<compile_context>
chip_gen: v7x
topology: tpu7x:2x2x1
jax: 0.10.0
libtpu: 0.0.40
codegen_flags: <defaults>
</compile_context>

<pallas_src>
import functools

import jax
import jax.numpy as jnp
from jax.experimental import pallas as pl
from jax.experimental.pallas import tpu as pltpu

EPS = 1e-5  # nn.BatchNorm2d default


# ----------------------------------------------------------------------------
# Kernel 1: fused [previous-layer BN + ReLU] -> 3x3 "same" conv -> per-channel
#           sum / sum-of-squares partials (for this layer's train-mode BN).
#
# Grid = (samples, Cout tiles).  Per sample (at ct == 0) the dense (H*W, Cin) input is
# BN(+ReLU)-ed and scattered into a zero-padded, halo-extended VMEM scratch of shape
# (P + 2*(Wp+1), Cin); every 3x3 tap is then a contiguous P-row slice of that scratch.
# ----------------------------------------------------------------------------
def _conv_bn_stats_kernel(x_ref, w_ref, scale_ref, shift_ref, y_ref, stats_ref, pad_ref,
                          *, H, W, apply_relu, fold_taps):
    Wp = W + 2
    P = (H + 2) * Wp
    pad_top = Wp + 1                      # halo rows so every tap slice stays in range
    ct = pl.program_id(1)

    # --- Stage 1 (once per sample): previous layer's BN (+ ReLU), scatter into the padded
    #     scratch.  The scratch is fully zeroed first so the conv's zero-padding ring and the
    #     +-Wp halo rows are exact zeros.  Reused across all Cout-tile steps of this sample
    #     (the Cout grid axis is "arbitrary", i.e. executed in order on one core).
    @pl.when(ct == 0)
    def _embed():
        a = x_ref[...].astype(jnp.float32) * scale_ref[...] + shift_ref[...]
        if apply_relu:
            a = jnp.maximum(a, 0.0)
        pad_ref[...] = jnp.zeros(pad_ref.shape, pad_ref.dtype)
        for r in range(H):
            pad_ref[pl.ds(pad_top + (r + 1) * Wp + 1, W), :] = a[r * W:(r + 1) * W, :]

    # --- Stage 2: 3x3 conv over the padded geometry.  Tap (ky, kx) of the padded output is the
    #     scratch row-slice starting at ky*Wp + kx; operands are cast to bf16 for the MXU with
    #     f32 accumulation.  The conv bias is dropped: train-mode BN cancels it exactly.
    def tap(ky, kx):
        return pad_ref[pl.ds(ky * Wp + kx, P), :]

    if fold_taps:
        # Thin-channel layers: fold all 9 taps into the contraction (K = 9*Cin) -> 1 matmul.
        a_cat = jnp.concatenate([tap(ky, kx) for ky in range(3) for kx in range(3)], axis=1)
        acc = jnp.dot(a_cat.astype(jnp.bfloat16), w_ref[...],
                      preferred_element_type=jnp.float32)
    else:
        acc = jnp.dot(tap(0, 0).astype(jnp.bfloat16), w_ref[0],
                      preferred_element_type=jnp.float32)
        for i in range(1, 9):
            ky, kx = divmod(i, 3)
            acc = acc + jnp.dot(tap(ky, kx).astype(jnp.bfloat16), w_ref[i],
                                preferred_element_type=jnp.float32)

    # --- Stage 3: extract the interior rows (drops the padding ring, so consumers get a dense
    #     (H*W, Cout) activation and the pool's pair-folding reshape stays a free bitcast),
    #     emit per-channel BN-stat partials from the f32 accumulator, store the activation bf16.
    inter = jnp.concatenate(
        [acc[(r + 1) * Wp + 1:(r + 1) * Wp + 1 + W, :] for r in range(H)], axis=0)
    s = jnp.sum(inter, axis=0, keepdims=True)            # XLU reduce; keeps f32 off the MXU
    ss = jnp.sum(inter * inter, axis=0, keepdims=True)
    stats_ref[...] = jnp.concatenate([s, ss], axis=0)
    y_ref[...] = inter.astype(y_ref.dtype)


def _conv_bn_stats(x, w_k, scale, shift, *, H, W, apply_relu, fold_taps):
    N, HW, cin = x.shape
    cout = w_k.shape[-1]
    Wp = W + 2
    P = (H + 2) * Wp
    Pe = P + 2 * (Wp + 1)                                 # halo-extended scratch rows

    tcout = 128 if cout % 128 == 0 else cout              # lane-dense Cout tiles when possible
    CT = cout // tcout

    # Derived VMEM budget (item 7): double-buffered blocks + resident scratch + in-kernel
    # temporaries, x2 plus headroom for Mosaic-internal scratch.  At this module's shapes the
    # result is ~24 MiB, well under v7x's 64 MiB physical VMEM; the cap allows larger tiles on
    # v5e/v6e (128 MiB).
    est = (2 * HW * cin * x.dtype.itemsize                # x block (double-buffered)
           + 2 * HW * tcout * 2                           # y block (bf16)
           + 2 * 2 * tcout * 4                            # stats block
           + 2 * 9 * cin * tcout * 2                      # weight block (bf16)
           + Pe * cin * 4                                 # padded scratch (f32)
           + P * tcout * 4                                # acc
           + HW * tcout * 8 + HW * cin * 4                # inter, inter^2, embed temp
           + (P * 9 * cin * 6 if fold_taps else P * cin * 6))   # tap / im2col temporaries
    vmem_limit = int(min(96 * 2**20, max(24 * 2**20, 2 * est + 8 * 2**20)))

    if fold_taps:
        w_spec = pl.BlockSpec((9 * cin, tcout), lambda n, c: (0, c))
    else:
        w_spec = pl.BlockSpec((9, cin, tcout), lambda n, c: (0, 0, c))

    kernel = functools.partial(_conv_bn_stats_kernel, H=H, W=W,
                               apply_relu=apply_relu, fold_taps=fold_taps)
    return pl.pallas_call(
        kernel,
        out_shape=(
            jax.ShapeDtypeStruct((N, HW, cout), jnp.bfloat16),   # pre-BN conv output (dense, bf16)
            jax.ShapeDtypeStruct((N, 2, cout), jnp.float32),     # per-sample BN stat partials
        ),
        grid=(N, CT),
        in_specs=[
            pl.BlockSpec((None, HW, cin), lambda n, c: (n, 0, 0)),   # one dense sample per step
            w_spec,                                                  # resident weight tile
            pl.BlockSpec((1, cin), lambda n, c: (0, 0)),             # prev-layer BN scale
            pl.BlockSpec((1, cin), lambda n, c: (0, 0)),             # prev-layer BN shift
        ],
        out_specs=(
            pl.BlockSpec((None, HW, tcout), lambda n, c: (n, 0, c)),
            pl.BlockSpec((None, 2, tcout), lambda n, c: (n, 0, c)),
        ),
        scratch_shapes=[pltpu.VMEM((Pe, cin), jnp.float32)],         # padded, halo-extended input
        compiler_params=pltpu.CompilerParams(
            # Samples shard across v7x's two TensorCores; the Cout-tile axis is serialized per
            # sample (it reuses the embedded scratch) but still pipelines block DMAs.
            dimension_semantics=("parallel", "arbitrary"),
            vmem_limit_bytes=vmem_limit,
        ),
    )(x, w_k, scale, shift)


# ----------------------------------------------------------------------------
# Kernel 2: fused [last-layer BN + ReLU] -> 2x2 max pool (stride 2).
# The conv output is already dense (N, H*W, C), so folding W-column pairs into the lane dim
# ((N, Ho, 2, Wo, 2C)) is a free metadata reshape in the wrapper — no HBM crop pass.
# ----------------------------------------------------------------------------
def _pool_bn_relu_kernel(x_ref, scale_ref, shift_ref, o_ref):
    # x_ref : (Ho, 2, Wo, 2C) bf16 pre-BN conv output, pairs folded; scale/shift: (1, 2C) f32
    # o_ref : (Ho, Wo, C) f32
    C = o_ref.shape[-1]
    scale = scale_ref[...].reshape(1, 1, 1, 2 * C)
    shift = shift_ref[...].reshape(1, 1, 1, 2 * C)
    a = jnp.maximum(x_ref[...].astype(jnp.float32) * scale + shift, 0.0)   # BN + ReLU
    hmax = jnp.maximum(a[:, 0], a[:, 1])                      # max over the H pair -> (Ho, Wo, 2C)
    o_ref[...] = jnp.maximum(hmax[:, :, :C], hmax[:, :, C:])  # max over the W pair


def _maxpool_bn_relu(y_folded, scale2, shift2):
    N, Ho, _, Wo, twoC = y_folded.shape
    C = twoC // 2
    return pl.pallas_call(
        _pool_bn_relu_kernel,
        out_shape=jax.ShapeDtypeStruct((N, Ho, Wo, C), jnp.float32),
        grid=(N,),
        in_specs=[
            pl.BlockSpec((None, Ho, 2, Wo, twoC), lambda n: (n, 0, 0, 0, 0)),
            pl.BlockSpec((1, twoC), lambda n: (0, 0)),
            pl.BlockSpec((1, twoC), lambda n: (0, 0)),
        ],
        out_specs=pl.BlockSpec((None, Ho, Wo, C), lambda n: (n, 0, 0, 0)),
        compiler_params=pltpu.CompilerParams(dimension_semantics=("parallel",)),
    )(y_folded, scale2, shift2)


# ----------------------------------------------------------------------------
# VGGBlock forward (PyTorch module in default .train() mode -> BN uses batch statistics).
# ----------------------------------------------------------------------------
def vgg_block_forward(x_nchw, params):
    N, cin, H, W = x_nchw.shape
    assert H % 2 == 0 and W % 2 == 0, "MaxPool2d(2) expects even spatial dims"
    HW = H * W
    n_elems = N * HW

    # NCHW -> dense flattened NHWC (the reshape after the transpose is free).
    x = jnp.transpose(x_nchw, (0, 2, 3, 1)).astype(jnp.float32).reshape(N, HW, cin)

    scale = jnp.ones((1, cin), jnp.float32)                   # identity "previous BN" for layer 0
    shift = jnp.zeros((1, cin), jnp.float32)
    apply_relu = False

    for (w_hwio, b, gamma, beta) in params:
        cin, cout = w_hwio.shape[2], w_hwio.shape[3]
        fold = (9 * cin) <= 256                               # thin-channel layers: im2col fold
        if fold:
            w_k = w_hwio.reshape(9 * cin, cout).astype(jnp.bfloat16)
        else:
            w_k = w_hwio.reshape(9, cin, cout).astype(jnp.bfloat16)

        y, stats = _conv_bn_stats(x, w_k, scale, shift, H=H, W=W,
                                  apply_relu=apply_relu, fold_taps=fold)

        s = jnp.sum(stats[:, 0, :], axis=0)                   # finalize stats across samples
        ss = jnp.sum(stats[:, 1, :], axis=0)
        mean = s / n_elems
        var = jnp.maximum(ss / n_elems - mean * mean, 0.0)    # clamp: E[x^2]-E[x]^2 cancellation
        inv = jax.lax.rsqrt(var + EPS)
        scale = (gamma * inv).reshape(1, cout)
        shift = (beta - mean * gamma * inv).reshape(1, cout)
        # NOTE: the conv bias `b` is intentionally unused — train-mode BN subtracts the batch
        # mean, which cancels a per-channel bias exactly.

        x = y                                                 # dense bf16 pre-BN activation
        apply_relu = True

    # Fused BN + ReLU + 2x2 maxpool on the last conv output.  The activation is already dense
    # (N, H*W, C), so folding (H,W) pairs into (Ho, 2, Wo, 2C) is a free metadata reshape.
    C = x.shape[-1]
    Ho, Wo = H // 2, W // 2
    y_folded = x.reshape(N, Ho, 2, Wo, 2 * C)
    scale2 = jnp.concatenate([scale, scale], axis=1)          # lane-folded channel params
    shift2 = jnp.concatenate([shift, shift], axis=1)
    pooled = _maxpool_bn_relu(y_folded, scale2, shift2)       # (N, Ho, Wo, C) f32
    return jnp.transpose(pooled, (0, 3, 1, 2))                # NHWC -> NCHW


# ----------------------------------------------------------------------------
# Pure-JAX reference for correctness checking (f32, highest precision).
# ----------------------------------------------------------------------------
def reference_forward(x_nchw, params):
    x = jnp.transpose(x_nchw, (0, 2, 3, 1)).astype(jnp.float32)
    for (w, b, gamma, beta) in params:
        y = jax.lax.conv_general_dilated(
            x, w, (1, 1), "SAME",
            dimension_numbers=("NHWC", "HWIO", "NHWC"),
            precision="highest") + b
        mean = jnp.mean(y, axis=(0, 1, 2))
        var = jnp.mean((y - mean) ** 2, axis=(0, 1, 2))
        y = (y - mean) * (gamma / jnp.sqrt(var + EPS)) + beta
        x = jnp.maximum(y, 0.0)
    N, H, W, C = x.shape
    pooled = x.reshape(N, H // 2, 2, W // 2, 2, C).max(axis=(2, 4))
    return jnp.transpose(pooled, (0, 3, 1, 2))


def init_params(key, size, in_channels, out_channels):
    """Deterministic synthetic parameters (shapes match nn.Conv2d / nn.BatchNorm2d)."""
    params = []
    cin = in_channels
    for _ in range(size):
        key, k1, k2, k3, k4 = jax.random.split(key, 5)
        w = 0.1 * jax.random.normal(k1, (3, 3, cin, out_channels), jnp.float32)   # HWIO
        b = 0.05 * jax.random.normal(k2, (out_channels,), jnp.float32)
        gamma = 1.0 + 0.1 * jax.random.normal(k3, (out_channels,), jnp.float32)
        beta = 0.1 * jax.random.normal(k4, (out_channels,), jnp.float32)
        params.append((w, b, gamma, beta))
        cin = out_channels
    return params


if __name__ == "__main__":
    key = jax.random.PRNGKey(0)
    forward = jax.jit(vgg_block_forward)

    # Test 1: shapes consistent with the module at toy size: VGGBlock(size=2, 4 -> 8) on 16x16.
    # Exercises the folded-tap (thin-channel) conv path.  NOTE: not a perf proxy (Cout=8 means
    # masked lane stores); tune with C >= 128.
    key, kx = jax.random.split(key)
    N, Cin, H, W = 2, 4, 16, 16
    size, Cout = 2, 8
    x = jax.random.normal(kx, (N, Cin, H, W), jnp.float32)
    params = init_params(key, size, Cin, Cout)
    out = jax.block_until_ready(forward(x, params))
    assert out.shape == (N, Cout, H // 2, W // 2), out.shape
    ref = reference_forward(x, params)
    err = float(jnp.max(jnp.abs(out - ref)))
    # bf16 MXU inputs + bf16 inter-layer activations vs an f32 "highest" reference.
    assert err < 1e-1, f"test1 mismatch vs reference: {err}"

    # Test 2: lane-dense channels (C=128) — exercises the 9-matmul wide-channel path and
    # unmasked 128-lane stores on a small 8x8 spatial grid.
    key, kx2 = jax.random.split(key)
    N2, C2, H2, W2 = 2, 128, 8, 8
    x2 = jax.random.normal(kx2, (N2, C2, H2, W2), jnp.float32)
    params2 = init_params(key, 2, C2, C2)
    out2 = jax.block_until_ready(forward(x2, params2))
    assert out2.shape == (N2, C2, H2 // 2, W2 // 2), out2.shape
    ref2 = reference_forward(x2, params2)
    err2 = float(jnp.max(jnp.abs(out2 - ref2)))
    # K = 9*128 bf16 contraction accumulates more operand-rounding error; tolerance sized for it.
    assert err2 < 2e-1, f"test2 mismatch vs reference: {err2}"

    print("KERNEL_OK")
</pallas_src>

<mosaic_0001>
module attributes {stable_mosaic.version = 11 : i64} {
  func.func @_conv_bn_stats_kernel(%arg0: i32, %arg1: i32, %arg2: memref<1x256x8xbf16, #tpu.memory_space<vmem>>, %arg3: memref<72x8xbf16, #tpu.memory_space<vmem>>, %arg4: memref<1x8xf32, #tpu.memory_space<vmem>>, %arg5: memref<1x8xf32, #tpu.memory_space<vmem>>, %arg6: memref<1x256x8xbf16, #tpu.memory_space<vmem>>, %arg7: memref<1x2x8xf32, #tpu.memory_space<vmem>>, %arg8: memref<362x8xf32, #tpu.memory_space<vmem>>) attributes {dimension_semantics = [#tpu.dimension_semantics<parallel>, #tpu.dimension_semantics<arbitrary>], iteration_bounds = array<i64: 2, 1>, scalar_prefetch = 0 : i64, scratch_operands = 1 : i64, tpu.core_type = #tpu.core_type<tc>, window_params = [{transform_indices = @transform_0, window_bounds = array<i64: 1, 256, 8>}, {transform_indices = @transform_1, window_bounds = array<i64: 72, 8>}, {pipeline_mode = #tpu.pipeline_mode<synchronous>, transform_indices = @transform_2, window_bounds = array<i64: 1, 8>}, {pipeline_mode = #tpu.pipeline_mode<synchronous>, transform_indices = @transform_3, window_bounds = array<i64: 1, 8>}, {transform_indices = @transform_4, window_bounds = array<i64: 1, 256, 8>}, {transform_indices = @transform_5, window_bounds = array<i64: 1, 2, 8>}]} {
    %c0_i32 = arith.constant 0 : i32
    %0 = arith.cmpi eq, %arg1, %c0_i32 : i32
    %1 = arith.extui %0 : i1 to i32
    %c0_i32_0 = arith.constant 0 : i32
    %2 = arith.cmpi ne, %1, %c0_i32_0 : i32
    scf.if %2 {
      %c0_20 = arith.constant 0 : index
      %c0_21 = arith.constant 0 : index
      %c0_22 = arith.constant 0 : index
      %46 = vector.load %arg2[%c0_20, %c0_21, %c0_22] : memref<1x256x8xbf16, #tpu.memory_space<vmem>>, vector<1x256x8xbf16>
      %47 = vector.shape_cast %46 : vector<1x256x8xbf16> to vector<256x8xbf16>
      %48 = arith.extf %47 : vector<256x8xbf16> to vector<256x8xf32>
      %c0_23 = arith.constant 0 : index
      %c0_24 = arith.constant 0 : index
      %49 = vector.load %arg4[%c0_23, %c0_24] : memref<1x8xf32, #tpu.memory_space<vmem>>, vector<1x8xf32>
      %50 = vector.broadcast %49 : vector<1x8xf32> to vector<256x8xf32>
      %51 = arith.mulf %48, %50 : vector<256x8xf32>
      %c0_25 = arith.constant 0 : index
      %c0_26 = arith.constant 0 : index
      %52 = vector.load %arg5[%c0_25, %c0_26] : memref<1x8xf32, #tpu.memory_space<vmem>>, vector<1x8xf32>
      %53 = vector.broadcast %52 : vector<1x8xf32> to vector<256x8xf32>
      %54 = arith.addf %51, %53 : vector<256x8xf32>
      %cst_27 = arith.constant 0.000000e+00 : f32
      %55 = vector.broadcast %cst_27 : f32 to vector<256x8xf32>
      %56 = arith.maximumf %54, %55 : vector<256x8xf32>
      %cst_28 = arith.constant 0.000000e+00 : f32
      %57 = vector.broadcast %cst_28 : f32 to vector<362x8xf32>
      %c0_29 = arith.constant 0 : index
      %c0_30 = arith.constant 0 : index
      %58 = vector.load %arg8[%c0_29, %c0_30] : memref<362x8xf32, #tpu.memory_space<vmem>>, vector<362x8xf32>
      tpu.vector_store %arg8[%c0_29, %c0_30], %57 {strides = array<i32>} : memref<362x8xf32, #tpu.memory_space<vmem>>, vector<362x8xf32>,
      %59 = vector.extract_strided_slice %56 {offsets = [0, 0], sizes = [16, 8], strides = [1, 1]} : vector<256x8xf32> to vector<16x8xf32>
      %c38_31 = arith.constant 38 : index
      %c0_32 = arith.constant 0 : index
      %60 = vector.load %arg8[%c38_31, %c0_32] : memref<362x8xf32, #tpu.memory_space<vmem>>, vector<16x8xf32>
      tpu.vector_store %arg8[%c38_31, %c0_32], %59 {strides = array<i32>} : memref<362x8xf32, #tpu.memory_space<vmem>>, vector<16x8xf32>,
      %61 = vector.extract_strided_slice %56 {offsets = [16, 0], sizes = [16, 8], strides = [1, 1]} : vector<256x8xf32> to vector<16x8xf32>
      %c56 = arith.constant 56 : index
      %c0_33 = arith.constant 0 : index
      %62 = vector.load %arg8[%c56, %c0_33] : memref<362x8xf32, #tpu.memory_space<vmem>>, vector<16x8xf32>
      tpu.vector_store %arg8[%c56, %c0_33], %61 {strides = array<i32>} : memref<362x8xf32, #tpu.memory_space<vmem>>, vector<16x8xf32>,
      %63 = vector.extract_strided_slice %56 {offsets = [32, 0], sizes = [16, 8], strides = [1, 1]} : vector<256x8xf32> to vector<16x8xf32>
      %c74 = arith.constant 74 : index
      %c0_34 = arith.constant 0 : index
      %64 = vector.load %arg8[%c74, %c0_34] : memref<362x8xf32, #tpu.memory_space<vmem>>, vector<16x8xf32>
      tpu.vector_store %arg8[%c74, %c0_34], %63 {strides = array<i32>} : memref<362x8xf32, #tpu.memory_space<vmem>>, vector<16x8xf32>,
      %65 = vector.extract_strided_slice %56 {offsets = [48, 0], sizes = [16, 8], strides = [1, 1]} : vector<256x8xf32> to vector<16x8xf32>
      %c92 = arith.constant 92 : index
      %c0_35 = arith.constant 0 : index
      %66 = vector.load %arg8[%c92, %c0_35] : memref<362x8xf32, #tpu.memory_space<vmem>>, vector<16x8xf32>
      tpu.vector_store %arg8[%c92, %c0_35], %65 {strides = array<i32>} : memref<362x8xf32, #tpu.memory_space<vmem>>, vector<16x8xf32>,
      %67 = vector.extract_strided_slice %56 {offsets = [64, 0], sizes = [16, 8], strides = [1, 1]} : vector<256x8xf32> to vector<16x8xf32>
      %c110 = arith.constant 110 : index
      %c0_36 = arith.constant 0 : index
      %68 = vector.load %arg8[%c110, %c0_36] : memref<362x8xf32, #tpu.memory_space<vmem>>, vector<16x8xf32>
      tpu.vector_store %arg8[%c110, %c0_36], %67 {strides = array<i32>} : memref<362x8xf32, #tpu.memory_space<vmem>>, vector<16x8xf32>,
      %69 = vector.extract_strided_slice %56 {offsets = [80, 0], sizes = [16, 8], strides = [1, 1]} : vector<256x8xf32> to vector<16x8xf32>
      %c128 = arith.constant 128 : index
      %c0_37 = arith.constant 0 : index
      %70 = vector.load %arg8[%c128, %c0_37] : memref<362x8xf32, #tpu.memory_space<vmem>>, vector<16x8xf32>
      tpu.vector_store %arg8[%c128, %c0_37], %69 {strides = array<i32>} : memref<362x8xf32, #tpu.memory_space<vmem>>, vector<16x8xf32>,
      %71 = vector.extract_strided_slice %56 {offsets = [96, 0], sizes = [16, 8], strides = [1, 1]} : vector<256x8xf32> to vector<16x8xf32>
      %c146 = arith.constant 146 : index
      %c0_38 = arith.constant 0 : index
      %72 = vector.load %arg8[%c146, %c0_38] : memref<362x8xf32, #tpu.memory_space<vmem>>, vector<16x8xf32>
      tpu.vector_store %arg8[%c146, %c0_38], %71 {strides = array<i32>} : memref<362x8xf32, #tpu.memory_space<vmem>>, vector<16x8xf32>,
      %73 = vector.extract_strided_slice %56 {offsets = [112, 0], sizes = [16, 8], strides = [1, 1]} : vector<256x8xf32> to vector<16x8xf32>
      %c164 = arith.constant 164 : index
      %c0_39 = arith.constant 0 : index
      %74 = vector.load %arg8[%c164, %c0_39] : memref<362x8xf32, #tpu.memory_space<vmem>>, vector<16x8xf32>
      tpu.vector_store %arg8[%c164, %c0_39], %73 {strides = array<i32>} : memref<362x8xf32, #tpu.memory_space<vmem>>, vector<16x8xf32>,
      %75 = vector.extract_strided_slice %56 {offsets = [128, 0], sizes = [16, 8], strides = [1, 1]} : vector<256x8xf32> to vector<16x8xf32>
      %c182 = arith.constant 182 : index
      %c0_40 = arith.constant 0 : index
      %76 = vector.load %arg8[%c182, %c0_40] : memref<362x8xf32, #tpu.memory_space<vmem>>, vector<16x8xf32>
      tpu.vector_store %arg8[%c182, %c0_40], %75 {strides = array<i32>} : memref<362x8xf32, #tpu.memory_space<vmem>>, vector<16x8xf32>,
      %77 = vector.extract_strided_slice %56 {offsets = [144, 0], sizes = [16, 8], strides = [1, 1]} : vector<256x8xf32> to vector<16x8xf32>
      %c200 = arith.constant 200 : index
      %c0_41 = arith.constant 0 : index
      %78 = vector.load %arg8[%c200, %c0_41] : memref<362x8xf32, #tpu.memory_space<vmem>>, vector<16x8xf32>
      tpu.vector_store %arg8[%c200, %c0_41], %77 {strides = array<i32>} : memref<362x8xf32, #tpu.memory_space<vmem>>, vector<16x8xf32>,
      %79 = vector.extract_strided_slice %56 {offsets = [160, 0], sizes = [16, 8], strides = [1, 1]} : vector<256x8xf32> to vector<16x8xf32>
      %c218 = arith.constant 218 : index
      %c0_42 = arith.constant 0 : index
      %80 = vector.load %arg8[%c218, %c0_42] : memref<362x8xf32, #tpu.memory_space<vmem>>, vector<16x8xf32>
      tpu.vector_store %arg8[%c218, %c0_42], %79 {strides = array<i32>} : memref<362x8xf32, #tpu.memory_space<vmem>>, vector<16x8xf32>,
      %81 = vector.extract_strided_slice %56 {offsets = [176, 0], sizes = [16, 8], strides = [1, 1]} : vector<256x8xf32> to vector<16x8xf32>
      %c236 = arith.constant 236 : index
      %c0_43 = arith.constant 0 : index
      %82 = vector.load %arg8[%c236, %c0_43] : memref<362x8xf32, #tpu.memory_space<vmem>>, vector<16x8xf32>
      tpu.vector_store %arg8[%c236, %c0_43], %81 {strides = array<i32>} : memref<362x8xf32, #tpu.memory_space<vmem>>, vector<16x8xf32>,
      %83 = vector.extract_strided_slice %56 {offsets = [192, 0], sizes = [16, 8], strides = [1, 1]} : vector<256x8xf32> to vector<16x8xf32>
      %c254 = arith.constant 254 : index
      %c0_44 = arith.constant 0 : index
      %84 = vector.load %arg8[%c254, %c0_44] : memref<362x8xf32, #tpu.memory_space<vmem>>, vector<16x8xf32>
      tpu.vector_store %arg8[%c254, %c0_44], %83 {strides = array<i32>} : memref<362x8xf32, #tpu.memory_space<vmem>>, vector<16x8xf32>,
      %85 = vector.extract_strided_slice %56 {offsets = [208, 0], sizes = [16, 8], strides = [1, 1]} : vector<256x8xf32> to vector<16x8xf32>
      %c272 = arith.constant 272 : index
      %c0_45 = arith.constant 0 : index
      %86 = vector.load %arg8[%c272, %c0_45] : memref<362x8xf32, #tpu.memory_space<vmem>>, vector<16x8xf32>
      tpu.vector_store %arg8[%c272, %c0_45], %85 {strides = array<i32>} : memref<362x8xf32, #tpu.memory_space<vmem>>, vector<16x8xf32>,
      %87 = vector.extract_strided_slice %56 {offsets = [224, 0], sizes = [16, 8], strides = [1, 1]} : vector<256x8xf32> to vector<16x8xf32>
      %c290 = arith.constant 290 : index
      %c0_46 = arith.constant 0 : index
      %88 = vector.load %arg8[%c290, %c0_46] : memref<362x8xf32, #tpu.memory_space<vmem>>, vector<16x8xf32>
      tpu.vector_store %arg8[%c290, %c0_46], %87 {strides = array<i32>} : memref<362x8xf32, #tpu.memory_space<vmem>>, vector<16x8xf32>,
      %89 = vector.extract_strided_slice %56 {offsets = [240, 0], sizes = [16, 8], strides = [1, 1]} : vector<256x8xf32> to vector<16x8xf32>
      %c308 = arith.constant 308 : index
      %c0_47 = arith.constant 0 : index
      %90 = vector.load %arg8[%c308, %c0_47] : memref<362x8xf32, #tpu.memory_space<vmem>>, vector<16x8xf32>
      tpu.vector_store %arg8[%c308, %c0_47], %89 {strides = array<i32>} : memref<362x8xf32, #tpu.memory_space<vmem>>, vector<16x8xf32>,
    } else {
    }
    %c0 = arith.constant 0 : index
    %c0_1 = arith.constant 0 : index
    %3 = vector.load %arg8[%c0, %c0_1] : memref<362x8xf32, #tpu.memory_space<vmem>>, vector<324x8xf32>
    %c1 = arith.constant 1 : index
    %c0_2 = arith.constant 0 : index
    %4 = vector.load %arg8[%c1, %c0_2] : memref<362x8xf32, #tpu.memory_space<vmem>>, vector<324x8xf32>
    %c2 = arith.constant 2 : index
    %c0_3 = arith.constant 0 : index
    %5 = vector.load %arg8[%c2, %c0_3] : memref<362x8xf32, #tpu.memory_space<vmem>>, vector<324x8xf32>
    %c18 = arith.constant 18 : index
    %c0_4 = arith.constant 0 : index
    %6 = vector.load %arg8[%c18, %c0_4] : memref<362x8xf32, #tpu.memory_space<vmem>>, vector<324x8xf32>
    %c19 = arith.constant 19 : index
    %c0_5 = arith.constant 0 : index
    %7 = vector.load %arg8[%c19, %c0_5] : memref<362x8xf32, #tpu.memory_space<vmem>>, vector<324x8xf32>
    %c20 = arith.constant 20 : index
    %c0_6 = arith.constant 0 : index
    %8 = vector.load %arg8[%c20, %c0_6] : memref<362x8xf32, #tpu.memory_space<vmem>>, vector<324x8xf32>
    %c36 = arith.constant 36 : index
    %c0_7 = arith.constant 0 : index
    %9 = vector.load %arg8[%c36, %c0_7] : memref<362x8xf32, #tpu.memory_space<vmem>>, vector<324x8xf32>
    %c37 = arith.constant 37 : index
    %c0_8 = arith.constant 0 : index
    %10 = vector.load %arg8[%c37, %c0_8] : memref<362x8xf32, #tpu.memory_space<vmem>>, vector<324x8xf32>
    %c38 = arith.constant 38 : index
    %c0_9 = arith.constant 0 : index
    %11 = vector.load %arg8[%c38, %c0_9] : memref<362x8xf32, #tpu.memory_space<vmem>>, vector<324x8xf32>
    %12 = tpu.concatenate %3, %4, %5, %6, %7, %8, %9, %10, %11 in 1 : vector<324x8xf32>, vector<324x8xf32>, vector<324x8xf32>, vector<324x8xf32>, vector<324x8xf32>, vector<324x8xf32>, vector<324x8xf32>, vector<324x8xf32>, vector<324x8xf32> -> vector<324x72xf32>
    %13 = arith.truncf %12 : vector<324x72xf32> to vector<324x72xbf16>
    %c0_10 = arith.constant 0 : index
    %c0_11 = arith.constant 0 : index
    %14 = vector.load %arg3[%c0_10, %c0_11] : memref<72x8xbf16, #tpu.memory_space<vmem>>, vector<72x8xbf16>
    %cst = arith.constant dense<0.000000e+00> : vector<324x8xf32>
    %15 = tpu.matmul %13, %14, %cst {dimension_numbers = #tpu.dot_dimension_numbers<[1], [0], [0], [1], [0, 0, 1, 1], [], []>} : vector<324x72xbf16>, vector<72x8xbf16>, vector<324x8xf32> -> vector<324x8xf32>
    %16 = vector.extract_strided_slice %15 {offsets = [19, 0], sizes = [16, 8], strides = [1, 1]} : vector<324x8xf32> to vector<16x8xf32>
    %17 = vector.extract_strided_slice %15 {offsets = [37, 0], sizes = [16, 8], strides = [1, 1]} : vector<324x8xf32> to vector<16x8xf32>
    %18 = vector.extract_strided_slice %15 {offsets = [55, 0], sizes = [16, 8], strides = [1, 1]} : vector<324x8xf32> to vector<16x8xf32>
    %19 = vector.extract_strided_slice %15 {offsets = [73, 0], sizes = [16, 8], strides = [1, 1]} : vector<324x8xf32> to vector<16x8xf32>
    %20 = vector.extract_strided_slice %15 {offsets = [91, 0], sizes = [16, 8], strides = [1, 1]} : vector<324x8xf32> to vector<16x8xf32>
    %21 = vector.extract_strided_slice %15 {offsets = [109, 0], sizes = [16, 8], strides = [1, 1]} : vector<324x8xf32> to vector<16x8xf32>
    %22 = vector.extract_strided_slice %15 {offsets = [127, 0], sizes = [16, 8], strides = [1, 1]} : vector<324x8xf32> to vector<16x8xf32>
    %23 = vector.extract_strided_slice %15 {offsets = [145, 0], sizes = [16, 8], strides = [1, 1]} : vector<324x8xf32> to vector<16x8xf32>
    %24 = vector.extract_strided_slice %15 {offsets = [163, 0], sizes = [16, 8], strides = [1, 1]} : vector<324x8xf32> to vector<16x8xf32>
    %25 = vector.extract_strided_slice %15 {offsets = [181, 0], sizes = [16, 8], strides = [1, 1]} : vector<324x8xf32> to vector<16x8xf32>
    %26 = vector.extract_strided_slice %15 {offsets = [199, 0], sizes = [16, 8], strides = [1, 1]} : vector<324x8xf32> to vector<16x8xf32>
    %27 = vector.extract_strided_slice %15 {offsets = [217, 0], sizes = [16, 8], strides = [1, 1]} : vector<324x8xf32> to vector<16x8xf32>
    %28 = vector.extract_strided_slice %15 {offsets = [235, 0], sizes = [16, 8], strides = [1, 1]} : vector<324x8xf32> to vector<16x8xf32>
    %29 = vector.extract_strided_slice %15 {offsets = [253, 0], sizes = [16, 8], strides = [1, 1]} : vector<324x8xf32> to vector<16x8xf32>
    %30 = vector.extract_strided_slice %15 {offsets = [271, 0], sizes = [16, 8], strides = [1, 1]} : vector<324x8xf32> to vector<16x8xf32>
    %31 = vector.extract_strided_slice %15 {offsets = [289, 0], sizes = [16, 8], strides = [1, 1]} : vector<324x8xf32> to vector<16x8xf32>
    %32 = tpu.concatenate %16, %17, %18, %19, %20, %21, %22, %23, %24, %25, %26, %27, %28, %29, %30, %31 in 0 : vector<16x8xf32>, vector<16x8xf32>, vector<16x8xf32>, vector<16x8xf32>, vector<16x8xf32>, vector<16x8xf32>, vector<16x8xf32>, vector<16x8xf32>, vector<16x8xf32>, vector<16x8xf32>, vector<16x8xf32>, vector<16x8xf32>, vector<16x8xf32>, vector<16x8xf32>, vector<16x8xf32>, vector<16x8xf32> -> vector<256x8xf32>
    %cst_12 = arith.constant dense<0.000000e+00> : vector<8xf32>
    %33 = vector.multi_reduction <add>, %32, %cst_12 [0] : vector<256x8xf32> to vector<8xf32>
    %34 = vector.shape_cast %33 : vector<8xf32> to vector<1x8xf32>
    %35 = arith.mulf %32, %32 : vector<256x8xf32>
    %cst_13 = arith.constant dense<0.000000e+00> : vector<8xf32>
    %36 = vector.multi_reduction <add>, %35, %cst_13 [0] : vector<256x8xf32> to vector<8xf32>
    %37 = vector.shape_cast %36 : vector<8xf32> to vector<1x8xf32>
    %38 = tpu.concatenate %34, %37 in 0 : vector<1x8xf32>, vector<1x8xf32> -> vector<2x8xf32>
    %c0_14 = arith.constant 0 : index
    %c0_15 = arith.constant 0 : index
    %c0_16 = arith.constant 0 : index
    %39 = vector.load %arg7[%c0_14, %c0_15, %c0_16] : memref<1x2x8xf32, #tpu.memory_space<vmem>>, vector<1x2x8xf32>
    %40 = vector.shape_cast %39 : vector<1x2x8xf32> to vector<2x8xf32>
    %41 = vector.shape_cast %38 : vector<2x8xf32> to vector<1x2x8xf32>
    tpu.vector_store %arg7[%c0_14, %c0_15, %c0_16], %41 {strides = array<i32>} : memref<1x2x8xf32, #tpu.memory_space<vmem>>, vector<1x2x8xf32>,
    %42 = arith.truncf %32 : vector<256x8xf32> to vector<256x8xbf16>
    %c0_17 = arith.constant 0 : index
    %c0_18 = arith.constant 0 : index
    %c0_19 = arith.constant 0 : index
    %43 = vector.load %arg6[%c0_17, %c0_18, %c0_19] : memref<1x256x8xbf16, #tpu.memory_space<vmem>>, vector<1x256x8xbf16>
    %44 = vector.shape_cast %43 : vector<1x256x8xbf16> to vector<256x8xbf16>
    %45 = vector.shape_cast %42 : vector<256x8xbf16> to vector<1x256x8xbf16>
    tpu.vector_store %arg6[%c0_17, %c0_18, %c0_19], %45 {strides = array<i32>} : memref<1x256x8xbf16, #tpu.memory_space<vmem>>, vector<1x256x8xbf16>,
    return
  }
  func.func @transform_0(%arg0: i32, %arg1: i32) -> (i32, i32, i32) {
    %c0_i32 = arith.constant 0 : i32
    %c0_i32_0 = arith.constant 0 : i32
    %c0_i32_1 = arith.constant 0 : i32
    return %arg0, %c0_i32, %c0_i32_0 : i32, i32, i32
  }
  func.func @transform_1(%arg0: i32, %arg1: i32) -> (i32, i32) {
    %c0_i32 = arith.constant 0 : i32
    %c0_i32_0 = arith.constant 0 : i32
    return %c0_i32, %arg1 : i32, i32
  }
  func.func @transform_2(%arg0: i32, %arg1: i32) -> (i32, i32) {
    %c0_i32 = arith.constant 0 : i32
    %c0_i32_0 = arith.constant 0 : i32
    %c0_i32_1 = arith.constant 0 : i32
    return %c0_i32, %c0_i32_0 : i32, i32
  }
  func.func @transform_3(%arg0: i32, %arg1: i32) -> (i32, i32) {
    %c0_i32 = arith.constant 0 : i32
    %c0_i32_0 = arith.constant 0 : i32
    %c0_i32_1 = arith.constant 0 : i32
    return %c0_i32, %c0_i32_0 : i32, i32
  }
  func.func @transform_4(%arg0: i32, %arg1: i32) -> (i32, i32, i32) {
    %c0_i32 = arith.constant 0 : i32
    %c0_i32_0 = arith.constant 0 : i32
    return %arg0, %c0_i32, %arg1 : i32, i32, i32
  }
  func.func @transform_5(%arg0: i32, %arg1: i32) -> (i32, i32, i32) {
    %c0_i32 = arith.constant 0 : i32
    %c0_i32_0 = arith.constant 0 : i32
    return %arg0, %c0_i32, %arg1 : i32, i32, i32
  }
}

module attributes {stable_mosaic.version = 11 : i64} {
  func.func @_conv_bn_stats_kernel(%arg0: i32, %arg1: i32, %arg2: memref<1x256x4xf32, #tpu.memory_space<vmem>>, %arg3: memref<36x8xbf16, #tpu.memory_space<vmem>>, %arg4: memref<1x4xf32, #tpu.memory_space<vmem>>, %arg5: memref<1x4xf32, #tpu.memory_space<vmem>>, %arg6: memref<1x256x8xbf16, #tpu.memory_space<vmem>>, %arg7: memref<1x2x8xf32, #tpu.memory_space<vmem>>, %arg8: memref<362x4xf32, #tpu.memory_space<vmem>>) attributes {dimension_semantics = [#tpu.dimension_semantics<parallel>, #tpu.dimension_semantics<arbitrary>], iteration_bounds = array<i64: 2, 1>, scalar_prefetch = 0 : i64, scratch_operands = 1 : i64, tpu.core_type = #tpu.core_type<tc>, window_params = [{transform_indices = @transform_0, window_bounds = array<i64: 1, 256, 4>}, {transform_indices = @transform_1, window_bounds = array<i64: 36, 8>}, {pipeline_mode = #tpu.pipeline_mode<synchronous>, transform_indices = @transform_2, window_bounds = array<i64: 1, 4>}, {pipeline_mode = #tpu.pipeline_mode<synchronous>, transform_indices = @transform_3, window_bounds = array<i64: 1, 4>}, {transform_indices = @transform_4, window_bounds = array<i64: 1, 256, 8>}, {transform_indices = @transform_5, window_bounds = array<i64: 1, 2, 8>}]} {
    %c0_i32 = arith.constant 0 : i32
    %0 = arith.cmpi eq, %arg1, %c0_i32 : i32
    %1 = arith.extui %0 : i1 to i32
    %c0_i32_0 = arith.constant 0 : i32
    %2 = arith.cmpi ne, %1, %c0_i32_0 : i32
    scf.if %2 {
      %c0_20 = arith.constant 0 : index
      %c0_21 = arith.constant 0 : index
      %c0_22 = arith.constant 0 : index
      %46 = vector.load %arg2[%c0_20, %c0_21, %c0_22] : memref<1x256x4xf32, #tpu.memory_space<vmem>>, vector<1x256x4xf32>
      %47 = vector.shape_cast %46 : vector<1x256x4xf32> to vector<256x4xf32>
      %c0_23 = arith.constant 0 : index
      %c0_24 = arith.constant 0 : index
      %48 = vector.load %arg4[%c0_23, %c0_24] : memref<1x4xf32, #tpu.memory_space<vmem>>, vector<1x4xf32>
      %49 = vector.broadcast %48 : vector<1x4xf32> to vector<256x4xf32>
      %50 = arith.mulf %47, %49 : vector<256x4xf32>
      %c0_25 = arith.constant 0 : index
      %c0_26 = arith.constant 0 : index
      %51 = vector.load %arg5[%c0_25, %c0_26] : memref<1x4xf32, #tpu.memory_space<vmem>>, vector<1x4xf32>
      %52 = vector.broadcast %51 : vector<1x4xf32> to vector<256x4xf32>
      %53 = arith.addf %50, %52 : vector<256x4xf32>
      %cst_27 = arith.constant 0.000000e+00 : f32
      %54 = vector.broadcast %cst_27 : f32 to vector<362x4xf32>
      %c0_28 = arith.constant 0 : index
      %c0_29 = arith.constant 0 : index
      %55 = vector.load %arg8[%c0_28, %c0_29] : memref<362x4xf32, #tpu.memory_space<vmem>>, vector<362x4xf32>
      tpu.vector_store %arg8[%c0_28, %c0_29], %54 {strides = array<i32>} : memref<362x4xf32, #tpu.memory_space<vmem>>, vector<362x4xf32>,
      %56 = vector.extract_strided_slice %53 {offsets = [0, 0], sizes = [16, 4], strides = [1, 1]} : vector<256x4xf32> to vector<16x4xf32>
      %c38_30 = arith.constant 38 : index
      %c0_31 = arith.constant 0 : index
      %57 = vector.load %arg8[%c38_30, %c0_31] : memref<362x4xf32, #tpu.memory_space<vmem>>, vector<16x4xf32>
      tpu.vector_store %arg8[%c38_30, %c0_31], %56 {strides = array<i32>} : memref<362x4xf32, #tpu.memory_space<vmem>>, vector<16x4xf32>,
      %58 = vector.extract_strided_slice %53 {offsets = [16, 0], sizes = [16, 4], strides = [1, 1]} : vector<256x4xf32> to vector<16x4xf32>
      %c56 = arith.constant 56 : index
      %c0_32 = arith.constant 0 : index
      %59 = vector.load %arg8[%c56, %c0_32] : memref<362x4xf32, #tpu.memory_space<vmem>>, vector<16x4xf32>
      tpu.vector_store %arg8[%c56, %c0_32], %58 {strides = array<i32>} : memref<362x4xf32, #tpu.memory_space<vmem>>, vector<16x4xf32>,
      %60 = vector.extract_strided_slice %53 {offsets = [32, 0], sizes = [16, 4], strides = [1, 1]} : vector<256x4xf32> to vector<16x4xf32>
      %c74 = arith.constant 74 : index
      %c0_33 = arith.constant 0 : index
      %61 = vector.load %arg8[%c74, %c0_33] : memref<362x4xf32, #tpu.memory_space<vmem>>, vector<16x4xf32>
      tpu.vector_store %arg8[%c74, %c0_33], %60 {strides = array<i32>} : memref<362x4xf32, #tpu.memory_space<vmem>>, vector<16x4xf32>,
      %62 = vector.extract_strided_slice %53 {offsets = [48, 0], sizes = [16, 4], strides = [1, 1]} : vector<256x4xf32> to vector<16x4xf32>
      %c92 = arith.constant 92 : index
      %c0_34 = arith.constant 0 : index
      %63 = vector.load %arg8[%c92, %c0_34] : memref<362x4xf32, #tpu.memory_space<vmem>>, vector<16x4xf32>
      tpu.vector_store %arg8[%c92, %c0_34], %62 {strides = array<i32>} : memref<362x4xf32, #tpu.memory_space<vmem>>, vector<16x4xf32>,
      %64 = vector.extract_strided_slice %53 {offsets = [64, 0], sizes = [16, 4], strides = [1, 1]} : vector<256x4xf32> to vector<16x4xf32>
      %c110 = arith.constant 110 : index
      %c0_35 = arith.constant 0 : index
      %65 = vector.load %arg8[%c110, %c0_35] : memref<362x4xf32, #tpu.memory_space<vmem>>, vector<16x4xf32>
      tpu.vector_store %arg8[%c110, %c0_35], %64 {strides = array<i32>} : memref<362x4xf32, #tpu.memory_space<vmem>>, vector<16x4xf32>,
      %66 = vector.extract_strided_slice %53 {offsets = [80, 0], sizes = [16, 4], strides = [1, 1]} : vector<256x4xf32> to vector<16x4xf32>
      %c128 = arith.constant 128 : index
      %c0_36 = arith.constant 0 : index
      %67 = vector.load %arg8[%c128, %c0_36] : memref<362x4xf32, #tpu.memory_space<vmem>>, vector<16x4xf32>
      tpu.vector_store %arg8[%c128, %c0_36], %66 {strides = array<i32>} : memref<362x4xf32, #tpu.memory_space<vmem>>, vector<16x4xf32>,
      %68 = vector.extract_strided_slice %53 {offsets = [96, 0], sizes = [16, 4], strides = [1, 1]} : vector<256x4xf32> to vector<16x4xf32>
      %c146 = arith.constant 146 : index
      %c0_37 = arith.constant 0 : index
      %69 = vector.load %arg8[%c146, %c0_37] : memref<362x4xf32, #tpu.memory_space<vmem>>, vector<16x4xf32>
      tpu.vector_store %arg8[%c146, %c0_37], %68 {strides = array<i32>} : memref<362x4xf32, #tpu.memory_space<vmem>>, vector<16x4xf32>,
      %70 = vector.extract_strided_slice %53 {offsets = [112, 0], sizes = [16, 4], strides = [1, 1]} : vector<256x4xf32> to vector<16x4xf32>
      %c164 = arith.constant 164 : index
      %c0_38 = arith.constant 0 : index
      %71 = vector.load %arg8[%c164, %c0_38] : memref<362x4xf32, #tpu.memory_space<vmem>>, vector<16x4xf32>
      tpu.vector_store %arg8[%c164, %c0_38], %70 {strides = array<i32>} : memref<362x4xf32, #tpu.memory_space<vmem>>, vector<16x4xf32>,
      %72 = vector.extract_strided_slice %53 {offsets = [128, 0], sizes = [16, 4], strides = [1, 1]} : vector<256x4xf32> to vector<16x4xf32>
      %c182 = arith.constant 182 : index
      %c0_39 = arith.constant 0 : index
      %73 = vector.load %arg8[%c182, %c0_39] : memref<362x4xf32, #tpu.memory_space<vmem>>, vector<16x4xf32>
      tpu.vector_store %arg8[%c182, %c0_39], %72 {strides = array<i32>} : memref<362x4xf32, #tpu.memory_space<vmem>>, vector<16x4xf32>,
      %74 = vector.extract_strided_slice %53 {offsets = [144, 0], sizes = [16, 4], strides = [1, 1]} : vector<256x4xf32> to vector<16x4xf32>
      %c200 = arith.constant 200 : index
      %c0_40 = arith.constant 0 : index
      %75 = vector.load %arg8[%c200, %c0_40] : memref<362x4xf32, #tpu.memory_space<vmem>>, vector<16x4xf32>
      tpu.vector_store %arg8[%c200, %c0_40], %74 {strides = array<i32>} : memref<362x4xf32, #tpu.memory_space<vmem>>, vector<16x4xf32>,
      %76 = vector.extract_strided_slice %53 {offsets = [160, 0], sizes = [16, 4], strides = [1, 1]} : vector<256x4xf32> to vector<16x4xf32>
      %c218 = arith.constant 218 : index
      %c0_41 = arith.constant 0 : index
      %77 = vector.load %arg8[%c218, %c0_41] : memref<362x4xf32, #tpu.memory_space<vmem>>, vector<16x4xf32>
      tpu.vector_store %arg8[%c218, %c0_41], %76 {strides = array<i32>} : memref<362x4xf32, #tpu.memory_space<vmem>>, vector<16x4xf32>,
      %78 = vector.extract_strided_slice %53 {offsets = [176, 0], sizes = [16, 4], strides = [1, 1]} : vector<256x4xf32> to vector<16x4xf32>
      %c236 = arith.constant 236 : index
      %c0_42 = arith.constant 0 : index
      %79 = vector.load %arg8[%c236, %c0_42] : memref<362x4xf32, #tpu.memory_space<vmem>>, vector<16x4xf32>
      tpu.vector_store %arg8[%c236, %c0_42], %78 {strides = array<i32>} : memref<362x4xf32, #tpu.memory_space<vmem>>, vector<16x4xf32>,
      %80 = vector.extract_strided_slice %53 {offsets = [192, 0], sizes = [16, 4], strides = [1, 1]} : vector<256x4xf32> to vector<16x4xf32>
      %c254 = arith.constant 254 : index
      %c0_43 = arith.constant 0 : index
      %81 = vector.load %arg8[%c254, %c0_43] : memref<362x4xf32, #tpu.memory_space<vmem>>, vector<16x4xf32>
      tpu.vector_store %arg8[%c254, %c0_43], %80 {strides = array<i32>} : memref<362x4xf32, #tpu.memory_space<vmem>>, vector<16x4xf32>,
      %82 = vector.extract_strided_slice %53 {offsets = [208, 0], sizes = [16, 4], strides = [1, 1]} : vector<256x4xf32> to vector<16x4xf32>
      %c272 = arith.constant 272 : index
      %c0_44 = arith.constant 0 : index
      %83 = vector.load %arg8[%c272, %c0_44] : memref<362x4xf32, #tpu.memory_space<vmem>>, vector<16x4xf32>
      tpu.vector_store %arg8[%c272, %c0_44], %82 {strides = array<i32>} : memref<362x4xf32, #tpu.memory_space<vmem>>, vector<16x4xf32>,
      %84 = vector.extract_strided_slice %53 {offsets = [224, 0], sizes = [16, 4], strides = [1, 1]} : vector<256x4xf32> to vector<16x4xf32>
      %c290 = arith.constant 290 : index
      %c0_45 = arith.constant 0 : index
      %85 = vector.load %arg8[%c290, %c0_45] : memref<362x4xf32, #tpu.memory_space<vmem>>, vector<16x4xf32>
      tpu.vector_store %arg8[%c290, %c0_45], %84 {strides = array<i32>} : memref<362x4xf32, #tpu.memory_space<vmem>>, vector<16x4xf32>,
      %86 = vector.extract_strided_slice %53 {offsets = [240, 0], sizes = [16, 4], strides = [1, 1]} : vector<256x4xf32> to vector<16x4xf32>
      %c308 = arith.constant 308 : index
      %c0_46 = arith.constant 0 : index
      %87 = vector.load %arg8[%c308, %c0_46] : memref<362x4xf32, #tpu.memory_space<vmem>>, vector<16x4xf32>
      tpu.vector_store %arg8[%c308, %c0_46], %86 {strides = array<i32>} : memref<362x4xf32, #tpu.memory_space<vmem>>, vector<16x4xf32>,
    } else {
    }
    %c0 = arith.constant 0 : index
    %c0_1 = arith.constant 0 : index
    %3 = vector.load %arg8[%c0, %c0_1] : memref<362x4xf32, #tpu.memory_space<vmem>>, vector<324x4xf32>
    %c1 = arith.constant 1 : index
    %c0_2 = arith.constant 0 : index
    %4 = vector.load %arg8[%c1, %c0_2] : memref<362x4xf32, #tpu.memory_space<vmem>>, vector<324x4xf32>
    %c2 = arith.constant 2 : index
    %c0_3 = arith.constant 0 : index
    %5 = vector.load %arg8[%c2, %c0_3] : memref<362x4xf32, #tpu.memory_space<vmem>>, vector<324x4xf32>
    %c18 = arith.constant 18 : index
    %c0_4 = arith.constant 0 : index
    %6 = vector.load %arg8[%c18, %c0_4] : memref<362x4xf32, #tpu.memory_space<vmem>>, vector<324x4xf32>
    %c19 = arith.constant 19 : index
    %c0_5 = arith.constant 0 : index
    %7 = vector.load %arg8[%c19, %c0_5] : memref<362x4xf32, #tpu.memory_space<vmem>>, vector<324x4xf32>
    %c20 = arith.constant 20 : index
    %c0_6 = arith.constant 0 : index
    %8 = vector.load %arg8[%c20, %c0_6] : memref<362x4xf32, #tpu.memory_space<vmem>>, vector<324x4xf32>
    %c36 = arith.constant 36 : index
    %c0_7 = arith.constant 0 : index
    %9 = vector.load %arg8[%c36, %c0_7] : memref<362x4xf32, #tpu.memory_space<vmem>>, vector<324x4xf32>
    %c37 = arith.constant 37 : index
    %c0_8 = arith.constant 0 : index
    %10 = vector.load %arg8[%c37, %c0_8] : memref<362x4xf32, #tpu.memory_space<vmem>>, vector<324x4xf32>
    %c38 = arith.constant 38 : index
    %c0_9 = arith.constant 0 : index
    %11 = vector.load %arg8[%c38, %c0_9] : memref<362x4xf32, #tpu.memory_space<vmem>>, vector<324x4xf32>
    %12 = tpu.concatenate %3, %4, %5, %6, %7, %8, %9, %10, %11 in 1 : vector<324x4xf32>, vector<324x4xf32>, vector<324x4xf32>, vector<324x4xf32>, vector<324x4xf32>, vector<324x4xf32>, vector<324x4xf32>, vector<324x4xf32>, vector<324x4xf32> -> vector<324x36xf32>
    %13 = arith.truncf %12 : vector<324x36xf32> to vector<324x36xbf16>
    %c0_10 = arith.constant 0 : index
    %c0_11 = arith.constant 0 : index
    %14 = vector.load %arg3[%c0_10, %c0_11] : memref<36x8xbf16, #tpu.memory_space<vmem>>, vector<36x8xbf16>
    %cst = arith.constant dense<0.000000e+00> : vector<324x8xf32>
    %15 = tpu.matmul %13, %14, %cst {dimension_numbers = #tpu.dot_dimension_numbers<[1], [0], [0], [1], [0, 0, 1, 1], [], []>} : vector<324x36xbf16>, vector<36x8xbf16>, vector<324x8xf32> -> vector<324x8xf32>
    %16 = vector.extract_strided_slice %15 {offsets = [19, 0], sizes = [16, 8], strides = [1, 1]} : vector<324x8xf32> to vector<16x8xf32>
    %17 = vector.extract_strided_slice %15 {offsets = [37, 0], sizes = [16, 8], strides = [1, 1]} : vector<324x8xf32> to vector<16x8xf32>
    %18 = vector.extract_strided_slice %15 {offsets = [55, 0], sizes = [16, 8], strides = [1, 1]} : vector<324x8xf32> to vector<16x8xf32>
    %19 = vector.extract_strided_slice %15 {offsets = [73, 0], sizes = [16, 8], strides = [1, 1]} : vector<324x8xf32> to vector<16x8xf32>
    %20 = vector.extract_strided_slice %15 {offsets = [91, 0], sizes = [16, 8], strides = [1, 1]} : vector<324x8xf32> to vector<16x8xf32>
    %21 = vector.extract_strided_slice %15 {offsets = [109, 0], sizes = [16, 8], strides = [1, 1]} : vector<324x8xf32> to vector<16x8xf32>
    %22 = vector.extract_strided_slice %15 {offsets = [127, 0], sizes = [16, 8], strides = [1, 1]} : vector<324x8xf32> to vector<16x8xf32>
    %23 = vector.extract_strided_slice %15 {offsets = [145, 0], sizes = [16, 8], strides = [1, 1]} : vector<324x8xf32> to vector<16x8xf32>
    %24 = vector.extract_strided_slice %15 {offsets = [163, 0], sizes = [16, 8], strides = [1, 1]} : vector<324x8xf32> to vector<16x8xf32>
    %25 = vector.extract_strided_slice %15 {offsets = [181, 0], sizes = [16, 8], strides = [1, 1]} : vector<324x8xf32> to vector<16x8xf32>
    %26 = vector.extract_strided_slice %15 {offsets = [199, 0], sizes = [16, 8], strides = [1, 1]} : vector<324x8xf32> to vector<16x8xf32>
    %27 = vector.extract_strided_slice %15 {offsets = [217, 0], sizes = [16, 8], strides = [1, 1]} : vector<324x8xf32> to vector<16x8xf32>
    %28 = vector.extract_strided_slice %15 {offsets = [235, 0], sizes = [16, 8], strides = [1, 1]} : vector<324x8xf32> to vector<16x8xf32>
    %29 = vector.extract_strided_slice %15 {offsets = [253, 0], sizes = [16, 8], strides = [1, 1]} : vector<324x8xf32> to vector<16x8xf32>
    %30 = vector.extract_strided_slice %15 {offsets = [271, 0], sizes = [16, 8], strides = [1, 1]} : vector<324x8xf32> to vector<16x8xf32>
    %31 = vector.extract_strided_slice %15 {offsets = [289, 0], sizes = [16, 8], strides = [1, 1]} : vector<324x8xf32> to vector<16x8xf32>
    %32 = tpu.concatenate %16, %17, %18, %19, %20, %21, %22, %23, %24, %25, %26, %27, %28, %29, %30, %31 in 0 : vector<16x8xf32>, vector<16x8xf32>, vector<16x8xf32>, vector<16x8xf32>, vector<16x8xf32>, vector<16x8xf32>, vector<16x8xf32>, vector<16x8xf32>, vector<16x8xf32>, vector<16x8xf32>, vector<16x8xf32>, vector<16x8xf32>, vector<16x8xf32>, vector<16x8xf32>, vector<16x8xf32>, vector<16x8xf32> -> vector<256x8xf32>
    %cst_12 = arith.constant dense<0.000000e+00> : vector<8xf32>
    %33 = vector.multi_reduction <add>, %32, %cst_12 [0] : vector<256x8xf32> to vector<8xf32>
    %34 = vector.shape_cast %33 : vector<8xf32> to vector<1x8xf32>
    %35 = arith.mulf %32, %32 : vector<256x8xf32>
    %cst_13 = arith.constant dense<0.000000e+00> : vector<8xf32>
    %36 = vector.multi_reduction <add>, %35, %cst_13 [0] : vector<256x8xf32> to vector<8xf32>
    %37 = vector.shape_cast %36 : vector<8xf32> to vector<1x8xf32>
    %38 = tpu.concatenate %34, %37 in 0 : vector<1x8xf32>, vector<1x8xf32> -> vector<2x8xf32>
    %c0_14 = arith.constant 0 : index
    %c0_15 = arith.constant 0 : index
    %c0_16 = arith.constant 0 : index
    %39 = vector.load %arg7[%c0_14, %c0_15, %c0_16] : memref<1x2x8xf32, #tpu.memory_space<vmem>>, vector<1x2x8xf32>
    %40 = vector.shape_cast %39 : vector<1x2x8xf32> to vector<2x8xf32>
    %41 = vector.shape_cast %38 : vector<2x8xf32> to vector<1x2x8xf32>
    tpu.vector_store %arg7[%c0_14, %c0_15, %c0_16], %41 {strides = array<i32>} : memref<1x2x8xf32, #tpu.memory_space<vmem>>, vector<1x2x8xf32>,
    %42 = arith.truncf %32 : vector<256x8xf32> to vector<256x8xbf16>
    %c0_17 = arith.constant 0 : index
    %c0_18 = arith.constant 0 : index
    %c0_19 = arith.constant 0 : index
    %43 = vector.load %arg6[%c0_17, %c0_18, %c0_19] : memref<1x256x8xbf16, #tpu.memory_space<vmem>>, vector<1x256x8xbf16>
    %44 = vector.shape_cast %43 : vector<1x256x8xbf16> to vector<256x8xbf16>
    %45 = vector.shape_cast %42 : vector<256x8xbf16> to vector<1x256x8xbf16>
    tpu.vector_store %arg6[%c0_17, %c0_18, %c0_19], %45 {strides = array<i32>} : memref<1x256x8xbf16, #tpu.memory_space<vmem>>, vector<1x256x8xbf16>,
    return
  }
  func.func @transform_0(%arg0: i32, %arg1: i32) -> (i32, i32, i32) {
    %c0_i32 = arith.constant 0 : i32
    %c0_i32_0 = arith.constant 0 : i32
    %c0_i32_1 = arith.constant 0 : i32
    return %arg0, %c0_i32, %c0_i32_0 : i32, i32, i32
  }
  func.func @transform_1(%arg0: i32, %arg1: i32) -> (i32, i32) {
    %c0_i32 = arith.constant 0 : i32
    %c0_i32_0 = arith.constant 0 : i32
    return %c0_i32, %arg1 : i32, i32
  }
  func.func @transform_2(%arg0: i32, %arg1: i32) -> (i32, i32) {
    %c0_i32 = arith.constant 0 : i32
    %c0_i32_0 = arith.constant 0 : i32
    %c0_i32_1 = arith.constant 0 : i32
    return %c0_i32, %c0_i32_0 : i32, i32
  }
  func.func @transform_3(%arg0: i32, %arg1: i32) -> (i32, i32) {
    %c0_i32 = arith.constant 0 : i32
    %c0_i32_0 = arith.constant 0 : i32
    %c0_i32_1 = arith.constant 0 : i32
    return %c0_i32, %c0_i32_0 : i32, i32
  }
  func.func @transform_4(%arg0: i32, %arg1: i32) -> (i32, i32, i32) {
    %c0_i32 = arith.constant 0 : i32
    %c0_i32_0 = arith.constant 0 : i32
    return %arg0, %c0_i32, %arg1 : i32, i32, i32
  }
  func.func @transform_5(%arg0: i32, %arg1: i32) -> (i32, i32, i32) {
    %c0_i32 = arith.constant 0 : i32
    %c0_i32_0 = arith.constant 0 : i32
    return %arg0, %c0_i32, %arg1 : i32, i32, i32
  }
}

module attributes {stable_mosaic.version = 11 : i64} {
  func.func @_pool_bn_relu_kernel(%arg0: i32, %arg1: memref<1x8x2x8x16xbf16, #tpu.memory_space<vmem>>, %arg2: memref<1x16xf32, #tpu.memory_space<vmem>>, %arg3: memref<1x16xf32, #tpu.memory_space<vmem>>, %arg4: memref<1x8x8x8xf32, #tpu.memory_space<vmem>>) attributes {dimension_semantics = [#tpu.dimension_semantics<parallel>], iteration_bounds = array<i64: 2>, scalar_prefetch = 0 : i64, scratch_operands = 0 : i64, tpu.core_type = #tpu.core_type<tc>, window_params = [{transform_indices = @transform_0, window_bounds = array<i64: 1, 8, 2, 8, 16>}, {pipeline_mode = #tpu.pipeline_mode<synchronous>, transform_indices = @transform_1, window_bounds = array<i64: 1, 16>}, {pipeline_mode = #tpu.pipeline_mode<synchronous>, transform_indices = @transform_2, window_bounds = array<i64: 1, 16>}, {transform_indices = @transform_3, window_bounds = array<i64: 1, 8, 8, 8>}]} {
    %c0 = arith.constant 0 : index
    %c0_0 = arith.constant 0 : index
    %0 = vector.load %arg2[%c0, %c0_0] : memref<1x16xf32, #tpu.memory_space<vmem>>, vector<1x16xf32>
    %1 = vector.shape_cast %0 : vector<1x16xf32> to vector<1x1x1x16xf32>
    %c0_1 = arith.constant 0 : index
    %c0_2 = arith.constant 0 : index
    %2 = vector.load %arg3[%c0_1, %c0_2] : memref<1x16xf32, #tpu.memory_space<vmem>>, vector<1x16xf32>
    %3 = vector.shape_cast %2 : vector<1x16xf32> to vector<1x1x1x16xf32>
    %c0_3 = arith.constant 0 : index
    %c0_4 = arith.constant 0 : index
    %c0_5 = arith.constant 0 : index
    %c0_6 = arith.constant 0 : index
    %c0_7 = arith.constant 0 : index
    %4 = vector.load %arg1[%c0_3, %c0_4, %c0_5, %c0_6, %c0_7] : memref<1x8x2x8x16xbf16, #tpu.memory_space<vmem>>, vector<1x8x2x8x16xbf16>
    %5 = vector.shape_cast %4 : vector<1x8x2x8x16xbf16> to vector<8x2x8x16xbf16>
    %6 = arith.extf %5 : vector<8x2x8x16xbf16> to vector<8x2x8x16xf32>
    %7 = vector.broadcast %1 : vector<1x1x1x16xf32> to vector<8x2x8x16xf32>
    %8 = arith.mulf %6, %7 : vector<8x2x8x16xf32>
    %9 = vector.broadcast %3 : vector<1x1x1x16xf32> to vector<8x2x8x16xf32>
    %10 = arith.addf %8, %9 : vector<8x2x8x16xf32>
    %cst = arith.constant 0.000000e+00 : f32
    %11 = vector.broadcast %cst : f32 to vector<8x2x8x16xf32>
    %12 = arith.maximumf %10, %11 : vector<8x2x8x16xf32>
    %13 = vector.extract_strided_slice %12 {offsets = [0, 0, 0, 0], sizes = [8, 1, 8, 16], strides = [1, 1, 1, 1]} : vector<8x2x8x16xf32> to vector<8x1x8x16xf32>
    %14 = vector.shape_cast %13 : vector<8x1x8x16xf32> to vector<8x8x16xf32>
    %15 = vector.extract_strided_slice %12 {offsets = [0, 1, 0, 0], sizes = [8, 1, 8, 16], strides = [1, 1, 1, 1]} : vector<8x2x8x16xf32> to vector<8x1x8x16xf32>
    %16 = vector.shape_cast %15 : vector<8x1x8x16xf32> to vector<8x8x16xf32>
    %17 = arith.maximumf %14, %16 : vector<8x8x16xf32>
    %18 = vector.extract_strided_slice %17 {offsets = [0, 0, 0], sizes = [8, 8, 8], strides = [1, 1, 1]} : vector<8x8x16xf32> to vector<8x8x8xf32>
    %19 = vector.extract_strided_slice %17 {offsets = [0, 0, 8], sizes = [8, 8, 8], strides = [1, 1, 1]} : vector<8x8x16xf32> to vector<8x8x8xf32>
    %20 = arith.maximumf %18, %19 : vector<8x8x8xf32>
    %c0_8 = arith.constant 0 : index
    %c0_9 = arith.constant 0 : index
    %c0_10 = arith.constant 0 : index
    %c0_11 = arith.constant 0 : index
    %21 = vector.load %arg4[%c0_8, %c0_9, %c0_10, %c0_11] : memref<1x8x8x8xf32, #tpu.memory_space<vmem>>, vector<1x8x8x8xf32>
    %22 = vector.shape_cast %21 : vector<1x8x8x8xf32> to vector<8x8x8xf32>
    %23 = vector.shape_cast %20 : vector<8x8x8xf32> to vector<1x8x8x8xf32>
    tpu.vector_store %arg4[%c0_8, %c0_9, %c0_10, %c0_11], %23 {strides = array<i32>} : memref<1x8x8x8xf32, #tpu.memory_space<vmem>>, vector<1x8x8x8xf32>,
    return
  }
  func.func @transform_0(%arg0: i32) -> (i32, i32, i32, i32, i32) {
    %c0_i32 = arith.constant 0 : i32
    %c0_i32_0 = arith.constant 0 : i32
    %c0_i32_1 = arith.constant 0 : i32
    %c0_i32_2 = arith.constant 0 : i32
    %c0_i32_3 = arith.constant 0 : i32
    return %arg0, %c0_i32, %c0_i32_0, %c0_i32_1, %c0_i32_2 : i32, i32, i32, i32, i32
  }
  func.func @transform_1(%arg0: i32) -> (i32, i32) {
    %c0_i32 = arith.constant 0 : i32
    %c0_i32_0 = arith.constant 0 : i32
    %c0_i32_1 = arith.constant 0 : i32
    return %c0_i32, %c0_i32_0 : i32, i32
  }
  func.func @transform_2(%arg0: i32) -> (i32, i32) {
    %c0_i32 = arith.constant 0 : i32
    %c0_i32_0 = arith.constant 0 : i32
    %c0_i32_1 = arith.constant 0 : i32
    return %c0_i32, %c0_i32_0 : i32, i32
  }
  func.func @transform_3(%arg0: i32) -> (i32, i32, i32, i32) {
    %c0_i32 = arith.constant 0 : i32
    %c0_i32_0 = arith.constant 0 : i32
    %c0_i32_1 = arith.constant 0 : i32
    %c0_i32_2 = arith.constant 0 : i32
    return %arg0, %c0_i32, %c0_i32_0, %c0_i32_1 : i32, i32, i32, i32
  }
}

</mosaic_0001>

<llo_original>
// kernel: vgg_block_forward.5
$region0: #{vgg_block_forward.5}
  #allocation0 [shape = 'u32[]', space=smem, size = 0x4, offset = 0x4, fixed_abs, tag = 'smem constant byte address 0x4 - core index']
  #allocation1 [shape = 'u32[144,128]{1,0:T(1,128)}', space=vmem, size = 0x12000, scoped, tag = 'internal scratch']
  %s0 = inlined_call_operand.vmem [shape: bf16[2,8,2,8,16], index: 0, kind: input, shape index: {}]
  %s1 = inlined_call_operand.vmem [shape: f32[1,16], index: 1, kind: input, shape index: {}]
  %s2 = inlined_call_operand.vmem [shape: f32[1,16], index: 2, kind: input, shape index: {}]
  %s3 = inlined_call_operand.vmem [shape: f32[2,8,8,8], index: 3, kind: output, shape index: {}]
  %s4 = sld [smem:[#allocation0]]
  $region45: #{vgg_block_forward.5} parent=0
    _
  %s6 = ssub.s32 1, %s4
  %s7 = scalar_select 0, %s6, %s4
  loop: start=0, step=1, limit=4
  $region2: #{vgg_block_forward.5} parent=0 // loop_pre_header
    _
  $region3: #{vgg_block_forward.5} parent=0 // loop_header
    %s9 = sphi 0, %s13
    %p10 = scmp.ge.s32.totalorder %s9, 4
    %s19 = sphi 0, %s21
    %s22 = sphi 0, %s19
    %s23 = sphi 0, %s22
    %s39 = sphi 0, %s23
    %s43 = sphi 0, %s43
    %s45 = sphi 0, %s43
    %s46 = sphi 0, %s45
    %s60 = sphi 0, %s46
    %s64 = sphi 0, %s64
    %s66 = sphi 0, %s64
    %s67 = sphi 0, %s66
    %s81 = sphi 0, %s67
    %s87 = sphi 0, %s89
    %s90 = sphi 0, %s87
    %s91 = sphi 0, %s90
    %s107 = sphi 0, %s91
  $region4: #{vgg_block_forward.5} parent=0 // loop_header_branch
    %12 = sbr.rel (%p10) target = $region8
  $region5: #{vgg_block_forward.5} parent=0 // loop_body
    %s14 = ssub.s32 %s9, 1
    %s15 = ssub.s32 %s9, 2
    %s16 = sadd.s32 %s9, 1
    %s17 = ssub.s32 %s9, %s16
    %p18 = scmp.eq.s32.totalorder %s17, 0
    %s20 = sadd.s32 %s19, 1
    %s21 = scalar_select %p18, %s19, %s20
    %p24 = pneg %p18
    %p25 = scmp.eq.s32.totalorder %s9, 1
    %p26 = por %p24, %p25
    %p27 = scmp.ne.s32.totalorder %s19, %s22
    %p28 = scmp.eq.s32.totalorder %s9, 0
    %p29 = por %p27, %p28
    %p30 = scmp.ne.s32.totalorder %s19, %s22
    %p31 = scmp.eq.s32.totalorder %s14, 1
    %p32 = por %p30, %p31
    %p33 = scmp.ne.s32.totalorder %s22, %s23
    %p34 = scmp.eq.s32.totalorder %s14, 0
    %p35 = por %p33, %p34
    %p36 = scmp.ne.s32.totalorder %s22, %s23
    %p37 = scmp.eq.s32.totalorder %s15, 1
    %p38 = por %p36, %p37
    %p40 = scmp.ne.s32.totalorder %s23, %s39
    %p41 = scmp.eq.s32.totalorder %s15, 0
    %p42 = por %p40, %p41
    %s44 = sadd.s32 %s43, 1
    %p47 = scmp.eq.s32.totalorder %s9, 1
    %p48 = scmp.ne.s32.totalorder %s43, %s45
    %p49 = scmp.eq.s32.totalorder %s9, 0
    %p50 = por %p48, %p49
    %p51 = scmp.ne.s32.totalorder %s43, %s45
    %p52 = scmp.eq.s32.totalorder %s14, 1
    %p53 = por %p51, %p52
    %p54 = scmp.ne.s32.totalorder %s45, %s46
    %p55 = scmp.eq.s32.totalorder %s14, 0
    %p56 = por %p54, %p55
    %p57 = scmp.ne.s32.totalorder %s45, %s46
    %p58 = scmp.eq.s32.totalorder %s15, 1
    %p59 = por %p57, %p58
    %p61 = scmp.ne.s32.totalorder %s46, %s60
    %p62 = scmp.eq.s32.totalorder %s15, 0
    %p63 = por %p61, %p62
    %s65 = sadd.s32 %s64, 1
    %p68 = scmp.eq.s32.totalorder %s9, 1
    %p69 = scmp.ne.s32.totalorder %s64, %s66
    %p70 = scmp.eq.s32.totalorder %s9, 0
    %p71 = por %p69, %p70
    %p72 = scmp.ne.s32.totalorder %s64, %s66
    %p73 = scmp.eq.s32.totalorder %s14, 1
    %p74 = por %p72, %p73
    %p75 = scmp.ne.s32.totalorder %s66, %s67
    %p76 = scmp.eq.s32.totalorder %s14, 0
    %p77 = por %p75, %p76
    %p78 = scmp.ne.s32.totalorder %s66, %s67
    %p79 = scmp.eq.s32.totalorder %s15, 1
    %p80 = por %p78, %p79
    %p82 = scmp.ne.s32.totalorder %s67, %s81
    %p83 = scmp.eq.s32.totalorder %s15, 0
    %p84 = por %p82, %p83
    %s85 = ssub.s32 %s9, %s16
    %p86 = scmp.eq.s32.totalorder %s85, 0
    %s88 = sadd.s32 %s87, 1
    %s89 = scalar_select %p86, %s87, %s88
    %p92 = pneg %p86
    %p93 = scmp.eq.s32.totalorder %s9, 1
    %p94 = por %p92, %p93
    %p95 = scmp.ne.s32.totalorder %s87, %s90
    %p96 = scmp.eq.s32.totalorder %s9, 0
    %p97 = por %p95, %p96
    %p98 = scmp.ne.s32.totalorder %s87, %s90
    %p99 = scmp.eq.s32.totalorder %s14, 1
    %p100 = por %p98, %p99
    %p101 = scmp.ne.s32.totalorder %s90, %s91
    %p102 = scmp.eq.s32.totalorder %s14, 0
    %p103 = por %p101, %p102
    %p104 = scmp.ne.s32.totalorder %s90, %s91
    %p105 = scmp.eq.s32.totalorder %s15, 1
    %p106 = por %p104, %p105
    %p108 = scmp.ne.s32.totalorder %s91, %s107
    %p109 = scmp.eq.s32.totalorder %s15, 0
    %p110 = por %p108, %p109
    %p111 = scmp.le.s32.totalorder 1, %s9
    %p112 = scmp.lt.s32.totalorder %s9, 3
    %p113 = pnand %p111, %p112
    %p114 = pneg %p113
    // Predicated region
    $region9: #{vgg_block_forward.5} parent=5 // pred_check
      _
    $region10: #{vgg_block_forward.5} parent=5 // pred_check_branch
      %116 = sbr.rel (%p113) target = $region12
    $region11: #{vgg_block_forward.5} parent=5 // pred_region
      %s117 = ssub.s32 %s9, 1
      // Predicated region
      $region13: #{vgg_block_forward.5} parent=11 // pred_check
        %p118 = pneg %p56
      $region14: #{vgg_block_forward.5} parent=11 // pred_check_branch
        %120 = sbr.rel (%p118) target = $region16
      $region15: #{vgg_block_forward.5} parent=11 // pred_region
        _
      $region16: #{vgg_block_forward.5} parent=11 // pred_fallthru
        _
      // Predicated region
      $region17: #{vgg_block_forward.5} parent=11 // pred_check
        %p121 = pneg %p77
      $region18: #{vgg_block_forward.5} parent=11 // pred_check_branch
        %123 = sbr.rel (%p121) target = $region20
      $region19: #{vgg_block_forward.5} parent=11 // pred_region
        _
      $region20: #{vgg_block_forward.5} parent=11 // pred_fallthru
        _
    $region12: #{vgg_block_forward.5} parent=5 // pred_fallthru
      _
    %p124 = scmp.lt.s32.totalorder %s9, 2
    // Predicated region
    $region21: #{vgg_block_forward.5} parent=5 // pred_check
      %p125 = pneg %p124
    $region22: #{vgg_block_forward.5} parent=5 // pred_check_branch
      %127 = sbr.rel (%p125) target = $region24
    $region23: #{vgg_block_forward.5} parent=5 // pred_region
      // Predicated region
      $region25: #{vgg_block_forward.5} parent=23 // pred_check
        %p128 = pneg %p29
      $region26: #{vgg_block_forward.5} parent=23 // pred_check_branch
        %130 = sbr.rel (%p128) target = $region28
      $region27: #{vgg_block_forward.5} parent=23 // pred_region
        %p131 = scmp.lt.s32.totalorder %s9, 1
        %s132 = scalar_select %p131, %s9, 1
        %s133 = smul.addr %s132, 16
        %s134 = smul.addr %s133, 4
        %s135 = scalar_lea.vmem %s0, %s134
      $region28: #{vgg_block_forward.5} parent=23 // pred_fallthru
        _
    $region24: #{vgg_block_forward.5} parent=5 // pred_fallthru
      _
    %p136 = scmp.le.s32.totalorder 1, %s9
    %p137 = scmp.lt.s32.totalorder %s9, 3
    %p138 = pnand %p136, %p137
    %p139 = pneg %p138
    // Predicated region
    $region29: #{vgg_block_forward.5} parent=5 // pred_check
      _
    $region30: #{vgg_block_forward.5} parent=5 // pred_check_branch
      %141 = sbr.rel (%p138) target = $region32
    $region31: #{vgg_block_forward.5} parent=5 // pred_region
      %s142 = ssub.s32 %s9, 1
      %p143 = scmp.lt.s32.totalorder %s14, 1
      %s144 = scalar_select %p143, %s14, 1
      %s145 = smul.addr %s144, 16
      %s146 = smul.addr %s145, 4
      %s147 = scalar_lea.vmem %s0, %s146
      %p148 = pneg %p35
      %p149 = pneg %p32
      %p150 = pneg %p56
      %p151 = pneg %p53
      %p152 = pneg %p77
      %p153 = pneg %p74
      %p154 = pneg %p103
      %p155 = pneg %p100
      %p156 = scmp.lt.s32.totalorder %s14, 1
      %s157 = scalar_select %p156, %s14, 1
      %s158 = smul.addr %s157, 8
      %s159 = smul.addr %s158, 8
      %s160 = scalar_lea.vmem %s3, %s159
      %p161 = scmp.lt.s32.totalorder %s14, 1
      %s162 = scalar_select %p161, %s14, 1
      %s163 = smul.addr %s162, 16
      %s164 = smul.addr %s163, 4
      %s165 = scalar_lea.vmem %s0, %s164
      %p166 = scmp.lt.s32.totalorder %s14, 1
      %s167 = scalar_select %p166, %s14, 1
      %s168 = smul.addr %s167, 8
      %s169 = smul.addr %s168, 8
      %s170 = scalar_lea.vmem %s3, %s169
      %v171 = vld [vmem:[%s1] sm:$0x1]
      %v172 = vld [vmem:[%s2] sm:$0x1]
      %v173 = vld [vmem:[%s165] sm:$0xf]
      %v174 = vld [vmem:[%s165 + $0x4] sm:$0xf]
      %v175 = vld [vmem:[%s165 + $0x8] sm:$0xf]
      %v176 = vld [vmem:[%s165 + $0xc] sm:$0xf]
      %v177 = vld [vmem:[%s165 + $0x10] sm:$0xf]
      %v178 = vld [vmem:[%s165 + $0x14] sm:$0xf]
      %v179 = vld [vmem:[%s165 + $0x18] sm:$0xf]
      %v180 = vld [vmem:[%s165 + $0x1c] sm:$0xf]
      %v181 = vld [vmem:[%s165 + $0x20] sm:$0xf]
      %v182 = vld [vmem:[%s165 + $0x24] sm:$0xf]
      %v183 = vld [vmem:[%s165 + $0x28] sm:$0xf]
      %v184 = vld [vmem:[%s165 + $0x2c] sm:$0xf]
      %v185 = vld [vmem:[%s165 + $0x30] sm:$0xf]
      %v186 = vld [vmem:[%s165 + $0x34] sm:$0xf]
      %v187 = vld [vmem:[%s165 + $0x38] sm:$0xf]
      %v188 = vld [vmem:[%s165 + $0x3c] sm:$0xf]
      %v189 = vunpack.c.l.bf16 %v173
      %v190 = vunpack.c.l.bf16 %v174
      %v191 = vunpack.c.l.bf16 %v175
      %v192 = vunpack.c.l.bf16 %v176
      %v193 = vunpack.c.l.bf16 %v177
      %v194 = vunpack.c.l.bf16 %v178
      %v195 = vunpack.c.l.bf16 %v179
      %v196 = vunpack.c.l.bf16 %v180
      %v197 = vunpack.c.l.bf16 %v181
      %v198 = vunpack.c.l.bf16 %v182
      %v199 = vunpack.c.l.bf16 %v183
      %v200 = vunpack.c.l.bf16 %v184
      %v201 = vunpack.c.l.bf16 %v185
      %v202 = vunpack.c.l.bf16 %v186
      %v203 = vunpack.c.l.bf16 %v187
      %v204 = vunpack.c.l.bf16 %v188
      %v206 = vlaneseq
      %v207 = vshrl.u32 %v206, 7
      %v208 = vsub.s32 0, %v207
      %v209 = vrot.slane %v171, %v208
      %v211 = vmul.f32 %v189, %v209
      %v212 = vmul.f32 %v190, %v209
      %v213 = vmul.f32 %v191, %v209
      %v214 = vmul.f32 %v192, %v209
      %v215 = vmul.f32 %v193, %v209
      %v216 = vmul.f32 %v194, %v209
      %v217 = vmul.f32 %v195, %v209
      %v218 = vmul.f32 %v196, %v209
      %v219 = vmul.f32 %v197, %v209
      %v220 = vmul.f32 %v198, %v209
      %v221 = vmul.f32 %v199, %v209
      %v222 = vmul.f32 %v200, %v209
      %v223 = vmul.f32 %v201, %v209
      %v224 = vmul.f32 %v202, %v209
      %v225 = vmul.f32 %v203, %v209
      %v226 = vmul.f32 %v204, %v209
      %v228 = vlaneseq
      %v229 = vshrl.u32 %v228, 7
      %v230 = vsub.s32 0, %v229
      %v231 = vrot.slane %v172, %v230
      %v233 = vadd.f32 %v211, %v231
      %v234 = vadd.f32 %v212, %v231
      %v235 = vadd.f32 %v213, %v231
      %v236 = vadd.f32 %v214, %v231
      %v237 = vadd.f32 %v215, %v231
      %v238 = vadd.f32 %v216, %v231
      %v239 = vadd.f32 %v217, %v231
      %v240 = vadd.f32 %v218, %v231
      %v241 = vadd.f32 %v219, %v231
      %v242 = vadd.f32 %v220, %v231
      %v243 = vadd.f32 %v221, %v231
      %v244 = vadd.f32 %v222, %v231
      %v245 = vadd.f32 %v223, %v231
      %v246 = vadd.f32 %v224, %v231
      %v247 = vadd.f32 %v225, %v231
      %v248 = vadd.f32 %v226, %v231
      %v249 = vmax.f32 %v233, 0.0
      %v250 = vmax.f32 %v234, 0.0
      %v251 = vmax.f32 %v235, 0.0
      %v252 = vmax.f32 %v236, 0.0
      %v253 = vmax.f32 %v237, 0.0
      %v254 = vmax.f32 %v238, 0.0
      %v255 = vmax.f32 %v239, 0.0
      %v256 = vmax.f32 %v240, 0.0
      %v257 = vmax.f32 %v241, 0.0
      %v258 = vmax.f32 %v242, 0.0
      %v259 = vmax.f32 %v243, 0.0
      %v260 = vmax.f32 %v244, 0.0
      %v261 = vmax.f32 %v245, 0.0
      %v262 = vmax.f32 %v246, 0.0
      %v263 = vmax.f32 %v247, 0.0
      %v264 = vmax.f32 %v248, 0.0
      %v265 = vmax.f32 %v249, %v250
      %v266 = vmax.f32 %v251, %v252
      %v267 = vmax.f32 %v253, %v254
      %v268 = vmax.f32 %v255, %v256
      %v269 = vmax.f32 %v257, %v258
      %v270 = vmax.f32 %v259, %v260
      %v271 = vmax.f32 %v261, %v262
      %v272 = vmax.f32 %v263, %v264
      %281 = vrot.lane.b32.xlu0 %v265, 120
      %v282 = vpop.permute.xlu0 %281
      %283 = vrot.lane.b32.xlu0 %v266, 120
      %v284 = vpop.permute.xlu0 %283
      %285 = vrot.lane.b32.xlu0 %v267, 120
      %v286 = vpop.permute.xlu0 %285
      %287 = vrot.lane.b32.xlu0 %v268, 120
      %v288 = vpop.permute.xlu0 %287
      %289 = vrot.lane.b32.xlu0 %v269, 120
      %v290 = vpop.permute.xlu0 %289
      %291 = vrot.lane.b32.xlu0 %v270, 120
      %v292 = vpop.permute.xlu0 %291
      %293 = vrot.lane.b32.xlu0 %v271, 120
      %v294 = vpop.permute.xlu0 %293
      %295 = vrot.lane.b32.xlu0 %v272, 120
      %v296 = vpop.permute.xlu0 %295
      %v305 = vmax.f32 %v265, %v282
      %v306 = vmax.f32 %v266, %v284
      %v307 = vmax.f32 %v267, %v286
      %v308 = vmax.f32 %v268, %v288
      %v309 = vmax.f32 %v269, %v290
      %v310 = vmax.f32 %v270, %v292
      %v311 = vmax.f32 %v271, %v294
      %v312 = vmax.f32 %v272, %v296
      %vm313 = vcmask 64512
      %314 = vst.msk [vmem:[%s170] sm:$0xff] %vm313, %v305
      %315 = vst.msk [vmem:[%s170 + $0x8] sm:$0xff] %vm313, %v306
      %316 = vst.msk [vmem:[%s170 + $0x10] sm:$0xff] %vm313, %v307
      %317 = vst.msk [vmem:[%s170 + $0x18] sm:$0xff] %vm313, %v308
      %318 = vst.msk [vmem:[%s170 + $0x20] sm:$0xff] %vm313, %v309
      %319 = vst.msk [vmem:[%s170 + $0x28] sm:$0xff] %vm313, %v310
      %320 = vst.msk [vmem:[%s170 + $0x30] sm:$0xff] %vm313, %v311
      %321 = vst.msk [vmem:[%s170 + $0x38] sm:$0xff] %vm313, %v312
      %p322 = scmp.lt.s32.totalorder %s14, 1
      %s323 = scalar_select %p322, %s14, 1
      %s324 = smul.addr %s323, 8
      %s325 = smul.addr %s324, 8
      %s326 = scalar_lea.vmem %s3, %s325
      // Predicated region
      $region33: #{vgg_block_forward.5} parent=31 // pred_check
        %p327 = pneg %p100
      $region34: #{vgg_block_forward.5} parent=31 // pred_check_branch
        %329 = sbr.rel (%p327) target = $region36
      $region35: #{vgg_block_forward.5} parent=31 // pred_region
        _
      $region36: #{vgg_block_forward.5} parent=31 // pred_fallthru
        _
    $region32: #{vgg_block_forward.5} parent=5 // pred_fallthru
      _
    %p330 = scmp.le.s32.totalorder 2, %s9
    // Predicated region
    $region37: #{vgg_block_forward.5} parent=5 // pred_check
      %p331 = pneg %p330
    $region38: #{vgg_block_forward.5} parent=5 // pred_check_branch
      %333 = sbr.rel (%p331) target = $region40
    $region39: #{vgg_block_forward.5} parent=5 // pred_region
      %s334 = ssub.s32 %s9, 2
      // Predicated region
      $region41: #{vgg_block_forward.5} parent=39 // pred_check
        %p335 = pneg %p106
      $region42: #{vgg_block_forward.5} parent=39 // pred_check_branch
        %337 = sbr.rel (%p335) target = $region44
      $region43: #{vgg_block_forward.5} parent=39 // pred_region
        %p338 = scmp.lt.s32.totalorder %s15, 1
        %s339 = scalar_select %p338, %s15, 1
        %s340 = smul.addr %s339, 8
        %s341 = smul.addr %s340, 8
        %s342 = scalar_lea.vmem %s3, %s341
      $region44: #{vgg_block_forward.5} parent=39 // pred_fallthru
        _
    $region40: #{vgg_block_forward.5} parent=5 // pred_fallthru
      _
  $region6: #{vgg_block_forward.5} parent=0 // loop_footer
    %s13 = sadd.s32 1, %s9
  $region7: #{vgg_block_forward.5} parent=0 // loop_footer_branch
    %8 = sbr.rel target = $region3
  $region8: #{vgg_block_forward.5} parent=0 // loop_exit
    _

// kernel: vgg_block_forward.3
$region0: #{vgg_block_forward.3}
  #allocation0 [shape = 'u32[]', space=smem, size = 0x4, offset = 0x4, fixed_abs, tag = 'smem constant byte address 0x4 - core index']
  #allocation1 [shape = 'u32[144,128]{1,0:T(1,128)}', space=vmem, size = 0x12000, scoped, tag = 'internal scratch']
  #allocation2 [shape = 'f32[362,4]{1,0:T(8,128)}', space=vmem, size = 0x2e000, scoped, tag = 'scratch operand']
  %s0 = inlined_call_operand.vmem [shape: f32[2,256,4], index: 0, kind: input, shape index: {}]
  %s1 = inlined_call_operand.vmem [shape: bf16[36,8], index: 1, kind: input, shape index: {}]
  %s2 = inlined_call_operand.vmem [shape: f32[1,4], index: 2, kind: input, shape index: {}]
  %s3 = inlined_call_operand.vmem [shape: f32[1,4], index: 3, kind: input, shape index: {}]
  %s4 = inlined_call_operand.vmem [shape: bf16[2,256,8], index: 4, kind: output, shape index: {0}]
  %s5 = inlined_call_operand.vmem [shape: f32[2,2,8], index: 5, kind: output, shape index: {1}]
  %6 = xla_tuple %s4, %s5
  %s7 = sld [smem:[#allocation0]]
  $region61: #{vgg_block_forward.3} parent=0
    _
  %s9 = ssub.s32 1, %s7
  %s10 = scalar_select 0, %s9, %s7
  loop: start=0, step=1, limit=4
  $region2: #{vgg_block_forward.3} parent=0 // loop_pre_header
    _
  $region3: #{vgg_block_forward.3} parent=0 // loop_header
    %s12 = sphi 0, %s16
    %p13 = scmp.ge.s32.totalorder %s12, 4
    %s19 = sphi 0, %s31
    %s20 = sphi 0, %s27
    %s21 = sphi 0, %s19
    %s22 = sphi 0, %s20
    %s23 = sphi 0, %s21
    %s24 = sphi 0, %s22
    %s34 = sphi 0, %s36
    %s37 = sphi 0, %s34
    %s38 = sphi 0, %s37
    %s54 = sphi 0, %s38
    %s60 = sphi 0, %s62
    %s63 = sphi 0, %s60
    %s64 = sphi 0, %s63
    %s80 = sphi 0, %s64
    %s84 = sphi 0, %s84
    %s86 = sphi 0, %s84
    %s87 = sphi 0, %s86
    %s101 = sphi 0, %s87
    %s105 = sphi 0, %s105
    %s107 = sphi 0, %s105
    %s108 = sphi 0, %s107
    %s122 = sphi 0, %s108
    %s130 = sphi 0, %s132
    %s133 = sphi 0, %s130
    %s134 = sphi 0, %s133
    %s150 = sphi 0, %s134
    %s158 = sphi 0, %s160
    %s161 = sphi 0, %s158
    %s162 = sphi 0, %s161
    %s178 = sphi 0, %s162
  $region4: #{vgg_block_forward.3} parent=0 // loop_header_branch
    %15 = sbr.rel (%p13) target = $region8
  $region5: #{vgg_block_forward.3} parent=0 // loop_body
    %s17 = ssub.s32 %s12, 1
    %s18 = ssub.s32 %s12, 2
    %s25 = sadd.s32 1, %s20
    %p26 = scmp.ge.s32.totalorder %s25, 1
    %s27 = scalar_select %p26, 0, %s25
    %s28 = sadd.s32 1, %s19
    %s29 = scalar_select %p26, %s28, %s19
    %p30 = scmp.ge.s32.totalorder %s29, 2
    %s31 = scalar_select %p30, 0, %s29
    %s32 = ssub.s32 %s19, %s31
    %p33 = scmp.eq.s32.totalorder %s32, 0
    %s35 = sadd.s32 %s34, 1
    %s36 = scalar_select %p33, %s34, %s35
    %p39 = pneg %p33
    %p40 = scmp.eq.s32.totalorder %s12, 1
    %p41 = por %p39, %p40
    %p42 = scmp.ne.s32.totalorder %s34, %s37
    %p43 = scmp.eq.s32.totalorder %s12, 0
    %p44 = por %p42, %p43
    %p45 = scmp.ne.s32.totalorder %s34, %s37
    %p46 = scmp.eq.s32.totalorder %s17, 1
    %p47 = por %p45, %p46
    %p48 = scmp.ne.s32.totalorder %s37, %s38
    %p49 = scmp.eq.s32.totalorder %s17, 0
    %p50 = por %p48, %p49
    %p51 = scmp.ne.s32.totalorder %s37, %s38
    %p52 = scmp.eq.s32.totalorder %s18, 1
    %p53 = por %p51, %p52
    %p55 = scmp.ne.s32.totalorder %s38, %s54
    %p56 = scmp.eq.s32.totalorder %s18, 0
    %p57 = por %p55, %p56
    %s58 = ssub.s32 %s20, %s27
    %p59 = scmp.eq.s32.totalorder %s58, 0
    %s61 = sadd.s32 %s60, 1
    %s62 = scalar_select %p59, %s60, %s61
    %p65 = pneg %p59
    %p66 = scmp.eq.s32.totalorder %s12, 1
    %p67 = por %p65, %p66
    %p68 = scmp.ne.s32.totalorder %s60, %s63
    %p69 = scmp.eq.s32.totalorder %s12, 0
    %p70 = por %p68, %p69
    %p71 = scmp.ne.s32.totalorder %s60, %s63
    %p72 = scmp.eq.s32.totalorder %s17, 1
    %p73 = por %p71, %p72
    %p74 = scmp.ne.s32.totalorder %s63, %s64
    %p75 = scmp.eq.s32.totalorder %s17, 0
    %p76 = por %p74, %p75
    %p77 = scmp.ne.s32.totalorder %s63, %s64
    %p78 = scmp.eq.s32.totalorder %s18, 1
    %p79 = por %p77, %p78
    %p81 = scmp.ne.s32.totalorder %s64, %s80
    %p82 = scmp.eq.s32.totalorder %s18, 0
    %p83 = por %p81, %p82
    %s85 = sadd.s32 %s84, 1
    %p88 = scmp.eq.s32.totalorder %s12, 1
    %p89 = scmp.ne.s32.totalorder %s84, %s86
    %p90 = scmp.eq.s32.totalorder %s12, 0
    %p91 = por %p89, %p90
    %p92 = scmp.ne.s32.totalorder %s84, %s86
    %p93 = scmp.eq.s32.totalorder %s17, 1
    %p94 = por %p92, %p93
    %p95 = scmp.ne.s32.totalorder %s86, %s87
    %p96 = scmp.eq.s32.totalorder %s17, 0
    %p97 = por %p95, %p96
    %p98 = scmp.ne.s32.totalorder %s86, %s87
    %p99 = scmp.eq.s32.totalorder %s18, 1
    %p100 = por %p98, %p99
    %p102 = scmp.ne.s32.totalorder %s87, %s101
    %p103 = scmp.eq.s32.totalorder %s18, 0
    %p104 = por %p102, %p103
    %s106 = sadd.s32 %s105, 1
    %p109 = scmp.eq.s32.totalorder %s12, 1
    %p110 = scmp.ne.s32.totalorder %s105, %s107
    %p111 = scmp.eq.s32.totalorder %s12, 0
    %p112 = por %p110, %p111
    %p113 = scmp.ne.s32.totalorder %s105, %s107
    %p114 = scmp.eq.s32.totalorder %s17, 1
    %p115 = por %p113, %p114
    %p116 = scmp.ne.s32.totalorder %s107, %s108
    %p117 = scmp.eq.s32.totalorder %s17, 0
    %p118 = por %p116, %p117
    %p119 = scmp.ne.s32.totalorder %s107, %s108
    %p120 = scmp.eq.s32.totalorder %s18, 1
    %p121 = por %p119, %p120
    %p123 = scmp.ne.s32.totalorder %s108, %s122
    %p124 = scmp.eq.s32.totalorder %s18, 0
    %p125 = por %p123, %p124
    %s126 = ssub.s32 %s19, %s31
    %s127 = ssub.s32 %s20, %s27
    %s128 = sor.u32 %s126, %s127
    %p129 = scmp.eq.s32.totalorder %s128, 0
    %s131 = sadd.s32 %s130, 1
    %s132 = scalar_select %p129, %s130, %s131
    %p135 = pneg %p129
    %p136 = scmp.eq.s32.totalorder %s12, 1
    %p137 = por %p135, %p136
    %p138 = scmp.ne.s32.totalorder %s130, %s133
    %p139 = scmp.eq.s32.totalorder %s12, 0
    %p140 = por %p138, %p139
    %p141 = scmp.ne.s32.totalorder %s130, %s133
    %p142 = scmp.eq.s32.totalorder %s17, 1
    %p143 = por %p141, %p142
    %p144 = scmp.ne.s32.totalorder %s133, %s134
    %p145 = scmp.eq.s32.totalorder %s17, 0
    %p146 = por %p144, %p145
    %p147 = scmp.ne.s32.totalorder %s133, %s134
    %p148 = scmp.eq.s32.totalorder %s18, 1
    %p149 = por %p147, %p148
    %p151 = scmp.ne.s32.totalorder %s134, %s150
    %p152 = scmp.eq.s32.totalorder %s18, 0
    %p153 = por %p151, %p152
    %s154 = ssub.s32 %s19, %s31
    %s155 = ssub.s32 %s20, %s27
    %s156 = sor.u32 %s154, %s155
    %p157 = scmp.eq.s32.totalorder %s156, 0
    %s159 = sadd.s32 %s158, 1
    %s160 = scalar_select %p157, %s158, %s159
    %p163 = pneg %p157
    %p164 = scmp.eq.s32.totalorder %s12, 1
    %p165 = por %p163, %p164
    %p166 = scmp.ne.s32.totalorder %s158, %s161
    %p167 = scmp.eq.s32.totalorder %s12, 0
    %p168 = por %p166, %p167
    %p169 = scmp.ne.s32.totalorder %s158, %s161
    %p170 = scmp.eq.s32.totalorder %s17, 1
    %p171 = por %p169, %p170
    %p172 = scmp.ne.s32.totalorder %s161, %s162
    %p173 = scmp.eq.s32.totalorder %s17, 0
    %p174 = por %p172, %p173
    %p175 = scmp.ne.s32.totalorder %s161, %s162
    %p176 = scmp.eq.s32.totalorder %s18, 1
    %p177 = por %p175, %p176
    %p179 = scmp.ne.s32.totalorder %s162, %s178
    %p180 = scmp.eq.s32.totalorder %s18, 0
    %p181 = por %p179, %p180
    %p182 = scmp.le.s32.totalorder 1, %s12
    %p183 = scmp.lt.s32.totalorder %s12, 3
    %p184 = pnand %p182, %p183
    %p185 = pneg %p184
    // Predicated region
    $region9: #{vgg_block_forward.3} parent=5 // pred_check
      _
    $region10: #{vgg_block_forward.3} parent=5 // pred_check_branch
      %187 = sbr.rel (%p184) target = $region12
    $region11: #{vgg_block_forward.3} parent=5 // pred_region
      %s188 = ssub.s32 %s12, 1
      // Predicated region
      $region13: #{vgg_block_forward.3} parent=11 // pred_check
        %p189 = pneg %p76
      $region14: #{vgg_block_forward.3} parent=11 // pred_check_branch
        %191 = sbr.rel (%p189) target = $region16
      $region15: #{vgg_block_forward.3} parent=11 // pred_region
        %p192 = scmp.lt.s32.totalorder %s22, 0
        %s193 = scalar_select %p192, %s22, 0
        %s194 = smul.addr %s193, 4
        %s195 = scalar_lea.vmem %s1, %s194
      $region16: #{vgg_block_forward.3} parent=11 // pred_fallthru
        _
      // Predicated region
      $region17: #{vgg_block_forward.3} parent=11 // pred_check
        %p196 = pneg %p97
      $region18: #{vgg_block_forward.3} parent=11 // pred_check_branch
        %198 = sbr.rel (%p196) target = $region20
      $region19: #{vgg_block_forward.3} parent=11 // pred_region
        _
      $region20: #{vgg_block_forward.3} parent=11 // pred_fallthru
        _
      // Predicated region
      $region21: #{vgg_block_forward.3} parent=11 // pred_check
        %p199 = pneg %p118
      $region22: #{vgg_block_forward.3} parent=11 // pred_check_branch
        %201 = sbr.rel (%p199) target = $region24
      $region23: #{vgg_block_forward.3} parent=11 // pred_region
        _
      $region24: #{vgg_block_forward.3} parent=11 // pred_fallthru
        _
    $region12: #{vgg_block_forward.3} parent=5 // pred_fallthru
      _
    %p202 = scmp.lt.s32.totalorder %s12, 2
    // Predicated region
    $region25: #{vgg_block_forward.3} parent=5 // pred_check
      %p203 = pneg %p202
    $region26: #{vgg_block_forward.3} parent=5 // pred_check_branch
      %205 = sbr.rel (%p203) target = $region28
    $region27: #{vgg_block_forward.3} parent=5 // pred_region
      // Predicated region
      $region29: #{vgg_block_forward.3} parent=27 // pred_check
        %p206 = pneg %p44
      $region30: #{vgg_block_forward.3} parent=27 // pred_check_branch
        %208 = sbr.rel (%p206) target = $region32
      $region31: #{vgg_block_forward.3} parent=27 // pred_region
        %p209 = scmp.lt.s32.totalorder %s19, 1
        %s210 = scalar_select %p209, %s19, 1
        %s211 = smul.addr %s210, 32
        %s212 = smul.addr %s211, 8
        %s213 = scalar_lea.vmem %s0, %s212
      $region32: #{vgg_block_forward.3} parent=27 // pred_fallthru
        _
    $region28: #{vgg_block_forward.3} parent=5 // pred_fallthru
      _
    %p214 = scmp.le.s32.totalorder 1, %s12
    %p215 = scmp.lt.s32.totalorder %s12, 3
    %p216 = pnand %p214, %p215
    %p217 = pneg %p216
    // Predicated region
    $region33: #{vgg_block_forward.3} parent=5 // pred_check
      _
    $region34: #{vgg_block_forward.3} parent=5 // pred_check_branch
      %219 = sbr.rel (%p216) target = $region36
    $region35: #{vgg_block_forward.3} parent=5 // pred_region
      %s220 = ssub.s32 %s12, 1
      %p221 = scmp.lt.s32.totalorder %s21, 1
      %s222 = scalar_select %p221, %s21, 1
      %s223 = smul.addr %s222, 32
      %s224 = smul.addr %s223, 8
      %s225 = scalar_lea.vmem %s0, %s224
      %p226 = pneg %p50
      %p227 = pneg %p47
      %p228 = scmp.lt.s32.totalorder %s22, 0
      %s229 = scalar_select %p228, %s22, 0
      %s230 = smul.addr %s229, 4
      %s231 = scalar_lea.vmem %s1, %s230
      %p232 = pneg %p76
      %p233 = pneg %p73
      %p234 = pneg %p97
      %p235 = pneg %p94
      %p236 = pneg %p118
      %p237 = pneg %p115
      %p238 = pneg %p146
      %p239 = pneg %p143
      %p240 = scmp.lt.s32.totalorder %s21, 1
      %s241 = scalar_select %p240, %s21, 1
      %p242 = scmp.lt.s32.totalorder %s22, 0
      %s243 = scalar_select %p242, %s22, 0
      %s244 = smul.addr %s241, 32
      %s245 = sadd.s32 %s243, %s244
      %s246 = smul.addr %s245, 4
      %s247 = scalar_lea.vmem %s4, %s246
      %p248 = pneg %p174
      %p249 = pneg %p171
      %p250 = scmp.lt.s32.totalorder %s21, 1
      %s251 = scalar_select %p250, %s21, 1
      %p252 = scmp.lt.s32.totalorder %s22, 0
      %s253 = scalar_select %p252, %s22, 0
      %s254 = sadd.s32 %s253, %s251
      %s255 = smul.addr %s254, 2
      %s256 = scalar_lea.vmem %s5, %s255
      %p257 = scmp.lt.s32.totalorder %s21, 1
      %s258 = scalar_select %p257, %s21, 1
      %s259 = smul.addr %s258, 32
      %s260 = smul.addr %s259, 8
      %s261 = scalar_lea.vmem %s0, %s260
      %p262 = scmp.lt.s32.totalorder %s22, 0
      %s263 = scalar_select %p262, %s22, 0
      %s264 = smul.addr %s263, 4
      %s265 = scalar_lea.vmem %s1, %s264
      %p266 = scmp.lt.s32.totalorder %s21, 1
      %s267 = scalar_select %p266, %s21, 1
      %p268 = scmp.lt.s32.totalorder %s22, 0
      %s269 = scalar_select %p268, %s22, 0
      %s270 = smul.addr %s267, 32
      %s271 = sadd.s32 %s269, %s270
      %s272 = smul.addr %s271, 4
      %s273 = scalar_lea.vmem %s4, %s272
      %p274 = scmp.lt.s32.totalorder %s21, 1
      %s275 = scalar_select %p274, %s21, 1
      %p276 = scmp.lt.s32.totalorder %s22, 0
      %s277 = scalar_select %p276, %s22, 0
      %s278 = sadd.s32 %s277, %s275
      %s279 = smul.addr %s278, 2
      %s280 = scalar_lea.vmem %s5, %s279
      %p282 = scmp.eq.s32.totalorder %s22, 0
      // Predicated region
      $region37: #{vgg_block_forward.3} parent=35 // pred_check
        %p283 = pneg %p282
      $region38: #{vgg_block_forward.3} parent=35 // pred_check_branch
        %285 = sbr.rel (%p283) target = $region40
      $region39: #{vgg_block_forward.3} parent=35 // pred_region
        %v286 = vld [vmem:[%s261] sm:$0xff]
        %v287 = vld [vmem:[%s261 + $0x8] sm:$0xff]
        %v288 = vld [vmem:[%s261 + $0x10] sm:$0xff]
        %v289 = vld [vmem:[%s261 + $0x18] sm:$0xff]
        %v290 = vld [vmem:[%s261 + $0x20] sm:$0xff]
        %v291 = vld [vmem:[%s261 + $0x28] sm:$0xff]
        %v292 = vld [vmem:[%s261 + $0x30] sm:$0xff]
        %v293 = vld [vmem:[%s261 + $0x38] sm:$0xff]
        %v294 = vld [vmem:[%s261 + $0x40] sm:$0xff]
        %v295 = vld [vmem:[%s261 + $0x48] sm:$0xff]
        %v296 = vld [vmem:[%s261 + $0x50] sm:$0xff]
        %v297 = vld [vmem:[%s261 + $0x58] sm:$0xff]
        %v298 = vld [vmem:[%s261 + $0x60] sm:$0xff]
        %v299 = vld [vmem:[%s261 + $0x68] sm:$0xff]
        %v300 = vld [vmem:[%s261 + $0x70] sm:$0xff]
        %v301 = vld [vmem:[%s261 + $0x78] sm:$0xff]
        %v302 = vld [vmem:[%s261 + $0x80] sm:$0xff]
        %v303 = vld [vmem:[%s261 + $0x88] sm:$0xff]
        %v304 = vld [vmem:[%s261 + $0x90] sm:$0xff]
        %v305 = vld [vmem:[%s261 + $0x98] sm:$0xff]
        %v306 = vld [vmem:[%s261 + $0xa0] sm:$0xff]
        %v307 = vld [vmem:[%s261 + $0xa8] sm:$0xff]
        %v308 = vld [vmem:[%s261 + $0xb0] sm:$0xff]
        %v309 = vld [vmem:[%s261 + $0xb8] sm:$0xff]
        %v310 = vld [vmem:[%s261 + $0xc0] sm:$0xff]
        %v311 = vld [vmem:[%s261 + $0xc8] sm:$0xff]
        %v312 = vld [vmem:[%s261 + $0xd0] sm:$0xff]
        %v313 = vld [vmem:[%s261 + $0xd8] sm:$0xff]
        %v314 = vld [vmem:[%s261 + $0xe0] sm:$0xff]
        %v315 = vld [vmem:[%s261 + $0xe8] sm:$0xff]
        %v316 = vld [vmem:[%s261 + $0xf0] sm:$0xff]
        %v317 = vld [vmem:[%s261 + $0xf8] sm:$0xff]
        %v318 = vld [vmem:[%s2] sm:$0x1]
        %v320 = vlaneseq
        %v321 = vshrl.u32 %v320, 7
        %v322 = vsub.s32 0, %v321
        %v323 = vrot.slane %v318, %v322
        %v325 = vmul.f32 %v286, %v323
        %v326 = vmul.f32 %v287, %v323
        %v327 = vmul.f32 %v288, %v323
        %v328 = vmul.f32 %v289, %v323
        %v329 = vmul.f32 %v290, %v323
        %v330 = vmul.f32 %v291, %v323
        %v331 = vmul.f32 %v292, %v323
        %v332 = vmul.f32 %v293, %v323
        %v333 = vmul.f32 %v294, %v323
        %v334 = vmul.f32 %v295, %v323
        %v335 = vmul.f32 %v296, %v323
        %v336 = vmul.f32 %v297, %v323
        %v337 = vmul.f32 %v298, %v323
        %v338 = vmul.f32 %v299, %v323
        %v339 = vmul.f32 %v300, %v323
        %v340 = vmul.f32 %v301, %v323
        %v341 = vmul.f32 %v302, %v323
        %v342 = vmul.f32 %v303, %v323
        %v343 = vmul.f32 %v304, %v323
        %v344 = vmul.f32 %v305, %v323
        %v345 = vmul.f32 %v306, %v323
        %v346 = vmul.f32 %v307, %v323
        %v347 = vmul.f32 %v308, %v323
        %v348 = vmul.f32 %v309, %v323
        %v349 = vmul.f32 %v310, %v323
        %v350 = vmul.f32 %v311, %v323
        %v351 = vmul.f32 %v312, %v323
        %v352 = vmul.f32 %v313, %v323
        %v353 = vmul.f32 %v314, %v323
        %v354 = vmul.f32 %v315, %v323
        %v355 = vmul.f32 %v316, %v323
        %v356 = vmul.f32 %v317, %v323
        %v357 = vld [vmem:[%s3] sm:$0x1]
        %v359 = vlaneseq
        %v360 = vshrl.u32 %v359, 7
        %v361 = vsub.s32 0, %v360
        %v362 = vrot.slane %v357, %v361
        %v364 = vadd.f32 %v325, %v362
        %v365 = vadd.f32 %v326, %v362
        %v366 = vadd.f32 %v327, %v362
        %v367 = vadd.f32 %v328, %v362
        %v368 = vadd.f32 %v329, %v362
        %v369 = vadd.f32 %v330, %v362
        %v370 = vadd.f32 %v331, %v362
        %v371 = vadd.f32 %v332, %v362
        %v372 = vadd.f32 %v333, %v362
        %v373 = vadd.f32 %v334, %v362
        %v374 = vadd.f32 %v335, %v362
        %v375 = vadd.f32 %v336, %v362
        %v376 = vadd.f32 %v337, %v362
        %v377 = vadd.f32 %v338, %v362
        %v378 = vadd.f32 %v339, %v362
        %v379 = vadd.f32 %v340, %v362
        %v380 = vadd.f32 %v341, %v362
        %v381 = vadd.f32 %v342, %v362
        %v382 = vadd.f32 %v343, %v362
        %v383 = vadd.f32 %v344, %v362
        %v384 = vadd.f32 %v345, %v362
        %v385 = vadd.f32 %v346, %v362
        %v386 = vadd.f32 %v347, %v362
        %v387 = vadd.f32 %v348, %v362
        %v388 = vadd.f32 %v349, %v362
        %v389 = vadd.f32 %v350, %v362
        %v390 = vadd.f32 %v351, %v362
        %v391 = vadd.f32 %v352, %v362
        %v392 = vadd.f32 %v353, %v362
        %v393 = vadd.f32 %v354, %v362
        %v394 = vadd.f32 %v355, %v362
        %v395 = vadd.f32 %v356, %v362
        %vm396 = vcmask 31744
        %397 = vst.msk [vmem:[#allocation2] sm:$0xff] %vm396, 0.0
        %398 = vst.msk [vmem:[#allocation2 + $0x8] sm:$0xff] %vm396, 0.0
        %399 = vst.msk [vmem:[#allocation2 + $0x10] sm:$0xff] %vm396, 0.0
        %400 = vst.msk [vmem:[#allocation2 + $0x18] sm:$0xff] %vm396, 0.0
        %401 = vst.msk [vmem:[#allocation2 + $0x20] sm:$0xff] %vm396, 0.0
        %402 = vst.msk [vmem:[#allocation2 + $0x28] sm:$0xff] %vm396, 0.0
        %403 = vst.msk [vmem:[#allocation2 + $0x30] sm:$0xff] %vm396, 0.0
        %404 = vst.msk [vmem:[#allocation2 + $0x38] sm:$0xff] %vm396, 0.0
        %405 = vst.msk [vmem:[#allocation2 + $0x40] sm:$0xff] %vm396, 0.0
        %406 = vst.msk [vmem:[#allocation2 + $0x48] sm:$0xff] %vm396, 0.0
        %407 = vst.msk [vmem:[#allocation2 + $0x50] sm:$0xff] %vm396, 0.0
        %408 = vst.msk [vmem:[#allocation2 + $0x58] sm:$0xff] %vm396, 0.0
        %409 = vst.msk [vmem:[#allocation2 + $0x60] sm:$0xff] %vm396, 0.0
        %410 = vst.msk [vmem:[#allocation2 + $0x68] sm:$0xff] %vm396, 0.0
        %411 = vst.msk [vmem:[#allocation2 + $0x70] sm:$0xff] %vm396, 0.0
        %412 = vst.msk [vmem:[#allocation2 + $0x78] sm:$0xff] %vm396, 0.0
        %413 = vst.msk [vmem:[#allocation2 + $0x80] sm:$0xff] %vm396, 0.0
        %414 = vst.msk [vmem:[#allocation2 + $0x88] sm:$0xff] %vm396, 0.0
        %415 = vst.msk [vmem:[#allocation2 + $0x90] sm:$0xff] %vm396, 0.0
        %416 = vst.msk [vmem:[#allocation2 + $0x98] sm:$0xff] %vm396, 0.0
        %417 = vst.msk [vmem:[#allocation2 + $0xa0] sm:$0xff] %vm396, 0.0
        %418 = vst.msk [vmem:[#allocation2 + $0xa8] sm:$0xff] %vm396, 0.0
        %419 = vst.msk [vmem:[#allocation2 + $0xb0] sm:$0xff] %vm396, 0.0
        %420 = vst.msk [vmem:[#allocation2 + $0xb8] sm:$0xff] %vm396, 0.0
        %421 = vst.msk [vmem:[#allocation2 + $0xc0] sm:$0xff] %vm396, 0.0
        %422 = vst.msk [vmem:[#allocation2 + $0xc8] sm:$0xff] %vm396, 0.0
        %423 = vst.msk [vmem:[#allocation2 + $0xd0] sm:$0xff] %vm396, 0.0
        %424 = vst.msk [vmem:[#allocation2 + $0xd8] sm:$0xff] %vm396, 0.0
        %425 = vst.msk [vmem:[#allocation2 + $0xe0] sm:$0xff] %vm396, 0.0
        %426 = vst.msk [vmem:[#allocation2 + $0xe8] sm:$0xff] %vm396, 0.0
        %427 = vst.msk [vmem:[#allocation2 + $0xf0] sm:$0xff] %vm396, 0.0
        %428 = vst.msk [vmem:[#allocation2 + $0xf8] sm:$0xff] %vm396, 0.0
        %429 = vst.msk [vmem:[#allocation2 + $0x100] sm:$0xff] %vm396, 0.0
        %430 = vst.msk [vmem:[#allocation2 + $0x108] sm:$0xff] %vm396, 0.0
        %431 = vst.msk [vmem:[#allocation2 + $0x110] sm:$0xff] %vm396, 0.0
        %432 = vst.msk [vmem:[#allocation2 + $0x118] sm:$0xff] %vm396, 0.0
        %433 = vst.msk [vmem:[#allocation2 + $0x120] sm:$0xff] %vm396, 0.0
        %434 = vst.msk [vmem:[#allocation2 + $0x128] sm:$0xff] %vm396, 0.0
        %435 = vst.msk [vmem:[#allocation2 + $0x130] sm:$0xff] %vm396, 0.0
        %436 = vst.msk [vmem:[#allocation2 + $0x138] sm:$0xff] %vm396, 0.0
        %437 = vst.msk [vmem:[#allocation2 + $0x140] sm:$0xff] %vm396, 0.0
        %438 = vst.msk [vmem:[#allocation2 + $0x148] sm:$0xff] %vm396, 0.0
        %439 = vst.msk [vmem:[#allocation2 + $0x150] sm:$0xff] %vm396, 0.0
        %440 = vst.msk [vmem:[#allocation2 + $0x158] sm:$0xff] %vm396, 0.0
        %441 = vst.msk [vmem:[#allocation2 + $0x160] sm:$0xff] %vm396, 0.0
        %vm442 = vcmask 25600
        %443 = vst.msk [vmem:[#allocation2 + $0x168] sm:$0x3] %vm442, 0.0
        %444 = vst.msk [vmem:[#allocation2 + $0x26] sm:$0xff] %vm396, %v364
        %445 = vst.msk [vmem:[#allocation2 + $0x2e] sm:$0xff] %vm396, %v365
        %446 = vst.msk [vmem:[#allocation2 + $0x38] sm:$0xff] %vm396, %v366
        %447 = vst.msk [vmem:[#allocation2 + $0x40] sm:$0xff] %vm396, %v367
        %448 = vst.msk [vmem:[#allocation2 + $0x4a] sm:$0xff] %vm396, %v368
        %449 = vst.msk [vmem:[#allocation2 + $0x52] sm:$0xff] %vm396, %v369
        %450 = vst.msk [vmem:[#allocation2 + $0x5c] sm:$0xff] %vm396, %v370
        %451 = vst.msk [vmem:[#allocation2 + $0x64] sm:$0xff] %vm396, %v371
        %452 = vst.msk [vmem:[#allocation2 + $0x6e] sm:$0xff] %vm396, %v372
        %453 = vst.msk [vmem:[#allocation2 + $0x76] sm:$0xff] %vm396, %v373
        %454 = vst.msk [vmem:[#allocation2 + $0x80] sm:$0xff] %vm396, %v374
        %455 = vst.msk [vmem:[#allocation2 + $0x88] sm:$0xff] %vm396, %v375
        %456 = vst.msk [vmem:[#allocation2 + $0x92] sm:$0xff] %vm396, %v376
        %457 = vst.msk [vmem:[#allocation2 + $0x9a] sm:$0xff] %vm396, %v377
        %458 = vst.msk [vmem:[#allocation2 + $0xa4] sm:$0xff] %vm396, %v378
        %459 = vst.msk [vmem:[#allocation2 + $0xac] sm:$0xff] %vm396, %v379
        %460 = vst.msk [vmem:[#allocation2 + $0xb6] sm:$0xff] %vm396, %v380
        %461 = vst.msk [vmem:[#allocation2 + $0xbe] sm:$0xff] %vm396, %v381
        %462 = vst.msk [vmem:[#allocation2 + $0xc8] sm:$0xff] %vm396, %v382
        %463 = vst.msk [vmem:[#allocation2 + $0xd0] sm:$0xff] %vm396, %v383
        %464 = vst.msk [vmem:[#allocation2 + $0xda] sm:$0xff] %vm396, %v384
        %465 = vst.msk [vmem:[#allocation2 + $0xe2] sm:$0xff] %vm396, %v385
        %466 = vst.msk [vmem:[#allocation2 + $0xec] sm:$0xff] %vm396, %v386
        %467 = vst.msk [vmem:[#allocation2 + $0xf4] sm:$0xff] %vm396, %v387
        %468 = vst.msk [vmem:[#allocation2 + $0xfe] sm:$0xff] %vm396, %v388
        %469 = vst.msk [vmem:[#allocation2 + $0x106] sm:$0xff] %vm396, %v389
        %470 = vst.msk [vmem:[#allocation2 + $0x110] sm:$0xff] %vm396, %v390
        %471 = vst.msk [vmem:[#allocation2 + $0x118] sm:$0xff] %vm396, %v391
        %472 = vst.msk [vmem:[#allocation2 + $0x122] sm:$0xff] %vm396, %v392
        %473 = vst.msk [vmem:[#allocation2 + $0x12a] sm:$0xff] %vm396, %v393
        %474 = vst.msk [vmem:[#allocation2 + $0x134] sm:$0xff] %vm396, %v394
        %475 = vst.msk [vmem:[#allocation2 + $0x13c] sm:$0xff] %vm396, %v395
      $region40: #{vgg_block_forward.3} parent=35 // pred_fallthru
        _
      %v476 = vld [vmem:[#allocation2] sm:$0xff]
      %v477 = vld [vmem:[#allocation2 + $0x8] sm:$0xff]
      %v478 = vld [vmem:[#allocation2 + $0x10] sm:$0xff]
      %v479 = vld [vmem:[#allocation2 + $0x18] sm:$0xff]
      %v480 = vld [vmem:[#allocation2 + $0x20] sm:$0xff]
      %v481 = vld [vmem:[#allocation2 + $0x28] sm:$0xff]
      %v482 = vld [vmem:[#allocation2 + $0x30] sm:$0xff]
      %v483 = vld [vmem:[#allocation2 + $0x38] sm:$0xff]
      %v484 = vld [vmem:[#allocation2 + $0x40] sm:$0xff]
      %v485 = vld [vmem:[#allocation2 + $0x48] sm:$0xff]
      %v486 = vld [vmem:[#allocation2 + $0x50] sm:$0xff]
      %v487 = vld [vmem:[#allocation2 + $0x58] sm:$0xff]
      %v488 = vld [vmem:[#allocation2 + $0x60] sm:$0xff]
      %v489 = vld [vmem:[#allocation2 + $0x68] sm:$0xff]
      %v490 = vld [vmem:[#allocation2 + $0x70] sm:$0xff]
      %v491 = vld [vmem:[#allocation2 + $0x78] sm:$0xff]
      %v492 = vld [vmem:[#allocation2 + $0x80] sm:$0xff]
      %v493 = vld [vmem:[#allocation2 + $0x88] sm:$0xff]
      %v494 = vld [vmem:[#allocation2 + $0x90] sm:$0xff]
      %v495 = vld [vmem:[#allocation2 + $0x98] sm:$0xff]
      %v496 = vld [vmem:[#allocation2 + $0xa0] sm:$0xff]
      %v497 = vld [vmem:[#allocation2 + $0xa8] sm:$0xff]
      %v498 = vld [vmem:[#allocation2 + $0xb0] sm:$0xff]
      %v499 = vld [vmem:[#allocation2 + $0xb8] sm:$0xff]
      %v500 = vld [vmem:[#allocation2 + $0xc0] sm:$0xff]
      %v501 = vld [vmem:[#allocation2 + $0xc8] sm:$0xff]
      %v502 = vld [vmem:[#allocation2 + $0xd0] sm:$0xff]
      %v503 = vld [vmem:[#allocation2 + $0xd8] sm:$0xff]
      %v504 = vld [vmem:[#allocation2 + $0xe0] sm:$0xff]
      %v505 = vld [vmem:[#allocation2 + $0xe8] sm:$0xff]
      %v506 = vld [vmem:[#allocation2 + $0xf0] sm:$0xff]
      %v507 = vld [vmem:[#allocation2 + $0xf8] sm:$0xff]
      %v508 = vld [vmem:[#allocation2 + $0x100] sm:$0xff]
      %v509 = vld [vmem:[#allocation2 + $0x108] sm:$0xff]
      %v510 = vld [vmem:[#allocation2 + $0x110] sm:$0xff]
      %v511 = vld [vmem:[#allocation2 + $0x118] sm:$0xff]
      %v512 = vld [vmem:[#allocation2 + $0x120] sm:$0xff]
      %v513 = vld [vmem:[#allocation2 + $0x128] sm:$0xff]
      %v514 = vld [vmem:[#allocation2 + $0x130] sm:$0xff]
      %v515 = vld [vmem:[#allocation2 + $0x138] sm:$0xff]
      %v516 = vld [vmem:[#allocation2 + $0x140] sm:$0xf]
      %v517 = vld [vmem:[#allocation2 + $0x1] sm:$0xff]
      %v518 = vld [vmem:[#allocation2 + $0x9] sm:$0xff]
      %v519 = vld [vmem:[#allocation2 + $0x11] sm:$0xff]
      %v520 = vld [vmem:[#allocation2 + $0x19] sm:$0xff]
      %v521 = vld [vmem:[#allocation2 + $0x21] sm:$0xff]
      %v522 = vld [vmem:[#allocation2 + $0x29] sm:$0xff]
      %v523 = vld [vmem:[#allocation2 + $0x31] sm:$0xff]
      %v524 = vld [vmem:[#allocation2 + $0x39] sm:$0xff]
      %v525 = vld [vmem:[#allocation2 + $0x41] sm:$0xff]
      %v526 = vld [vmem:[#allocation2 + $0x49] sm:$0xff]
      %v527 = vld [vmem:[#allocation2 + $0x51] sm:$0xff]
      %v528 = vld [vmem:[#allocation2 + $0x59] sm:$0xff]
      %v529 = vld [vmem:[#allocation2 + $0x61] sm:$0xff]
      %v530 = vld [vmem:[#allocation2 + $0x69] sm:$0xff]
      %v531 = vld [vmem:[#allocation2 + $0x71] sm:$0xff]
      %v532 = vld [vmem:[#allocation2 + $0x79] sm:$0xff]
      %v533 = vld [vmem:[#allocation2 + $0x81] sm:$0xff]
      %v534 = vld [vmem:[#allocation2 + $0x89] sm:$0xff]
      %v535 = vld [vmem:[#allocation2 + $0x91] sm:$0xff]
      %v536 = vld [vmem:[#allocation2 + $0x99] sm:$0xff]
      %v537 = vld [vmem:[#allocation2 + $0xa1] sm:$0xff]
      %v538 = vld [vmem:[#allocation2 + $0xa9] sm:$0xff]
      %v539 = vld [vmem:[#allocation2 + $0xb1] sm:$0xff]
      %v540 = vld [vmem:[#allocation2 + $0xb9] sm:$0xff]
      %v541 = vld [vmem:[#allocation2 + $0xc1] sm:$0xff]
      %v542 = vld [vmem:[#allocation2 + $0xc9] sm:$0xff]
      %v543 = vld [vmem:[#allocation2 + $0xd1] sm:$0xff]
      %v544 = vld [vmem:[#allocation2 + $0xd9] sm:$0xff]
      %v545 = vld [vmem:[#allocation2 + $0xe1] sm:$0xff]
      %v546 = vld [vmem:[#allocation2 + $0xe9] sm:$0xff]
      %v547 = vld [vmem:[#allocation2 + $0xf1] sm:$0xff]
      %v548 = vld [vmem:[#allocation2 + $0xf9] sm:$0xff]
      %v549 = vld [vmem:[#allocation2 + $0x101] sm:$0xff]
      %v550 = vld [vmem:[#allocation2 + $0x109] sm:$0xff]
      %v551 = vld [vmem:[#allocation2 + $0x111] sm:$0xff]
      %v552 = vld [vmem:[#allocation2 + $0x119] sm:$0xff]
      %v553 = vld [vmem:[#allocation2 + $0x121] sm:$0xff]
      %v554 = vld [vmem:[#allocation2 + $0x129] sm:$0xff]
      %v555 = vld [vmem:[#allocation2 + $0x131] sm:$0xff]
      %v556 = vld [vmem:[#allocation2 + $0x139] sm:$0xff]
      %v557 = vld [vmem:[#allocation2 + $0x141] sm:$0xf]
      %v558 = vld [vmem:[#allocation2 + $0x2] sm:$0xff]
      %v559 = vld [vmem:[#allocation2 + $0xa] sm:$0xff]
      %v560 = vld [vmem:[#allocation2 + $0x12] sm:$0xff]
      %v561 = vld [vmem:[#allocation2 + $0x1a] sm:$0xff]
      %v562 = vld [vmem:[#allocation2 + $0x22] sm:$0xff]
      %v563 = vld [vmem:[#allocation2 + $0x2a] sm:$0xff]
      %v564 = vld [vmem:[#allocation2 + $0x32] sm:$0xff]
      %v565 = vld [vmem:[#allocation2 + $0x3a] sm:$0xff]
      %v566 = vld [vmem:[#allocation2 + $0x42] sm:$0xff]
      %v567 = vld [vmem:[#allocation2 + $0x4a] sm:$0xff]
      %v568 = vld [vmem:[#allocation2 + $0x52] sm:$0xff]
      %v569 = vld [vmem:[#allocation2 + $0x5a] sm:$0xff]
      %v570 = vld [vmem:[#allocation2 + $0x62] sm:$0xff]
      %v571 = vld [vmem:[#allocation2 + $0x6a] sm:$0xff]
      %v572 = vld [vmem:[#allocation2 + $0x72] sm:$0xff]
      %v573 = vld [vmem:[#allocation2 + $0x7a] sm:$0xff]
      %v574 = vld [vmem:[#allocation2 + $0x82] sm:$0xff]
      %v575 = vld [vmem:[#allocation2 + $0x8a] sm:$0xff]
      %v576 = vld [vmem:[#allocation2 + $0x92] sm:$0xff]
      %v577 = vld [vmem:[#allocation2 + $0x9a] sm:$0xff]
      %v578 = vld [vmem:[#allocation2 + $0xa2] sm:$0xff]
      %v579 = vld [vmem:[#allocation2 + $0xaa] sm:$0xff]
      %v580 = vld [vmem:[#allocation2 + $0xb2] sm:$0xff]
      %v581 = vld [vmem:[#allocation2 + $0xba] sm:$0xff]
      %v582 = vld [vmem:[#allocation2 + $0xc2] sm:$0xff]
      %v583 = vld [vmem:[#allocation2 + $0xca] sm:$0xff]
      %v584 = vld [vmem:[#allocation2 + $0xd2] sm:$0xff]
      %v585 = vld [vmem:[#allocation2 + $0xda] sm:$0xff]
      %v586 = vld [vmem:[#allocation2 + $0xe2] sm:$0xff]
      %v587 = vld [vmem:[#allocation2 + $0xea] sm:$0xff]
      %v588 = vld [vmem:[#allocation2 + $0xf2] sm:$0xff]
      %v589 = vld [vmem:[#allocation2 + $0xfa] sm:$0xff]
      %v590 = vld [vmem:[#allocation2 + $0x102] sm:$0xff]
      %v591 = vld [vmem:[#allocation2 + $0x10a] sm:$0xff]
      %v592 = vld [vmem:[#allocation2 + $0x112] sm:$0xff]
      %v593 = vld [vmem:[#allocation2 + $0x11a] sm:$0xff]
      %v594 = vld [vmem:[#allocation2 + $0x122] sm:$0xff]
      %v595 = vld [vmem:[#allocation2 + $0x12a] sm:$0xff]
      %v596 = vld [vmem:[#allocation2 + $0x132] sm:$0xff]
      %v597 = vld [vmem:[#allocation2 + $0x13a] sm:$0xff]
      %v598 = vld [vmem:[#allocation2 + $0x142] sm:$0xf]
      %v599 = vld [vmem:[#allocation2 + $0x142] sm:$0xff]
      %v600 = vld [vmem:[#allocation2 + $0x14a] sm:$0xff]
      %v601 = vld [vmem:[#allocation2 + $0x152] sm:$0xf]
      %v602 = vld [vmem:[#allocation2 + $0x13] sm:$0xff]
      %v603 = vld [vmem:[#allocation2 + $0x1b] sm:$0xff]
      %v604 = vld [vmem:[#allocation2 + $0x23] sm:$0xff]
      %v605 = vld [vmem:[#allocation2 + $0x2b] sm:$0xff]
      %v606 = vld [vmem:[#allocation2 + $0x33] sm:$0xff]
      %v607 = vld [vmem:[#allocation2 + $0x3b] sm:$0xff]
      %v608 = vld [vmem:[#allocation2 + $0x43] sm:$0xff]
      %v609 = vld [vmem:[#allocation2 + $0x4b] sm:$0xff]
      %v610 = vld [vmem:[#allocation2 + $0x53] sm:$0xff]
      %v611 = vld [vmem:[#allocation2 + $0x5b] sm:$0xff]
      %v612 = vld [vmem:[#allocation2 + $0x63] sm:$0xff]
      %v613 = vld [vmem:[#allocation2 + $0x6b] sm:$0xff]
      %v614 = vld [vmem:[#allocation2 + $0x73] sm:$0xff]
      %v615 = vld [vmem:[#allocation2 + $0x7b] sm:$0xff]
      %v616 = vld [vmem:[#allocation2 + $0x83] sm:$0xff]
      %v617 = vld [vmem:[#allocation2 + $0x8b] sm:$0xff]
      %v618 = vld [vmem:[#allocation2 + $0x93] sm:$0xff]
      %v619 = vld [vmem:[#allocation2 + $0x9b] sm:$0xff]
      %v620 = vld [vmem:[#allocation2 + $0xa3] sm:$0xff]
      %v621 = vld [vmem:[#allocation2 + $0xab] sm:$0xff]
      %v622 = vld [vmem:[#allocation2 + $0xb3] sm:$0xff]
      %v623 = vld [vmem:[#allocation2 + $0xbb] sm:$0xff]
      %v624 = vld [vmem:[#allocation2 + $0xc3] sm:$0xff]
      %v625 = vld [vmem:[#allocation2 + $0xcb] sm:$0xff]
      %v626 = vld [vmem:[#allocation2 + $0xd3] sm:$0xff]
      %v627 = vld [vmem:[#allocation2 + $0xdb] sm:$0xff]
      %v628 = vld [vmem:[#allocation2 + $0xe3] sm:$0xff]
      %v629 = vld [vmem:[#allocation2 + $0xeb] sm:$0xff]
      %v630 = vld [vmem:[#allocation2 + $0xf3] sm:$0xff]
      %v631 = vld [vmem:[#allocation2 + $0xfb] sm:$0xff]
      %v632 = vld [vmem:[#allocation2 + $0x103] sm:$0xff]
      %v633 = vld [vmem:[#allocation2 + $0x10b] sm:$0xff]
      %v634 = vld [vmem:[#allocation2 + $0x113] sm:$0xff]
      %v635 = vld [vmem:[#allocation2 + $0x11b] sm:$0xff]
      %v636 = vld [vmem:[#allocation2 + $0x123] sm:$0xff]
      %v637 = vld [vmem:[#allocation2 + $0x12b] sm:$0xff]
      %v638 = vld [vmem:[#allocation2 + $0x133] sm:$0xff]
      %v639 = vld [vmem:[#allocation2 + $0x13b] sm:$0xff]
      %v640 = vld [vmem:[#allocation2 + $0x143] sm:$0xff]
      %v641 = vld [vmem:[#allocation2 + $0x14b] sm:$0xff]
      %v642 = vld [vmem:[#allocation2 + $0x153] sm:$0xf]
      %v643 = vld [vmem:[#allocation2 + $0x14] sm:$0xff]
      %v644 = vld [vmem:[#allocation2 + $0x1c] sm:$0xff]
      %v645 = vld [vmem:[#allocation2 + $0x24] sm:$0xff]
      %v646 = vld [vmem:[#allocation2 + $0x2c] sm:$0xff]
      %v647 = vld [vmem:[#allocation2 + $0x34] sm:$0xff]
      %v648 = vld [vmem:[#allocation2 + $0x3c] sm:$0xff]
      %v649 = vld [vmem:[#allocation2 + $0x44] sm:$0xff]
      %v650 = vld [vmem:[#allocation2 + $0x4c] sm:$0xff]
      %v651 = vld [vmem:[#allocation2 + $0x54] sm:$0xff]
      %v652 = vld [vmem:[#allocation2 + $0x5c] sm:$0xff]
      %v653 = vld [vmem:[#allocation2 + $0x64] sm:$0xff]
      %v654 = vld [vmem:[#allocation2 + $0x6c] sm:$0xff]
      %v655 = vld [vmem:[#allocation2 + $0x74] sm:$0xff]
      %v656 = vld [vmem:[#allocation2 + $0x7c] sm:$0xff]
      %v657 = vld [vmem:[#allocation2 + $0x84] sm:$0xff]
      %v658 = vld [vmem:[#allocation2 + $0x8c] sm:$0xff]
      %v659 = vld [vmem:[#allocation2 + $0x94] sm:$0xff]
      %v660 = vld [vmem:[#allocation2 + $0x9c] sm:$0xff]
      %v661 = vld [vmem:[#allocation2 + $0xa4] sm:$0xff]
      %v662 = vld [vmem:[#allocation2 + $0xac] sm:$0xff]
      %v663 = vld [vmem:[#allocation2 + $0xb4] sm:$0xff]
      %v664 = vld [vmem:[#allocation2 + $0xbc] sm:$0xff]
      %v665 = vld [vmem:[#allocation2 + $0xc4] sm:$0xff]
      %v666 = vld [vmem:[#allocation2 + $0xcc] sm:$0xff]
      %v667 = vld [vmem:[#allocation2 + $0xd4] sm:$0xff]
      %v668 = vld [vmem:[#allocation2 + $0xdc] sm:$0xff]
      %v669 = vld [vmem:[#allocation2 + $0xe4] sm:$0xff]
      %v670 = vld [vmem:[#allocation2 + $0xec] sm:$0xff]
      %v671 = vld [vmem:[#allocation2 + $0xf4] sm:$0xff]
      %v672 = vld [vmem:[#allocation2 + $0xfc] sm:$0xff]
      %v673 = vld [vmem:[#allocation2 + $0x104] sm:$0xff]
      %v674 = vld [vmem:[#allocation2 + $0x10c] sm:$0xff]
      %v675 = vld [vmem:[#allocation2 + $0x114] sm:$0xff]
      %v676 = vld [vmem:[#allocation2 + $0x11c] sm:$0xff]
      %v677 = vld [vmem:[#allocation2 + $0x124] sm:$0xff]
      %v678 = vld [vmem:[#allocation2 + $0x12c] sm:$0xff]
      %v679 = vld [vmem:[#allocation2 + $0x134] sm:$0xff]
      %v680 = vld [vmem:[#allocation2 + $0x13c] sm:$0xff]
      %v681 = vld [vmem:[#allocation2 + $0x144] sm:$0xff]
      %v682 = vld [vmem:[#allocation2 + $0x14c] sm:$0xff]
      %v683 = vld [vmem:[#allocation2 + $0x154] sm:$0xf]
      %v684 = vld [vmem:[#allocation2 + $0x154] sm:$0xff]
      %v685 = vld [vmem:[#allocation2 + $0x15c] sm:$0xff]
      %v686 = vld [vmem:[#allocation2 + $0x164] sm:$0xf]
      %v687 = vld [vmem:[#allocation2 + $0x25] sm:$0xff]
      %v688 = vld [vmem:[#allocation2 + $0x2d] sm:$0xff]
      %v689 = vld [vmem:[#allocation2 + $0x35] sm:$0xff]
      %v690 = vld [vmem:[#allocation2 + $0x3d] sm:$0xff]
      %v691 = vld [vmem:[#allocation2 + $0x45] sm:$0xff]
      %v692 = vld [vmem:[#allocation2 + $0x4d] sm:$0xff]
      %v693 = vld [vmem:[#allocation2 + $0x55] sm:$0xff]
      %v694 = vld [vmem:[#allocation2 + $0x5d] sm:$0xff]
      %v695 = vld [vmem:[#allocation2 + $0x65] sm:$0xff]
      %v696 = vld [vmem:[#allocation2 + $0x6d] sm:$0xff]
      %v697 = vld [vmem:[#allocation2 + $0x75] sm:$0xff]
      %v698 = vld [vmem:[#allocation2 + $0x7d] sm:$0xff]
      %v699 = vld [vmem:[#allocation2 + $0x85] sm:$0xff]
      %v700 = vld [vmem:[#allocation2 + $0x8d] sm:$0xff]
      %v701 = vld [vmem:[#allocation2 + $0x95] sm:$0xff]
      %v702 = vld [vmem:[#allocation2 + $0x9d] sm:$0xff]
      %v703 = vld [vmem:[#allocation2 + $0xa5] sm:$0xff]
      %v704 = vld [vmem:[#allocation2 + $0xad] sm:$0xff]
      %v705 = vld [vmem:[#allocation2 + $0xb5] sm:$0xff]
      %v706 = vld [vmem:[#allocation2 + $0xbd] sm:$0xff]
      %v707 = vld [vmem:[#allocation2 + $0xc5] sm:$0xff]
      %v708 = vld [vmem:[#allocation2 + $0xcd] sm:$0xff]
      %v709 = vld [vmem:[#allocation2 + $0xd5] sm:$0xff]
      %v710 = vld [vmem:[#allocation2 + $0xdd] sm:$0xff]
      %v711 = vld [vmem:[#allocation2 + $0xe5] sm:$0xff]
      %v712 = vld [vmem:[#allocation2 + $0xed] sm:$0xff]
      %v713 = vld [vmem:[#allocation2 + $0xf5] sm:$0xff]
      %v714 = vld [vmem:[#allocation2 + $0xfd] sm:$0xff]
      %v715 = vld [vmem:[#allocation2 + $0x105] sm:$0xff]
      %v716 = vld [vmem:[#allocation2 + $0x10d] sm:$0xff]
      %v717 = vld [vmem:[#allocation2 + $0x115] sm:$0xff]
      %v718 = vld [vmem:[#allocation2 + $0x11d] sm:$0xff]
      %v719 = vld [vmem:[#allocation2 + $0x125] sm:$0xff]
      %v720 = vld [vmem:[#allocation2 + $0x12d] sm:$0xff]
      %v721 = vld [vmem:[#allocation2 + $0x135] sm:$0xff]
      %v722 = vld [vmem:[#allocation2 + $0x13d] sm:$0xff]
      %v723 = vld [vmem:[#allocation2 + $0x145] sm:$0xff]
      %v724 = vld [vmem:[#allocation2 + $0x14d] sm:$0xff]
      %v725 = vld [vmem:[#allocation2 + $0x155] sm:$0xff]
      %v726 = vld [vmem:[#allocation2 + $0x15d] sm:$0xff]
      %v727 = vld [vmem:[#allocation2 + $0x165] sm:$0xf]
      %v728 = vld [vmem:[#allocation2 + $0x26] sm:$0xff]
      %v729 = vld [vmem:[#allocation2 + $0x2e] sm:$0xff]
      %v730 = vld [vmem:[#allocation2 + $0x36] sm:$0xff]
      %v731 = vld [vmem:[#allocation2 + $0x3e] sm:$0xff]
      %v732 = vld [vmem:[#allocation2 + $0x46] sm:$0xff]
      %v733 = vld [vmem:[#allocation2 + $0x4e] sm:$0xff]
      %v734 = vld [vmem:[#allocation2 + $0x56] sm:$0xff]
      %v735 = vld [vmem:[#allocation2 + $0x5e] sm:$0xff]
      %v736 = vld [vmem:[#allocation2 + $0x66] sm:$0xff]
      %v737 = vld [vmem:[#allocation2 + $0x6e] sm:$0xff]
      %v738 = vld [vmem:[#allocation2 + $0x76] sm:$0xff]
      %v739 = vld [vmem:[#allocation2 + $0x7e] sm:$0xff]
      %v740 = vld [vmem:[#allocation2 + $0x86] sm:$0xff]
      %v741 = vld [vmem:[#allocation2 + $0x8e] sm:$0xff]
      %v742 = vld [vmem:[#allocation2 + $0x96] sm:$0xff]
      %v743 = vld [vmem:[#allocation2 + $0x9e] sm:$0xff]
      %v744 = vld [vmem:[#allocation2 + $0xa6] sm:$0xff]
      %v745 = vld [vmem:[#allocation2 + $0xae] sm:$0xff]
      %v746 = vld [vmem:[#allocation2 + $0xb6] sm:$0xff]
      %v747 = vld [vmem:[#allocation2 + $0xbe] sm:$0xff]
      %v748 = vld [vmem:[#allocation2 + $0xc6] sm:$0xff]
      %v749 = vld [vmem:[#allocation2 + $0xce] sm:$0xff]
      %v750 = vld [vmem:[#allocation2 + $0xd6] sm:$0xff]
      %v751 = vld [vmem:[#allocation2 + $0xde] sm:$0xff]
      %v752 = vld [vmem:[#allocation2 + $0xe6] sm:$0xff]
      %v753 = vld [vmem:[#allocation2 + $0xee] sm:$0xff]
      %v754 = vld [vmem:[#allocation2 + $0xf6] sm:$0xff]
      %v755 = vld [vmem:[#allocation2 + $0xfe] sm:$0xff]
      %v756 = vld [vmem:[#allocation2 + $0x106] sm:$0xff]
      %v757 = vld [vmem:[#allocation2 + $0x10e] sm:$0xff]
      %v758 = vld [vmem:[#allocation2 + $0x116] sm:$0xff]
      %v759 = vld [vmem:[#allocation2 + $0x11e] sm:$0xff]
      %v760 = vld [vmem:[#allocation2 + $0x126] sm:$0xff]
      %v761 = vld [vmem:[#allocation2 + $0x12e] sm:$0xff]
      %v762 = vld [vmem:[#allocation2 + $0x136] sm:$0xff]
      %v763 = vld [vmem:[#allocation2 + $0x13e] sm:$0xff]
      %v764 = vld [vmem:[#allocation2 + $0x146] sm:$0xff]
      %v765 = vld [vmem:[#allocation2 + $0x14e] sm:$0xff]
      %v766 = vld [vmem:[#allocation2 + $0x156] sm:$0xff]
      %v767 = vld [vmem:[#allocation2 + $0x15e] sm:$0xff]
      %v768 = vld [vmem:[#allocation2 + $0x166] sm:$0xf]
      %810 = vrot.lane.b32.xlu0 %v517, 4
      %v811 = vpop.permute.xlu0 %810
      %812 = vrot.lane.b32.xlu0 %v518, 4
      %v813 = vpop.permute.xlu0 %812
      %814 = vrot.lane.b32.xlu0 %v519, 4
      %v815 = vpop.permute.xlu0 %814
      %816 = vrot.lane.b32.xlu0 %v520, 4
      %v817 = vpop.permute.xlu0 %816
      %818 = vrot.lane.b32.xlu0 %v521, 4
      %v819 = vpop.permute.xlu0 %818
      %820 = vrot.lane.b32.xlu0 %v522, 4
      %v821 = vpop.permute.xlu0 %820
      %822 = vrot.lane.b32.xlu0 %v523, 4
      %v823 = vpop.permute.xlu0 %822
      %824 = vrot.lane.b32.xlu0 %v524, 4
      %v825 = vpop.permute.xlu0 %824
      %826 = vrot.lane.b32.xlu0 %v525, 4
      %v827 = vpop.permute.xlu0 %826
      %828 = vrot.lane.b32.xlu0 %v526, 4
      %v829 = vpop.permute.xlu0 %828
      %830 = vrot.lane.b32.xlu0 %v527, 4
      %v831 = vpop.permute.xlu0 %830
      %832 = vrot.lane.b32.xlu0 %v528, 4
      %v833 = vpop.permute.xlu0 %832
      %834 = vrot.lane.b32.xlu0 %v529, 4
      %v835 = vpop.permute.xlu0 %834
      %836 = vrot.lane.b32.xlu0 %v530, 4
      %v837 = vpop.permute.xlu0 %836
      %838 = vrot.lane.b32.xlu0 %v531, 4
      %v839 = vpop.permute.xlu0 %838
      %840 = vrot.lane.b32.xlu0 %v532, 4
      %v841 = vpop.permute.xlu0 %840
      %842 = vrot.lane.b32.xlu0 %v533, 4
      %v843 = vpop.permute.xlu0 %842
      %844 = vrot.lane.b32.xlu0 %v534, 4
      %v845 = vpop.permute.xlu0 %844
      %846 = vrot.lane.b32.xlu0 %v535, 4
      %v847 = vpop.permute.xlu0 %846
      %848 = vrot.lane.b32.xlu0 %v536, 4
      %v849 = vpop.permute.xlu0 %848
      %850 = vrot.lane.b32.xlu0 %v537, 4
      %v851 = vpop.permute.xlu0 %850
      %852 = vrot.lane.b32.xlu0 %v538, 4
      %v853 = vpop.permute.xlu0 %852
      %854 = vrot.lane.b32.xlu0 %v539, 4
      %v855 = vpop.permute.xlu0 %854
      %856 = vrot.lane.b32.xlu0 %v540, 4
      %v857 = vpop.permute.xlu0 %856
      %858 = vrot.lane.b32.xlu0 %v541, 4
      %v859 = vpop.permute.xlu0 %858
      %860 = vrot.lane.b32.xlu0 %v542, 4
      %v861 = vpop.permute.xlu0 %860
      %862 = vrot.lane.b32.xlu0 %v543, 4
      %v863 = vpop.permute.xlu0 %862
      %864 = vrot.lane.b32.xlu0 %v544, 4
      %v865 = vpop.permute.xlu0 %864
      %866 = vrot.lane.b32.xlu0 %v545, 4
      %v867 = vpop.permute.xlu0 %866
      %868 = vrot.lane.b32.xlu0 %v546, 4
      %v869 = vpop.permute.xlu0 %868
      %870 = vrot.lane.b32.xlu0 %v547, 4
      %v871 = vpop.permute.xlu0 %870
      %872 = vrot.lane.b32.xlu0 %v548, 4
      %v873 = vpop.permute.xlu0 %872
      %874 = vrot.lane.b32.xlu0 %v549, 4
      %v875 = vpop.permute.xlu0 %874
      %876 = vrot.lane.b32.xlu0 %v550, 4
      %v877 = vpop.permute.xlu0 %876
      %878 = vrot.lane.b32.xlu0 %v551, 4
      %v879 = vpop.permute.xlu0 %878
      %880 = vrot.lane.b32.xlu0 %v552, 4
      %v881 = vpop.permute.xlu0 %880
      %882 = vrot.lane.b32.xlu0 %v553, 4
      %v883 = vpop.permute.xlu0 %882
      %884 = vrot.lane.b32.xlu0 %v554, 4
      %v885 = vpop.permute.xlu0 %884
      %886 = vrot.lane.b32.xlu0 %v555, 4
      %v887 = vpop.permute.xlu0 %886
      %888 = vrot.lane.b32.xlu0 %v556, 4
      %v889 = vpop.permute.xlu0 %888
      %890 = vrot.lane.b32.xlu0 %v557, 4
      %v891 = vpop.permute.xlu0 %890
      %974 = vrot.lane.b32.xlu0 %v558, 8
      %v975 = vpop.permute.xlu0 %974
      %976 = vrot.lane.b32.xlu0 %v559, 8
      %v977 = vpop.permute.xlu0 %976
      %978 = vrot.lane.b32.xlu0 %v560, 8
      %v979 = vpop.permute.xlu0 %978
      %980 = vrot.lane.b32.xlu0 %v561, 8
      %v981 = vpop.permute.xlu0 %980
      %982 = vrot.lane.b32.xlu0 %v562, 8
      %v983 = vpop.permute.xlu0 %982
      %984 = vrot.lane.b32.xlu0 %v563, 8
      %v985 = vpop.permute.xlu0 %984
      %986 = vrot.lane.b32.xlu0 %v564, 8
      %v987 = vpop.permute.xlu0 %986
      %988 = vrot.lane.b32.xlu0 %v565, 8
      %v989 = vpop.permute.xlu0 %988
      %990 = vrot.lane.b32.xlu0 %v566, 8
      %v991 = vpop.permute.xlu0 %990
      %992 = vrot.lane.b32.xlu0 %v567, 8
      %v993 = vpop.permute.xlu0 %992
      %994 = vrot.lane.b32.xlu0 %v568, 8
      %v995 = vpop.permute.xlu0 %994
      %996 = vrot.lane.b32.xlu0 %v569, 8
      %v997 = vpop.permute.xlu0 %996
      %998 = vrot.lane.b32.xlu0 %v570, 8
      %v999 = vpop.permute.xlu0 %998
      %1000 = vrot.lane.b32.xlu0 %v571, 8
      %v1001 = vpop.permute.xlu0 %1000
      %1002 = vrot.lane.b32.xlu0 %v572, 8
      %v1003 = vpop.permute.xlu0 %1002
      %1004 = vrot.lane.b32.xlu0 %v573, 8
      %v1005 = vpop.permute.xlu0 %1004
      %1006 = vrot.lane.b32.xlu0 %v574, 8
      %v1007 = vpop.permute.xlu0 %1006
      %1008 = vrot.lane.b32.xlu0 %v575, 8
      %v1009 = vpop.permute.xlu0 %1008
      %1010 = vrot.lane.b32.xlu0 %v576, 8
      %v1011 = vpop.permute.xlu0 %1010
      %1012 = vrot.lane.b32.xlu0 %v577, 8
      %v1013 = vpop.permute.xlu0 %1012
      %1014 = vrot.lane.b32.xlu0 %v578, 8
      %v1015 = vpop.permute.xlu0 %1014
      %1016 = vrot.lane.b32.xlu0 %v579, 8
      %v1017 = vpop.permute.xlu0 %1016
      %1018 = vrot.lane.b32.xlu0 %v580, 8
      %v1019 = vpop.permute.xlu0 %1018
      %1020 = vrot.lane.b32.xlu0 %v581, 8
      %v1021 = vpop.permute.xlu0 %1020
      %1022 = vrot.lane.b32.xlu0 %v582, 8
      %v1023 = vpop.permute.xlu0 %1022
      %1024 = vrot.lane.b32.xlu0 %v583, 8
      %v1025 = vpop.permute.xlu0 %1024
      %1026 = vrot.lane.b32.xlu0 %v584, 8
      %v1027 = vpop.permute.xlu0 %1026
      %1028 = vrot.lane.b32.xlu0 %v585, 8
      %v1029 = vpop.permute.xlu0 %1028
      %1030 = vrot.lane.b32.xlu0 %v586, 8
      %v1031 = vpop.permute.xlu0 %1030
      %1032 = vrot.lane.b32.xlu0 %v587, 8
      %v1033 = vpop.permute.xlu0 %1032
      %1034 = vrot.lane.b32.xlu0 %v588, 8
      %v1035 = vpop.permute.xlu0 %1034
      %1036 = vrot.lane.b32.xlu0 %v589, 8
      %v1037 = vpop.permute.xlu0 %1036
      %1038 = vrot.lane.b32.xlu0 %v590, 8
      %v1039 = vpop.permute.xlu0 %1038
      %1040 = vrot.lane.b32.xlu0 %v591, 8
      %v1041 = vpop.permute.xlu0 %1040
      %1042 = vrot.lane.b32.xlu0 %v592, 8
      %v1043 = vpop.permute.xlu0 %1042
      %1044 = vrot.lane.b32.xlu0 %v593, 8
      %v1045 = vpop.permute.xlu0 %1044
      %1046 = vrot.lane.b32.xlu0 %v594, 8
      %v1047 = vpop.permute.xlu0 %1046
      %1048 = vrot.lane.b32.xlu0 %v595, 8
      %v1049 = vpop.permute.xlu0 %1048
      %1050 = vrot.lane.b32.xlu0 %v596, 8
      %v1051 = vpop.permute.xlu0 %1050
      %1052 = vrot.lane.b32.xlu0 %v597, 8
      %v1053 = vpop.permute.xlu0 %1052
      %1054 = vrot.lane.b32.xlu0 %v598, 8
      %v1055 = vpop.permute.xlu0 %1054
      %1100 = vrot.lane.b32.xlu0 %v560, 12
      %v1101 = vpop.permute.xlu0 %1100
      %1102 = vrot.lane.b32.xlu0 %v561, 12
      %v1103 = vpop.permute.xlu0 %1102
      %1104 = vrot.lane.b32.xlu0 %v562, 12
      %v1105 = vpop.permute.xlu0 %1104
      %1106 = vrot.lane.b32.xlu0 %v563, 12
      %v1107 = vpop.permute.xlu0 %1106
      %1108 = vrot.lane.b32.xlu0 %v564, 12
      %v1109 = vpop.permute.xlu0 %1108
      %1110 = vrot.lane.b32.xlu0 %v565, 12
      %v1111 = vpop.permute.xlu0 %1110
      %1112 = vrot.lane.b32.xlu0 %v566, 12
      %v1113 = vpop.permute.xlu0 %1112
      %1114 = vrot.lane.b32.xlu0 %v567, 12
      %v1115 = vpop.permute.xlu0 %1114
      %1116 = vrot.lane.b32.xlu0 %v568, 12
      %v1117 = vpop.permute.xlu0 %1116
      %1118 = vrot.lane.b32.xlu0 %v569, 12
      %v1119 = vpop.permute.xlu0 %1118
      %1120 = vrot.lane.b32.xlu0 %v570, 12
      %v1121 = vpop.permute.xlu0 %1120
      %1122 = vrot.lane.b32.xlu0 %v571, 12
      %v1123 = vpop.permute.xlu0 %1122
      %1124 = vrot.lane.b32.xlu0 %v572, 12
      %v1125 = vpop.permute.xlu0 %1124
      %1126 = vrot.lane.b32.xlu0 %v573, 12
      %v1127 = vpop.permute.xlu0 %1126
      %1128 = vrot.lane.b32.xlu0 %v574, 12
      %v1129 = vpop.permute.xlu0 %1128
      %1130 = vrot.lane.b32.xlu0 %v575, 12
      %v1131 = vpop.permute.xlu0 %1130
      %1132 = vrot.lane.b32.xlu0 %v576, 12
      %v1133 = vpop.permute.xlu0 %1132
      %1134 = vrot.lane.b32.xlu0 %v577, 12
      %v1135 = vpop.permute.xlu0 %1134
      %1136 = vrot.lane.b32.xlu0 %v578, 12
      %v1137 = vpop.permute.xlu0 %1136
      %1138 = vrot.lane.b32.xlu0 %v579, 12
      %v1139 = vpop.permute.xlu0 %1138
      %1140 = vrot.lane.b32.xlu0 %v580, 12
      %v1141 = vpop.permute.xlu0 %1140
      %1142 = vrot.lane.b32.xlu0 %v581, 12
      %v1143 = vpop.permute.xlu0 %1142
      %1144 = vrot.lane.b32.xlu0 %v582, 12
      %v1145 = vpop.permute.xlu0 %1144
      %1146 = vrot.lane.b32.xlu0 %v583, 12
      %v1147 = vpop.permute.xlu0 %1146
      %1148 = vrot.lane.b32.xlu0 %v584, 12
      %v1149 = vpop.permute.xlu0 %1148
      %1150 = vrot.lane.b32.xlu0 %v585, 12
      %v1151 = vpop.permute.xlu0 %1150
      %1152 = vrot.lane.b32.xlu0 %v586, 12
      %v1153 = vpop.permute.xlu0 %1152
      %1154 = vrot.lane.b32.xlu0 %v587, 12
      %v1155 = vpop.permute.xlu0 %1154
      %1156 = vrot.lane.b32.xlu0 %v588, 12
      %v1157 = vpop.permute.xlu0 %1156
      %1158 = vrot.lane.b32.xlu0 %v589, 12
      %v1159 = vpop.permute.xlu0 %1158
      %1160 = vrot.lane.b32.xlu0 %v590, 12
      %v1161 = vpop.permute.xlu0 %1160
      %1162 = vrot.lane.b32.xlu0 %v591, 12
      %v1163 = vpop.permute.xlu0 %1162
      %1164 = vrot.lane.b32.xlu0 %v592, 12
      %v1165 = vpop.permute.xlu0 %1164
      %1166 = vrot.lane.b32.xlu0 %v593, 12
      %v1167 = vpop.permute.xlu0 %1166
      %1168 = vrot.lane.b32.xlu0 %v594, 12
      %v1169 = vpop.permute.xlu0 %1168
      %1170 = vrot.lane.b32.xlu0 %v595, 12
      %v1171 = vpop.permute.xlu0 %1170
      %1172 = vrot.lane.b32.xlu0 %v596, 12
      %v1173 = vpop.permute.xlu0 %1172
      %1174 = vrot.lane.b32.xlu0 %v597, 12
      %v1175 = vpop.permute.xlu0 %1174
      %1176 = vrot.lane.b32.xlu0 %v599, 12
      %v1177 = vpop.permute.xlu0 %1176
      %1178 = vrot.lane.b32.xlu0 %v600, 12
      %v1179 = vpop.permute.xlu0 %1178
      %1180 = vrot.lane.b32.xlu0 %v601, 12
      %v1181 = vpop.permute.xlu0 %1180
      %1264 = vrot.lane.b32.xlu0 %v602, 16
      %v1265 = vpop.permute.xlu0 %1264
      %1266 = vrot.lane.b32.xlu0 %v603, 16
      %v1267 = vpop.permute.xlu0 %1266
      %1268 = vrot.lane.b32.xlu0 %v604, 16
      %v1269 = vpop.permute.xlu0 %1268
      %1270 = vrot.lane.b32.xlu0 %v605, 16
      %v1271 = vpop.permute.xlu0 %1270
      %1272 = vrot.lane.b32.xlu0 %v606, 16
      %v1273 = vpop.permute.xlu0 %1272
      %1274 = vrot.lane.b32.xlu0 %v607, 16
      %v1275 = vpop.permute.xlu0 %1274
      %1276 = vrot.lane.b32.xlu0 %v608, 16
      %v1277 = vpop.permute.xlu0 %1276
      %1278 = vrot.lane.b32.xlu0 %v609, 16
      %v1279 = vpop.permute.xlu0 %1278
      %1280 = vrot.lane.b32.xlu0 %v610, 16
      %v1281 = vpop.permute.xlu0 %1280
      %1282 = vrot.lane.b32.xlu0 %v611, 16
      %v1283 = vpop.permute.xlu0 %1282
      %1284 = vrot.lane.b32.xlu0 %v612, 16
      %v1285 = vpop.permute.xlu0 %1284
      %1286 = vrot.lane.b32.xlu0 %v613, 16
      %v1287 = vpop.permute.xlu0 %1286
      %1288 = vrot.lane.b32.xlu0 %v614, 16
      %v1289 = vpop.permute.xlu0 %1288
      %1290 = vrot.lane.b32.xlu0 %v615, 16
      %v1291 = vpop.permute.xlu0 %1290
      %1292 = vrot.lane.b32.xlu0 %v616, 16
      %v1293 = vpop.permute.xlu0 %1292
      %1294 = vrot.lane.b32.xlu0 %v617, 16
      %v1295 = vpop.permute.xlu0 %1294
      %1296 = vrot.lane.b32.xlu0 %v618, 16
      %v1297 = vpop.permute.xlu0 %1296
      %1298 = vrot.lane.b32.xlu0 %v619, 16
      %v1299 = vpop.permute.xlu0 %1298
      %1300 = vrot.lane.b32.xlu0 %v620, 16
      %v1301 = vpop.permute.xlu0 %1300
      %1302 = vrot.lane.b32.xlu0 %v621, 16
      %v1303 = vpop.permute.xlu0 %1302
      %1304 = vrot.lane.b32.xlu0 %v622, 16
      %v1305 = vpop.permute.xlu0 %1304
      %1306 = vrot.lane.b32.xlu0 %v623, 16
      %v1307 = vpop.permute.xlu0 %1306
      %1308 = vrot.lane.b32.xlu0 %v624, 16
      %v1309 = vpop.permute.xlu0 %1308
      %1310 = vrot.lane.b32.xlu0 %v625, 16
      %v1311 = vpop.permute.xlu0 %1310
      %1312 = vrot.lane.b32.xlu0 %v626, 16
      %v1313 = vpop.permute.xlu0 %1312
      %1314 = vrot.lane.b32.xlu0 %v627, 16
      %v1315 = vpop.permute.xlu0 %1314
      %1316 = vrot.lane.b32.xlu0 %v628, 16
      %v1317 = vpop.permute.xlu0 %1316
      %1318 = vrot.lane.b32.xlu0 %v629, 16
      %v1319 = vpop.permute.xlu0 %1318
      %1320 = vrot.lane.b32.xlu0 %v630, 16
      %v1321 = vpop.permute.xlu0 %1320
      %1322 = vrot.lane.b32.xlu0 %v631, 16
      %v1323 = vpop.permute.xlu0 %1322
      %1324 = vrot.lane.b32.xlu0 %v632, 16
      %v1325 = vpop.permute.xlu0 %1324
      %1326 = vrot.lane.b32.xlu0 %v633, 16
      %v1327 = vpop.permute.xlu0 %1326
      %1328 = vrot.lane.b32.xlu0 %v634, 16
      %v1329 = vpop.permute.xlu0 %1328
      %1330 = vrot.lane.b32.xlu0 %v635, 16
      %v1331 = vpop.permute.xlu0 %1330
      %1332 = vrot.lane.b32.xlu0 %v636, 16
      %v1333 = vpop.permute.xlu0 %1332
      %1334 = vrot.lane.b32.xlu0 %v637, 16
      %v1335 = vpop.permute.xlu0 %1334
      %1336 = vrot.lane.b32.xlu0 %v638, 16
      %v1337 = vpop.permute.xlu0 %1336
      %1338 = vrot.lane.b32.xlu0 %v639, 16
      %v1339 = vpop.permute.xlu0 %1338
      %1340 = vrot.lane.b32.xlu0 %v640, 16
      %v1341 = vpop.permute.xlu0 %1340
      %1342 = vrot.lane.b32.xlu0 %v641, 16
      %v1343 = vpop.permute.xlu0 %1342
      %1344 = vrot.lane.b32.xlu0 %v642, 16
      %v1345 = vpop.permute.xlu0 %1344
      %1428 = vrot.lane.b32.xlu0 %v643, 20
      %v1429 = vpop.permute.xlu0 %1428
      %1430 = vrot.lane.b32.xlu0 %v644, 20
      %v1431 = vpop.permute.xlu0 %1430
      %1432 = vrot.lane.b32.xlu0 %v645, 20
      %v1433 = vpop.permute.xlu0 %1432
      %1434 = vrot.lane.b32.xlu0 %v646, 20
      %v1435 = vpop.permute.xlu0 %1434
      %1436 = vrot.lane.b32.xlu0 %v647, 20
      %v1437 = vpop.permute.xlu0 %1436
      %1438 = vrot.lane.b32.xlu0 %v648, 20
      %v1439 = vpop.permute.xlu0 %1438
      %1440 = vrot.lane.b32.xlu0 %v649, 20
      %v1441 = vpop.permute.xlu0 %1440
      %1442 = vrot.lane.b32.xlu0 %v650, 20
      %v1443 = vpop.permute.xlu0 %1442
      %1444 = vrot.lane.b32.xlu0 %v651, 20
      %v1445 = vpop.permute.xlu0 %1444
      %1446 = vrot.lane.b32.xlu0 %v652, 20
      %v1447 = vpop.permute.xlu0 %1446
      %1448 = vrot.lane.b32.xlu0 %v653, 20
      %v1449 = vpop.permute.xlu0 %1448
      %1450 = vrot.lane.b32.xlu0 %v654, 20
      %v1451 = vpop.permute.xlu0 %1450
      %1452 = vrot.lane.b32.xlu0 %v655, 20
      %v1453 = vpop.permute.xlu0 %1452
      %1454 = vrot.lane.b32.xlu0 %v656, 20
      %v1455 = vpop.permute.xlu0 %1454
      %1456 = vrot.lane.b32.xlu0 %v657, 20
      %v1457 = vpop.permute.xlu0 %1456
      %1458 = vrot.lane.b32.xlu0 %v658, 20
      %v1459 = vpop.permute.xlu0 %1458
      %1460 = vrot.lane.b32.xlu0 %v659, 20
      %v1461 = vpop.permute.xlu0 %1460
      %1462 = vrot.lane.b32.xlu0 %v660, 20
      %v1463 = vpop.permute.xlu0 %1462
      %1464 = vrot.lane.b32.xlu0 %v661, 20
      %v1465 = vpop.permute.xlu0 %1464
      %1466 = vrot.lane.b32.xlu0 %v662, 20
      %v1467 = vpop.permute.xlu0 %1466
      %1468 = vrot.lane.b32.xlu0 %v663, 20
      %v1469 = vpop.permute.xlu0 %1468
      %1470 = vrot.lane.b32.xlu0 %v664, 20
      %v1471 = vpop.permute.xlu0 %1470
      %1472 = vrot.lane.b32.xlu0 %v665, 20
      %v1473 = vpop.permute.xlu0 %1472
      %1474 = vrot.lane.b32.xlu0 %v666, 20
      %v1475 = vpop.permute.xlu0 %1474
      %1476 = vrot.lane.b32.xlu0 %v667, 20
      %v1477 = vpop.permute.xlu0 %1476
      %1478 = vrot.lane.b32.xlu0 %v668, 20
      %v1479 = vpop.permute.xlu0 %1478
      %1480 = vrot.lane.b32.xlu0 %v669, 20
      %v1481 = vpop.permute.xlu0 %1480
      %1482 = vrot.lane.b32.xlu0 %v670, 20
      %v1483 = vpop.permute.xlu0 %1482
      %1484 = vrot.lane.b32.xlu0 %v671, 20
      %v1485 = vpop.permute.xlu0 %1484
      %1486 = vrot.lane.b32.xlu0 %v672, 20
      %v1487 = vpop.permute.xlu0 %1486
      %1488 = vrot.lane.b32.xlu0 %v673, 20
      %v1489 = vpop.permute.xlu0 %1488
      %1490 = vrot.lane.b32.xlu0 %v674, 20
      %v1491 = vpop.permute.xlu0 %1490
      %1492 = vrot.lane.b32.xlu0 %v675, 20
      %v1493 = vpop.permute.xlu0 %1492
      %1494 = vrot.lane.b32.xlu0 %v676, 20
      %v1495 = vpop.permute.xlu0 %1494
      %1496 = vrot.lane.b32.xlu0 %v677, 20
      %v1497 = vpop.permute.xlu0 %1496
      %1498 = vrot.lane.b32.xlu0 %v678, 20
      %v1499 = vpop.permute.xlu0 %1498
      %1500 = vrot.lane.b32.xlu0 %v679, 20
      %v1501 = vpop.permute.xlu0 %1500
      %1502 = vrot.lane.b32.xlu0 %v680, 20
      %v1503 = vpop.permute.xlu0 %1502
      %1504 = vrot.lane.b32.xlu0 %v681, 20
      %v1505 = vpop.permute.xlu0 %1504
      %1506 = vrot.lane.b32.xlu0 %v682, 20
      %v1507 = vpop.permute.xlu0 %1506
      %1508 = vrot.lane.b32.xlu0 %v683, 20
      %v1509 = vpop.permute.xlu0 %1508
      %1554 = vrot.lane.b32.xlu0 %v645, 24
      %v1555 = vpop.permute.xlu0 %1554
      %1556 = vrot.lane.b32.xlu0 %v646, 24
      %v1557 = vpop.permute.xlu0 %1556
      %1558 = vrot.lane.b32.xlu0 %v647, 24
      %v1559 = vpop.permute.xlu0 %1558
      %1560 = vrot.lane.b32.xlu0 %v648, 24
      %v1561 = vpop.permute.xlu0 %1560
      %1562 = vrot.lane.b32.xlu0 %v649, 24
      %v1563 = vpop.permute.xlu0 %1562
      %1564 = vrot.lane.b32.xlu0 %v650, 24
      %v1565 = vpop.permute.xlu0 %1564
      %1566 = vrot.lane.b32.xlu0 %v651, 24
      %v1567 = vpop.permute.xlu0 %1566
      %1568 = vrot.lane.b32.xlu0 %v652, 24
      %v1569 = vpop.permute.xlu0 %1568
      %1570 = vrot.lane.b32.xlu0 %v653, 24
      %v1571 = vpop.permute.xlu0 %1570
      %1572 = vrot.lane.b32.xlu0 %v654, 24
      %v1573 = vpop.permute.xlu0 %1572
      %1574 = vrot.lane.b32.xlu0 %v655, 24
      %v1575 = vpop.permute.xlu0 %1574
      %1576 = vrot.lane.b32.xlu0 %v656, 24
      %v1577 = vpop.permute.xlu0 %1576
      %1578 = vrot.lane.b32.xlu0 %v657, 24
      %v1579 = vpop.permute.xlu0 %1578
      %1580 = vrot.lane.b32.xlu0 %v658, 24
      %v1581 = vpop.permute.xlu0 %1580
      %1582 = vrot.lane.b32.xlu0 %v659, 24
      %v1583 = vpop.permute.xlu0 %1582
      %1584 = vrot.lane.b32.xlu0 %v660, 24
      %v1585 = vpop.permute.xlu0 %1584
      %1586 = vrot.lane.b32.xlu0 %v661, 24
      %v1587 = vpop.permute.xlu0 %1586
      %1588 = vrot.lane.b32.xlu0 %v662, 24
      %v1589 = vpop.permute.xlu0 %1588
      %1590 = vrot.lane.b32.xlu0 %v663, 24
      %v1591 = vpop.permute.xlu0 %1590
      %1592 = vrot.lane.b32.xlu0 %v664, 24
      %v1593 = vpop.permute.xlu0 %1592
      %1594 = vrot.lane.b32.xlu0 %v665, 24
      %v1595 = vpop.permute.xlu0 %1594
      %1596 = vrot.lane.b32.xlu0 %v666, 24
      %v1597 = vpop.permute.xlu0 %1596
      %1598 = vrot.lane.b32.xlu0 %v667, 24
      %v1599 = vpop.permute.xlu0 %1598
      %1600 = vrot.lane.b32.xlu0 %v668, 24
      %v1601 = vpop.permute.xlu0 %1600
      %1602 = vrot.lane.b32.xlu0 %v669, 24
      %v1603 = vpop.permute.xlu0 %1602
      %1604 = vrot.lane.b32.xlu0 %v670, 24
      %v1605 = vpop.permute.xlu0 %1604
      %1606 = vrot.lane.b32.xlu0 %v671, 24
      %v1607 = vpop.permute.xlu0 %1606
      %1608 = vrot.lane.b32.xlu0 %v672, 24
      %v1609 = vpop.permute.xlu0 %1608
      %1610 = vrot.lane.b32.xlu0 %v673, 24
      %v1611 = vpop.permute.xlu0 %1610
      %1612 = vrot.lane.b32.xlu0 %v674, 24
      %v1613 = vpop.permute.xlu0 %1612
      %1614 = vrot.lane.b32.xlu0 %v675, 24
      %v1615 = vpop.permute.xlu0 %1614
      %1616 = vrot.lane.b32.xlu0 %v676, 24
      %v1617 = vpop.permute.xlu0 %1616
      %1618 = vrot.lane.b32.xlu0 %v677, 24
      %v1619 = vpop.permute.xlu0 %1618
      %1620 = vrot.lane.b32.xlu0 %v678, 24
      %v1621 = vpop.permute.xlu0 %1620
      %1622 = vrot.lane.b32.xlu0 %v679, 24
      %v1623 = vpop.permute.xlu0 %1622
      %1624 = vrot.lane.b32.xlu0 %v680, 24
      %v1625 = vpop.permute.xlu0 %1624
      %1626 = vrot.lane.b32.xlu0 %v681, 24
      %v1627 = vpop.permute.xlu0 %1626
      %1628 = vrot.lane.b32.xlu0 %v682, 24
      %v1629 = vpop.permute.xlu0 %1628
      %1630 = vrot.lane.b32.xlu0 %v684, 24
      %v1631 = vpop.permute.xlu0 %1630
      %1632 = vrot.lane.b32.xlu0 %v685, 24
      %v1633 = vpop.permute.xlu0 %1632
      %1634 = vrot.lane.b32.xlu0 %v686, 24
      %v1635 = vpop.permute.xlu0 %1634
      %1718 = vrot.lane.b32.xlu0 %v687, 28
      %v1719 = vpop.permute.xlu0 %1718
      %1720 = vrot.lane.b32.xlu0 %v688, 28
      %v1721 = vpop.permute.xlu0 %1720
      %1722 = vrot.lane.b32.xlu0 %v689, 28
      %v1723 = vpop.permute.xlu0 %1722
      %1724 = vrot.lane.b32.xlu0 %v690, 28
      %v1725 = vpop.permute.xlu0 %1724
      %1726 = vrot.lane.b32.xlu0 %v691, 28
      %v1727 = vpop.permute.xlu0 %1726
      %1728 = vrot.lane.b32.xlu0 %v692, 28
      %v1729 = vpop.permute.xlu0 %1728
      %1730 = vrot.lane.b32.xlu0 %v693, 28
      %v1731 = vpop.permute.xlu0 %1730
      %1732 = vrot.lane.b32.xlu0 %v694, 28
      %v1733 = vpop.permute.xlu0 %1732
      %1734 = vrot.lane.b32.xlu0 %v695, 28
      %v1735 = vpop.permute.xlu0 %1734
      %1736 = vrot.lane.b32.xlu0 %v696, 28
      %v1737 = vpop.permute.xlu0 %1736
      %1738 = vrot.lane.b32.xlu0 %v697, 28
      %v1739 = vpop.permute.xlu0 %1738
      %1740 = vrot.lane.b32.xlu0 %v698, 28
      %v1741 = vpop.permute.xlu0 %1740
      %1742 = vrot.lane.b32.xlu0 %v699, 28
      %v1743 = vpop.permute.xlu0 %1742
      %1744 = vrot.lane.b32.xlu0 %v700, 28
      %v1745 = vpop.permute.xlu0 %1744
      %1746 = vrot.lane.b32.xlu0 %v701, 28
      %v1747 = vpop.permute.xlu0 %1746
      %1748 = vrot.lane.b32.xlu0 %v702, 28
      %v1749 = vpop.permute.xlu0 %1748
      %1750 = vrot.lane.b32.xlu0 %v703, 28
      %v1751 = vpop.permute.xlu0 %1750
      %1752 = vrot.lane.b32.xlu0 %v704, 28
      %v1753 = vpop.permute.xlu0 %1752
      %1754 = vrot.lane.b32.xlu0 %v705, 28
      %v1755 = vpop.permute.xlu0 %1754
      %1756 = vrot.lane.b32.xlu0 %v706, 28
      %v1757 = vpop.permute.xlu0 %1756
      %1758 = vrot.lane.b32.xlu0 %v707, 28
      %v1759 = vpop.permute.xlu0 %1758
      %1760 = vrot.lane.b32.xlu0 %v708, 28
      %v1761 = vpop.permute.xlu0 %1760
      %1762 = vrot.lane.b32.xlu0 %v709, 28
      %v1763 = vpop.permute.xlu0 %1762
      %1764 = vrot.lane.b32.xlu0 %v710, 28
      %v1765 = vpop.permute.xlu0 %1764
      %1766 = vrot.lane.b32.xlu0 %v711, 28
      %v1767 = vpop.permute.xlu0 %1766
      %1768 = vrot.lane.b32.xlu0 %v712, 28
      %v1769 = vpop.permute.xlu0 %1768
      %1770 = vrot.lane.b32.xlu0 %v713, 28
      %v1771 = vpop.permute.xlu0 %1770
      %1772 = vrot.lane.b32.xlu0 %v714, 28
      %v1773 = vpop.permute.xlu0 %1772
      %1774 = vrot.lane.b32.xlu0 %v715, 28
      %v1775 = vpop.permute.xlu0 %1774
      %1776 = vrot.lane.b32.xlu0 %v716, 28
      %v1777 = vpop.permute.xlu0 %1776
      %1778 = vrot.lane.b32.xlu0 %v717, 28
      %v1779 = vpop.permute.xlu0 %1778
      %1780 = vrot.lane.b32.xlu0 %v718, 28
      %v1781 = vpop.permute.xlu0 %1780
      %1782 = vrot.lane.b32.xlu0 %v719, 28
      %v1783 = vpop.permute.xlu0 %1782
      %1784 = vrot.lane.b32.xlu0 %v720, 28
      %v1785 = vpop.permute.xlu0 %1784
      %1786 = vrot.lane.b32.xlu0 %v721, 28
      %v1787 = vpop.permute.xlu0 %1786
      %1788 = vrot.lane.b32.xlu0 %v722, 28
      %v1789 = vpop.permute.xlu0 %1788
      %1790 = vrot.lane.b32.xlu0 %v723, 28
      %v1791 = vpop.permute.xlu0 %1790
      %1792 = vrot.lane.b32.xlu0 %v724, 28
      %v1793 = vpop.permute.xlu0 %1792
      %1794 = vrot.lane.b32.xlu0 %v725, 28
      %v1795 = vpop.permute.xlu0 %1794
      %1796 = vrot.lane.b32.xlu0 %v726, 28
      %v1797 = vpop.permute.xlu0 %1796
      %1798 = vrot.lane.b32.xlu0 %v727, 28
      %v1799 = vpop.permute.xlu0 %1798
      %1882 = vrot.lane.b32.xlu0 %v728, 32
      %v1883 = vpop.permute.xlu0 %1882
      %1884 = vrot.lane.b32.xlu0 %v729, 32
      %v1885 = vpop.permute.xlu0 %1884
      %1886 = vrot.lane.b32.xlu0 %v730, 32
      %v1887 = vpop.permute.xlu0 %1886
      %1888 = vrot.lane.b32.xlu0 %v731, 32
      %v1889 = vpop.permute.xlu0 %1888
      %1890 = vrot.lane.b32.xlu0 %v732, 32
      %v1891 = vpop.permute.xlu0 %1890
      %1892 = vrot.lane.b32.xlu0 %v733, 32
      %v1893 = vpop.permute.xlu0 %1892
      %1894 = vrot.lane.b32.xlu0 %v734, 32
      %v1895 = vpop.permute.xlu0 %1894
      %1896 = vrot.lane.b32.xlu0 %v735, 32
      %v1897 = vpop.permute.xlu0 %1896
      %1898 = vrot.lane.b32.xlu0 %v736, 32
      %v1899 = vpop.permute.xlu0 %1898
      %1900 = vrot.lane.b32.xlu0 %v737, 32
      %v1901 = vpop.permute.xlu0 %1900
      %1902 = vrot.lane.b32.xlu0 %v738, 32
      %v1903 = vpop.permute.xlu0 %1902
      %1904 = vrot.lane.b32.xlu0 %v739, 32
      %v1905 = vpop.permute.xlu0 %1904
      %1906 = vrot.lane.b32.xlu0 %v740, 32
      %v1907 = vpop.permute.xlu0 %1906
      %1908 = vrot.lane.b32.xlu0 %v741, 32
      %v1909 = vpop.permute.xlu0 %1908
      %1910 = vrot.lane.b32.xlu0 %v742, 32
      %v1911 = vpop.permute.xlu0 %1910
      %1912 = vrot.lane.b32.xlu0 %v743, 32
      %v1913 = vpop.permute.xlu0 %1912
      %1914 = vrot.lane.b32.xlu0 %v744, 32
      %v1915 = vpop.permute.xlu0 %1914
      %1916 = vrot.lane.b32.xlu0 %v745, 32
      %v1917 = vpop.permute.xlu0 %1916
      %1918 = vrot.lane.b32.xlu0 %v746, 32
      %v1919 = vpop.permute.xlu0 %1918
      %1920 = vrot.lane.b32.xlu0 %v747, 32
      %v1921 = vpop.permute.xlu0 %1920
      %1922 = vrot.lane.b32.xlu0 %v748, 32
      %v1923 = vpop.permute.xlu0 %1922
      %1924 = vrot.lane.b32.xlu0 %v749, 32
      %v1925 = vpop.permute.xlu0 %1924
      %1926 = vrot.lane.b32.xlu0 %v750, 32
      %v1927 = vpop.permute.xlu0 %1926
      %1928 = vrot.lane.b32.xlu0 %v751, 32
      %v1929 = vpop.permute.xlu0 %1928
      %1930 = vrot.lane.b32.xlu0 %v752, 32
      %v1931 = vpop.permute.xlu0 %1930
      %1932 = vrot.lane.b32.xlu0 %v753, 32
      %v1933 = vpop.permute.xlu0 %1932
      %1934 = vrot.lane.b32.xlu0 %v754, 32
      %v1935 = vpop.permute.xlu0 %1934
      %1936 = vrot.lane.b32.xlu0 %v755, 32
      %v1937 = vpop.permute.xlu0 %1936
      %1938 = vrot.lane.b32.xlu0 %v756, 32
      %v1939 = vpop.permute.xlu0 %1938
      %1940 = vrot.lane.b32.xlu0 %v757, 32
      %v1941 = vpop.permute.xlu0 %1940
      %1942 = vrot.lane.b32.xlu0 %v758, 32
      %v1943 = vpop.permute.xlu0 %1942
      %1944 = vrot.lane.b32.xlu0 %v759, 32
      %v1945 = vpop.permute.xlu0 %1944
      %1946 = vrot.lane.b32.xlu0 %v760, 32
      %v1947 = vpop.permute.xlu0 %1946
      %1948 = vrot.lane.b32.xlu0 %v761, 32
      %v1949 = vpop.permute.xlu0 %1948
      %1950 = vrot.lane.b32.xlu0 %v762, 32
      %v1951 = vpop.permute.xlu0 %1950
      %1952 = vrot.lane.b32.xlu0 %v763, 32
      %v1953 = vpop.permute.xlu0 %1952
      %1954 = vrot.lane.b32.xlu0 %v764, 32
      %v1955 = vpop.permute.xlu0 %1954
      %1956 = vrot.lane.b32.xlu0 %v765, 32
      %v1957 = vpop.permute.xlu0 %1956
      %1958 = vrot.lane.b32.xlu0 %v766, 32
      %v1959 = vpop.permute.xlu0 %1958
      %1960 = vrot.lane.b32.xlu0 %v767, 32
      %v1961 = vpop.permute.xlu0 %1960
      %1962 = vrot.lane.b32.xlu0 %v768, 32
      %v1963 = vpop.permute.xlu0 %1962
      %vm2005 = vcmask 31744
      %v2006 = vsel %vm2005, %v476, %v811
      %v2007 = vsel %vm2005, %v477, %v813
      %v2008 = vsel %vm2005, %v478, %v815
      %v2009 = vsel %vm2005, %v479, %v817
      %v2010 = vsel %vm2005, %v480, %v819
      %v2011 = vsel %vm2005, %v481, %v821
      %v2012 = vsel %vm2005, %v482, %v823
      %v2013 = vsel %vm2005, %v483, %v825
      %v2014 = vsel %vm2005, %v484, %v827
      %v2015 = vsel %vm2005, %v485, %v829
      %v2016 = vsel %vm2005, %v486, %v831
      %v2017 = vsel %vm2005, %v487, %v833
      %v2018 = vsel %vm2005, %v488, %v835
      %v2019 = vsel %vm2005, %v489, %v837
      %v2020 = vsel %vm2005, %v490, %v839
      %v2021 = vsel %vm2005, %v491, %v841
      %v2022 = vsel %vm2005, %v492, %v843
      %v2023 = vsel %vm2005, %v493, %v845
      %v2024 = vsel %vm2005, %v494, %v847
      %v2025 = vsel %vm2005, %v495, %v849
      %v2026 = vsel %vm2005, %v496, %v851
      %v2027 = vsel %vm2005, %v497, %v853
      %v2028 = vsel %vm2005, %v498, %v855
      %v2029 = vsel %vm2005, %v499, %v857
      %v2030 = vsel %vm2005, %v500, %v859
      %v2031 = vsel %vm2005, %v501, %v861
      %v2032 = vsel %vm2005, %v502, %v863
      %v2033 = vsel %vm2005, %v503, %v865
      %v2034 = vsel %vm2005, %v504, %v867
      %v2035 = vsel %vm2005, %v505, %v869
      %v2036 = vsel %vm2005, %v506, %v871
      %v2037 = vsel %vm2005, %v507, %v873
      %v2038 = vsel %vm2005, %v508, %v875
      %v2039 = vsel %vm2005, %v509, %v877
      %v2040 = vsel %vm2005, %v510, %v879
      %v2041 = vsel %vm2005, %v511, %v881
      %v2042 = vsel %vm2005, %v512, %v883
      %v2043 = vsel %vm2005, %v513, %v885
      %v2044 = vsel %vm2005, %v514, %v887
      %v2045 = vsel %vm2005, %v515, %v889
      %v2046 = vsel %vm2005, %v516, %v891
      %vm2047 = vcmask 64512
      %v2048 = vsel %vm2047, %v2006, %v975
      %v2049 = vsel %vm2047, %v2007, %v977
      %v2050 = vsel %vm2047, %v2008, %v979
      %v2051 = vsel %vm2047, %v2009, %v981
      %v2052 = vsel %vm2047, %v2010, %v983
      %v2053 = vsel %vm2047, %v2011, %v985
      %v2054 = vsel %vm2047, %v2012, %v987
      %v2055 = vsel %vm2047, %v2013, %v989
      %v2056 = vsel %vm2047, %v2014, %v991
      %v2057 = vsel %vm2047, %v2015, %v993
      %v2058 = vsel %vm2047, %v2016, %v995
      %v2059 = vsel %vm2047, %v2017, %v997
      %v2060 = vsel %vm2047, %v2018, %v999
      %v2061 = vsel %vm2047, %v2019, %v1001
      %v2062 = vsel %vm2047, %v2020, %v1003
      %v2063 = vsel %vm2047, %v2021, %v1005
      %v2064 = vsel %vm2047, %v2022, %v1007
      %v2065 = vsel %vm2047, %v2023, %v1009
      %v2066 = vsel %vm2047, %v2024, %v1011
      %v2067 = vsel %vm2047, %v2025, %v1013
      %v2068 = vsel %vm2047, %v2026, %v1015
      %v2069 = vsel %vm2047, %v2027, %v1017
      %v2070 = vsel %vm2047, %v2028, %v1019
      %v2071 = vsel %vm2047, %v2029, %v1021
      %v2072 = vsel %vm2047, %v2030, %v1023
      %v2073 = vsel %vm2047, %v2031, %v1025
      %v2074 = vsel %vm2047, %v2032, %v1027
      %v2075 = vsel %vm2047, %v2033, %v1029
      %v2076 = vsel %vm2047, %v2034, %v1031
      %v2077 = vsel %vm2047, %v2035, %v1033
      %v2078 = vsel %vm2047, %v2036, %v1035
      %v2079 = vsel %vm2047, %v2037, %v1037
      %v2080 = vsel %vm2047, %v2038, %v1039
      %v2081 = vsel %vm2047, %v2039, %v1041
      %v2082 = vsel %vm2047, %v2040, %v1043
      %v2083 = vsel %vm2047, %v2041, %v1045
      %v2084 = vsel %vm2047, %v2042, %v1047
      %v2085 = vsel %vm2047, %v2043, %v1049
      %v2086 = vsel %vm2047, %v2044, %v1051
      %v2087 = vsel %vm2047, %v2045, %v1053
      %v2088 = vsel %vm2047, %v2046, %v1055
      %vm2089 = vcmask 97280
      %v2090 = vsel %vm2089, %v2048, %v1101
      %v2091 = vsel %vm2089, %v2049, %v1103
      %v2092 = vsel %vm2089, %v2050, %v1105
      %v2093 = vsel %vm2089, %v2051, %v1107
      %v2094 = vsel %vm2089, %v2052, %v1109
      %v2095 = vsel %vm2089, %v2053, %v1111
      %v2096 = vsel %vm2089, %v2054, %v1113
      %v2097 = vsel %vm2089, %v2055, %v1115
      %v2098 = vsel %vm2089, %v2056, %v1117
      %v2099 = vsel %vm2089, %v2057, %v1119
      %v2100 = vsel %vm2089, %v2058, %v1121
      %v2101 = vsel %vm2089, %v2059, %v1123
      %v2102 = vsel %vm2089, %v2060, %v1125
      %v2103 = vsel %vm2089, %v2061, %v1127
      %v2104 = vsel %vm2089, %v2062, %v1129
      %v2105 = vsel %vm2089, %v2063, %v1131
      %v2106 = vsel %vm2089, %v2064, %v1133
      %v2107 = vsel %vm2089, %v2065, %v1135
      %v2108 = vsel %vm2089, %v2066, %v1137
      %v2109 = vsel %vm2089, %v2067, %v1139
      %v2110 = vsel %vm2089, %v2068, %v1141
      %v2111 = vsel %vm2089, %v2069, %v1143
      %v2112 = vsel %vm2089, %v2070, %v1145
      %v2113 = vsel %vm2089, %v2071, %v1147
      %v2114 = vsel %vm2089, %v2072, %v1149
      %v2115 = vsel %vm2089, %v2073, %v1151
      %v2116 = vsel %vm2089, %v2074, %v1153
      %v2117 = vsel %vm2089, %v2075, %v1155
      %v2118 = vsel %vm2089, %v2076, %v1157
      %v2119 = vsel %vm2089, %v2077, %v1159
      %v2120 = vsel %vm2089, %v2078, %v1161
      %v2121 = vsel %vm2089, %v2079, %v1163
      %v2122 = vsel %vm2089, %v2080, %v1165
      %v2123 = vsel %vm2089, %v2081, %v1167
      %v2124 = vsel %vm2089, %v2082, %v1169
      %v2125 = vsel %vm2089, %v2083, %v1171
      %v2126 = vsel %vm2089, %v2084, %v1173
      %v2127 = vsel %vm2089, %v2085, %v1175
      %v2128 = vsel %vm2089, %v2086, %v1177
      %v2129 = vsel %vm2089, %v2087, %v1179
      %v2130 = vsel %vm2089, %v2088, %v1181
      %vm2131 = vcmask 130048
      %v2132 = vsel %vm2131, %v2090, %v1265
      %v2133 = vsel %vm2131, %v2091, %v1267
      %v2134 = vsel %vm2131, %v2092, %v1269
      %v2135 = vsel %vm2131, %v2093, %v1271
      %v2136 = vsel %vm2131, %v2094, %v1273
      %v2137 = vsel %vm2131, %v2095, %v1275
      %v2138 = vsel %vm2131, %v2096, %v1277
      %v2139 = vsel %vm2131, %v2097, %v1279
      %v2140 = vsel %vm2131, %v2098, %v1281
      %v2141 = vsel %vm2131, %v2099, %v1283
      %v2142 = vsel %vm2131, %v2100, %v1285
      %v2143 = vsel %vm2131, %v2101, %v1287
      %v2144 = vsel %vm2131, %v2102, %v1289
      %v2145 = vsel %vm2131, %v2103, %v1291
      %v2146 = vsel %vm2131, %v2104, %v1293
      %v2147 = vsel %vm2131, %v2105, %v1295
      %v2148 = vsel %vm2131, %v2106, %v1297
      %v2149 = vsel %vm2131, %v2107, %v1299
      %v2150 = vsel %vm2131, %v2108, %v1301
      %v2151 = vsel %vm2131, %v2109, %v1303
      %v2152 = vsel %vm2131, %v2110, %v1305
      %v2153 = vsel %vm2131, %v2111, %v1307
      %v2154 = vsel %vm2131, %v2112, %v1309
      %v2155 = vsel %vm2131, %v2113, %v1311
      %v2156 = vsel %vm2131, %v2114, %v1313
      %v2157 = vsel %vm2131, %v2115, %v1315
      %v2158 = vsel %vm2131, %v2116, %v1317
      %v2159 = vsel %vm2131, %v2117, %v1319
      %v2160 = vsel %vm2131, %v2118, %v1321
      %v2161 = vsel %vm2131, %v2119, %v1323
      %v2162 = vsel %vm2131, %v2120, %v1325
      %v2163 = vsel %vm2131, %v2121, %v1327
      %v2164 = vsel %vm2131, %v2122, %v1329
      %v2165 = vsel %vm2131, %v2123, %v1331
      %v2166 = vsel %vm2131, %v2124, %v1333
      %v2167 = vsel %vm2131, %v2125, %v1335
      %v2168 = vsel %vm2131, %v2126, %v1337
      %v2169 = vsel %vm2131, %v2127, %v1339
      %v2170 = vsel %vm2131, %v2128, %v1341
      %v2171 = vsel %vm2131, %v2129, %v1343
      %v2172 = vsel %vm2131, %v2130, %v1345
      %vm2173 = vcmask 162816
      %v2174 = vsel %vm2173, %v2132, %v1429
      %v2175 = vsel %vm2173, %v2133, %v1431
      %v2176 = vsel %vm2173, %v2134, %v1433
      %v2177 = vsel %vm2173, %v2135, %v1435
      %v2178 = vsel %vm2173, %v2136, %v1437
      %v2179 = vsel %vm2173, %v2137, %v1439
      %v2180 = vsel %vm2173, %v2138, %v1441
      %v2181 = vsel %vm2173, %v2139, %v1443
      %v2182 = vsel %vm2173, %v2140, %v1445
      %v2183 = vsel %vm2173, %v2141, %v1447
      %v2184 = vsel %vm2173, %v2142, %v1449
      %v2185 = vsel %vm2173, %v2143, %v1451
      %v2186 = vsel %vm2173, %v2144, %v1453
      %v2187 = vsel %vm2173, %v2145, %v1455
      %v2188 = vsel %vm2173, %v2146, %v1457
      %v2189 = vsel %vm2173, %v2147, %v1459
      %v2190 = vsel %vm2173, %v2148, %v1461
      %v2191 = vsel %vm2173, %v2149, %v1463
      %v2192 = vsel %vm2173, %v2150, %v1465
      %v2193 = vsel %vm2173, %v2151, %v1467
      %v2194 = vsel %vm2173, %v2152, %v1469
      %v2195 = vsel %vm2173, %v2153, %v1471
      %v2196 = vsel %vm2173, %v2154, %v1473
      %v2197 = vsel %vm2173, %v2155, %v1475
      %v2198 = vsel %vm2173, %v2156, %v1477
      %v2199 = vsel %vm2173, %v2157, %v1479
      %v2200 = vsel %vm2173, %v2158, %v1481
      %v2201 = vsel %vm2173, %v2159, %v1483
      %v2202 = vsel %vm2173, %v2160, %v1485
      %v2203 = vsel %vm2173, %v2161, %v1487
      %v2204 = vsel %vm2173, %v2162, %v1489
      %v2205 = vsel %vm2173, %v2163, %v1491
      %v2206 = vsel %vm2173, %v2164, %v1493
      %v2207 = vsel %vm2173, %v2165, %v1495
      %v2208 = vsel %vm2173, %v2166, %v1497
      %v2209 = vsel %vm2173, %v2167, %v1499
      %v2210 = vsel %vm2173, %v2168, %v1501
      %v2211 = vsel %vm2173, %v2169, %v1503
      %v2212 = vsel %vm2173, %v2170, %v1505
      %v2213 = vsel %vm2173, %v2171, %v1507
      %v2214 = vsel %vm2173, %v2172, %v1509
      %vm2215 = vcmask 195584
      %v2216 = vsel %vm2215, %v2174, %v1555
      %v2217 = vsel %vm2215, %v2175, %v1557
      %v2218 = vsel %vm2215, %v2176, %v1559
      %v2219 = vsel %vm2215, %v2177, %v1561
      %v2220 = vsel %vm2215, %v2178, %v1563
      %v2221 = vsel %vm2215, %v2179, %v1565
      %v2222 = vsel %vm2215, %v2180, %v1567
      %v2223 = vsel %vm2215, %v2181, %v1569
      %v2224 = vsel %vm2215, %v2182, %v1571
      %v2225 = vsel %vm2215, %v2183, %v1573
      %v2226 = vsel %vm2215, %v2184, %v1575
      %v2227 = vsel %vm2215, %v2185, %v1577
      %v2228 = vsel %vm2215, %v2186, %v1579
      %v2229 = vsel %vm2215, %v2187, %v1581
      %v2230 = vsel %vm2215, %v2188, %v1583
      %v2231 = vsel %vm2215, %v2189, %v1585
      %v2232 = vsel %vm2215, %v2190, %v1587
      %v2233 = vsel %vm2215, %v2191, %v1589
      %v2234 = vsel %vm2215, %v2192, %v1591
      %v2235 = vsel %vm2215, %v2193, %v1593
      %v2236 = vsel %vm2215, %v2194, %v1595
      %v2237 = vsel %vm2215, %v2195, %v1597
      %v2238 = vsel %vm2215, %v2196, %v1599
      %v2239 = vsel %vm2215, %v2197, %v1601
      %v2240 = vsel %vm2215, %v2198, %v1603
      %v2241 = vsel %vm2215, %v2199, %v1605
      %v2242 = vsel %vm2215, %v2200, %v1607
      %v2243 = vsel %vm2215, %v2201, %v1609
      %v2244 = vsel %vm2215, %v2202, %v1611
      %v2245 = vsel %vm2215, %v2203, %v1613
      %v2246 = vsel %vm2215, %v2204, %v1615
      %v2247 = vsel %vm2215, %v2205, %v1617
      %v2248 = vsel %vm2215, %v2206, %v1619
      %v2249 = vsel %vm2215, %v2207, %v1621
      %v2250 = vsel %vm2215, %v2208, %v1623
      %v2251 = vsel %vm2215, %v2209, %v1625
      %v2252 = vsel %vm2215, %v2210, %v1627
      %v2253 = vsel %vm2215, %v2211, %v1629
      %v2254 = vsel %vm2215, %v2212, %v1631
      %v2255 = vsel %vm2215, %v2213, %v1633
      %v2256 = vsel %vm2215, %v2214, %v1635
      %vm2257 = vcmask 228352
      %v2258 = vsel %vm2257, %v2216, %v1719
      %v2259 = vsel %vm2257, %v2217, %v1721
      %v2260 = vsel %vm2257, %v2218, %v1723
      %v2261 = vsel %vm2257, %v2219, %v1725
      %v2262 = vsel %vm2257, %v2220, %v1727
      %v2263 = vsel %vm2257, %v2221, %v1729
      %v2264 = vsel %vm2257, %v2222, %v1731
      %v2265 = vsel %vm2257, %v2223, %v1733
      %v2266 = vsel %vm2257, %v2224, %v1735
      %v2267 = vsel %vm2257, %v2225, %v1737
      %v2268 = vsel %vm2257, %v2226, %v1739
      %v2269 = vsel %vm2257, %v2227, %v1741
      %v2270 = vsel %vm2257, %v2228, %v1743
      %v2271 = vsel %vm2257, %v2229, %v1745
      %v2272 = vsel %vm2257, %v2230, %v1747
      %v2273 = vsel %vm2257, %v2231, %v1749
      %v2274 = vsel %vm2257, %v2232, %v1751
      %v2275 = vsel %vm2257, %v2233, %v1753
      %v2276 = vsel %vm2257, %v2234, %v1755
      %v2277 = vsel %vm2257, %v2235, %v1757
      %v2278 = vsel %vm2257, %v2236, %v1759
      %v2279 = vsel %vm2257, %v2237, %v1761
      %v2280 = vsel %vm2257, %v2238, %v1763
      %v2281 = vsel %vm2257, %v2239, %v1765
      %v2282 = vsel %vm2257, %v2240, %v1767
      %v2283 = vsel %vm2257, %v2241, %v1769
      %v2284 = vsel %vm2257, %v2242, %v1771
      %v2285 = vsel %vm2257, %v2243, %v1773
      %v2286 = vsel %vm2257, %v2244, %v1775
      %v2287 = vsel %vm2257, %v2245, %v1777
      %v2288 = vsel %vm2257, %v2246, %v1779
      %v2289 = vsel %vm2257, %v2247, %v1781
      %v2290 = vsel %vm2257, %v2248, %v1783
      %v2291 = vsel %vm2257, %v2249, %v1785
      %v2292 = vsel %vm2257, %v2250, %v1787
      %v2293 = vsel %vm2257, %v2251, %v1789
      %v2294 = vsel %vm2257, %v2252, %v1791
      %v2295 = vsel %vm2257, %v2253, %v1793
      %v2296 = vsel %vm2257, %v2254, %v1795
      %v2297 = vsel %vm2257, %v2255, %v1797
      %v2298 = vsel %vm2257, %v2256, %v1799
      %vm2299 = vcmask 261120
      %v2300 = vsel %vm2299, %v2258, %v1883
      %v2301 = vsel %vm2299, %v2259, %v1885
      %v2302 = vsel %vm2299, %v2260, %v1887
      %v2303 = vsel %vm2299, %v2261, %v1889
      %v2304 = vsel %vm2299, %v2262, %v1891
      %v2305 = vsel %vm2299, %v2263, %v1893
      %v2306 = vsel %vm2299, %v2264, %v1895
      %v2307 = vsel %vm2299, %v2265, %v1897
      %v2308 = vsel %vm2299, %v2266, %v1899
      %v2309 = vsel %vm2299, %v2267, %v1901
      %v2310 = vsel %vm2299, %v2268, %v1903
      %v2311 = vsel %vm2299, %v2269, %v1905
      %v2312 = vsel %vm2299, %v2270, %v1907
      %v2313 = vsel %vm2299, %v2271, %v1909
      %v2314 = vsel %vm2299, %v2272, %v1911
      %v2315 = vsel %vm2299, %v2273, %v1913
      %v2316 = vsel %vm2299, %v2274, %v1915
      %v2317 = vsel %vm2299, %v2275, %v1917
      %v2318 = vsel %vm2299, %v2276, %v1919
      %v2319 = vsel %vm2299, %v2277, %v1921
      %v2320 = vsel %vm2299, %v2278, %v1923
      %v2321 = vsel %vm2299, %v2279, %v1925
      %v2322 = vsel %vm2299, %v2280, %v1927
      %v2323 = vsel %vm2299, %v2281, %v1929
      %v2324 = vsel %vm2299, %v2282, %v1931
      %v2325 = vsel %vm2299, %v2283, %v1933
      %v2326 = vsel %vm2299, %v2284, %v1935
      %v2327 = vsel %vm2299, %v2285, %v1937
      %v2328 = vsel %vm2299, %v2286, %v1939
      %v2329 = vsel %vm2299, %v2287, %v1941
      %v2330 = vsel %vm2299, %v2288, %v1943
      %v2331 = vsel %vm2299, %v2289, %v1945
      %v2332 = vsel %vm2299, %v2290, %v1947
      %v2333 = vsel %vm2299, %v2291, %v1949
      %v2334 = vsel %vm2299, %v2292, %v1951
      %v2335 = vsel %vm2299, %v2293, %v1953
      %v2336 = vsel %vm2299, %v2294, %v1955
      %v2337 = vsel %vm2299, %v2295, %v1957
      %v2338 = vsel %vm2299, %v2296, %v1959
      %v2339 = vsel %vm2299, %v2297, %v1961
      %v2340 = vsel %vm2299, %v2298, %v1963
      %v2341 = vpack.c.bf16 %v2301, %v2300
      %v2342 = vpack.c.bf16 %v2303, %v2302
      %v2343 = vpack.c.bf16 %v2305, %v2304
      %v2344 = vpack.c.bf16 %v2307, %v2306
      %v2345 = vpack.c.bf16 %v2309, %v2308
      %v2346 = vpack.c.bf16 %v2311, %v2310
      %v2347 = vpack.c.bf16 %v2313, %v2312
      %v2348 = vpack.c.bf16 %v2315, %v2314
      %v2349 = vpack.c.bf16 %v2317, %v2316
      %v2350 = vpack.c.bf16 %v2319, %v2318
      %v2351 = vpack.c.bf16 %v2321, %v2320
      %v2352 = vpack.c.bf16 %v2323, %v2322
      %v2353 = vpack.c.bf16 %v2325, %v2324
      %v2354 = vpack.c.bf16 %v2327, %v2326
      %v2355 = vpack.c.bf16 %v2329, %v2328
      %v2356 = vpack.c.bf16 %v2331, %v2330
      %v2357 = vpack.c.bf16 %v2333, %v2332
      %v2358 = vpack.c.bf16 %v2335, %v2334
      %v2359 = vpack.c.bf16 %v2337, %v2336
      %v2360 = vpack.c.bf16 %v2339, %v2338
      %v2361 = vpack.c.bf16 %v2340, %v2340
      %v2362 = vld [vmem:[%s265] sm:$0xf]
      %v2363 = vld [vmem:[%s265 + $0x4] sm:$0xf]
      %v2364 = vld [vmem:[%s265 + $0x8] sm:$0xf]
      %v2365 = vld [vmem:[%s265 + $0xc] sm:$0xf]
      %v2366 = vld [vmem:[%s265 + $0x10] sm:$0x3]
      %v2372 = vunpack.c.l.b16 %v2362
      %v2373 = vunpack.c.l.b16 %v2363
      %v2374 = vunpack.c.l.b16 %v2364
      %v2375 = vunpack.c.l.b16 %v2365
      %v2376 = vunpack.c.l.b16 %v2366
      %v2377 = vpack.c.b16 %v2373, %v2372
      %v2378 = vpack.c.b16 %v2375, %v2374
      %v2379 = vpack.c.b16 %v2376, %v2376
      %vm2382 = vcmask 293888
      %v2384 = vsel %vm2382, %v2341, 0
      %v2387 = vsel %vm2382, %v2342, 0
      %v2390 = vsel %vm2382, %v2343, 0
      %v2393 = vsel %vm2382, %v2344, 0
      %v2396 = vsel %vm2382, %v2345, 0
      %v2399 = vsel %vm2382, %v2346, 0
      %v2402 = vsel %vm2382, %v2347, 0
      %v2405 = vsel %vm2382, %v2348, 0
      %v2408 = vsel %vm2382, %v2349, 0
      %v2411 = vsel %vm2382, %v2350, 0
      %v2414 = vsel %vm2382, %v2351, 0
      %v2417 = vsel %vm2382, %v2352, 0
      %v2420 = vsel %vm2382, %v2353, 0
      %v2423 = vsel %vm2382, %v2354, 0
      %v2426 = vsel %vm2382, %v2355, 0
      %v2429 = vsel %vm2382, %v2356, 0
      %v2432 = vsel %vm2382, %v2357, 0
      %v2435 = vsel %vm2382, %v2358, 0
      %v2438 = vsel %vm2382, %v2359, 0
      %v2441 = vsel %vm2382, %v2360, 0
      %v2444 = vsel %vm2382, %v2361, 0
      %vm2446 = vcmask 1041408
      %v2448 = vsel %vm2446, %v2379, 0
      %2450 = vmatprep.subr.bf16.mxu0 0
      %2451 = vmatpush1.bf16.msra.mxu0 %v2377
      %2452 = vmatprep.subr.bf16.mxu0 0
      %2453 = vmatpush1.bf16.msra.mxu0 %v2378
      %2454 = vmatprep.subr.bf16.mxu0 0
      %2455 = vmatpush1.bf16.msra.mxu0 %v2448
      %2456 = vmatprep.subr.bf16.mxu0 0
      %2457 = vmatpush1.bf16.msra.mxu0 0
      %2458 = vmatprep.subr.bf16.mxu0 0
      %2459 = vmatpush1.bf16.msra.mxu0 0
      %2460 = vmatprep.subr.bf16.mxu0 0
      %2461 = vmatpush1.bf16.msra.mxu0 0
      %2462 = vmatprep.subr.bf16.mxu0 0
      %2463 = vmatpush1.bf16.msra.mxu0 0
      %2464 = vmatprep.subr.bf16.mxu0 0
      %2465 = vmatpush1.bf16.msra.mxu0 0
      %2466 = vmatprep.subr.bf16.mxu0 0
      %2467 = vmatpush1.bf16.msra.mxu0 0
      %2468 = vmatprep.subr.bf16.mxu0 0
      %2469 = vmatpush1.bf16.msra.mxu0 0
      %2470 = vmatprep.subr.bf16.mxu0 0
      %2471 = vmatpush1.bf16.msra.mxu0 0
      %2472 = vmatprep.subr.bf16.mxu0 0
      %2473 = vmatpush1.bf16.msra.mxu0 0
      %2474 = vmatprep.subr.bf16.mxu0 0
      %2475 = vmatpush1.bf16.msra.mxu0 0
      %2476 = vmatprep.subr.bf16.mxu0 0
      %2477 = vmatpush1.bf16.msra.mxu0 0
      %2478 = vmatprep.subr.bf16.mxu0 0
      %2479 = vmatpush1.bf16.msra.mxu0 0
      %2480 = vmatprep.subr.bf16.mxu0 0
      %2481 = vmatpush1.bf16.msra.mxu0 0
      %2482 = vmatprep.mubr.bf16.mxu0 0
      %2483 = vmatmul.mubr.bf16.gmra.mrb[0].mxu0 %v2384
      %v2484 = vpop.f32.mrb[0].mxu0
      %v2485 = vpop.f32.mrb[0].mxu0
      %v2486 = vpop.f32.mrb[0].mxu0
      %v2487 = vpop.f32.mrb[0].mxu0
      %2488 = vmatprep.mubr.bf16.mxu0 0
      %2489 = vmatmul.mubr.bf16.gmra.mrb[0].mxu0 %v2387
      %v2490 = vpop.f32.mrb[0].mxu0
      %v2491 = vadd.f32 0.0, %v2490
      %v2492 = vpop.f32.mrb[0].mxu0
      %v2493 = vpop.f32.mrb[0].mxu0
      %v2494 = vadd.f32 0.0, %v2493
      %v2495 = vpop.f32.mrb[0].mxu0
      %2496 = vmatprep.mubr.bf16.mxu0 0
      %2497 = vmatmul.mubr.bf16.gmra.mrb[0].mxu0 %v2390
      %v2498 = vpop.f32.mrb[0].mxu0
      %v2499 = vadd.f32 0.0, %v2498
      %v2500 = vpop.f32.mrb[0].mxu0
      %v2501 = vpop.f32.mrb[0].mxu0
      %v2502 = vadd.f32 0.0, %v2501
      %v2503 = vpop.f32.mrb[0].mxu0
      %2504 = vmatprep.mubr.bf16.mxu0 0
      %2505 = vmatmul.mubr.bf16.gmra.mrb[0].mxu0 %v2393
      %v2506 = vpop.f32.mrb[0].mxu0
      %v2507 = vadd.f32 0.0, %v2506
      %v2508 = vpop.f32.mrb[0].mxu0
      %v2509 = vpop.f32.mrb[0].mxu0
      %v2510 = vadd.f32 0.0, %v2509
      %v2511 = vpop.f32.mrb[0].mxu0
      %2512 = vmatprep.mubr.bf16.mxu0 0
      %2513 = vmatmul.mubr.bf16.gmra.mrb[0].mxu0 %v2396
      %v2514 = vpop.f32.mrb[0].mxu0
      %v2515 = vadd.f32 0.0, %v2514
      %v2516 = vpop.f32.mrb[0].mxu0
      %v2517 = vpop.f32.mrb[0].mxu0
      %v2518 = vadd.f32 0.0, %v2517
      %v2519 = vpop.f32.mrb[0].mxu0
      %2520 = vmatprep.mubr.bf16.mxu0 0
      %2521 = vmatmul.mubr.bf16.gmra.mrb[0].mxu0 %v2399
      %v2522 = vpop.f32.mrb[0].mxu0
      %v2523 = vadd.f32 0.0, %v2522
      %v2524 = vpop.f32.mrb[0].mxu0
      %v2525 = vpop.f32.mrb[0].mxu0
      %v2526 = vadd.f32 0.0, %v2525
      %v2527 = vpop.f32.mrb[0].mxu0
      %2528 = vmatprep.mubr.bf16.mxu0 0
      %2529 = vmatmul.mubr.bf16.gmra.mrb[0].mxu0 %v2402
      %v2530 = vpop.f32.mrb[0].mxu0
      %v2531 = vadd.f32 0.0, %v2530
      %v2532 = vpop.f32.mrb[0].mxu0
      %v2533 = vpop.f32.mrb[0].mxu0
      %v2534 = vadd.f32 0.0, %v2533
      %v2535 = vpop.f32.mrb[0].mxu0
      %2536 = vmatprep.mubr.bf16.mxu0 0
      %2537 = vmatmul.mubr.bf16.gmra.mrb[0].mxu0 %v2405
      %v2538 = vpop.f32.mrb[0].mxu0
      %v2539 = vadd.f32 0.0, %v2538
      %v2540 = vpop.f32.mrb[0].mxu0
      %v2541 = vpop.f32.mrb[0].mxu0
      %v2542 = vadd.f32 0.0, %v2541
      %v2543 = vpop.f32.mrb[0].mxu0
      %2544 = vmatprep.mubr.bf16.mxu0 0
      %2545 = vmatmul.mubr.bf16.gmra.mrb[0].mxu0 %v2408
      %v2546 = vpop.f32.mrb[0].mxu0
      %v2547 = vadd.f32 0.0, %v2546
      %v2548 = vpop.f32.mrb[0].mxu0
      %v2549 = vpop.f32.mrb[0].mxu0
      %v2550 = vadd.f32 0.0, %v2549
      %v2551 = vpop.f32.mrb[0].mxu0
      %2552 = vmatprep.mubr.bf16.mxu0 0
      %2553 = vmatmul.mubr.bf16.gmra.mrb[0].mxu0 %v2411
      %v2554 = vpop.f32.mrb[0].mxu0
      %v2555 = vadd.f32 0.0, %v2554
      %v2556 = vpop.f32.mrb[0].mxu0
      %v2557 = vpop.f32.mrb[0].mxu0
      %v2558 = vadd.f32 0.0, %v2557
      %v2559 = vpop.f32.mrb[0].mxu0
      %2560 = vmatprep.mubr.bf16.mxu0 0
      %2561 = vmatmul.mubr.bf16.gmra.mrb[0].mxu0 %v2414
      %v2562 = vpop.f32.mrb[0].mxu0
      %v2563 = vadd.f32 0.0, %v2562
      %v2564 = vpop.f32.mrb[0].mxu0
      %v2565 = vpop.f32.mrb[0].mxu0
      %v2566 = vadd.f32 0.0, %v2565
      %v2567 = vpop.f32.mrb[0].mxu0
      %2568 = vmatprep.mubr.bf16.mxu0 0
      %2569 = vmatmul.mubr.bf16.gmra.mrb[0].mxu0 %v2417
      %v2570 = vpop.f32.mrb[0].mxu0
      %v2571 = vadd.f32 0.0, %v2570
      %v2572 = vpop.f32.mrb[0].mxu0
      %v2573 = vpop.f32.mrb[0].mxu0
      %v2574 = vadd.f32 0.0, %v2573
      %v2575 = vpop.f32.mrb[0].mxu0
      %2576 = vmatprep.mubr.bf16.mxu0 0
      %2577 = vmatmul.mubr.bf16.gmra.mrb[0].mxu0 %v2420
      %v2578 = vpop.f32.mrb[0].mxu0
      %v2579 = vadd.f32 0.0, %v2578
      %v2580 = vpop.f32.mrb[0].mxu0
      %v2581 = vpop.f32.mrb[0].mxu0
      %v2582 = vadd.f32 0.0, %v2581
      %v2583 = vpop.f32.mrb[0].mxu0
      %2584 = vmatprep.mubr.bf16.mxu0 0
      %2585 = vmatmul.mubr.bf16.gmra.mrb[0].mxu0 %v2423
      %v2586 = vpop.f32.mrb[0].mxu0
      %v2587 = vadd.f32 0.0, %v2586
      %v2588 = vpop.f32.mrb[0].mxu0
      %v2589 = vpop.f32.mrb[0].mxu0
      %v2590 = vadd.f32 0.0, %v2589
      %v2591 = vpop.f32.mrb[0].mxu0
      %2592 = vmatprep.mubr.bf16.mxu0 0
      %2593 = vmatmul.mubr.bf16.gmra.mrb[0].mxu0 %v2426
      %v2594 = vpop.f32.mrb[0].mxu0
      %v2595 = vadd.f32 0.0, %v2594
      %v2596 = vpop.f32.mrb[0].mxu0
      %v2597 = vpop.f32.mrb[0].mxu0
      %v2598 = vadd.f32 0.0, %v2597
      %v2599 = vpop.f32.mrb[0].mxu0
      %2600 = vmatprep.mubr.bf16.mxu0 0
      %2601 = vmatmul.mubr.bf16.gmra.mrb[0].mxu0 %v2429
      %v2602 = vpop.f32.mrb[0].mxu0
      %v2603 = vadd.f32 0.0, %v2602
      %v2604 = vpop.f32.mrb[0].mxu0
      %v2605 = vpop.f32.mrb[0].mxu0
      %v2606 = vadd.f32 0.0, %v2605
      %v2607 = vpop.f32.mrb[0].mxu0
      %2608 = vmatprep.mubr.bf16.mxu0 0
      %2609 = vmatmul.mubr.bf16.gmra.mrb[0].mxu0 %v2432
      %v2610 = vpop.f32.mrb[0].mxu0
      %v2611 = vadd.f32 0.0, %v2610
      %v2612 = vpop.f32.mrb[0].mxu0
      %v2613 = vpop.f32.mrb[0].mxu0
      %v2614 = vadd.f32 0.0, %v2613
      %v2615 = vpop.f32.mrb[0].mxu0
      %2616 = vmatprep.mubr.bf16.mxu0 0
      %2617 = vmatmul.mubr.bf16.gmra.mrb[0].mxu0 %v2435
      %v2618 = vpop.f32.mrb[0].mxu0
      %v2619 = vadd.f32 0.0, %v2618
      %v2620 = vpop.f32.mrb[0].mxu0
      %v2621 = vpop.f32.mrb[0].mxu0
      %v2622 = vadd.f32 0.0, %v2621
      %v2623 = vpop.f32.mrb[0].mxu0
      %2624 = vmatprep.mubr.bf16.mxu0 0
      %2625 = vmatmul.mubr.bf16.gmra.mrb[0].mxu0 %v2438
      %v2626 = vpop.f32.mrb[0].mxu0
      %v2627 = vadd.f32 0.0, %v2626
      %v2628 = vpop.f32.mrb[0].mxu0
      %v2629 = vpop.f32.mrb[0].mxu0
      %v2630 = vadd.f32 0.0, %v2629
      %v2631 = vpop.f32.mrb[0].mxu0
      %2632 = vmatprep.mubr.bf16.mxu0 0
      %2633 = vmatmul.mubr.bf16.gmra.mrb[0].mxu0 %v2441
      %v2634 = vpop.f32.mrb[0].mxu0
      %v2635 = vadd.f32 0.0, %v2634
      %v2636 = vpop.f32.mrb[0].mxu0
      %v2637 = vpop.f32.mrb[0].mxu0
      %v2638 = vpop.f32.mrb[0].mxu0
      %2639 = vmatprep.mubr.bf16.mxu0 0
      %2640 = vmatmul.mubr.bf16.gmra.mrb[0].mxu0 %v2444
      %v2641 = vpop.f32.mrb[0].mxu0
      %v2642 = vpop.f32.mrb[0].mxu0
      %v2643 = vpop.f32.mrb[0].mxu0
      %v2644 = vpop.f32.mrb[0].mxu0
      %2645 = vdwg.mxu0
      %vm2649 = vcmask 1044480
      %v2650 = vrot.slane %v2491, 3
      %v2651 = vrot.slane %v2494, 3
      %v2652 = vsel %vm2649, %v2650, %v2651
      %v2653 = vrot.slane %v2499, 3
      %v2654 = vsel %vm2649, %v2651, %v2653
      %vm2659 = vcmask 1042432
      %v2660 = vrot.slane %v2499, 5
      %v2661 = vrot.slane %v2502, 5
      %v2662 = vsel %vm2659, %v2660, %v2661
      %v2663 = vrot.slane %v2507, 5
      %v2664 = vsel %vm2659, %v2661, %v2663
      %vm2669 = vcmask 1040384
      %v2670 = vrot.slane %v2507, 7
      %v2671 = vrot.slane %v2510, 7
      %v2672 = vsel %vm2669, %v2670, %v2671
      %v2673 = vrot.slane %v2515, 7
      %v2674 = vsel %vm2669, %v2671, %v2673
      %vm2680 = vcmask 1046528
      %v2681 = vrot.slane %v2518, 1
      %v2682 = vrot.slane %v2523, 1
      %v2683 = vsel %vm2680, %v2681, %v2682
      %v2684 = vrot.slane %v2526, 1
      %v2685 = vsel %vm2680, %v2682, %v2684
      %v2690 = vrot.slane %v2526, 3
      %v2691 = vrot.slane %v2531, 3
      %v2692 = vsel %vm2649, %v2690, %v2691
      %v2693 = vrot.slane %v2534, 3
      %v2694 = vsel %vm2649, %v2691, %v2693
      %v2699 = vrot.slane %v2534, 5
      %v2700 = vrot.slane %v2539, 5
      %v2701 = vsel %vm2659, %v2699, %v2700
      %v2702 = vrot.slane %v2542, 5
      %v2703 = vsel %vm2659, %v2700, %v2702
      %v2708 = vrot.slane %v2542, 7
      %v2709 = vrot.slane %v2547, 7
      %v2710 = vsel %vm2669, %v2708, %v2709
      %v2711 = vrot.slane %v2550, 7
      %v2712 = vsel %vm2669, %v2709, %v2711
      %v2718 = vrot.slane %v2555, 1
      %v2719 = vrot.slane %v2558, 1
      %v2720 = vsel %vm2680, %v2718, %v2719
      %v2721 = vrot.slane %v2563, 1
      %v2722 = vsel %vm2680, %v2719, %v2721
      %v2727 = vrot.slane %v2563, 3
      %v2728 = vrot.slane %v2566, 3
      %v2729 = vsel %vm2649, %v2727, %v2728
      %v2730 = vrot.slane %v2571, 3
      %v2731 = vsel %vm2649, %v2728, %v2730
      %v2736 = vrot.slane %v2571, 5
      %v2737 = vrot.slane %v2574, 5
      %v2738 = vsel %vm2659, %v2736, %v2737
      %v2739 = vrot.slane %v2579, 5
      %v2740 = vsel %vm2659, %v2737, %v2739
      %v2745 = vrot.slane %v2579, 7
      %v2746 = vrot.slane %v2582, 7
      %v2747 = vsel %vm2669, %v2745, %v2746
      %v2748 = vrot.slane %v2587, 7
      %v2749 = vsel %vm2669, %v2746, %v2748
      %v2755 = vrot.slane %v2590, 1
      %v2756 = vrot.slane %v2595, 1
      %v2757 = vsel %vm2680, %v2755, %v2756
      %v2758 = vrot.slane %v2598, 1
      %v2759 = vsel %vm2680, %v2756, %v2758
      %v2764 = vrot.slane %v2598, 3
      %v2765 = vrot.slane %v2603, 3
      %v2766 = vsel %vm2649, %v2764, %v2765
      %v2767 = vrot.slane %v2606, 3
      %v2768 = vsel %vm2649, %v2765, %v2767
      %v2773 = vrot.slane %v2606, 5
      %v2774 = vrot.slane %v2611, 5
      %v2775 = vsel %vm2659, %v2773, %v2774
      %v2776 = vrot.slane %v2614, 5
      %v2777 = vsel %vm2659, %v2774, %v2776
      %v2782 = vrot.slane %v2614, 7
      %v2783 = vrot.slane %v2619, 7
      %v2784 = vsel %vm2669, %v2782, %v2783
      %v2785 = vrot.slane %v2622, 7
      %v2786 = vsel %vm2669, %v2783, %v2785
      %v2792 = vrot.slane %v2627, 1
      %v2793 = vrot.slane %v2630, 1
      %v2794 = vsel %vm2680, %v2792, %v2793
      %v2795 = vrot.slane %v2635, 1
      %v2796 = vsel %vm2680, %v2793, %v2795
      %v2799 = vsel %vm2047, %v2652, 0.0
      %v2800 = vsel %vm2047, %v2654, 0.0
      %v2801 = vadd.f32 %v2799, %v2800
      %v2802 = vsel %vm2047, %v2662, 0.0
      %v2803 = vadd.f32 %v2801, %v2802
      %v2804 = vsel %vm2047, %v2664, 0.0
      %v2805 = vadd.f32 %v2803, %v2804
      %v2806 = vsel %vm2047, %v2672, 0.0
      %v2807 = vadd.f32 %v2805, %v2806
      %v2808 = vsel %vm2047, %v2674, 0.0
      %v2809 = vadd.f32 %v2807, %v2808
      %v2810 = vsel %vm2047, %v2683, 0.0
      %v2811 = vadd.f32 %v2809, %v2810
      %v2812 = vsel %vm2047, %v2685, 0.0
      %v2813 = vadd.f32 %v2811, %v2812
      %v2814 = vsel %vm2047, %v2692, 0.0
      %v2815 = vadd.f32 %v2813, %v2814
      %v2816 = vsel %vm2047, %v2694, 0.0
      %v2817 = vadd.f32 %v2815, %v2816
      %v2818 = vsel %vm2047, %v2701, 0.0
      %v2819 = vadd.f32 %v2817, %v2818
      %v2820 = vsel %vm2047, %v2703, 0.0
      %v2821 = vadd.f32 %v2819, %v2820
      %v2822 = vsel %vm2047, %v2710, 0.0
      %v2823 = vadd.f32 %v2821, %v2822
      %v2824 = vsel %vm2047, %v2712, 0.0
      %v2825 = vadd.f32 %v2823, %v2824
      %v2826 = vsel %vm2047, %v2720, 0.0
      %v2827 = vadd.f32 %v2825, %v2826
      %v2828 = vsel %vm2047, %v2722, 0.0
      %v2829 = vadd.f32 %v2827, %v2828
      %v2830 = vsel %vm2047, %v2729, 0.0
      %v2831 = vadd.f32 %v2829, %v2830
      %v2832 = vsel %vm2047, %v2731, 0.0
      %v2833 = vadd.f32 %v2831, %v2832
      %v2834 = vsel %vm2047, %v2738, 0.0
      %v2835 = vadd.f32 %v2833, %v2834
      %v2836 = vsel %vm2047, %v2740, 0.0
      %v2837 = vadd.f32 %v2835, %v2836
      %v2838 = vsel %vm2047, %v2747, 0.0
      %v2839 = vadd.f32 %v2837, %v2838
      %v2840 = vsel %vm2047, %v2749, 0.0
      %v2841 = vadd.f32 %v2839, %v2840
      %v2842 = vsel %vm2047, %v2757, 0.0
      %v2843 = vadd.f32 %v2841, %v2842
      %v2844 = vsel %vm2047, %v2759, 0.0
      %v2845 = vadd.f32 %v2843, %v2844
      %v2846 = vsel %vm2047, %v2766, 0.0
      %v2847 = vadd.f32 %v2845, %v2846
      %v2848 = vsel %vm2047, %v2768, 0.0
      %v2849 = vadd.f32 %v2847, %v2848
      %v2850 = vsel %vm2047, %v2775, 0.0
      %v2851 = vadd.f32 %v2849, %v2850
      %v2852 = vsel %vm2047, %v2777, 0.0
      %v2853 = vadd.f32 %v2851, %v2852
      %v2854 = vsel %vm2047, %v2784, 0.0
      %v2855 = vadd.f32 %v2853, %v2854
      %v2856 = vsel %vm2047, %v2786, 0.0
      %v2857 = vadd.f32 %v2855, %v2856
      %v2858 = vsel %vm2047, %v2794, 0.0
      %v2859 = vadd.f32 %v2857, %v2858
      %v2860 = vsel %vm2047, %v2796, 0.0
      %v2861 = vadd.f32 %v2859, %v2860
      %v2862 = vrot.slane %v2861, 4
      %v2863 = vadd.f32 %v2861, %v2862
      %v2864 = vrot.slane %v2863, 2
      %v2865 = vadd.f32 %v2863, %v2864
      %v2866 = vrot.slane %v2865, 1
      %v2867 = vadd.f32 %v2865, %v2866
      %v2868 = vmul.f32 %v2652, %v2652
      %v2869 = vmul.f32 %v2654, %v2654
      %v2870 = vmul.f32 %v2662, %v2662
      %v2871 = vmul.f32 %v2664, %v2664
      %v2872 = vmul.f32 %v2672, %v2672
      %v2873 = vmul.f32 %v2674, %v2674
      %v2874 = vmul.f32 %v2683, %v2683
      %v2875 = vmul.f32 %v2685, %v2685
      %v2876 = vmul.f32 %v2692, %v2692
      %v2877 = vmul.f32 %v2694, %v2694
      %v2878 = vmul.f32 %v2701, %v2701
      %v2879 = vmul.f32 %v2703, %v2703
      %v2880 = vmul.f32 %v2710, %v2710
      %v2881 = vmul.f32 %v2712, %v2712
      %v2882 = vmul.f32 %v2720, %v2720
      %v2883 = vmul.f32 %v2722, %v2722
      %v2884 = vmul.f32 %v2729, %v2729
      %v2885 = vmul.f32 %v2731, %v2731
      %v2886 = vmul.f32 %v2738, %v2738
      %v2887 = vmul.f32 %v2740, %v2740
      %v2888 = vmul.f32 %v2747, %v2747
      %v2889 = vmul.f32 %v2749, %v2749
      %v2890 = vmul.f32 %v2757, %v2757
      %v2891 = vmul.f32 %v2759, %v2759
      %v2892 = vmul.f32 %v2766, %v2766
      %v2893 = vmul.f32 %v2768, %v2768
      %v2894 = vmul.f32 %v2775, %v2775
      %v2895 = vmul.f32 %v2777, %v2777
      %v2896 = vmul.f32 %v2784, %v2784
      %v2897 = vmul.f32 %v2786, %v2786
      %v2898 = vmul.f32 %v2794, %v2794
      %v2899 = vmul.f32 %v2796, %v2796
      %v2900 = vsel %vm2047, %v2868, 0.0
      %v2901 = vsel %vm2047, %v2869, 0.0
      %v2902 = vadd.f32 %v2900, %v2901
      %v2903 = vsel %vm2047, %v2870, 0.0
      %v2904 = vadd.f32 %v2902, %v2903
      %v2905 = vsel %vm2047, %v2871, 0.0
      %v2906 = vadd.f32 %v2904, %v2905
      %v2907 = vsel %vm2047, %v2872, 0.0
      %v2908 = vadd.f32 %v2906, %v2907
      %v2909 = vsel %vm2047, %v2873, 0.0
      %v2910 = vadd.f32 %v2908, %v2909
      %v2911 = vsel %vm2047, %v2874, 0.0
      %v2912 = vadd.f32 %v2910, %v2911
      %v2913 = vsel %vm2047, %v2875, 0.0
      %v2914 = vadd.f32 %v2912, %v2913
      %v2915 = vsel %vm2047, %v2876, 0.0
      %v2916 = vadd.f32 %v2914, %v2915
      %v2917 = vsel %vm2047, %v2877, 0.0
      %v2918 = vadd.f32 %v2916, %v2917
      %v2919 = vsel %vm2047, %v2878, 0.0
      %v2920 = vadd.f32 %v2918, %v2919
      %v2921 = vsel %vm2047, %v2879, 0.0
      %v2922 = vadd.f32 %v2920, %v2921
      %v2923 = vsel %vm2047, %v2880, 0.0
      %v2924 = vadd.f32 %v2922, %v2923
      %v2925 = vsel %vm2047, %v2881, 0.0
      %v2926 = vadd.f32 %v2924, %v2925
      %v2927 = vsel %vm2047, %v2882, 0.0
      %v2928 = vadd.f32 %v2926, %v2927
      %v2929 = vsel %vm2047, %v2883, 0.0
      %v2930 = vadd.f32 %v2928, %v2929
      %v2931 = vsel %vm2047, %v2884, 0.0
      %v2932 = vadd.f32 %v2930, %v2931
      %v2933 = vsel %vm2047, %v2885, 0.0
      %v2934 = vadd.f32 %v2932, %v2933
      %v2935 = vsel %vm2047, %v2886, 0.0
      %v2936 = vadd.f32 %v2934, %v2935
      %v2937 = vsel %vm2047, %v2887, 0.0
      %v2938 = vadd.f32 %v2936, %v2937
      %v2939 = vsel %vm2047, %v2888, 0.0
      %v2940 = vadd.f32 %v2938, %v2939
      %v2941 = vsel %vm2047, %v2889, 0.0
      %v2942 = vadd.f32 %v2940, %v2941
      %v2943 = vsel %vm2047, %v2890, 0.0
      %v2944 = vadd.f32 %v2942, %v2943
      %v2945 = vsel %vm2047, %v2891, 0.0
      %v2946 = vadd.f32 %v2944, %v2945
      %v2947 = vsel %vm2047, %v2892, 0.0
      %v2948 = vadd.f32 %v2946, %v2947
      %v2949 = vsel %vm2047, %v2893, 0.0
      %v2950 = vadd.f32 %v2948, %v2949
      %v2951 = vsel %vm2047, %v2894, 0.0
      %v2952 = vadd.f32 %v2950, %v2951
      %v2953 = vsel %vm2047, %v2895, 0.0
      %v2954 = vadd.f32 %v2952, %v2953
      %v2955 = vsel %vm2047, %v2896, 0.0
      %v2956 = vadd.f32 %v2954, %v2955
      %v2957 = vsel %vm2047, %v2897, 0.0
      %v2958 = vadd.f32 %v2956, %v2957
      %v2959 = vsel %vm2047, %v2898, 0.0
      %v2960 = vadd.f32 %v2958, %v2959
      %v2961 = vsel %vm2047, %v2899, 0.0
      %v2962 = vadd.f32 %v2960, %v2961
      %v2963 = vrot.slane %v2962, 4
      %v2964 = vadd.f32 %v2962, %v2963
      %v2965 = vrot.slane %v2964, 2
      %v2966 = vadd.f32 %v2964, %v2965
      %v2967 = vrot.slane %v2966, 1
      %v2968 = vadd.f32 %v2966, %v2967
      %v2969 = vsel %vm2669, %v2867, %v2968
      %vm2970 = vcmask 58368
      %2971 = vst.msk [vmem:[%s280] sm:$0x3] %vm2970, %v2969
      %v2972 = vpack.c.bf16 %v2654, %v2652
      %v2973 = vpack.c.bf16 %v2664, %v2662
      %v2974 = vpack.c.bf16 %v2674, %v2672
      %v2975 = vpack.c.bf16 %v2685, %v2683
      %v2976 = vpack.c.bf16 %v2694, %v2692
      %v2977 = vpack.c.bf16 %v2703, %v2701
      %v2978 = vpack.c.bf16 %v2712, %v2710
      %v2979 = vpack.c.bf16 %v2722, %v2720
      %v2980 = vpack.c.bf16 %v2731, %v2729
      %v2981 = vpack.c.bf16 %v2740, %v2738
      %v2982 = vpack.c.bf16 %v2749, %v2747
      %v2983 = vpack.c.bf16 %v2759, %v2757
      %v2984 = vpack.c.bf16 %v2768, %v2766
      %v2985 = vpack.c.bf16 %v2777, %v2775
      %v2986 = vpack.c.bf16 %v2786, %v2784
      %v2987 = vpack.c.bf16 %v2796, %v2794
      %v3004 = vunpack.c.l.b16 %v2972
      %v3005 = vunpack.c.h.b16 %v2972
      %v3006 = vunpack.c.l.b16 %v2973
      %v3007 = vunpack.c.h.b16 %v2973
      %v3008 = vunpack.c.l.b16 %v2974
      %v3009 = vunpack.c.h.b16 %v2974
      %v3010 = vunpack.c.l.b16 %v2975
      %v3011 = vunpack.c.h.b16 %v2975
      %v3012 = vunpack.c.l.b16 %v2976
      %v3013 = vunpack.c.h.b16 %v2976
      %v3014 = vunpack.c.l.b16 %v2977
      %v3015 = vunpack.c.h.b16 %v2977
      %v3016 = vunpack.c.l.b16 %v2978
      %v3017 = vunpack.c.h.b16 %v2978
      %v3018 = vunpack.c.l.b16 %v2979
      %v3019 = vunpack.c.h.b16 %v2979
      %v3020 = vunpack.c.l.b16 %v2980
      %v3021 = vunpack.c.h.b16 %v2980
      %v3022 = vunpack.c.l.b16 %v2981
      %v3023 = vunpack.c.h.b16 %v2981
      %v3024 = vunpack.c.l.b16 %v2982
      %v3025 = vunpack.c.h.b16 %v2982
      %v3026 = vunpack.c.l.b16 %v2983
      %v3027 = vunpack.c.h.b16 %v2983
      %v3028 = vunpack.c.l.b16 %v2984
      %v3029 = vunpack.c.h.b16 %v2984
      %v3030 = vunpack.c.l.b16 %v2985
      %v3031 = vunpack.c.h.b16 %v2985
      %v3032 = vunpack.c.l.b16 %v2986
      %v3033 = vunpack.c.h.b16 %v2986
      %v3034 = vunpack.c.l.b16 %v2987
      %v3035 = vunpack.c.h.b16 %v2987
      %v3036 = vpack.c.b16 %v3004, %v3004
      %v3037 = vpack.c.b16 %v3005, %v3005
      %v3038 = vpack.c.b16 %v3006, %v3006
      %v3039 = vpack.c.b16 %v3007, %v3007
      %v3040 = vpack.c.b16 %v3008, %v3008
      %v3041 = vpack.c.b16 %v3009, %v3009
      %v3042 = vpack.c.b16 %v3010, %v3010
      %v3043 = vpack.c.b16 %v3011, %v3011
      %v3044 = vpack.c.b16 %v3012, %v3012
      %v3045 = vpack.c.b16 %v3013, %v3013
      %v3046 = vpack.c.b16 %v3014, %v3014
      %v3047 = vpack.c.b16 %v3015, %v3015
      %v3048 = vpack.c.b16 %v3016, %v3016
      %v3049 = vpack.c.b16 %v3017, %v3017
      %v3050 = vpack.c.b16 %v3018, %v3018
      %v3051 = vpack.c.b16 %v3019, %v3019
      %v3052 = vpack.c.b16 %v3020, %v3020
      %v3053 = vpack.c.b16 %v3021, %v3021
      %v3054 = vpack.c.b16 %v3022, %v3022
      %v3055 = vpack.c.b16 %v3023, %v3023
      %v3056 = vpack.c.b16 %v3024, %v3024
      %v3057 = vpack.c.b16 %v3025, %v3025
      %v3058 = vpack.c.b16 %v3026, %v3026
      %v3059 = vpack.c.b16 %v3027, %v3027
      %v3060 = vpack.c.b16 %v3028, %v3028
      %v3061 = vpack.c.b16 %v3029, %v3029
      %v3062 = vpack.c.b16 %v3030, %v3030
      %v3063 = vpack.c.b16 %v3031, %v3031
      %v3064 = vpack.c.b16 %v3032, %v3032
      %v3065 = vpack.c.b16 %v3033, %v3033
      %v3066 = vpack.c.b16 %v3034, %v3034
      %v3067 = vpack.c.b16 %v3035, %v3035
      %vm3100 = vcmask 60416
      %3101 = vst.msk [vmem:[%s273] sm:$0xf] %vm3100, %v3036
      %3102 = vst.msk [vmem:[%s273 + $0x4] sm:$0xf] %vm3100, %v3037
      %3103 = vst.msk [vmem:[%s273 + $0x8] sm:$0xf] %vm3100, %v3038
      %3104 = vst.msk [vmem:[%s273 + $0xc] sm:$0xf] %vm3100, %v3039
      %3105 = vst.msk [vmem:[%s273 + $0x10] sm:$0xf] %vm3100, %v3040
      %3106 = vst.msk [vmem:[%s273 + $0x14] sm:$0xf] %vm3100, %v3041
      %3107 = vst.msk [vmem:[%s273 + $0x18] sm:$0xf] %vm3100, %v3042
      %3108 = vst.msk [vmem:[%s273 + $0x1c] sm:$0xf] %vm3100, %v3043
      %3109 = vst.msk [vmem:[%s273 + $0x20] sm:$0xf] %vm3100, %v3044
      %3110 = vst.msk [vmem:[%s273 + $0x24] sm:$0xf] %vm3100, %v3045
      %3111 = vst.msk [vmem:[%s273 + $0x28] sm:$0xf] %vm3100, %v3046
      %3112 = vst.msk [vmem:[%s273 + $0x2c] sm:$0xf] %vm3100, %v3047
      %3113 = vst.msk [vmem:[%s273 + $0x30] sm:$0xf] %vm3100, %v3048
      %3114 = vst.msk [vmem:[%s273 + $0x34] sm:$0xf] %vm3100, %v3049
      %3115 = vst.msk [vmem:[%s273 + $0x38] sm:$0xf] %vm3100, %v3050
      %3116 = vst.msk [vmem:[%s273 + $0x3c] sm:$0xf] %vm3100, %v3051
      %3117 = vst.msk [vmem:[%s273 + $0x40] sm:$0xf] %vm3100, %v3052
      %3118 = vst.msk [vmem:[%s273 + $0x44] sm:$0xf] %vm3100, %v3053
      %3119 = vst.msk [vmem:[%s273 + $0x48] sm:$0xf] %vm3100, %v3054
      %3120 = vst.msk [vmem:[%s273 + $0x4c] sm:$0xf] %vm3100, %v3055
      %3121 = vst.msk [vmem:[%s273 + $0x50] sm:$0xf] %vm3100, %v3056
      %3122 = vst.msk [vmem:[%s273 + $0x54] sm:$0xf] %vm3100, %v3057
      %3123 = vst.msk [vmem:[%s273 + $0x58] sm:$0xf] %vm3100, %v3058
      %3124 = vst.msk [vmem:[%s273 + $0x5c] sm:$0xf] %vm3100, %v3059
      %3125 = vst.msk [vmem:[%s273 + $0x60] sm:$0xf] %vm3100, %v3060
      %3126 = vst.msk [vmem:[%s273 + $0x64] sm:$0xf] %vm3100, %v3061
      %3127 = vst.msk [vmem:[%s273 + $0x68] sm:$0xf] %vm3100, %v3062
      %3128 = vst.msk [vmem:[%s273 + $0x6c] sm:$0xf] %vm3100, %v3063
      %3129 = vst.msk [vmem:[%s273 + $0x70] sm:$0xf] %vm3100, %v3064
      %3130 = vst.msk [vmem:[%s273 + $0x74] sm:$0xf] %vm3100, %v3065
      %3131 = vst.msk [vmem:[%s273 + $0x78] sm:$0xf] %vm3100, %v3066
      %3132 = vst.msk [vmem:[%s273 + $0x7c] sm:$0xf] %vm3100, %v3067
      %p3133 = scmp.lt.s32.totalorder %s21, 1
      %s3134 = scalar_select %p3133, %s21, 1
      %p3135 = scmp.lt.s32.totalorder %s22, 0
      %s3136 = scalar_select %p3135, %s22, 0
      %s3137 = smul.addr %s3134, 32
      %s3138 = sadd.s32 %s3136, %s3137
      %s3139 = smul.addr %s3138, 4
      %s3140 = scalar_lea.vmem %s4, %s3139
      %p3141 = scmp.lt.s32.totalorder %s21, 1
      %s3142 = scalar_select %p3141, %s21, 1
      %p3143 = scmp.lt.s32.totalorder %s22, 0
      %s3144 = scalar_select %p3143, %s22, 0
      %s3145 = sadd.s32 %s3144, %s3142
      %s3146 = smul.addr %s3145, 2
      %s3147 = scalar_lea.vmem %s5, %s3146
      // Predicated region
      $region41: #{vgg_block_forward.3} parent=35 // pred_check
        %p3148 = pneg %p143
      $region42: #{vgg_block_forward.3} parent=35 // pred_check_branch
        %3150 = sbr.rel (%p3148) target = $region44
      $region43: #{vgg_block_forward.3} parent=35 // pred_region
        _
      $region44: #{vgg_block_forward.3} parent=35 // pred_fallthru
        _
      // Predicated region
      $region45: #{vgg_block_forward.3} parent=35 // pred_check
        %p3151 = pneg %p171
      $region46: #{vgg_block_forward.3} parent=35 // pred_check_branch
        %3153 = sbr.rel (%p3151) target = $region48
      $region47: #{vgg_block_forward.3} parent=35 // pred_region
        _
      $region48: #{vgg_block_forward.3} parent=35 // pred_fallthru
        _
    $region36: #{vgg_block_forward.3} parent=5 // pred_fallthru
      _
    %p3154 = scmp.le.s32.totalorder 2, %s12
    // Predicated region
    $region49: #{vgg_block_forward.3} parent=5 // pred_check
      %p3155 = pneg %p3154
    $region50: #{vgg_block_forward.3} parent=5 // pred_check_branch
      %3157 = sbr.rel (%p3155) target = $region52
    $region51: #{vgg_block_forward.3} parent=5 // pred_region
      %s3158 = ssub.s32 %s12, 2
      // Predicated region
      $region53: #{vgg_block_forward.3} parent=51 // pred_check
        %p3159 = pneg %p149
      $region54: #{vgg_block_forward.3} parent=51 // pred_check_branch
        %3161 = sbr.rel (%p3159) target = $region56
      $region55: #{vgg_block_forward.3} parent=51 // pred_region
        %p3162 = scmp.lt.s32.totalorder %s23, 1
        %s3163 = scalar_select %p3162, %s23, 1
        %p3164 = scmp.lt.s32.totalorder %s24, 0
        %s3165 = scalar_select %p3164, %s24, 0
        %s3166 = smul.addr %s3163, 32
        %s3167 = sadd.s32 %s3165, %s3166
        %s3168 = smul.addr %s3167, 4
        %s3169 = scalar_lea.vmem %s4, %s3168
      $region56: #{vgg_block_forward.3} parent=51 // pred_fallthru
        _
      // Predicated region
      $region57: #{vgg_block_forward.3} parent=51 // pred_check
        %p3170 = pneg %p177
      $region58: #{vgg_block_forward.3} parent=51 // pred_check_branch
        %3172 = sbr.rel (%p3170) target = $region60
      $region59: #{vgg_block_forward.3} parent=51 // pred_region
        %p3173 = scmp.lt.s32.totalorder %s23, 1
        %s3174 = scalar_select %p3173, %s23, 1
        %p3175 = scmp.lt.s32.totalorder %s24, 0
        %s3176 = scalar_select %p3175, %s24, 0
        %s3177 = sadd.s32 %s3176, %s3174
        %s3178 = smul.addr %s3177, 2
        %s3179 = scalar_lea.vmem %s5, %s3178
      $region60: #{vgg_block_forward.3} parent=51 // pred_fallthru
        _
    $region52: #{vgg_block_forward.3} parent=5 // pred_fallthru
      _
  $region6: #{vgg_block_forward.3} parent=0 // loop_footer
    %s16 = sadd.s32 1, %s12
  $region7: #{vgg_block_forward.3} parent=0 // loop_footer_branch
    %11 = sbr.rel target = $region3
  $region8: #{vgg_block_forward.3} parent=0 // loop_exit
    _

// kernel: vgg_block_forward.4
$region0: #{vgg_block_forward.4}
  #allocation0 [shape = 'u32[]', space=smem, size = 0x4, offset = 0x4, fixed_abs, tag = 'smem constant byte address 0x4 - core index']
  #allocation1 [shape = 'u32[144,128]{1,0:T(1,128)}', space=vmem, size = 0x12000, scoped, tag = 'internal scratch']
  #allocation2 [shape = 'f32[362,8]{1,0:T(8,128)}', space=vmem, size = 0x2e000, scoped, tag = 'scratch operand']
  %s0 = inlined_call_operand.vmem [shape: bf16[2,256,8], index: 0, kind: input, shape index: {}]
  %s1 = inlined_call_operand.vmem [shape: bf16[72,8], index: 1, kind: input, shape index: {}]
  %s2 = inlined_call_operand.vmem [shape: f32[1,8], index: 2, kind: input, shape index: {}]
  %s3 = inlined_call_operand.vmem [shape: f32[1,8], index: 3, kind: input, shape index: {}]
  %s4 = inlined_call_operand.vmem [shape: bf16[2,256,8], index: 4, kind: output, shape index: {0}]
  %s5 = inlined_call_operand.vmem [shape: f32[2,2,8], index: 5, kind: output, shape index: {1}]
  %6 = xla_tuple %s4, %s5
  %s7 = sld [smem:[#allocation0]]
  $region61: #{vgg_block_forward.4} parent=0
    _
  %s9 = ssub.s32 1, %s7
  %s10 = scalar_select 0, %s9, %s7
  loop: start=0, step=1, limit=4
  $region2: #{vgg_block_forward.4} parent=0 // loop_pre_header
    _
  $region3: #{vgg_block_forward.4} parent=0 // loop_header
    %s12 = sphi 0, %s16
    %p13 = scmp.ge.s32.totalorder %s12, 4
    %s19 = sphi 0, %s31
    %s20 = sphi 0, %s27
    %s21 = sphi 0, %s19
    %s22 = sphi 0, %s20
    %s23 = sphi 0, %s21
    %s24 = sphi 0, %s22
    %s34 = sphi 0, %s36
    %s37 = sphi 0, %s34
    %s38 = sphi 0, %s37
    %s54 = sphi 0, %s38
    %s60 = sphi 0, %s62
    %s63 = sphi 0, %s60
    %s64 = sphi 0, %s63
    %s80 = sphi 0, %s64
    %s84 = sphi 0, %s84
    %s86 = sphi 0, %s84
    %s87 = sphi 0, %s86
    %s101 = sphi 0, %s87
    %s105 = sphi 0, %s105
    %s107 = sphi 0, %s105
    %s108 = sphi 0, %s107
    %s122 = sphi 0, %s108
    %s130 = sphi 0, %s132
    %s133 = sphi 0, %s130
    %s134 = sphi 0, %s133
    %s150 = sphi 0, %s134
    %s158 = sphi 0, %s160
    %s161 = sphi 0, %s158
    %s162 = sphi 0, %s161
    %s178 = sphi 0, %s162
  $region4: #{vgg_block_forward.4} parent=0 // loop_header_branch
    %15 = sbr.rel (%p13) target = $region8
  $region5: #{vgg_block_forward.4} parent=0 // loop_body
    %s17 = ssub.s32 %s12, 1
    %s18 = ssub.s32 %s12, 2
    %s25 = sadd.s32 1, %s20
    %p26 = scmp.ge.s32.totalorder %s25, 1
    %s27 = scalar_select %p26, 0, %s25
    %s28 = sadd.s32 1, %s19
    %s29 = scalar_select %p26, %s28, %s19
    %p30 = scmp.ge.s32.totalorder %s29, 2
    %s31 = scalar_select %p30, 0, %s29
    %s32 = ssub.s32 %s19, %s31
    %p33 = scmp.eq.s32.totalorder %s32, 0
    %s35 = sadd.s32 %s34, 1
    %s36 = scalar_select %p33, %s34, %s35
    %p39 = pneg %p33
    %p40 = scmp.eq.s32.totalorder %s12, 1
    %p41 = por %p39, %p40
    %p42 = scmp.ne.s32.totalorder %s34, %s37
    %p43 = scmp.eq.s32.totalorder %s12, 0
    %p44 = por %p42, %p43
    %p45 = scmp.ne.s32.totalorder %s34, %s37
    %p46 = scmp.eq.s32.totalorder %s17, 1
    %p47 = por %p45, %p46
    %p48 = scmp.ne.s32.totalorder %s37, %s38
    %p49 = scmp.eq.s32.totalorder %s17, 0
    %p50 = por %p48, %p49
    %p51 = scmp.ne.s32.totalorder %s37, %s38
    %p52 = scmp.eq.s32.totalorder %s18, 1
    %p53 = por %p51, %p52
    %p55 = scmp.ne.s32.totalorder %s38, %s54
    %p56 = scmp.eq.s32.totalorder %s18, 0
    %p57 = por %p55, %p56
    %s58 = ssub.s32 %s20, %s27
    %p59 = scmp.eq.s32.totalorder %s58, 0
    %s61 = sadd.s32 %s60, 1
    %s62 = scalar_select %p59, %s60, %s61
    %p65 = pneg %p59
    %p66 = scmp.eq.s32.totalorder %s12, 1
    %p67 = por %p65, %p66
    %p68 = scmp.ne.s32.totalorder %s60, %s63
    %p69 = scmp.eq.s32.totalorder %s12, 0
    %p70 = por %p68, %p69
    %p71 = scmp.ne.s32.totalorder %s60, %s63
    %p72 = scmp.eq.s32.totalorder %s17, 1
    %p73 = por %p71, %p72
    %p74 = scmp.ne.s32.totalorder %s63, %s64
    %p75 = scmp.eq.s32.totalorder %s17, 0
    %p76 = por %p74, %p75
    %p77 = scmp.ne.s32.totalorder %s63, %s64
    %p78 = scmp.eq.s32.totalorder %s18, 1
    %p79 = por %p77, %p78
    %p81 = scmp.ne.s32.totalorder %s64, %s80
    %p82 = scmp.eq.s32.totalorder %s18, 0
    %p83 = por %p81, %p82
    %s85 = sadd.s32 %s84, 1
    %p88 = scmp.eq.s32.totalorder %s12, 1
    %p89 = scmp.ne.s32.totalorder %s84, %s86
    %p90 = scmp.eq.s32.totalorder %s12, 0
    %p91 = por %p89, %p90
    %p92 = scmp.ne.s32.totalorder %s84, %s86
    %p93 = scmp.eq.s32.totalorder %s17, 1
    %p94 = por %p92, %p93
    %p95 = scmp.ne.s32.totalorder %s86, %s87
    %p96 = scmp.eq.s32.totalorder %s17, 0
    %p97 = por %p95, %p96
    %p98 = scmp.ne.s32.totalorder %s86, %s87
    %p99 = scmp.eq.s32.totalorder %s18, 1
    %p100 = por %p98, %p99
    %p102 = scmp.ne.s32.totalorder %s87, %s101
    %p103 = scmp.eq.s32.totalorder %s18, 0
    %p104 = por %p102, %p103
    %s106 = sadd.s32 %s105, 1
    %p109 = scmp.eq.s32.totalorder %s12, 1
    %p110 = scmp.ne.s32.totalorder %s105, %s107
    %p111 = scmp.eq.s32.totalorder %s12, 0
    %p112 = por %p110, %p111
    %p113 = scmp.ne.s32.totalorder %s105, %s107
    %p114 = scmp.eq.s32.totalorder %s17, 1
    %p115 = por %p113, %p114
    %p116 = scmp.ne.s32.totalorder %s107, %s108
    %p117 = scmp.eq.s32.totalorder %s17, 0
    %p118 = por %p116, %p117
    %p119 = scmp.ne.s32.totalorder %s107, %s108
    %p120 = scmp.eq.s32.totalorder %s18, 1
    %p121 = por %p119, %p120
    %p123 = scmp.ne.s32.totalorder %s108, %s122
    %p124 = scmp.eq.s32.totalorder %s18, 0
    %p125 = por %p123, %p124
    %s126 = ssub.s32 %s19, %s31
    %s127 = ssub.s32 %s20, %s27
    %s128 = sor.u32 %s126, %s127
    %p129 = scmp.eq.s32.totalorder %s128, 0
    %s131 = sadd.s32 %s130, 1
    %s132 = scalar_select %p129, %s130, %s131
    %p135 = pneg %p129
    %p136 = scmp.eq.s32.totalorder %s12, 1
    %p137 = por %p135, %p136
    %p138 = scmp.ne.s32.totalorder %s130, %s133
    %p139 = scmp.eq.s32.totalorder %s12, 0
    %p140 = por %p138, %p139
    %p141 = scmp.ne.s32.totalorder %s130, %s133
    %p142 = scmp.eq.s32.totalorder %s17, 1
    %p143 = por %p141, %p142
    %p144 = scmp.ne.s32.totalorder %s133, %s134
    %p145 = scmp.eq.s32.totalorder %s17, 0
    %p146 = por %p144, %p145
    %p147 = scmp.ne.s32.totalorder %s133, %s134
    %p148 = scmp.eq.s32.totalorder %s18, 1
    %p149 = por %p147, %p148
    %p151 = scmp.ne.s32.totalorder %s134, %s150
    %p152 = scmp.eq.s32.totalorder %s18, 0
    %p153 = por %p151, %p152
    %s154 = ssub.s32 %s19, %s31
    %s155 = ssub.s32 %s20, %s27
    %s156 = sor.u32 %s154, %s155
    %p157 = scmp.eq.s32.totalorder %s156, 0
    %s159 = sadd.s32 %s158, 1
    %s160 = scalar_select %p157, %s158, %s159
    %p163 = pneg %p157
    %p164 = scmp.eq.s32.totalorder %s12, 1
    %p165 = por %p163, %p164
    %p166 = scmp.ne.s32.totalorder %s158, %s161
    %p167 = scmp.eq.s32.totalorder %s12, 0
    %p168 = por %p166, %p167
    %p169 = scmp.ne.s32.totalorder %s158, %s161
    %p170 = scmp.eq.s32.totalorder %s17, 1
    %p171 = por %p169, %p170
    %p172 = scmp.ne.s32.totalorder %s161, %s162
    %p173 = scmp.eq.s32.totalorder %s17, 0
    %p174 = por %p172, %p173
    %p175 = scmp.ne.s32.totalorder %s161, %s162
    %p176 = scmp.eq.s32.totalorder %s18, 1
    %p177 = por %p175, %p176
    %p179 = scmp.ne.s32.totalorder %s162, %s178
    %p180 = scmp.eq.s32.totalorder %s18, 0
    %p181 = por %p179, %p180
    %p182 = scmp.le.s32.totalorder 1, %s12
    %p183 = scmp.lt.s32.totalorder %s12, 3
    %p184 = pnand %p182, %p183
    %p185 = pneg %p184
    // Predicated region
    $region9: #{vgg_block_forward.4} parent=5 // pred_check
      _
    $region10: #{vgg_block_forward.4} parent=5 // pred_check_branch
      %187 = sbr.rel (%p184) target = $region12
    $region11: #{vgg_block_forward.4} parent=5 // pred_region
      %s188 = ssub.s32 %s12, 1
      // Predicated region
      $region13: #{vgg_block_forward.4} parent=11 // pred_check
        %p189 = pneg %p76
      $region14: #{vgg_block_forward.4} parent=11 // pred_check_branch
        %191 = sbr.rel (%p189) target = $region16
      $region15: #{vgg_block_forward.4} parent=11 // pred_region
        %p192 = scmp.lt.s32.totalorder %s22, 0
        %s193 = scalar_select %p192, %s22, 0
        %s194 = smul.addr %s193, 4
        %s195 = scalar_lea.vmem %s1, %s194
      $region16: #{vgg_block_forward.4} parent=11 // pred_fallthru
        _
      // Predicated region
      $region17: #{vgg_block_forward.4} parent=11 // pred_check
        %p196 = pneg %p97
      $region18: #{vgg_block_forward.4} parent=11 // pred_check_branch
        %198 = sbr.rel (%p196) target = $region20
      $region19: #{vgg_block_forward.4} parent=11 // pred_region
        _
      $region20: #{vgg_block_forward.4} parent=11 // pred_fallthru
        _
      // Predicated region
      $region21: #{vgg_block_forward.4} parent=11 // pred_check
        %p199 = pneg %p118
      $region22: #{vgg_block_forward.4} parent=11 // pred_check_branch
        %201 = sbr.rel (%p199) target = $region24
      $region23: #{vgg_block_forward.4} parent=11 // pred_region
        _
      $region24: #{vgg_block_forward.4} parent=11 // pred_fallthru
        _
    $region12: #{vgg_block_forward.4} parent=5 // pred_fallthru
      _
    %p202 = scmp.lt.s32.totalorder %s12, 2
    // Predicated region
    $region25: #{vgg_block_forward.4} parent=5 // pred_check
      %p203 = pneg %p202
    $region26: #{vgg_block_forward.4} parent=5 // pred_check_branch
      %205 = sbr.rel (%p203) target = $region28
    $region27: #{vgg_block_forward.4} parent=5 // pred_region
      // Predicated region
      $region29: #{vgg_block_forward.4} parent=27 // pred_check
        %p206 = pneg %p44
      $region30: #{vgg_block_forward.4} parent=27 // pred_check_branch
        %208 = sbr.rel (%p206) target = $region32
      $region31: #{vgg_block_forward.4} parent=27 // pred_region
        %p209 = scmp.lt.s32.totalorder %s19, 1
        %s210 = scalar_select %p209, %s19, 1
        %s211 = smul.addr %s210, 32
        %s212 = smul.addr %s211, 4
        %s213 = scalar_lea.vmem %s0, %s212
      $region32: #{vgg_block_forward.4} parent=27 // pred_fallthru
        _
    $region28: #{vgg_block_forward.4} parent=5 // pred_fallthru
      _
    %p214 = scmp.le.s32.totalorder 1, %s12
    %p215 = scmp.lt.s32.totalorder %s12, 3
    %p216 = pnand %p214, %p215
    %p217 = pneg %p216
    // Predicated region
    $region33: #{vgg_block_forward.4} parent=5 // pred_check
      _
    $region34: #{vgg_block_forward.4} parent=5 // pred_check_branch
      %219 = sbr.rel (%p216) target = $region36
    $region35: #{vgg_block_forward.4} parent=5 // pred_region
      %s220 = ssub.s32 %s12, 1
      %p221 = scmp.lt.s32.totalorder %s21, 1
      %s222 = scalar_select %p221, %s21, 1
      %s223 = smul.addr %s222, 32
      %s224 = smul.addr %s223, 4
      %s225 = scalar_lea.vmem %s0, %s224
      %p226 = pneg %p50
      %p227 = pneg %p47
      %p228 = scmp.lt.s32.totalorder %s22, 0
      %s229 = scalar_select %p228, %s22, 0
      %s230 = smul.addr %s229, 4
      %s231 = scalar_lea.vmem %s1, %s230
      %p232 = pneg %p76
      %p233 = pneg %p73
      %p234 = pneg %p97
      %p235 = pneg %p94
      %p236 = pneg %p118
      %p237 = pneg %p115
      %p238 = pneg %p146
      %p239 = pneg %p143
      %p240 = scmp.lt.s32.totalorder %s21, 1
      %s241 = scalar_select %p240, %s21, 1
      %p242 = scmp.lt.s32.totalorder %s22, 0
      %s243 = scalar_select %p242, %s22, 0
      %s244 = smul.addr %s241, 32
      %s245 = sadd.s32 %s243, %s244
      %s246 = smul.addr %s245, 4
      %s247 = scalar_lea.vmem %s4, %s246
      %p248 = pneg %p174
      %p249 = pneg %p171
      %p250 = scmp.lt.s32.totalorder %s21, 1
      %s251 = scalar_select %p250, %s21, 1
      %p252 = scmp.lt.s32.totalorder %s22, 0
      %s253 = scalar_select %p252, %s22, 0
      %s254 = sadd.s32 %s253, %s251
      %s255 = smul.addr %s254, 2
      %s256 = scalar_lea.vmem %s5, %s255
      %p257 = scmp.lt.s32.totalorder %s21, 1
      %s258 = scalar_select %p257, %s21, 1
      %s259 = smul.addr %s258, 32
      %s260 = smul.addr %s259, 4
      %s261 = scalar_lea.vmem %s0, %s260
      %p262 = scmp.lt.s32.totalorder %s22, 0
      %s263 = scalar_select %p262, %s22, 0
      %s264 = smul.addr %s263, 4
      %s265 = scalar_lea.vmem %s1, %s264
      %p266 = scmp.lt.s32.totalorder %s21, 1
      %s267 = scalar_select %p266, %s21, 1
      %p268 = scmp.lt.s32.totalorder %s22, 0
      %s269 = scalar_select %p268, %s22, 0
      %s270 = smul.addr %s267, 32
      %s271 = sadd.s32 %s269, %s270
      %s272 = smul.addr %s271, 4
      %s273 = scalar_lea.vmem %s4, %s272
      %p274 = scmp.lt.s32.totalorder %s21, 1
      %s275 = scalar_select %p274, %s21, 1
      %p276 = scmp.lt.s32.totalorder %s22, 0
      %s277 = scalar_select %p276, %s22, 0
      %s278 = sadd.s32 %s277, %s275
      %s279 = smul.addr %s278, 2
      %s280 = scalar_lea.vmem %s5, %s279
      %p282 = scmp.eq.s32.totalorder %s22, 0
      // Predicated region
      $region37: #{vgg_block_forward.4} parent=35 // pred_check
        %p283 = pneg %p282
      $region38: #{vgg_block_forward.4} parent=35 // pred_check_branch
        %285 = sbr.rel (%p283) target = $region40
      $region39: #{vgg_block_forward.4} parent=35 // pred_region
        %v286 = vld [vmem:[%s261] sm:$0xf]
        %v287 = vld [vmem:[%s261 + $0x4] sm:$0xf]
        %v288 = vld [vmem:[%s261 + $0x8] sm:$0xf]
        %v289 = vld [vmem:[%s261 + $0xc] sm:$0xf]
        %v290 = vld [vmem:[%s261 + $0x10] sm:$0xf]
        %v291 = vld [vmem:[%s261 + $0x14] sm:$0xf]
        %v292 = vld [vmem:[%s261 + $0x18] sm:$0xf]
        %v293 = vld [vmem:[%s261 + $0x1c] sm:$0xf]
        %v294 = vld [vmem:[%s261 + $0x20] sm:$0xf]
        %v295 = vld [vmem:[%s261 + $0x24] sm:$0xf]
        %v296 = vld [vmem:[%s261 + $0x28] sm:$0xf]
        %v297 = vld [vmem:[%s261 + $0x2c] sm:$0xf]
        %v298 = vld [vmem:[%s261 + $0x30] sm:$0xf]
        %v299 = vld [vmem:[%s261 + $0x34] sm:$0xf]
        %v300 = vld [vmem:[%s261 + $0x38] sm:$0xf]
        %v301 = vld [vmem:[%s261 + $0x3c] sm:$0xf]
        %v302 = vld [vmem:[%s261 + $0x40] sm:$0xf]
        %v303 = vld [vmem:[%s261 + $0x44] sm:$0xf]
        %v304 = vld [vmem:[%s261 + $0x48] sm:$0xf]
        %v305 = vld [vmem:[%s261 + $0x4c] sm:$0xf]
        %v306 = vld [vmem:[%s261 + $0x50] sm:$0xf]
        %v307 = vld [vmem:[%s261 + $0x54] sm:$0xf]
        %v308 = vld [vmem:[%s261 + $0x58] sm:$0xf]
        %v309 = vld [vmem:[%s261 + $0x5c] sm:$0xf]
        %v310 = vld [vmem:[%s261 + $0x60] sm:$0xf]
        %v311 = vld [vmem:[%s261 + $0x64] sm:$0xf]
        %v312 = vld [vmem:[%s261 + $0x68] sm:$0xf]
        %v313 = vld [vmem:[%s261 + $0x6c] sm:$0xf]
        %v314 = vld [vmem:[%s261 + $0x70] sm:$0xf]
        %v315 = vld [vmem:[%s261 + $0x74] sm:$0xf]
        %v316 = vld [vmem:[%s261 + $0x78] sm:$0xf]
        %v317 = vld [vmem:[%s261 + $0x7c] sm:$0xf]
        %v318 = vunpack.c.l.bf16 %v286
        %v319 = vunpack.c.l.bf16 %v287
        %v320 = vunpack.c.l.bf16 %v288
        %v321 = vunpack.c.l.bf16 %v289
        %v322 = vunpack.c.l.bf16 %v290
        %v323 = vunpack.c.l.bf16 %v291
        %v324 = vunpack.c.l.bf16 %v292
        %v325 = vunpack.c.l.bf16 %v293
        %v326 = vunpack.c.l.bf16 %v294
        %v327 = vunpack.c.l.bf16 %v295
        %v328 = vunpack.c.l.bf16 %v296
        %v329 = vunpack.c.l.bf16 %v297
        %v330 = vunpack.c.l.bf16 %v298
        %v331 = vunpack.c.l.bf16 %v299
        %v332 = vunpack.c.l.bf16 %v300
        %v333 = vunpack.c.l.bf16 %v301
        %v334 = vunpack.c.l.bf16 %v302
        %v335 = vunpack.c.l.bf16 %v303
        %v336 = vunpack.c.l.bf16 %v304
        %v337 = vunpack.c.l.bf16 %v305
        %v338 = vunpack.c.l.bf16 %v306
        %v339 = vunpack.c.l.bf16 %v307
        %v340 = vunpack.c.l.bf16 %v308
        %v341 = vunpack.c.l.bf16 %v309
        %v342 = vunpack.c.l.bf16 %v310
        %v343 = vunpack.c.l.bf16 %v311
        %v344 = vunpack.c.l.bf16 %v312
        %v345 = vunpack.c.l.bf16 %v313
        %v346 = vunpack.c.l.bf16 %v314
        %v347 = vunpack.c.l.bf16 %v315
        %v348 = vunpack.c.l.bf16 %v316
        %v349 = vunpack.c.l.bf16 %v317
        %v350 = vld [vmem:[%s2] sm:$0x1]
        %v352 = vlaneseq
        %v353 = vshrl.u32 %v352, 7
        %v354 = vsub.s32 0, %v353
        %v355 = vrot.slane %v350, %v354
        %v357 = vmul.f32 %v318, %v355
        %v358 = vmul.f32 %v319, %v355
        %v359 = vmul.f32 %v320, %v355
        %v360 = vmul.f32 %v321, %v355
        %v361 = vmul.f32 %v322, %v355
        %v362 = vmul.f32 %v323, %v355
        %v363 = vmul.f32 %v324, %v355
        %v364 = vmul.f32 %v325, %v355
        %v365 = vmul.f32 %v326, %v355
        %v366 = vmul.f32 %v327, %v355
        %v367 = vmul.f32 %v328, %v355
        %v368 = vmul.f32 %v329, %v355
        %v369 = vmul.f32 %v330, %v355
        %v370 = vmul.f32 %v331, %v355
        %v371 = vmul.f32 %v332, %v355
        %v372 = vmul.f32 %v333, %v355
        %v373 = vmul.f32 %v334, %v355
        %v374 = vmul.f32 %v335, %v355
        %v375 = vmul.f32 %v336, %v355
        %v376 = vmul.f32 %v337, %v355
        %v377 = vmul.f32 %v338, %v355
        %v378 = vmul.f32 %v339, %v355
        %v379 = vmul.f32 %v340, %v355
        %v380 = vmul.f32 %v341, %v355
        %v381 = vmul.f32 %v342, %v355
        %v382 = vmul.f32 %v343, %v355
        %v383 = vmul.f32 %v344, %v355
        %v384 = vmul.f32 %v345, %v355
        %v385 = vmul.f32 %v346, %v355
        %v386 = vmul.f32 %v347, %v355
        %v387 = vmul.f32 %v348, %v355
        %v388 = vmul.f32 %v349, %v355
        %v389 = vld [vmem:[%s3] sm:$0x1]
        %v391 = vlaneseq
        %v392 = vshrl.u32 %v391, 7
        %v393 = vsub.s32 0, %v392
        %v394 = vrot.slane %v389, %v393
        %v396 = vadd.f32 %v357, %v394
        %v397 = vadd.f32 %v358, %v394
        %v398 = vadd.f32 %v359, %v394
        %v399 = vadd.f32 %v360, %v394
        %v400 = vadd.f32 %v361, %v394
        %v401 = vadd.f32 %v362, %v394
        %v402 = vadd.f32 %v363, %v394
        %v403 = vadd.f32 %v364, %v394
        %v404 = vadd.f32 %v365, %v394
        %v405 = vadd.f32 %v366, %v394
        %v406 = vadd.f32 %v367, %v394
        %v407 = vadd.f32 %v368, %v394
        %v408 = vadd.f32 %v369, %v394
        %v409 = vadd.f32 %v370, %v394
        %v410 = vadd.f32 %v371, %v394
        %v411 = vadd.f32 %v372, %v394
        %v412 = vadd.f32 %v373, %v394
        %v413 = vadd.f32 %v374, %v394
        %v414 = vadd.f32 %v375, %v394
        %v415 = vadd.f32 %v376, %v394
        %v416 = vadd.f32 %v377, %v394
        %v417 = vadd.f32 %v378, %v394
        %v418 = vadd.f32 %v379, %v394
        %v419 = vadd.f32 %v380, %v394
        %v420 = vadd.f32 %v381, %v394
        %v421 = vadd.f32 %v382, %v394
        %v422 = vadd.f32 %v383, %v394
        %v423 = vadd.f32 %v384, %v394
        %v424 = vadd.f32 %v385, %v394
        %v425 = vadd.f32 %v386, %v394
        %v426 = vadd.f32 %v387, %v394
        %v427 = vadd.f32 %v388, %v394
        %v428 = vmax.f32 %v396, 0.0
        %v429 = vmax.f32 %v397, 0.0
        %v430 = vmax.f32 %v398, 0.0
        %v431 = vmax.f32 %v399, 0.0
        %v432 = vmax.f32 %v400, 0.0
        %v433 = vmax.f32 %v401, 0.0
        %v434 = vmax.f32 %v402, 0.0
        %v435 = vmax.f32 %v403, 0.0
        %v436 = vmax.f32 %v404, 0.0
        %v437 = vmax.f32 %v405, 0.0
        %v438 = vmax.f32 %v406, 0.0
        %v439 = vmax.f32 %v407, 0.0
        %v440 = vmax.f32 %v408, 0.0
        %v441 = vmax.f32 %v409, 0.0
        %v442 = vmax.f32 %v410, 0.0
        %v443 = vmax.f32 %v411, 0.0
        %v444 = vmax.f32 %v412, 0.0
        %v445 = vmax.f32 %v413, 0.0
        %v446 = vmax.f32 %v414, 0.0
        %v447 = vmax.f32 %v415, 0.0
        %v448 = vmax.f32 %v416, 0.0
        %v449 = vmax.f32 %v417, 0.0
        %v450 = vmax.f32 %v418, 0.0
        %v451 = vmax.f32 %v419, 0.0
        %v452 = vmax.f32 %v420, 0.0
        %v453 = vmax.f32 %v421, 0.0
        %v454 = vmax.f32 %v422, 0.0
        %v455 = vmax.f32 %v423, 0.0
        %v456 = vmax.f32 %v424, 0.0
        %v457 = vmax.f32 %v425, 0.0
        %v458 = vmax.f32 %v426, 0.0
        %v459 = vmax.f32 %v427, 0.0
        %vm460 = vcmask 64512
        %461 = vst.msk [vmem:[#allocation2] sm:$0xff] %vm460, 0.0
        %462 = vst.msk [vmem:[#allocation2 + $0x8] sm:$0xff] %vm460, 0.0
        %463 = vst.msk [vmem:[#allocation2 + $0x10] sm:$0xff] %vm460, 0.0
        %464 = vst.msk [vmem:[#allocation2 + $0x18] sm:$0xff] %vm460, 0.0
        %465 = vst.msk [vmem:[#allocation2 + $0x20] sm:$0xff] %vm460, 0.0
        %466 = vst.msk [vmem:[#allocation2 + $0x28] sm:$0xff] %vm460, 0.0
        %467 = vst.msk [vmem:[#allocation2 + $0x30] sm:$0xff] %vm460, 0.0
        %468 = vst.msk [vmem:[#allocation2 + $0x38] sm:$0xff] %vm460, 0.0
        %469 = vst.msk [vmem:[#allocation2 + $0x40] sm:$0xff] %vm460, 0.0
        %470 = vst.msk [vmem:[#allocation2 + $0x48] sm:$0xff] %vm460, 0.0
        %471 = vst.msk [vmem:[#allocation2 + $0x50] sm:$0xff] %vm460, 0.0
        %472 = vst.msk [vmem:[#allocation2 + $0x58] sm:$0xff] %vm460, 0.0
        %473 = vst.msk [vmem:[#allocation2 + $0x60] sm:$0xff] %vm460, 0.0
        %474 = vst.msk [vmem:[#allocation2 + $0x68] sm:$0xff] %vm460, 0.0
        %475 = vst.msk [vmem:[#allocation2 + $0x70] sm:$0xff] %vm460, 0.0
        %476 = vst.msk [vmem:[#allocation2 + $0x78] sm:$0xff] %vm460, 0.0
        %477 = vst.msk [vmem:[#allocation2 + $0x80] sm:$0xff] %vm460, 0.0
        %478 = vst.msk [vmem:[#allocation2 + $0x88] sm:$0xff] %vm460, 0.0
        %479 = vst.msk [vmem:[#allocation2 + $0x90] sm:$0xff] %vm460, 0.0
        %480 = vst.msk [vmem:[#allocation2 + $0x98] sm:$0xff] %vm460, 0.0
        %481 = vst.msk [vmem:[#allocation2 + $0xa0] sm:$0xff] %vm460, 0.0
        %482 = vst.msk [vmem:[#allocation2 + $0xa8] sm:$0xff] %vm460, 0.0
        %483 = vst.msk [vmem:[#allocation2 + $0xb0] sm:$0xff] %vm460, 0.0
        %484 = vst.msk [vmem:[#allocation2 + $0xb8] sm:$0xff] %vm460, 0.0
        %485 = vst.msk [vmem:[#allocation2 + $0xc0] sm:$0xff] %vm460, 0.0
        %486 = vst.msk [vmem:[#allocation2 + $0xc8] sm:$0xff] %vm460, 0.0
        %487 = vst.msk [vmem:[#allocation2 + $0xd0] sm:$0xff] %vm460, 0.0
        %488 = vst.msk [vmem:[#allocation2 + $0xd8] sm:$0xff] %vm460, 0.0
        %489 = vst.msk [vmem:[#allocation2 + $0xe0] sm:$0xff] %vm460, 0.0
        %490 = vst.msk [vmem:[#allocation2 + $0xe8] sm:$0xff] %vm460, 0.0
        %491 = vst.msk [vmem:[#allocation2 + $0xf0] sm:$0xff] %vm460, 0.0
        %492 = vst.msk [vmem:[#allocation2 + $0xf8] sm:$0xff] %vm460, 0.0
        %493 = vst.msk [vmem:[#allocation2 + $0x100] sm:$0xff] %vm460, 0.0
        %494 = vst.msk [vmem:[#allocation2 + $0x108] sm:$0xff] %vm460, 0.0
        %495 = vst.msk [vmem:[#allocation2 + $0x110] sm:$0xff] %vm460, 0.0
        %496 = vst.msk [vmem:[#allocation2 + $0x118] sm:$0xff] %vm460, 0.0
        %497 = vst.msk [vmem:[#allocation2 + $0x120] sm:$0xff] %vm460, 0.0
        %498 = vst.msk [vmem:[#allocation2 + $0x128] sm:$0xff] %vm460, 0.0
        %499 = vst.msk [vmem:[#allocation2 + $0x130] sm:$0xff] %vm460, 0.0
        %500 = vst.msk [vmem:[#allocation2 + $0x138] sm:$0xff] %vm460, 0.0
        %501 = vst.msk [vmem:[#allocation2 + $0x140] sm:$0xff] %vm460, 0.0
        %502 = vst.msk [vmem:[#allocation2 + $0x148] sm:$0xff] %vm460, 0.0
        %503 = vst.msk [vmem:[#allocation2 + $0x150] sm:$0xff] %vm460, 0.0
        %504 = vst.msk [vmem:[#allocation2 + $0x158] sm:$0xff] %vm460, 0.0
        %505 = vst.msk [vmem:[#allocation2 + $0x160] sm:$0xff] %vm460, 0.0
        %vm506 = vcmask 58368
        %507 = vst.msk [vmem:[#allocation2 + $0x168] sm:$0x3] %vm506, 0.0
        %508 = vst.msk [vmem:[#allocation2 + $0x26] sm:$0xff] %vm460, %v428
        %509 = vst.msk [vmem:[#allocation2 + $0x2e] sm:$0xff] %vm460, %v429
        %510 = vst.msk [vmem:[#allocation2 + $0x38] sm:$0xff] %vm460, %v430
        %511 = vst.msk [vmem:[#allocation2 + $0x40] sm:$0xff] %vm460, %v431
        %512 = vst.msk [vmem:[#allocation2 + $0x4a] sm:$0xff] %vm460, %v432
        %513 = vst.msk [vmem:[#allocation2 + $0x52] sm:$0xff] %vm460, %v433
        %514 = vst.msk [vmem:[#allocation2 + $0x5c] sm:$0xff] %vm460, %v434
        %515 = vst.msk [vmem:[#allocation2 + $0x64] sm:$0xff] %vm460, %v435
        %516 = vst.msk [vmem:[#allocation2 + $0x6e] sm:$0xff] %vm460, %v436
        %517 = vst.msk [vmem:[#allocation2 + $0x76] sm:$0xff] %vm460, %v437
        %518 = vst.msk [vmem:[#allocation2 + $0x80] sm:$0xff] %vm460, %v438
        %519 = vst.msk [vmem:[#allocation2 + $0x88] sm:$0xff] %vm460, %v439
        %520 = vst.msk [vmem:[#allocation2 + $0x92] sm:$0xff] %vm460, %v440
        %521 = vst.msk [vmem:[#allocation2 + $0x9a] sm:$0xff] %vm460, %v441
        %522 = vst.msk [vmem:[#allocation2 + $0xa4] sm:$0xff] %vm460, %v442
        %523 = vst.msk [vmem:[#allocation2 + $0xac] sm:$0xff] %vm460, %v443
        %524 = vst.msk [vmem:[#allocation2 + $0xb6] sm:$0xff] %vm460, %v444
        %525 = vst.msk [vmem:[#allocation2 + $0xbe] sm:$0xff] %vm460, %v445
        %526 = vst.msk [vmem:[#allocation2 + $0xc8] sm:$0xff] %vm460, %v446
        %527 = vst.msk [vmem:[#allocation2 + $0xd0] sm:$0xff] %vm460, %v447
        %528 = vst.msk [vmem:[#allocation2 + $0xda] sm:$0xff] %vm460, %v448
        %529 = vst.msk [vmem:[#allocation2 + $0xe2] sm:$0xff] %vm460, %v449
        %530 = vst.msk [vmem:[#allocation2 + $0xec] sm:$0xff] %vm460, %v450
        %531 = vst.msk [vmem:[#allocation2 + $0xf4] sm:$0xff] %vm460, %v451
        %532 = vst.msk [vmem:[#allocation2 + $0xfe] sm:$0xff] %vm460, %v452
        %533 = vst.msk [vmem:[#allocation2 + $0x106] sm:$0xff] %vm460, %v453
        %534 = vst.msk [vmem:[#allocation2 + $0x110] sm:$0xff] %vm460, %v454
        %535 = vst.msk [vmem:[#allocation2 + $0x118] sm:$0xff] %vm460, %v455
        %536 = vst.msk [vmem:[#allocation2 + $0x122] sm:$0xff] %vm460, %v456
        %537 = vst.msk [vmem:[#allocation2 + $0x12a] sm:$0xff] %vm460, %v457
        %538 = vst.msk [vmem:[#allocation2 + $0x134] sm:$0xff] %vm460, %v458
        %539 = vst.msk [vmem:[#allocation2 + $0x13c] sm:$0xff] %vm460, %v459
      $region40: #{vgg_block_forward.4} parent=35 // pred_fallthru
        _
      %v540 = vld [vmem:[#allocation2] sm:$0xff]
      %v541 = vld [vmem:[#allocation2 + $0x8] sm:$0xff]
      %v542 = vld [vmem:[#allocation2 + $0x10] sm:$0xff]
      %v543 = vld [vmem:[#allocation2 + $0x18] sm:$0xff]
      %v544 = vld [vmem:[#allocation2 + $0x20] sm:$0xff]
      %v545 = vld [vmem:[#allocation2 + $0x28] sm:$0xff]
      %v546 = vld [vmem:[#allocation2 + $0x30] sm:$0xff]
      %v547 = vld [vmem:[#allocation2 + $0x38] sm:$0xff]
      %v548 = vld [vmem:[#allocation2 + $0x40] sm:$0xff]
      %v549 = vld [vmem:[#allocation2 + $0x48] sm:$0xff]
      %v550 = vld [vmem:[#allocation2 + $0x50] sm:$0xff]
      %v551 = vld [vmem:[#allocation2 + $0x58] sm:$0xff]
      %v552 = vld [vmem:[#allocation2 + $0x60] sm:$0xff]
      %v553 = vld [vmem:[#allocation2 + $0x68] sm:$0xff]
      %v554 = vld [vmem:[#allocation2 + $0x70] sm:$0xff]
      %v555 = vld [vmem:[#allocation2 + $0x78] sm:$0xff]
      %v556 = vld [vmem:[#allocation2 + $0x80] sm:$0xff]
      %v557 = vld [vmem:[#allocation2 + $0x88] sm:$0xff]
      %v558 = vld [vmem:[#allocation2 + $0x90] sm:$0xff]
      %v559 = vld [vmem:[#allocation2 + $0x98] sm:$0xff]
      %v560 = vld [vmem:[#allocation2 + $0xa0] sm:$0xff]
      %v561 = vld [vmem:[#allocation2 + $0xa8] sm:$0xff]
      %v562 = vld [vmem:[#allocation2 + $0xb0] sm:$0xff]
      %v563 = vld [vmem:[#allocation2 + $0xb8] sm:$0xff]
      %v564 = vld [vmem:[#allocation2 + $0xc0] sm:$0xff]
      %v565 = vld [vmem:[#allocation2 + $0xc8] sm:$0xff]
      %v566 = vld [vmem:[#allocation2 + $0xd0] sm:$0xff]
      %v567 = vld [vmem:[#allocation2 + $0xd8] sm:$0xff]
      %v568 = vld [vmem:[#allocation2 + $0xe0] sm:$0xff]
      %v569 = vld [vmem:[#allocation2 + $0xe8] sm:$0xff]
      %v570 = vld [vmem:[#allocation2 + $0xf0] sm:$0xff]
      %v571 = vld [vmem:[#allocation2 + $0xf8] sm:$0xff]
      %v572 = vld [vmem:[#allocation2 + $0x100] sm:$0xff]
      %v573 = vld [vmem:[#allocation2 + $0x108] sm:$0xff]
      %v574 = vld [vmem:[#allocation2 + $0x110] sm:$0xff]
      %v575 = vld [vmem:[#allocation2 + $0x118] sm:$0xff]
      %v576 = vld [vmem:[#allocation2 + $0x120] sm:$0xff]
      %v577 = vld [vmem:[#allocation2 + $0x128] sm:$0xff]
      %v578 = vld [vmem:[#allocation2 + $0x130] sm:$0xff]
      %v579 = vld [vmem:[#allocation2 + $0x138] sm:$0xff]
      %v580 = vld [vmem:[#allocation2 + $0x140] sm:$0xf]
      %v581 = vld [vmem:[#allocation2 + $0x1] sm:$0xff]
      %v582 = vld [vmem:[#allocation2 + $0x9] sm:$0xff]
      %v583 = vld [vmem:[#allocation2 + $0x11] sm:$0xff]
      %v584 = vld [vmem:[#allocation2 + $0x19] sm:$0xff]
      %v585 = vld [vmem:[#allocation2 + $0x21] sm:$0xff]
      %v586 = vld [vmem:[#allocation2 + $0x29] sm:$0xff]
      %v587 = vld [vmem:[#allocation2 + $0x31] sm:$0xff]
      %v588 = vld [vmem:[#allocation2 + $0x39] sm:$0xff]
      %v589 = vld [vmem:[#allocation2 + $0x41] sm:$0xff]
      %v590 = vld [vmem:[#allocation2 + $0x49] sm:$0xff]
      %v591 = vld [vmem:[#allocation2 + $0x51] sm:$0xff]
      %v592 = vld [vmem:[#allocation2 + $0x59] sm:$0xff]
      %v593 = vld [vmem:[#allocation2 + $0x61] sm:$0xff]
      %v594 = vld [vmem:[#allocation2 + $0x69] sm:$0xff]
      %v595 = vld [vmem:[#allocation2 + $0x71] sm:$0xff]
      %v596 = vld [vmem:[#allocation2 + $0x79] sm:$0xff]
      %v597 = vld [vmem:[#allocation2 + $0x81] sm:$0xff]
      %v598 = vld [vmem:[#allocation2 + $0x89] sm:$0xff]
      %v599 = vld [vmem:[#allocation2 + $0x91] sm:$0xff]
      %v600 = vld [vmem:[#allocation2 + $0x99] sm:$0xff]
      %v601 = vld [vmem:[#allocation2 + $0xa1] sm:$0xff]
      %v602 = vld [vmem:[#allocation2 + $0xa9] sm:$0xff]
      %v603 = vld [vmem:[#allocation2 + $0xb1] sm:$0xff]
      %v604 = vld [vmem:[#allocation2 + $0xb9] sm:$0xff]
      %v605 = vld [vmem:[#allocation2 + $0xc1] sm:$0xff]
      %v606 = vld [vmem:[#allocation2 + $0xc9] sm:$0xff]
      %v607 = vld [vmem:[#allocation2 + $0xd1] sm:$0xff]
      %v608 = vld [vmem:[#allocation2 + $0xd9] sm:$0xff]
      %v609 = vld [vmem:[#allocation2 + $0xe1] sm:$0xff]
      %v610 = vld [vmem:[#allocation2 + $0xe9] sm:$0xff]
      %v611 = vld [vmem:[#allocation2 + $0xf1] sm:$0xff]
      %v612 = vld [vmem:[#allocation2 + $0xf9] sm:$0xff]
      %v613 = vld [vmem:[#allocation2 + $0x101] sm:$0xff]
      %v614 = vld [vmem:[#allocation2 + $0x109] sm:$0xff]
      %v615 = vld [vmem:[#allocation2 + $0x111] sm:$0xff]
      %v616 = vld [vmem:[#allocation2 + $0x119] sm:$0xff]
      %v617 = vld [vmem:[#allocation2 + $0x121] sm:$0xff]
      %v618 = vld [vmem:[#allocation2 + $0x129] sm:$0xff]
      %v619 = vld [vmem:[#allocation2 + $0x131] sm:$0xff]
      %v620 = vld [vmem:[#allocation2 + $0x139] sm:$0xff]
      %v621 = vld [vmem:[#allocation2 + $0x141] sm:$0xf]
      %v622 = vld [vmem:[#allocation2 + $0x2] sm:$0xff]
      %v623 = vld [vmem:[#allocation2 + $0xa] sm:$0xff]
      %v624 = vld [vmem:[#allocation2 + $0x12] sm:$0xff]
      %v625 = vld [vmem:[#allocation2 + $0x1a] sm:$0xff]
      %v626 = vld [vmem:[#allocation2 + $0x22] sm:$0xff]
      %v627 = vld [vmem:[#allocation2 + $0x2a] sm:$0xff]
      %v628 = vld [vmem:[#allocation2 + $0x32] sm:$0xff]
      %v629 = vld [vmem:[#allocation2 + $0x3a] sm:$0xff]
      %v630 = vld [vmem:[#allocation2 + $0x42] sm:$0xff]
      %v631 = vld [vmem:[#allocation2 + $0x4a] sm:$0xff]
      %v632 = vld [vmem:[#allocation2 + $0x52] sm:$0xff]
      %v633 = vld [vmem:[#allocation2 + $0x5a] sm:$0xff]
      %v634 = vld [vmem:[#allocation2 + $0x62] sm:$0xff]
      %v635 = vld [vmem:[#allocation2 + $0x6a] sm:$0xff]
      %v636 = vld [vmem:[#allocation2 + $0x72] sm:$0xff]
      %v637 = vld [vmem:[#allocation2 + $0x7a] sm:$0xff]
      %v638 = vld [vmem:[#allocation2 + $0x82] sm:$0xff]
      %v639 = vld [vmem:[#allocation2 + $0x8a] sm:$0xff]
      %v640 = vld [vmem:[#allocation2 + $0x92] sm:$0xff]
      %v641 = vld [vmem:[#allocation2 + $0x9a] sm:$0xff]
      %v642 = vld [vmem:[#allocation2 + $0xa2] sm:$0xff]
      %v643 = vld [vmem:[#allocation2 + $0xaa] sm:$0xff]
      %v644 = vld [vmem:[#allocation2 + $0xb2] sm:$0xff]
      %v645 = vld [vmem:[#allocation2 + $0xba] sm:$0xff]
      %v646 = vld [vmem:[#allocation2 + $0xc2] sm:$0xff]
      %v647 = vld [vmem:[#allocation2 + $0xca] sm:$0xff]
      %v648 = vld [vmem:[#allocation2 + $0xd2] sm:$0xff]
      %v649 = vld [vmem:[#allocation2 + $0xda] sm:$0xff]
      %v650 = vld [vmem:[#allocation2 + $0xe2] sm:$0xff]
      %v651 = vld [vmem:[#allocation2 + $0xea] sm:$0xff]
      %v652 = vld [vmem:[#allocation2 + $0xf2] sm:$0xff]
      %v653 = vld [vmem:[#allocation2 + $0xfa] sm:$0xff]
      %v654 = vld [vmem:[#allocation2 + $0x102] sm:$0xff]
      %v655 = vld [vmem:[#allocation2 + $0x10a] sm:$0xff]
      %v656 = vld [vmem:[#allocation2 + $0x112] sm:$0xff]
      %v657 = vld [vmem:[#allocation2 + $0x11a] sm:$0xff]
      %v658 = vld [vmem:[#allocation2 + $0x122] sm:$0xff]
      %v659 = vld [vmem:[#allocation2 + $0x12a] sm:$0xff]
      %v660 = vld [vmem:[#allocation2 + $0x132] sm:$0xff]
      %v661 = vld [vmem:[#allocation2 + $0x13a] sm:$0xff]
      %v662 = vld [vmem:[#allocation2 + $0x142] sm:$0xf]
      %v663 = vld [vmem:[#allocation2 + $0x142] sm:$0xff]
      %v664 = vld [vmem:[#allocation2 + $0x14a] sm:$0xff]
      %v665 = vld [vmem:[#allocation2 + $0x152] sm:$0xf]
      %v666 = vld [vmem:[#allocation2 + $0x13] sm:$0xff]
      %v667 = vld [vmem:[#allocation2 + $0x1b] sm:$0xff]
      %v668 = vld [vmem:[#allocation2 + $0x23] sm:$0xff]
      %v669 = vld [vmem:[#allocation2 + $0x2b] sm:$0xff]
      %v670 = vld [vmem:[#allocation2 + $0x33] sm:$0xff]
      %v671 = vld [vmem:[#allocation2 + $0x3b] sm:$0xff]
      %v672 = vld [vmem:[#allocation2 + $0x43] sm:$0xff]
      %v673 = vld [vmem:[#allocation2 + $0x4b] sm:$0xff]
      %v674 = vld [vmem:[#allocation2 + $0x53] sm:$0xff]
      %v675 = vld [vmem:[#allocation2 + $0x5b] sm:$0xff]
      %v676 = vld [vmem:[#allocation2 + $0x63] sm:$0xff]
      %v677 = vld [vmem:[#allocation2 + $0x6b] sm:$0xff]
      %v678 = vld [vmem:[#allocation2 + $0x73] sm:$0xff]
      %v679 = vld [vmem:[#allocation2 + $0x7b] sm:$0xff]
      %v680 = vld [vmem:[#allocation2 + $0x83] sm:$0xff]
      %v681 = vld [vmem:[#allocation2 + $0x8b] sm:$0xff]
      %v682 = vld [vmem:[#allocation2 + $0x93] sm:$0xff]
      %v683 = vld [vmem:[#allocation2 + $0x9b] sm:$0xff]
      %v684 = vld [vmem:[#allocation2 + $0xa3] sm:$0xff]
      %v685 = vld [vmem:[#allocation2 + $0xab] sm:$0xff]
      %v686 = vld [vmem:[#allocation2 + $0xb3] sm:$0xff]
      %v687 = vld [vmem:[#allocation2 + $0xbb] sm:$0xff]
      %v688 = vld [vmem:[#allocation2 + $0xc3] sm:$0xff]
      %v689 = vld [vmem:[#allocation2 + $0xcb] sm:$0xff]
      %v690 = vld [vmem:[#allocation2 + $0xd3] sm:$0xff]
      %v691 = vld [vmem:[#allocation2 + $0xdb] sm:$0xff]
      %v692 = vld [vmem:[#allocation2 + $0xe3] sm:$0xff]
      %v693 = vld [vmem:[#allocation2 + $0xeb] sm:$0xff]
      %v694 = vld [vmem:[#allocation2 + $0xf3] sm:$0xff]
      %v695 = vld [vmem:[#allocation2 + $0xfb] sm:$0xff]
      %v696 = vld [vmem:[#allocation2 + $0x103] sm:$0xff]
      %v697 = vld [vmem:[#allocation2 + $0x10b] sm:$0xff]
      %v698 = vld [vmem:[#allocation2 + $0x113] sm:$0xff]
      %v699 = vld [vmem:[#allocation2 + $0x11b] sm:$0xff]
      %v700 = vld [vmem:[#allocation2 + $0x123] sm:$0xff]
      %v701 = vld [vmem:[#allocation2 + $0x12b] sm:$0xff]
      %v702 = vld [vmem:[#allocation2 + $0x133] sm:$0xff]
      %v703 = vld [vmem:[#allocation2 + $0x13b] sm:$0xff]
      %v704 = vld [vmem:[#allocation2 + $0x143] sm:$0xff]
      %v705 = vld [vmem:[#allocation2 + $0x14b] sm:$0xff]
      %v706 = vld [vmem:[#allocation2 + $0x153] sm:$0xf]
      %v707 = vld [vmem:[#allocation2 + $0x14] sm:$0xff]
      %v708 = vld [vmem:[#allocation2 + $0x1c] sm:$0xff]
      %v709 = vld [vmem:[#allocation2 + $0x24] sm:$0xff]
      %v710 = vld [vmem:[#allocation2 + $0x2c] sm:$0xff]
      %v711 = vld [vmem:[#allocation2 + $0x34] sm:$0xff]
      %v712 = vld [vmem:[#allocation2 + $0x3c] sm:$0xff]
      %v713 = vld [vmem:[#allocation2 + $0x44] sm:$0xff]
      %v714 = vld [vmem:[#allocation2 + $0x4c] sm:$0xff]
      %v715 = vld [vmem:[#allocation2 + $0x54] sm:$0xff]
      %v716 = vld [vmem:[#allocation2 + $0x5c] sm:$0xff]
      %v717 = vld [vmem:[#allocation2 + $0x64] sm:$0xff]
      %v718 = vld [vmem:[#allocation2 + $0x6c] sm:$0xff]
      %v719 = vld [vmem:[#allocation2 + $0x74] sm:$0xff]
      %v720 = vld [vmem:[#allocation2 + $0x7c] sm:$0xff]
      %v721 = vld [vmem:[#allocation2 + $0x84] sm:$0xff]
      %v722 = vld [vmem:[#allocation2 + $0x8c] sm:$0xff]
      %v723 = vld [vmem:[#allocation2 + $0x94] sm:$0xff]
      %v724 = vld [vmem:[#allocation2 + $0x9c] sm:$0xff]
      %v725 = vld [vmem:[#allocation2 + $0xa4] sm:$0xff]
      %v726 = vld [vmem:[#allocation2 + $0xac] sm:$0xff]
      %v727 = vld [vmem:[#allocation2 + $0xb4] sm:$0xff]
      %v728 = vld [vmem:[#allocation2 + $0xbc] sm:$0xff]
      %v729 = vld [vmem:[#allocation2 + $0xc4] sm:$0xff]
      %v730 = vld [vmem:[#allocation2 + $0xcc] sm:$0xff]
      %v731 = vld [vmem:[#allocation2 + $0xd4] sm:$0xff]
      %v732 = vld [vmem:[#allocation2 + $0xdc] sm:$0xff]
      %v733 = vld [vmem:[#allocation2 + $0xe4] sm:$0xff]
      %v734 = vld [vmem:[#allocation2 + $0xec] sm:$0xff]
      %v735 = vld [vmem:[#allocation2 + $0xf4] sm:$0xff]
      %v736 = vld [vmem:[#allocation2 + $0xfc] sm:$0xff]
      %v737 = vld [vmem:[#allocation2 + $0x104] sm:$0xff]
      %v738 = vld [vmem:[#allocation2 + $0x10c] sm:$0xff]
      %v739 = vld [vmem:[#allocation2 + $0x114] sm:$0xff]
      %v740 = vld [vmem:[#allocation2 + $0x11c] sm:$0xff]
      %v741 = vld [vmem:[#allocation2 + $0x124] sm:$0xff]
      %v742 = vld [vmem:[#allocation2 + $0x12c] sm:$0xff]
      %v743 = vld [vmem:[#allocation2 + $0x134] sm:$0xff]
      %v744 = vld [vmem:[#allocation2 + $0x13c] sm:$0xff]
      %v745 = vld [vmem:[#allocation2 + $0x144] sm:$0xff]
      %v746 = vld [vmem:[#allocation2 + $0x14c] sm:$0xff]
      %v747 = vld [vmem:[#allocation2 + $0x154] sm:$0xf]
      %v748 = vld [vmem:[#allocation2 + $0x154] sm:$0xff]
      %v749 = vld [vmem:[#allocation2 + $0x15c] sm:$0xff]
      %v750 = vld [vmem:[#allocation2 + $0x164] sm:$0xf]
      %v751 = vld [vmem:[#allocation2 + $0x25] sm:$0xff]
      %v752 = vld [vmem:[#allocation2 + $0x2d] sm:$0xff]
      %v753 = vld [vmem:[#allocation2 + $0x35] sm:$0xff]
      %v754 = vld [vmem:[#allocation2 + $0x3d] sm:$0xff]
      %v755 = vld [vmem:[#allocation2 + $0x45] sm:$0xff]
      %v756 = vld [vmem:[#allocation2 + $0x4d] sm:$0xff]
      %v757 = vld [vmem:[#allocation2 + $0x55] sm:$0xff]
      %v758 = vld [vmem:[#allocation2 + $0x5d] sm:$0xff]
      %v759 = vld [vmem:[#allocation2 + $0x65] sm:$0xff]
      %v760 = vld [vmem:[#allocation2 + $0x6d] sm:$0xff]
      %v761 = vld [vmem:[#allocation2 + $0x75] sm:$0xff]
      %v762 = vld [vmem:[#allocation2 + $0x7d] sm:$0xff]
      %v763 = vld [vmem:[#allocation2 + $0x85] sm:$0xff]
      %v764 = vld [vmem:[#allocation2 + $0x8d] sm:$0xff]
      %v765 = vld [vmem:[#allocation2 + $0x95] sm:$0xff]
      %v766 = vld [vmem:[#allocation2 + $0x9d] sm:$0xff]
      %v767 = vld [vmem:[#allocation2 + $0xa5] sm:$0xff]
      %v768 = vld [vmem:[#allocation2 + $0xad] sm:$0xff]
      %v769 = vld [vmem:[#allocation2 + $0xb5] sm:$0xff]
      %v770 = vld [vmem:[#allocation2 + $0xbd] sm:$0xff]
      %v771 = vld [vmem:[#allocation2 + $0xc5] sm:$0xff]
      %v772 = vld [vmem:[#allocation2 + $0xcd] sm:$0xff]
      %v773 = vld [vmem:[#allocation2 + $0xd5] sm:$0xff]
      %v774 = vld [vmem:[#allocation2 + $0xdd] sm:$0xff]
      %v775 = vld [vmem:[#allocation2 + $0xe5] sm:$0xff]
      %v776 = vld [vmem:[#allocation2 + $0xed] sm:$0xff]
      %v777 = vld [vmem:[#allocation2 + $0xf5] sm:$0xff]
      %v778 = vld [vmem:[#allocation2 + $0xfd] sm:$0xff]
      %v779 = vld [vmem:[#allocation2 + $0x105] sm:$0xff]
      %v780 = vld [vmem:[#allocation2 + $0x10d] sm:$0xff]
      %v781 = vld [vmem:[#allocation2 + $0x115] sm:$0xff]
      %v782 = vld [vmem:[#allocation2 + $0x11d] sm:$0xff]
      %v783 = vld [vmem:[#allocation2 + $0x125] sm:$0xff]
      %v784 = vld [vmem:[#allocation2 + $0x12d] sm:$0xff]
      %v785 = vld [vmem:[#allocation2 + $0x135] sm:$0xff]
      %v786 = vld [vmem:[#allocation2 + $0x13d] sm:$0xff]
      %v787 = vld [vmem:[#allocation2 + $0x145] sm:$0xff]
      %v788 = vld [vmem:[#allocation2 + $0x14d] sm:$0xff]
      %v789 = vld [vmem:[#allocation2 + $0x155] sm:$0xff]
      %v790 = vld [vmem:[#allocation2 + $0x15d] sm:$0xff]
      %v791 = vld [vmem:[#allocation2 + $0x165] sm:$0xf]
      %v792 = vld [vmem:[#allocation2 + $0x26] sm:$0xff]
      %v793 = vld [vmem:[#allocation2 + $0x2e] sm:$0xff]
      %v794 = vld [vmem:[#allocation2 + $0x36] sm:$0xff]
      %v795 = vld [vmem:[#allocation2 + $0x3e] sm:$0xff]
      %v796 = vld [vmem:[#allocation2 + $0x46] sm:$0xff]
      %v797 = vld [vmem:[#allocation2 + $0x4e] sm:$0xff]
      %v798 = vld [vmem:[#allocation2 + $0x56] sm:$0xff]
      %v799 = vld [vmem:[#allocation2 + $0x5e] sm:$0xff]
      %v800 = vld [vmem:[#allocation2 + $0x66] sm:$0xff]
      %v801 = vld [vmem:[#allocation2 + $0x6e] sm:$0xff]
      %v802 = vld [vmem:[#allocation2 + $0x76] sm:$0xff]
      %v803 = vld [vmem:[#allocation2 + $0x7e] sm:$0xff]
      %v804 = vld [vmem:[#allocation2 + $0x86] sm:$0xff]
      %v805 = vld [vmem:[#allocation2 + $0x8e] sm:$0xff]
      %v806 = vld [vmem:[#allocation2 + $0x96] sm:$0xff]
      %v807 = vld [vmem:[#allocation2 + $0x9e] sm:$0xff]
      %v808 = vld [vmem:[#allocation2 + $0xa6] sm:$0xff]
      %v809 = vld [vmem:[#allocation2 + $0xae] sm:$0xff]
      %v810 = vld [vmem:[#allocation2 + $0xb6] sm:$0xff]
      %v811 = vld [vmem:[#allocation2 + $0xbe] sm:$0xff]
      %v812 = vld [vmem:[#allocation2 + $0xc6] sm:$0xff]
      %v813 = vld [vmem:[#allocation2 + $0xce] sm:$0xff]
      %v814 = vld [vmem:[#allocation2 + $0xd6] sm:$0xff]
      %v815 = vld [vmem:[#allocation2 + $0xde] sm:$0xff]
      %v816 = vld [vmem:[#allocation2 + $0xe6] sm:$0xff]
      %v817 = vld [vmem:[#allocation2 + $0xee] sm:$0xff]
      %v818 = vld [vmem:[#allocation2 + $0xf6] sm:$0xff]
      %v819 = vld [vmem:[#allocation2 + $0xfe] sm:$0xff]
      %v820 = vld [vmem:[#allocation2 + $0x106] sm:$0xff]
      %v821 = vld [vmem:[#allocation2 + $0x10e] sm:$0xff]
      %v822 = vld [vmem:[#allocation2 + $0x116] sm:$0xff]
      %v823 = vld [vmem:[#allocation2 + $0x11e] sm:$0xff]
      %v824 = vld [vmem:[#allocation2 + $0x126] sm:$0xff]
      %v825 = vld [vmem:[#allocation2 + $0x12e] sm:$0xff]
      %v826 = vld [vmem:[#allocation2 + $0x136] sm:$0xff]
      %v827 = vld [vmem:[#allocation2 + $0x13e] sm:$0xff]
      %v828 = vld [vmem:[#allocation2 + $0x146] sm:$0xff]
      %v829 = vld [vmem:[#allocation2 + $0x14e] sm:$0xff]
      %v830 = vld [vmem:[#allocation2 + $0x156] sm:$0xff]
      %v831 = vld [vmem:[#allocation2 + $0x15e] sm:$0xff]
      %v832 = vld [vmem:[#allocation2 + $0x166] sm:$0xf]
      %874 = vrot.lane.b32.xlu0 %v581, 8
      %v875 = vpop.permute.xlu0 %874
      %876 = vrot.lane.b32.xlu0 %v582, 8
      %v877 = vpop.permute.xlu0 %876
      %878 = vrot.lane.b32.xlu0 %v583, 8
      %v879 = vpop.permute.xlu0 %878
      %880 = vrot.lane.b32.xlu0 %v584, 8
      %v881 = vpop.permute.xlu0 %880
      %882 = vrot.lane.b32.xlu0 %v585, 8
      %v883 = vpop.permute.xlu0 %882
      %884 = vrot.lane.b32.xlu0 %v586, 8
      %v885 = vpop.permute.xlu0 %884
      %886 = vrot.lane.b32.xlu0 %v587, 8
      %v887 = vpop.permute.xlu0 %886
      %888 = vrot.lane.b32.xlu0 %v588, 8
      %v889 = vpop.permute.xlu0 %888
      %890 = vrot.lane.b32.xlu0 %v589, 8
      %v891 = vpop.permute.xlu0 %890
      %892 = vrot.lane.b32.xlu0 %v590, 8
      %v893 = vpop.permute.xlu0 %892
      %894 = vrot.lane.b32.xlu0 %v591, 8
      %v895 = vpop.permute.xlu0 %894
      %896 = vrot.lane.b32.xlu0 %v592, 8
      %v897 = vpop.permute.xlu0 %896
      %898 = vrot.lane.b32.xlu0 %v593, 8
      %v899 = vpop.permute.xlu0 %898
      %900 = vrot.lane.b32.xlu0 %v594, 8
      %v901 = vpop.permute.xlu0 %900
      %902 = vrot.lane.b32.xlu0 %v595, 8
      %v903 = vpop.permute.xlu0 %902
      %904 = vrot.lane.b32.xlu0 %v596, 8
      %v905 = vpop.permute.xlu0 %904
      %906 = vrot.lane.b32.xlu0 %v597, 8
      %v907 = vpop.permute.xlu0 %906
      %908 = vrot.lane.b32.xlu0 %v598, 8
      %v909 = vpop.permute.xlu0 %908
      %910 = vrot.lane.b32.xlu0 %v599, 8
      %v911 = vpop.permute.xlu0 %910
      %912 = vrot.lane.b32.xlu0 %v600, 8
      %v913 = vpop.permute.xlu0 %912
      %914 = vrot.lane.b32.xlu0 %v601, 8
      %v915 = vpop.permute.xlu0 %914
      %916 = vrot.lane.b32.xlu0 %v602, 8
      %v917 = vpop.permute.xlu0 %916
      %918 = vrot.lane.b32.xlu0 %v603, 8
      %v919 = vpop.permute.xlu0 %918
      %920 = vrot.lane.b32.xlu0 %v604, 8
      %v921 = vpop.permute.xlu0 %920
      %922 = vrot.lane.b32.xlu0 %v605, 8
      %v923 = vpop.permute.xlu0 %922
      %924 = vrot.lane.b32.xlu0 %v606, 8
      %v925 = vpop.permute.xlu0 %924
      %926 = vrot.lane.b32.xlu0 %v607, 8
      %v927 = vpop.permute.xlu0 %926
      %928 = vrot.lane.b32.xlu0 %v608, 8
      %v929 = vpop.permute.xlu0 %928
      %930 = vrot.lane.b32.xlu0 %v609, 8
      %v931 = vpop.permute.xlu0 %930
      %932 = vrot.lane.b32.xlu0 %v610, 8
      %v933 = vpop.permute.xlu0 %932
      %934 = vrot.lane.b32.xlu0 %v611, 8
      %v935 = vpop.permute.xlu0 %934
      %936 = vrot.lane.b32.xlu0 %v612, 8
      %v937 = vpop.permute.xlu0 %936
      %938 = vrot.lane.b32.xlu0 %v613, 8
      %v939 = vpop.permute.xlu0 %938
      %940 = vrot.lane.b32.xlu0 %v614, 8
      %v941 = vpop.permute.xlu0 %940
      %942 = vrot.lane.b32.xlu0 %v615, 8
      %v943 = vpop.permute.xlu0 %942
      %944 = vrot.lane.b32.xlu0 %v616, 8
      %v945 = vpop.permute.xlu0 %944
      %946 = vrot.lane.b32.xlu0 %v617, 8
      %v947 = vpop.permute.xlu0 %946
      %948 = vrot.lane.b32.xlu0 %v618, 8
      %v949 = vpop.permute.xlu0 %948
      %950 = vrot.lane.b32.xlu0 %v619, 8
      %v951 = vpop.permute.xlu0 %950
      %952 = vrot.lane.b32.xlu0 %v620, 8
      %v953 = vpop.permute.xlu0 %952
      %954 = vrot.lane.b32.xlu0 %v621, 8
      %v955 = vpop.permute.xlu0 %954
      %1038 = vrot.lane.b32.xlu0 %v622, 16
      %v1039 = vpop.permute.xlu0 %1038
      %1040 = vrot.lane.b32.xlu0 %v623, 16
      %v1041 = vpop.permute.xlu0 %1040
      %1042 = vrot.lane.b32.xlu0 %v624, 16
      %v1043 = vpop.permute.xlu0 %1042
      %1044 = vrot.lane.b32.xlu0 %v625, 16
      %v1045 = vpop.permute.xlu0 %1044
      %1046 = vrot.lane.b32.xlu0 %v626, 16
      %v1047 = vpop.permute.xlu0 %1046
      %1048 = vrot.lane.b32.xlu0 %v627, 16
      %v1049 = vpop.permute.xlu0 %1048
      %1050 = vrot.lane.b32.xlu0 %v628, 16
      %v1051 = vpop.permute.xlu0 %1050
      %1052 = vrot.lane.b32.xlu0 %v629, 16
      %v1053 = vpop.permute.xlu0 %1052
      %1054 = vrot.lane.b32.xlu0 %v630, 16
      %v1055 = vpop.permute.xlu0 %1054
      %1056 = vrot.lane.b32.xlu0 %v631, 16
      %v1057 = vpop.permute.xlu0 %1056
      %1058 = vrot.lane.b32.xlu0 %v632, 16
      %v1059 = vpop.permute.xlu0 %1058
      %1060 = vrot.lane.b32.xlu0 %v633, 16
      %v1061 = vpop.permute.xlu0 %1060
      %1062 = vrot.lane.b32.xlu0 %v634, 16
      %v1063 = vpop.permute.xlu0 %1062
      %1064 = vrot.lane.b32.xlu0 %v635, 16
      %v1065 = vpop.permute.xlu0 %1064
      %1066 = vrot.lane.b32.xlu0 %v636, 16
      %v1067 = vpop.permute.xlu0 %1066
      %1068 = vrot.lane.b32.xlu0 %v637, 16
      %v1069 = vpop.permute.xlu0 %1068
      %1070 = vrot.lane.b32.xlu0 %v638, 16
      %v1071 = vpop.permute.xlu0 %1070
      %1072 = vrot.lane.b32.xlu0 %v639, 16
      %v1073 = vpop.permute.xlu0 %1072
      %1074 = vrot.lane.b32.xlu0 %v640, 16
      %v1075 = vpop.permute.xlu0 %1074
      %1076 = vrot.lane.b32.xlu0 %v641, 16
      %v1077 = vpop.permute.xlu0 %1076
      %1078 = vrot.lane.b32.xlu0 %v642, 16
      %v1079 = vpop.permute.xlu0 %1078
      %1080 = vrot.lane.b32.xlu0 %v643, 16
      %v1081 = vpop.permute.xlu0 %1080
      %1082 = vrot.lane.b32.xlu0 %v644, 16
      %v1083 = vpop.permute.xlu0 %1082
      %1084 = vrot.lane.b32.xlu0 %v645, 16
      %v1085 = vpop.permute.xlu0 %1084
      %1086 = vrot.lane.b32.xlu0 %v646, 16
      %v1087 = vpop.permute.xlu0 %1086
      %1088 = vrot.lane.b32.xlu0 %v647, 16
      %v1089 = vpop.permute.xlu0 %1088
      %1090 = vrot.lane.b32.xlu0 %v648, 16
      %v1091 = vpop.permute.xlu0 %1090
      %1092 = vrot.lane.b32.xlu0 %v649, 16
      %v1093 = vpop.permute.xlu0 %1092
      %1094 = vrot.lane.b32.xlu0 %v650, 16
      %v1095 = vpop.permute.xlu0 %1094
      %1096 = vrot.lane.b32.xlu0 %v651, 16
      %v1097 = vpop.permute.xlu0 %1096
      %1098 = vrot.lane.b32.xlu0 %v652, 16
      %v1099 = vpop.permute.xlu0 %1098
      %1100 = vrot.lane.b32.xlu0 %v653, 16
      %v1101 = vpop.permute.xlu0 %1100
      %1102 = vrot.lane.b32.xlu0 %v654, 16
      %v1103 = vpop.permute.xlu0 %1102
      %1104 = vrot.lane.b32.xlu0 %v655, 16
      %v1105 = vpop.permute.xlu0 %1104
      %1106 = vrot.lane.b32.xlu0 %v656, 16
      %v1107 = vpop.permute.xlu0 %1106
      %1108 = vrot.lane.b32.xlu0 %v657, 16
      %v1109 = vpop.permute.xlu0 %1108
      %1110 = vrot.lane.b32.xlu0 %v658, 16
      %v1111 = vpop.permute.xlu0 %1110
      %1112 = vrot.lane.b32.xlu0 %v659, 16
      %v1113 = vpop.permute.xlu0 %1112
      %1114 = vrot.lane.b32.xlu0 %v660, 16
      %v1115 = vpop.permute.xlu0 %1114
      %1116 = vrot.lane.b32.xlu0 %v661, 16
      %v1117 = vpop.permute.xlu0 %1116
      %1118 = vrot.lane.b32.xlu0 %v662, 16
      %v1119 = vpop.permute.xlu0 %1118
      %1164 = vrot.lane.b32.xlu0 %v624, 24
      %v1165 = vpop.permute.xlu0 %1164
      %1166 = vrot.lane.b32.xlu0 %v625, 24
      %v1167 = vpop.permute.xlu0 %1166
      %1168 = vrot.lane.b32.xlu0 %v626, 24
      %v1169 = vpop.permute.xlu0 %1168
      %1170 = vrot.lane.b32.xlu0 %v627, 24
      %v1171 = vpop.permute.xlu0 %1170
      %1172 = vrot.lane.b32.xlu0 %v628, 24
      %v1173 = vpop.permute.xlu0 %1172
      %1174 = vrot.lane.b32.xlu0 %v629, 24
      %v1175 = vpop.permute.xlu0 %1174
      %1176 = vrot.lane.b32.xlu0 %v630, 24
      %v1177 = vpop.permute.xlu0 %1176
      %1178 = vrot.lane.b32.xlu0 %v631, 24
      %v1179 = vpop.permute.xlu0 %1178
      %1180 = vrot.lane.b32.xlu0 %v632, 24
      %v1181 = vpop.permute.xlu0 %1180
      %1182 = vrot.lane.b32.xlu0 %v633, 24
      %v1183 = vpop.permute.xlu0 %1182
      %1184 = vrot.lane.b32.xlu0 %v634, 24
      %v1185 = vpop.permute.xlu0 %1184
      %1186 = vrot.lane.b32.xlu0 %v635, 24
      %v1187 = vpop.permute.xlu0 %1186
      %1188 = vrot.lane.b32.xlu0 %v636, 24
      %v1189 = vpop.permute.xlu0 %1188
      %1190 = vrot.lane.b32.xlu0 %v637, 24
      %v1191 = vpop.permute.xlu0 %1190
      %1192 = vrot.lane.b32.xlu0 %v638, 24
      %v1193 = vpop.permute.xlu0 %1192
      %1194 = vrot.lane.b32.xlu0 %v639, 24
      %v1195 = vpop.permute.xlu0 %1194
      %1196 = vrot.lane.b32.xlu0 %v640, 24
      %v1197 = vpop.permute.xlu0 %1196
      %1198 = vrot.lane.b32.xlu0 %v641, 24
      %v1199 = vpop.permute.xlu0 %1198
      %1200 = vrot.lane.b32.xlu0 %v642, 24
      %v1201 = vpop.permute.xlu0 %1200
      %1202 = vrot.lane.b32.xlu0 %v643, 24
      %v1203 = vpop.permute.xlu0 %1202
      %1204 = vrot.lane.b32.xlu0 %v644, 24
      %v1205 = vpop.permute.xlu0 %1204
      %1206 = vrot.lane.b32.xlu0 %v645, 24
      %v1207 = vpop.permute.xlu0 %1206
      %1208 = vrot.lane.b32.xlu0 %v646, 24
      %v1209 = vpop.permute.xlu0 %1208
      %1210 = vrot.lane.b32.xlu0 %v647, 24
      %v1211 = vpop.permute.xlu0 %1210
      %1212 = vrot.lane.b32.xlu0 %v648, 24
      %v1213 = vpop.permute.xlu0 %1212
      %1214 = vrot.lane.b32.xlu0 %v649, 24
      %v1215 = vpop.permute.xlu0 %1214
      %1216 = vrot.lane.b32.xlu0 %v650, 24
      %v1217 = vpop.permute.xlu0 %1216
      %1218 = vrot.lane.b32.xlu0 %v651, 24
      %v1219 = vpop.permute.xlu0 %1218
      %1220 = vrot.lane.b32.xlu0 %v652, 24
      %v1221 = vpop.permute.xlu0 %1220
      %1222 = vrot.lane.b32.xlu0 %v653, 24
      %v1223 = vpop.permute.xlu0 %1222
      %1224 = vrot.lane.b32.xlu0 %v654, 24
      %v1225 = vpop.permute.xlu0 %1224
      %1226 = vrot.lane.b32.xlu0 %v655, 24
      %v1227 = vpop.permute.xlu0 %1226
      %1228 = vrot.lane.b32.xlu0 %v656, 24
      %v1229 = vpop.permute.xlu0 %1228
      %1230 = vrot.lane.b32.xlu0 %v657, 24
      %v1231 = vpop.permute.xlu0 %1230
      %1232 = vrot.lane.b32.xlu0 %v658, 24
      %v1233 = vpop.permute.xlu0 %1232
      %1234 = vrot.lane.b32.xlu0 %v659, 24
      %v1235 = vpop.permute.xlu0 %1234
      %1236 = vrot.lane.b32.xlu0 %v660, 24
      %v1237 = vpop.permute.xlu0 %1236
      %1238 = vrot.lane.b32.xlu0 %v661, 24
      %v1239 = vpop.permute.xlu0 %1238
      %1240 = vrot.lane.b32.xlu0 %v663, 24
      %v1241 = vpop.permute.xlu0 %1240
      %1242 = vrot.lane.b32.xlu0 %v664, 24
      %v1243 = vpop.permute.xlu0 %1242
      %1244 = vrot.lane.b32.xlu0 %v665, 24
      %v1245 = vpop.permute.xlu0 %1244
      %1328 = vrot.lane.b32.xlu0 %v666, 32
      %v1329 = vpop.permute.xlu0 %1328
      %1330 = vrot.lane.b32.xlu0 %v667, 32
      %v1331 = vpop.permute.xlu0 %1330
      %1332 = vrot.lane.b32.xlu0 %v668, 32
      %v1333 = vpop.permute.xlu0 %1332
      %1334 = vrot.lane.b32.xlu0 %v669, 32
      %v1335 = vpop.permute.xlu0 %1334
      %1336 = vrot.lane.b32.xlu0 %v670, 32
      %v1337 = vpop.permute.xlu0 %1336
      %1338 = vrot.lane.b32.xlu0 %v671, 32
      %v1339 = vpop.permute.xlu0 %1338
      %1340 = vrot.lane.b32.xlu0 %v672, 32
      %v1341 = vpop.permute.xlu0 %1340
      %1342 = vrot.lane.b32.xlu0 %v673, 32
      %v1343 = vpop.permute.xlu0 %1342
      %1344 = vrot.lane.b32.xlu0 %v674, 32
      %v1345 = vpop.permute.xlu0 %1344
      %1346 = vrot.lane.b32.xlu0 %v675, 32
      %v1347 = vpop.permute.xlu0 %1346
      %1348 = vrot.lane.b32.xlu0 %v676, 32
      %v1349 = vpop.permute.xlu0 %1348
      %1350 = vrot.lane.b32.xlu0 %v677, 32
      %v1351 = vpop.permute.xlu0 %1350
      %1352 = vrot.lane.b32.xlu0 %v678, 32
      %v1353 = vpop.permute.xlu0 %1352
      %1354 = vrot.lane.b32.xlu0 %v679, 32
      %v1355 = vpop.permute.xlu0 %1354
      %1356 = vrot.lane.b32.xlu0 %v680, 32
      %v1357 = vpop.permute.xlu0 %1356
      %1358 = vrot.lane.b32.xlu0 %v681, 32
      %v1359 = vpop.permute.xlu0 %1358
      %1360 = vrot.lane.b32.xlu0 %v682, 32
      %v1361 = vpop.permute.xlu0 %1360
      %1362 = vrot.lane.b32.xlu0 %v683, 32
      %v1363 = vpop.permute.xlu0 %1362
      %1364 = vrot.lane.b32.xlu0 %v684, 32
      %v1365 = vpop.permute.xlu0 %1364
      %1366 = vrot.lane.b32.xlu0 %v685, 32
      %v1367 = vpop.permute.xlu0 %1366
      %1368 = vrot.lane.b32.xlu0 %v686, 32
      %v1369 = vpop.permute.xlu0 %1368
      %1370 = vrot.lane.b32.xlu0 %v687, 32
      %v1371 = vpop.permute.xlu0 %1370
      %1372 = vrot.lane.b32.xlu0 %v688, 32
      %v1373 = vpop.permute.xlu0 %1372
      %1374 = vrot.lane.b32.xlu0 %v689, 32
      %v1375 = vpop.permute.xlu0 %1374
      %1376 = vrot.lane.b32.xlu0 %v690, 32
      %v1377 = vpop.permute.xlu0 %1376
      %1378 = vrot.lane.b32.xlu0 %v691, 32
      %v1379 = vpop.permute.xlu0 %1378
      %1380 = vrot.lane.b32.xlu0 %v692, 32
      %v1381 = vpop.permute.xlu0 %1380
      %1382 = vrot.lane.b32.xlu0 %v693, 32
      %v1383 = vpop.permute.xlu0 %1382
      %1384 = vrot.lane.b32.xlu0 %v694, 32
      %v1385 = vpop.permute.xlu0 %1384
      %1386 = vrot.lane.b32.xlu0 %v695, 32
      %v1387 = vpop.permute.xlu0 %1386
      %1388 = vrot.lane.b32.xlu0 %v696, 32
      %v1389 = vpop.permute.xlu0 %1388
      %1390 = vrot.lane.b32.xlu0 %v697, 32
      %v1391 = vpop.permute.xlu0 %1390
      %1392 = vrot.lane.b32.xlu0 %v698, 32
      %v1393 = vpop.permute.xlu0 %1392
      %1394 = vrot.lane.b32.xlu0 %v699, 32
      %v1395 = vpop.permute.xlu0 %1394
      %1396 = vrot.lane.b32.xlu0 %v700, 32
      %v1397 = vpop.permute.xlu0 %1396
      %1398 = vrot.lane.b32.xlu0 %v701, 32
      %v1399 = vpop.permute.xlu0 %1398
      %1400 = vrot.lane.b32.xlu0 %v702, 32
      %v1401 = vpop.permute.xlu0 %1400
      %1402 = vrot.lane.b32.xlu0 %v703, 32
      %v1403 = vpop.permute.xlu0 %1402
      %1404 = vrot.lane.b32.xlu0 %v704, 32
      %v1405 = vpop.permute.xlu0 %1404
      %1406 = vrot.lane.b32.xlu0 %v705, 32
      %v1407 = vpop.permute.xlu0 %1406
      %1408 = vrot.lane.b32.xlu0 %v706, 32
      %v1409 = vpop.permute.xlu0 %1408
      %1492 = vrot.lane.b32.xlu0 %v707, 40
      %v1493 = vpop.permute.xlu0 %1492
      %1494 = vrot.lane.b32.xlu0 %v708, 40
      %v1495 = vpop.permute.xlu0 %1494
      %1496 = vrot.lane.b32.xlu0 %v709, 40
      %v1497 = vpop.permute.xlu0 %1496
      %1498 = vrot.lane.b32.xlu0 %v710, 40
      %v1499 = vpop.permute.xlu0 %1498
      %1500 = vrot.lane.b32.xlu0 %v711, 40
      %v1501 = vpop.permute.xlu0 %1500
      %1502 = vrot.lane.b32.xlu0 %v712, 40
      %v1503 = vpop.permute.xlu0 %1502
      %1504 = vrot.lane.b32.xlu0 %v713, 40
      %v1505 = vpop.permute.xlu0 %1504
      %1506 = vrot.lane.b32.xlu0 %v714, 40
      %v1507 = vpop.permute.xlu0 %1506
      %1508 = vrot.lane.b32.xlu0 %v715, 40
      %v1509 = vpop.permute.xlu0 %1508
      %1510 = vrot.lane.b32.xlu0 %v716, 40
      %v1511 = vpop.permute.xlu0 %1510
      %1512 = vrot.lane.b32.xlu0 %v717, 40
      %v1513 = vpop.permute.xlu0 %1512
      %1514 = vrot.lane.b32.xlu0 %v718, 40
      %v1515 = vpop.permute.xlu0 %1514
      %1516 = vrot.lane.b32.xlu0 %v719, 40
      %v1517 = vpop.permute.xlu0 %1516
      %1518 = vrot.lane.b32.xlu0 %v720, 40
      %v1519 = vpop.permute.xlu0 %1518
      %1520 = vrot.lane.b32.xlu0 %v721, 40
      %v1521 = vpop.permute.xlu0 %1520
      %1522 = vrot.lane.b32.xlu0 %v722, 40
      %v1523 = vpop.permute.xlu0 %1522
      %1524 = vrot.lane.b32.xlu0 %v723, 40
      %v1525 = vpop.permute.xlu0 %1524
      %1526 = vrot.lane.b32.xlu0 %v724, 40
      %v1527 = vpop.permute.xlu0 %1526
      %1528 = vrot.lane.b32.xlu0 %v725, 40
      %v1529 = vpop.permute.xlu0 %1528
      %1530 = vrot.lane.b32.xlu0 %v726, 40
      %v1531 = vpop.permute.xlu0 %1530
      %1532 = vrot.lane.b32.xlu0 %v727, 40
      %v1533 = vpop.permute.xlu0 %1532
      %1534 = vrot.lane.b32.xlu0 %v728, 40
      %v1535 = vpop.permute.xlu0 %1534
      %1536 = vrot.lane.b32.xlu0 %v729, 40
      %v1537 = vpop.permute.xlu0 %1536
      %1538 = vrot.lane.b32.xlu0 %v730, 40
      %v1539 = vpop.permute.xlu0 %1538
      %1540 = vrot.lane.b32.xlu0 %v731, 40
      %v1541 = vpop.permute.xlu0 %1540
      %1542 = vrot.lane.b32.xlu0 %v732, 40
      %v1543 = vpop.permute.xlu0 %1542
      %1544 = vrot.lane.b32.xlu0 %v733, 40
      %v1545 = vpop.permute.xlu0 %1544
      %1546 = vrot.lane.b32.xlu0 %v734, 40
      %v1547 = vpop.permute.xlu0 %1546
      %1548 = vrot.lane.b32.xlu0 %v735, 40
      %v1549 = vpop.permute.xlu0 %1548
      %1550 = vrot.lane.b32.xlu0 %v736, 40
      %v1551 = vpop.permute.xlu0 %1550
      %1552 = vrot.lane.b32.xlu0 %v737, 40
      %v1553 = vpop.permute.xlu0 %1552
      %1554 = vrot.lane.b32.xlu0 %v738, 40
      %v1555 = vpop.permute.xlu0 %1554
      %1556 = vrot.lane.b32.xlu0 %v739, 40
      %v1557 = vpop.permute.xlu0 %1556
      %1558 = vrot.lane.b32.xlu0 %v740, 40
      %v1559 = vpop.permute.xlu0 %1558
      %1560 = vrot.lane.b32.xlu0 %v741, 40
      %v1561 = vpop.permute.xlu0 %1560
      %1562 = vrot.lane.b32.xlu0 %v742, 40
      %v1563 = vpop.permute.xlu0 %1562
      %1564 = vrot.lane.b32.xlu0 %v743, 40
      %v1565 = vpop.permute.xlu0 %1564
      %1566 = vrot.lane.b32.xlu0 %v744, 40
      %v1567 = vpop.permute.xlu0 %1566
      %1568 = vrot.lane.b32.xlu0 %v745, 40
      %v1569 = vpop.permute.xlu0 %1568
      %1570 = vrot.lane.b32.xlu0 %v746, 40
      %v1571 = vpop.permute.xlu0 %1570
      %1572 = vrot.lane.b32.xlu0 %v747, 40
      %v1573 = vpop.permute.xlu0 %1572
      %1618 = vrot.lane.b32.xlu0 %v709, 48
      %v1619 = vpop.permute.xlu0 %1618
      %1620 = vrot.lane.b32.xlu0 %v710, 48
      %v1621 = vpop.permute.xlu0 %1620
      %1622 = vrot.lane.b32.xlu0 %v711, 48
      %v1623 = vpop.permute.xlu0 %1622
      %1624 = vrot.lane.b32.xlu0 %v712, 48
      %v1625 = vpop.permute.xlu0 %1624
      %1626 = vrot.lane.b32.xlu0 %v713, 48
      %v1627 = vpop.permute.xlu0 %1626
      %1628 = vrot.lane.b32.xlu0 %v714, 48
      %v1629 = vpop.permute.xlu0 %1628
      %1630 = vrot.lane.b32.xlu0 %v715, 48
      %v1631 = vpop.permute.xlu0 %1630
      %1632 = vrot.lane.b32.xlu0 %v716, 48
      %v1633 = vpop.permute.xlu0 %1632
      %1634 = vrot.lane.b32.xlu0 %v717, 48
      %v1635 = vpop.permute.xlu0 %1634
      %1636 = vrot.lane.b32.xlu0 %v718, 48
      %v1637 = vpop.permute.xlu0 %1636
      %1638 = vrot.lane.b32.xlu0 %v719, 48
      %v1639 = vpop.permute.xlu0 %1638
      %1640 = vrot.lane.b32.xlu0 %v720, 48
      %v1641 = vpop.permute.xlu0 %1640
      %1642 = vrot.lane.b32.xlu0 %v721, 48
      %v1643 = vpop.permute.xlu0 %1642
      %1644 = vrot.lane.b32.xlu0 %v722, 48
      %v1645 = vpop.permute.xlu0 %1644
      %1646 = vrot.lane.b32.xlu0 %v723, 48
      %v1647 = vpop.permute.xlu0 %1646
      %1648 = vrot.lane.b32.xlu0 %v724, 48
      %v1649 = vpop.permute.xlu0 %1648
      %1650 = vrot.lane.b32.xlu0 %v725, 48
      %v1651 = vpop.permute.xlu0 %1650
      %1652 = vrot.lane.b32.xlu0 %v726, 48
      %v1653 = vpop.permute.xlu0 %1652
      %1654 = vrot.lane.b32.xlu0 %v727, 48
      %v1655 = vpop.permute.xlu0 %1654
      %1656 = vrot.lane.b32.xlu0 %v728, 48
      %v1657 = vpop.permute.xlu0 %1656
      %1658 = vrot.lane.b32.xlu0 %v729, 48
      %v1659 = vpop.permute.xlu0 %1658
      %1660 = vrot.lane.b32.xlu0 %v730, 48
      %v1661 = vpop.permute.xlu0 %1660
      %1662 = vrot.lane.b32.xlu0 %v731, 48
      %v1663 = vpop.permute.xlu0 %1662
      %1664 = vrot.lane.b32.xlu0 %v732, 48
      %v1665 = vpop.permute.xlu0 %1664
      %1666 = vrot.lane.b32.xlu0 %v733, 48
      %v1667 = vpop.permute.xlu0 %1666
      %1668 = vrot.lane.b32.xlu0 %v734, 48
      %v1669 = vpop.permute.xlu0 %1668
      %1670 = vrot.lane.b32.xlu0 %v735, 48
      %v1671 = vpop.permute.xlu0 %1670
      %1672 = vrot.lane.b32.xlu0 %v736, 48
      %v1673 = vpop.permute.xlu0 %1672
      %1674 = vrot.lane.b32.xlu0 %v737, 48
      %v1675 = vpop.permute.xlu0 %1674
      %1676 = vrot.lane.b32.xlu0 %v738, 48
      %v1677 = vpop.permute.xlu0 %1676
      %1678 = vrot.lane.b32.xlu0 %v739, 48
      %v1679 = vpop.permute.xlu0 %1678
      %1680 = vrot.lane.b32.xlu0 %v740, 48
      %v1681 = vpop.permute.xlu0 %1680
      %1682 = vrot.lane.b32.xlu0 %v741, 48
      %v1683 = vpop.permute.xlu0 %1682
      %1684 = vrot.lane.b32.xlu0 %v742, 48
      %v1685 = vpop.permute.xlu0 %1684
      %1686 = vrot.lane.b32.xlu0 %v743, 48
      %v1687 = vpop.permute.xlu0 %1686
      %1688 = vrot.lane.b32.xlu0 %v744, 48
      %v1689 = vpop.permute.xlu0 %1688
      %1690 = vrot.lane.b32.xlu0 %v745, 48
      %v1691 = vpop.permute.xlu0 %1690
      %1692 = vrot.lane.b32.xlu0 %v746, 48
      %v1693 = vpop.permute.xlu0 %1692
      %1694 = vrot.lane.b32.xlu0 %v748, 48
      %v1695 = vpop.permute.xlu0 %1694
      %1696 = vrot.lane.b32.xlu0 %v749, 48
      %v1697 = vpop.permute.xlu0 %1696
      %1698 = vrot.lane.b32.xlu0 %v750, 48
      %v1699 = vpop.permute.xlu0 %1698
      %1782 = vrot.lane.b32.xlu0 %v751, 56
      %v1783 = vpop.permute.xlu0 %1782
      %1784 = vrot.lane.b32.xlu0 %v752, 56
      %v1785 = vpop.permute.xlu0 %1784
      %1786 = vrot.lane.b32.xlu0 %v753, 56
      %v1787 = vpop.permute.xlu0 %1786
      %1788 = vrot.lane.b32.xlu0 %v754, 56
      %v1789 = vpop.permute.xlu0 %1788
      %1790 = vrot.lane.b32.xlu0 %v755, 56
      %v1791 = vpop.permute.xlu0 %1790
      %1792 = vrot.lane.b32.xlu0 %v756, 56
      %v1793 = vpop.permute.xlu0 %1792
      %1794 = vrot.lane.b32.xlu0 %v757, 56
      %v1795 = vpop.permute.xlu0 %1794
      %1796 = vrot.lane.b32.xlu0 %v758, 56
      %v1797 = vpop.permute.xlu0 %1796
      %1798 = vrot.lane.b32.xlu0 %v759, 56
      %v1799 = vpop.permute.xlu0 %1798
      %1800 = vrot.lane.b32.xlu0 %v760, 56
      %v1801 = vpop.permute.xlu0 %1800
      %1802 = vrot.lane.b32.xlu0 %v761, 56
      %v1803 = vpop.permute.xlu0 %1802
      %1804 = vrot.lane.b32.xlu0 %v762, 56
      %v1805 = vpop.permute.xlu0 %1804
      %1806 = vrot.lane.b32.xlu0 %v763, 56
      %v1807 = vpop.permute.xlu0 %1806
      %1808 = vrot.lane.b32.xlu0 %v764, 56
      %v1809 = vpop.permute.xlu0 %1808
      %1810 = vrot.lane.b32.xlu0 %v765, 56
      %v1811 = vpop.permute.xlu0 %1810
      %1812 = vrot.lane.b32.xlu0 %v766, 56
      %v1813 = vpop.permute.xlu0 %1812
      %1814 = vrot.lane.b32.xlu0 %v767, 56
      %v1815 = vpop.permute.xlu0 %1814
      %1816 = vrot.lane.b32.xlu0 %v768, 56
      %v1817 = vpop.permute.xlu0 %1816
      %1818 = vrot.lane.b32.xlu0 %v769, 56
      %v1819 = vpop.permute.xlu0 %1818
      %1820 = vrot.lane.b32.xlu0 %v770, 56
      %v1821 = vpop.permute.xlu0 %1820
      %1822 = vrot.lane.b32.xlu0 %v771, 56
      %v1823 = vpop.permute.xlu0 %1822
      %1824 = vrot.lane.b32.xlu0 %v772, 56
      %v1825 = vpop.permute.xlu0 %1824
      %1826 = vrot.lane.b32.xlu0 %v773, 56
      %v1827 = vpop.permute.xlu0 %1826
      %1828 = vrot.lane.b32.xlu0 %v774, 56
      %v1829 = vpop.permute.xlu0 %1828
      %1830 = vrot.lane.b32.xlu0 %v775, 56
      %v1831 = vpop.permute.xlu0 %1830
      %1832 = vrot.lane.b32.xlu0 %v776, 56
      %v1833 = vpop.permute.xlu0 %1832
      %1834 = vrot.lane.b32.xlu0 %v777, 56
      %v1835 = vpop.permute.xlu0 %1834
      %1836 = vrot.lane.b32.xlu0 %v778, 56
      %v1837 = vpop.permute.xlu0 %1836
      %1838 = vrot.lane.b32.xlu0 %v779, 56
      %v1839 = vpop.permute.xlu0 %1838
      %1840 = vrot.lane.b32.xlu0 %v780, 56
      %v1841 = vpop.permute.xlu0 %1840
      %1842 = vrot.lane.b32.xlu0 %v781, 56
      %v1843 = vpop.permute.xlu0 %1842
      %1844 = vrot.lane.b32.xlu0 %v782, 56
      %v1845 = vpop.permute.xlu0 %1844
      %1846 = vrot.lane.b32.xlu0 %v783, 56
      %v1847 = vpop.permute.xlu0 %1846
      %1848 = vrot.lane.b32.xlu0 %v784, 56
      %v1849 = vpop.permute.xlu0 %1848
      %1850 = vrot.lane.b32.xlu0 %v785, 56
      %v1851 = vpop.permute.xlu0 %1850
      %1852 = vrot.lane.b32.xlu0 %v786, 56
      %v1853 = vpop.permute.xlu0 %1852
      %1854 = vrot.lane.b32.xlu0 %v787, 56
      %v1855 = vpop.permute.xlu0 %1854
      %1856 = vrot.lane.b32.xlu0 %v788, 56
      %v1857 = vpop.permute.xlu0 %1856
      %1858 = vrot.lane.b32.xlu0 %v789, 56
      %v1859 = vpop.permute.xlu0 %1858
      %1860 = vrot.lane.b32.xlu0 %v790, 56
      %v1861 = vpop.permute.xlu0 %1860
      %1862 = vrot.lane.b32.xlu0 %v791, 56
      %v1863 = vpop.permute.xlu0 %1862
      %1946 = vrot.lane.b32.xlu0 %v792, 64
      %v1947 = vpop.permute.xlu0 %1946
      %1948 = vrot.lane.b32.xlu0 %v793, 64
      %v1949 = vpop.permute.xlu0 %1948
      %1950 = vrot.lane.b32.xlu0 %v794, 64
      %v1951 = vpop.permute.xlu0 %1950
      %1952 = vrot.lane.b32.xlu0 %v795, 64
      %v1953 = vpop.permute.xlu0 %1952
      %1954 = vrot.lane.b32.xlu0 %v796, 64
      %v1955 = vpop.permute.xlu0 %1954
      %1956 = vrot.lane.b32.xlu0 %v797, 64
      %v1957 = vpop.permute.xlu0 %1956
      %1958 = vrot.lane.b32.xlu0 %v798, 64
      %v1959 = vpop.permute.xlu0 %1958
      %1960 = vrot.lane.b32.xlu0 %v799, 64
      %v1961 = vpop.permute.xlu0 %1960
      %1962 = vrot.lane.b32.xlu0 %v800, 64
      %v1963 = vpop.permute.xlu0 %1962
      %1964 = vrot.lane.b32.xlu0 %v801, 64
      %v1965 = vpop.permute.xlu0 %1964
      %1966 = vrot.lane.b32.xlu0 %v802, 64
      %v1967 = vpop.permute.xlu0 %1966
      %1968 = vrot.lane.b32.xlu0 %v803, 64
      %v1969 = vpop.permute.xlu0 %1968
      %1970 = vrot.lane.b32.xlu0 %v804, 64
      %v1971 = vpop.permute.xlu0 %1970
      %1972 = vrot.lane.b32.xlu0 %v805, 64
      %v1973 = vpop.permute.xlu0 %1972
      %1974 = vrot.lane.b32.xlu0 %v806, 64
      %v1975 = vpop.permute.xlu0 %1974
      %1976 = vrot.lane.b32.xlu0 %v807, 64
      %v1977 = vpop.permute.xlu0 %1976
      %1978 = vrot.lane.b32.xlu0 %v808, 64
      %v1979 = vpop.permute.xlu0 %1978
      %1980 = vrot.lane.b32.xlu0 %v809, 64
      %v1981 = vpop.permute.xlu0 %1980
      %1982 = vrot.lane.b32.xlu0 %v810, 64
      %v1983 = vpop.permute.xlu0 %1982
      %1984 = vrot.lane.b32.xlu0 %v811, 64
      %v1985 = vpop.permute.xlu0 %1984
      %1986 = vrot.lane.b32.xlu0 %v812, 64
      %v1987 = vpop.permute.xlu0 %1986
      %1988 = vrot.lane.b32.xlu0 %v813, 64
      %v1989 = vpop.permute.xlu0 %1988
      %1990 = vrot.lane.b32.xlu0 %v814, 64
      %v1991 = vpop.permute.xlu0 %1990
      %1992 = vrot.lane.b32.xlu0 %v815, 64
      %v1993 = vpop.permute.xlu0 %1992
      %1994 = vrot.lane.b32.xlu0 %v816, 64
      %v1995 = vpop.permute.xlu0 %1994
      %1996 = vrot.lane.b32.xlu0 %v817, 64
      %v1997 = vpop.permute.xlu0 %1996
      %1998 = vrot.lane.b32.xlu0 %v818, 64
      %v1999 = vpop.permute.xlu0 %1998
      %2000 = vrot.lane.b32.xlu0 %v819, 64
      %v2001 = vpop.permute.xlu0 %2000
      %2002 = vrot.lane.b32.xlu0 %v820, 64
      %v2003 = vpop.permute.xlu0 %2002
      %2004 = vrot.lane.b32.xlu0 %v821, 64
      %v2005 = vpop.permute.xlu0 %2004
      %2006 = vrot.lane.b32.xlu0 %v822, 64
      %v2007 = vpop.permute.xlu0 %2006
      %2008 = vrot.lane.b32.xlu0 %v823, 64
      %v2009 = vpop.permute.xlu0 %2008
      %2010 = vrot.lane.b32.xlu0 %v824, 64
      %v2011 = vpop.permute.xlu0 %2010
      %2012 = vrot.lane.b32.xlu0 %v825, 64
      %v2013 = vpop.permute.xlu0 %2012
      %2014 = vrot.lane.b32.xlu0 %v826, 64
      %v2015 = vpop.permute.xlu0 %2014
      %2016 = vrot.lane.b32.xlu0 %v827, 64
      %v2017 = vpop.permute.xlu0 %2016
      %2018 = vrot.lane.b32.xlu0 %v828, 64
      %v2019 = vpop.permute.xlu0 %2018
      %2020 = vrot.lane.b32.xlu0 %v829, 64
      %v2021 = vpop.permute.xlu0 %2020
      %2022 = vrot.lane.b32.xlu0 %v830, 64
      %v2023 = vpop.permute.xlu0 %2022
      %2024 = vrot.lane.b32.xlu0 %v831, 64
      %v2025 = vpop.permute.xlu0 %2024
      %2026 = vrot.lane.b32.xlu0 %v832, 64
      %v2027 = vpop.permute.xlu0 %2026
      %vm2069 = vcmask 64512
      %v2070 = vsel %vm2069, %v540, %v875
      %v2071 = vsel %vm2069, %v541, %v877
      %v2072 = vsel %vm2069, %v542, %v879
      %v2073 = vsel %vm2069, %v543, %v881
      %v2074 = vsel %vm2069, %v544, %v883
      %v2075 = vsel %vm2069, %v545, %v885
      %v2076 = vsel %vm2069, %v546, %v887
      %v2077 = vsel %vm2069, %v547, %v889
      %v2078 = vsel %vm2069, %v548, %v891
      %v2079 = vsel %vm2069, %v549, %v893
      %v2080 = vsel %vm2069, %v550, %v895
      %v2081 = vsel %vm2069, %v551, %v897
      %v2082 = vsel %vm2069, %v552, %v899
      %v2083 = vsel %vm2069, %v553, %v901
      %v2084 = vsel %vm2069, %v554, %v903
      %v2085 = vsel %vm2069, %v555, %v905
      %v2086 = vsel %vm2069, %v556, %v907
      %v2087 = vsel %vm2069, %v557, %v909
      %v2088 = vsel %vm2069, %v558, %v911
      %v2089 = vsel %vm2069, %v559, %v913
      %v2090 = vsel %vm2069, %v560, %v915
      %v2091 = vsel %vm2069, %v561, %v917
      %v2092 = vsel %vm2069, %v562, %v919
      %v2093 = vsel %vm2069, %v563, %v921
      %v2094 = vsel %vm2069, %v564, %v923
      %v2095 = vsel %vm2069, %v565, %v925
      %v2096 = vsel %vm2069, %v566, %v927
      %v2097 = vsel %vm2069, %v567, %v929
      %v2098 = vsel %vm2069, %v568, %v931
      %v2099 = vsel %vm2069, %v569, %v933
      %v2100 = vsel %vm2069, %v570, %v935
      %v2101 = vsel %vm2069, %v571, %v937
      %v2102 = vsel %vm2069, %v572, %v939
      %v2103 = vsel %vm2069, %v573, %v941
      %v2104 = vsel %vm2069, %v574, %v943
      %v2105 = vsel %vm2069, %v575, %v945
      %v2106 = vsel %vm2069, %v576, %v947
      %v2107 = vsel %vm2069, %v577, %v949
      %v2108 = vsel %vm2069, %v578, %v951
      %v2109 = vsel %vm2069, %v579, %v953
      %v2110 = vsel %vm2069, %v580, %v955
      %vm2111 = vcmask 130048
      %v2112 = vsel %vm2111, %v2070, %v1039
      %v2113 = vsel %vm2111, %v2071, %v1041
      %v2114 = vsel %vm2111, %v2072, %v1043
      %v2115 = vsel %vm2111, %v2073, %v1045
      %v2116 = vsel %vm2111, %v2074, %v1047
      %v2117 = vsel %vm2111, %v2075, %v1049
      %v2118 = vsel %vm2111, %v2076, %v1051
      %v2119 = vsel %vm2111, %v2077, %v1053
      %v2120 = vsel %vm2111, %v2078, %v1055
      %v2121 = vsel %vm2111, %v2079, %v1057
      %v2122 = vsel %vm2111, %v2080, %v1059
      %v2123 = vsel %vm2111, %v2081, %v1061
      %v2124 = vsel %vm2111, %v2082, %v1063
      %v2125 = vsel %vm2111, %v2083, %v1065
      %v2126 = vsel %vm2111, %v2084, %v1067
      %v2127 = vsel %vm2111, %v2085, %v1069
      %v2128 = vsel %vm2111, %v2086, %v1071
      %v2129 = vsel %vm2111, %v2087, %v1073
      %v2130 = vsel %vm2111, %v2088, %v1075
      %v2131 = vsel %vm2111, %v2089, %v1077
      %v2132 = vsel %vm2111, %v2090, %v1079
      %v2133 = vsel %vm2111, %v2091, %v1081
      %v2134 = vsel %vm2111, %v2092, %v1083
      %v2135 = vsel %vm2111, %v2093, %v1085
      %v2136 = vsel %vm2111, %v2094, %v1087
      %v2137 = vsel %vm2111, %v2095, %v1089
      %v2138 = vsel %vm2111, %v2096, %v1091
      %v2139 = vsel %vm2111, %v2097, %v1093
      %v2140 = vsel %vm2111, %v2098, %v1095
      %v2141 = vsel %vm2111, %v2099, %v1097
      %v2142 = vsel %vm2111, %v2100, %v1099
      %v2143 = vsel %vm2111, %v2101, %v1101
      %v2144 = vsel %vm2111, %v2102, %v1103
      %v2145 = vsel %vm2111, %v2103, %v1105
      %v2146 = vsel %vm2111, %v2104, %v1107
      %v2147 = vsel %vm2111, %v2105, %v1109
      %v2148 = vsel %vm2111, %v2106, %v1111
      %v2149 = vsel %vm2111, %v2107, %v1113
      %v2150 = vsel %vm2111, %v2108, %v1115
      %v2151 = vsel %vm2111, %v2109, %v1117
      %v2152 = vsel %vm2111, %v2110, %v1119
      %vm2153 = vcmask 195584
      %v2154 = vsel %vm2153, %v2112, %v1165
      %v2155 = vsel %vm2153, %v2113, %v1167
      %v2156 = vsel %vm2153, %v2114, %v1169
      %v2157 = vsel %vm2153, %v2115, %v1171
      %v2158 = vsel %vm2153, %v2116, %v1173
      %v2159 = vsel %vm2153, %v2117, %v1175
      %v2160 = vsel %vm2153, %v2118, %v1177
      %v2161 = vsel %vm2153, %v2119, %v1179
      %v2162 = vsel %vm2153, %v2120, %v1181
      %v2163 = vsel %vm2153, %v2121, %v1183
      %v2164 = vsel %vm2153, %v2122, %v1185
      %v2165 = vsel %vm2153, %v2123, %v1187
      %v2166 = vsel %vm2153, %v2124, %v1189
      %v2167 = vsel %vm2153, %v2125, %v1191
      %v2168 = vsel %vm2153, %v2126, %v1193
      %v2169 = vsel %vm2153, %v2127, %v1195
      %v2170 = vsel %vm2153, %v2128, %v1197
      %v2171 = vsel %vm2153, %v2129, %v1199
      %v2172 = vsel %vm2153, %v2130, %v1201
      %v2173 = vsel %vm2153, %v2131, %v1203
      %v2174 = vsel %vm2153, %v2132, %v1205
      %v2175 = vsel %vm2153, %v2133, %v1207
      %v2176 = vsel %vm2153, %v2134, %v1209
      %v2177 = vsel %vm2153, %v2135, %v1211
      %v2178 = vsel %vm2153, %v2136, %v1213
      %v2179 = vsel %vm2153, %v2137, %v1215
      %v2180 = vsel %vm2153, %v2138, %v1217
      %v2181 = vsel %vm2153, %v2139, %v1219
      %v2182 = vsel %vm2153, %v2140, %v1221
      %v2183 = vsel %vm2153, %v2141, %v1223
      %v2184 = vsel %vm2153, %v2142, %v1225
      %v2185 = vsel %vm2153, %v2143, %v1227
      %v2186 = vsel %vm2153, %v2144, %v1229
      %v2187 = vsel %vm2153, %v2145, %v1231
      %v2188 = vsel %vm2153, %v2146, %v1233
      %v2189 = vsel %vm2153, %v2147, %v1235
      %v2190 = vsel %vm2153, %v2148, %v1237
      %v2191 = vsel %vm2153, %v2149, %v1239
      %v2192 = vsel %vm2153, %v2150, %v1241
      %v2193 = vsel %vm2153, %v2151, %v1243
      %v2194 = vsel %vm2153, %v2152, %v1245
      %vm2195 = vcmask 261120
      %v2196 = vsel %vm2195, %v2154, %v1329
      %v2197 = vsel %vm2195, %v2155, %v1331
      %v2198 = vsel %vm2195, %v2156, %v1333
      %v2199 = vsel %vm2195, %v2157, %v1335
      %v2200 = vsel %vm2195, %v2158, %v1337
      %v2201 = vsel %vm2195, %v2159, %v1339
      %v2202 = vsel %vm2195, %v2160, %v1341
      %v2203 = vsel %vm2195, %v2161, %v1343
      %v2204 = vsel %vm2195, %v2162, %v1345
      %v2205 = vsel %vm2195, %v2163, %v1347
      %v2206 = vsel %vm2195, %v2164, %v1349
      %v2207 = vsel %vm2195, %v2165, %v1351
      %v2208 = vsel %vm2195, %v2166, %v1353
      %v2209 = vsel %vm2195, %v2167, %v1355
      %v2210 = vsel %vm2195, %v2168, %v1357
      %v2211 = vsel %vm2195, %v2169, %v1359
      %v2212 = vsel %vm2195, %v2170, %v1361
      %v2213 = vsel %vm2195, %v2171, %v1363
      %v2214 = vsel %vm2195, %v2172, %v1365
      %v2215 = vsel %vm2195, %v2173, %v1367
      %v2216 = vsel %vm2195, %v2174, %v1369
      %v2217 = vsel %vm2195, %v2175, %v1371
      %v2218 = vsel %vm2195, %v2176, %v1373
      %v2219 = vsel %vm2195, %v2177, %v1375
      %v2220 = vsel %vm2195, %v2178, %v1377
      %v2221 = vsel %vm2195, %v2179, %v1379
      %v2222 = vsel %vm2195, %v2180, %v1381
      %v2223 = vsel %vm2195, %v2181, %v1383
      %v2224 = vsel %vm2195, %v2182, %v1385
      %v2225 = vsel %vm2195, %v2183, %v1387
      %v2226 = vsel %vm2195, %v2184, %v1389
      %v2227 = vsel %vm2195, %v2185, %v1391
      %v2228 = vsel %vm2195, %v2186, %v1393
      %v2229 = vsel %vm2195, %v2187, %v1395
      %v2230 = vsel %vm2195, %v2188, %v1397
      %v2231 = vsel %vm2195, %v2189, %v1399
      %v2232 = vsel %vm2195, %v2190, %v1401
      %v2233 = vsel %vm2195, %v2191, %v1403
      %v2234 = vsel %vm2195, %v2192, %v1405
      %v2235 = vsel %vm2195, %v2193, %v1407
      %v2236 = vsel %vm2195, %v2194, %v1409
      %vm2237 = vcmask 326656
      %v2238 = vsel %vm2237, %v2196, %v1493
      %v2239 = vsel %vm2237, %v2197, %v1495
      %v2240 = vsel %vm2237, %v2198, %v1497
      %v2241 = vsel %vm2237, %v2199, %v1499
      %v2242 = vsel %vm2237, %v2200, %v1501
      %v2243 = vsel %vm2237, %v2201, %v1503
      %v2244 = vsel %vm2237, %v2202, %v1505
      %v2245 = vsel %vm2237, %v2203, %v1507
      %v2246 = vsel %vm2237, %v2204, %v1509
      %v2247 = vsel %vm2237, %v2205, %v1511
      %v2248 = vsel %vm2237, %v2206, %v1513
      %v2249 = vsel %vm2237, %v2207, %v1515
      %v2250 = vsel %vm2237, %v2208, %v1517
      %v2251 = vsel %vm2237, %v2209, %v1519
      %v2252 = vsel %vm2237, %v2210, %v1521
      %v2253 = vsel %vm2237, %v2211, %v1523
      %v2254 = vsel %vm2237, %v2212, %v1525
      %v2255 = vsel %vm2237, %v2213, %v1527
      %v2256 = vsel %vm2237, %v2214, %v1529
      %v2257 = vsel %vm2237, %v2215, %v1531
      %v2258 = vsel %vm2237, %v2216, %v1533
      %v2259 = vsel %vm2237, %v2217, %v1535
      %v2260 = vsel %vm2237, %v2218, %v1537
      %v2261 = vsel %vm2237, %v2219, %v1539
      %v2262 = vsel %vm2237, %v2220, %v1541
      %v2263 = vsel %vm2237, %v2221, %v1543
      %v2264 = vsel %vm2237, %v2222, %v1545
      %v2265 = vsel %vm2237, %v2223, %v1547
      %v2266 = vsel %vm2237, %v2224, %v1549
      %v2267 = vsel %vm2237, %v2225, %v1551
      %v2268 = vsel %vm2237, %v2226, %v1553
      %v2269 = vsel %vm2237, %v2227, %v1555
      %v2270 = vsel %vm2237, %v2228, %v1557
      %v2271 = vsel %vm2237, %v2229, %v1559
      %v2272 = vsel %vm2237, %v2230, %v1561
      %v2273 = vsel %vm2237, %v2231, %v1563
      %v2274 = vsel %vm2237, %v2232, %v1565
      %v2275 = vsel %vm2237, %v2233, %v1567
      %v2276 = vsel %vm2237, %v2234, %v1569
      %v2277 = vsel %vm2237, %v2235, %v1571
      %v2278 = vsel %vm2237, %v2236, %v1573
      %vm2279 = vcmask 392192
      %v2280 = vsel %vm2279, %v2238, %v1619
      %v2281 = vsel %vm2279, %v2239, %v1621
      %v2282 = vsel %vm2279, %v2240, %v1623
      %v2283 = vsel %vm2279, %v2241, %v1625
      %v2284 = vsel %vm2279, %v2242, %v1627
      %v2285 = vsel %vm2279, %v2243, %v1629
      %v2286 = vsel %vm2279, %v2244, %v1631
      %v2287 = vsel %vm2279, %v2245, %v1633
      %v2288 = vsel %vm2279, %v2246, %v1635
      %v2289 = vsel %vm2279, %v2247, %v1637
      %v2290 = vsel %vm2279, %v2248, %v1639
      %v2291 = vsel %vm2279, %v2249, %v1641
      %v2292 = vsel %vm2279, %v2250, %v1643
      %v2293 = vsel %vm2279, %v2251, %v1645
      %v2294 = vsel %vm2279, %v2252, %v1647
      %v2295 = vsel %vm2279, %v2253, %v1649
      %v2296 = vsel %vm2279, %v2254, %v1651
      %v2297 = vsel %vm2279, %v2255, %v1653
      %v2298 = vsel %vm2279, %v2256, %v1655
      %v2299 = vsel %vm2279, %v2257, %v1657
      %v2300 = vsel %vm2279, %v2258, %v1659
      %v2301 = vsel %vm2279, %v2259, %v1661
      %v2302 = vsel %vm2279, %v2260, %v1663
      %v2303 = vsel %vm2279, %v2261, %v1665
      %v2304 = vsel %vm2279, %v2262, %v1667
      %v2305 = vsel %vm2279, %v2263, %v1669
      %v2306 = vsel %vm2279, %v2264, %v1671
      %v2307 = vsel %vm2279, %v2265, %v1673
      %v2308 = vsel %vm2279, %v2266, %v1675
      %v2309 = vsel %vm2279, %v2267, %v1677
      %v2310 = vsel %vm2279, %v2268, %v1679
      %v2311 = vsel %vm2279, %v2269, %v1681
      %v2312 = vsel %vm2279, %v2270, %v1683
      %v2313 = vsel %vm2279, %v2271, %v1685
      %v2314 = vsel %vm2279, %v2272, %v1687
      %v2315 = vsel %vm2279, %v2273, %v1689
      %v2316 = vsel %vm2279, %v2274, %v1691
      %v2317 = vsel %vm2279, %v2275, %v1693
      %v2318 = vsel %vm2279, %v2276, %v1695
      %v2319 = vsel %vm2279, %v2277, %v1697
      %v2320 = vsel %vm2279, %v2278, %v1699
      %vm2321 = vcmask 457728
      %v2322 = vsel %vm2321, %v2280, %v1783
      %v2323 = vsel %vm2321, %v2281, %v1785
      %v2324 = vsel %vm2321, %v2282, %v1787
      %v2325 = vsel %vm2321, %v2283, %v1789
      %v2326 = vsel %vm2321, %v2284, %v1791
      %v2327 = vsel %vm2321, %v2285, %v1793
      %v2328 = vsel %vm2321, %v2286, %v1795
      %v2329 = vsel %vm2321, %v2287, %v1797
      %v2330 = vsel %vm2321, %v2288, %v1799
      %v2331 = vsel %vm2321, %v2289, %v1801
      %v2332 = vsel %vm2321, %v2290, %v1803
      %v2333 = vsel %vm2321, %v2291, %v1805
      %v2334 = vsel %vm2321, %v2292, %v1807
      %v2335 = vsel %vm2321, %v2293, %v1809
      %v2336 = vsel %vm2321, %v2294, %v1811
      %v2337 = vsel %vm2321, %v2295, %v1813
      %v2338 = vsel %vm2321, %v2296, %v1815
      %v2339 = vsel %vm2321, %v2297, %v1817
      %v2340 = vsel %vm2321, %v2298, %v1819
      %v2341 = vsel %vm2321, %v2299, %v1821
      %v2342 = vsel %vm2321, %v2300, %v1823
      %v2343 = vsel %vm2321, %v2301, %v1825
      %v2344 = vsel %vm2321, %v2302, %v1827
      %v2345 = vsel %vm2321, %v2303, %v1829
      %v2346 = vsel %vm2321, %v2304, %v1831
      %v2347 = vsel %vm2321, %v2305, %v1833
      %v2348 = vsel %vm2321, %v2306, %v1835
      %v2349 = vsel %vm2321, %v2307, %v1837
      %v2350 = vsel %vm2321, %v2308, %v1839
      %v2351 = vsel %vm2321, %v2309, %v1841
      %v2352 = vsel %vm2321, %v2310, %v1843
      %v2353 = vsel %vm2321, %v2311, %v1845
      %v2354 = vsel %vm2321, %v2312, %v1847
      %v2355 = vsel %vm2321, %v2313, %v1849
      %v2356 = vsel %vm2321, %v2314, %v1851
      %v2357 = vsel %vm2321, %v2315, %v1853
      %v2358 = vsel %vm2321, %v2316, %v1855
      %v2359 = vsel %vm2321, %v2317, %v1857
      %v2360 = vsel %vm2321, %v2318, %v1859
      %v2361 = vsel %vm2321, %v2319, %v1861
      %v2362 = vsel %vm2321, %v2320, %v1863
      %vm2363 = vcmask 523264
      %v2364 = vsel %vm2363, %v2322, %v1947
      %v2365 = vsel %vm2363, %v2323, %v1949
      %v2366 = vsel %vm2363, %v2324, %v1951
      %v2367 = vsel %vm2363, %v2325, %v1953
      %v2368 = vsel %vm2363, %v2326, %v1955
      %v2369 = vsel %vm2363, %v2327, %v1957
      %v2370 = vsel %vm2363, %v2328, %v1959
      %v2371 = vsel %vm2363, %v2329, %v1961
      %v2372 = vsel %vm2363, %v2330, %v1963
      %v2373 = vsel %vm2363, %v2331, %v1965
      %v2374 = vsel %vm2363, %v2332, %v1967
      %v2375 = vsel %vm2363, %v2333, %v1969
      %v2376 = vsel %vm2363, %v2334, %v1971
      %v2377 = vsel %vm2363, %v2335, %v1973
      %v2378 = vsel %vm2363, %v2336, %v1975
      %v2379 = vsel %vm2363, %v2337, %v1977
      %v2380 = vsel %vm2363, %v2338, %v1979
      %v2381 = vsel %vm2363, %v2339, %v1981
      %v2382 = vsel %vm2363, %v2340, %v1983
      %v2383 = vsel %vm2363, %v2341, %v1985
      %v2384 = vsel %vm2363, %v2342, %v1987
      %v2385 = vsel %vm2363, %v2343, %v1989
      %v2386 = vsel %vm2363, %v2344, %v1991
      %v2387 = vsel %vm2363, %v2345, %v1993
      %v2388 = vsel %vm2363, %v2346, %v1995
      %v2389 = vsel %vm2363, %v2347, %v1997
      %v2390 = vsel %vm2363, %v2348, %v1999
      %v2391 = vsel %vm2363, %v2349, %v2001
      %v2392 = vsel %vm2363, %v2350, %v2003
      %v2393 = vsel %vm2363, %v2351, %v2005
      %v2394 = vsel %vm2363, %v2352, %v2007
      %v2395 = vsel %vm2363, %v2353, %v2009
      %v2396 = vsel %vm2363, %v2354, %v2011
      %v2397 = vsel %vm2363, %v2355, %v2013
      %v2398 = vsel %vm2363, %v2356, %v2015
      %v2399 = vsel %vm2363, %v2357, %v2017
      %v2400 = vsel %vm2363, %v2358, %v2019
      %v2401 = vsel %vm2363, %v2359, %v2021
      %v2402 = vsel %vm2363, %v2360, %v2023
      %v2403 = vsel %vm2363, %v2361, %v2025
      %v2404 = vsel %vm2363, %v2362, %v2027
      %v2405 = vpack.c.bf16 %v2365, %v2364
      %v2406 = vpack.c.bf16 %v2367, %v2366
      %v2407 = vpack.c.bf16 %v2369, %v2368
      %v2408 = vpack.c.bf16 %v2371, %v2370
      %v2409 = vpack.c.bf16 %v2373, %v2372
      %v2410 = vpack.c.bf16 %v2375, %v2374
      %v2411 = vpack.c.bf16 %v2377, %v2376
      %v2412 = vpack.c.bf16 %v2379, %v2378
      %v2413 = vpack.c.bf16 %v2381, %v2380
      %v2414 = vpack.c.bf16 %v2383, %v2382
      %v2415 = vpack.c.bf16 %v2385, %v2384
      %v2416 = vpack.c.bf16 %v2387, %v2386
      %v2417 = vpack.c.bf16 %v2389, %v2388
      %v2418 = vpack.c.bf16 %v2391, %v2390
      %v2419 = vpack.c.bf16 %v2393, %v2392
      %v2420 = vpack.c.bf16 %v2395, %v2394
      %v2421 = vpack.c.bf16 %v2397, %v2396
      %v2422 = vpack.c.bf16 %v2399, %v2398
      %v2423 = vpack.c.bf16 %v2401, %v2400
      %v2424 = vpack.c.bf16 %v2403, %v2402
      %v2425 = vpack.c.bf16 %v2404, %v2404
      %v2426 = vld [vmem:[%s265] sm:$0xf]
      %v2427 = vld [vmem:[%s265 + $0x4] sm:$0xf]
      %v2428 = vld [vmem:[%s265 + $0x8] sm:$0xf]
      %v2429 = vld [vmem:[%s265 + $0xc] sm:$0xf]
      %v2430 = vld [vmem:[%s265 + $0x10] sm:$0xf]
      %v2431 = vld [vmem:[%s265 + $0x14] sm:$0xf]
      %v2432 = vld [vmem:[%s265 + $0x18] sm:$0xf]
      %v2433 = vld [vmem:[%s265 + $0x1c] sm:$0xf]
      %v2434 = vld [vmem:[%s265 + $0x20] sm:$0xf]
      %v2444 = vunpack.c.l.b16 %v2426
      %v2445 = vunpack.c.l.b16 %v2427
      %v2446 = vunpack.c.l.b16 %v2428
      %v2447 = vunpack.c.l.b16 %v2429
      %v2448 = vunpack.c.l.b16 %v2430
      %v2449 = vunpack.c.l.b16 %v2431
      %v2450 = vunpack.c.l.b16 %v2432
      %v2451 = vunpack.c.l.b16 %v2433
      %v2452 = vunpack.c.l.b16 %v2434
      %v2453 = vpack.c.b16 %v2445, %v2444
      %v2454 = vpack.c.b16 %v2447, %v2446
      %v2455 = vpack.c.b16 %v2449, %v2448
      %v2456 = vpack.c.b16 %v2451, %v2450
      %v2457 = vpack.c.b16 %v2452, %v2452
      %vm2462 = vcmask 588800
      %v2464 = vsel %vm2462, %v2405, 0
      %v2467 = vsel %vm2462, %v2406, 0
      %v2470 = vsel %vm2462, %v2407, 0
      %v2473 = vsel %vm2462, %v2408, 0
      %v2476 = vsel %vm2462, %v2409, 0
      %v2479 = vsel %vm2462, %v2410, 0
      %v2482 = vsel %vm2462, %v2411, 0
      %v2485 = vsel %vm2462, %v2412, 0
      %v2488 = vsel %vm2462, %v2413, 0
      %v2491 = vsel %vm2462, %v2414, 0
      %v2494 = vsel %vm2462, %v2415, 0
      %v2497 = vsel %vm2462, %v2416, 0
      %v2500 = vsel %vm2462, %v2417, 0
      %v2503 = vsel %vm2462, %v2418, 0
      %v2506 = vsel %vm2462, %v2419, 0
      %v2509 = vsel %vm2462, %v2420, 0
      %v2512 = vsel %vm2462, %v2421, 0
      %v2515 = vsel %vm2462, %v2422, 0
      %v2518 = vsel %vm2462, %v2423, 0
      %v2521 = vsel %vm2462, %v2424, 0
      %v2524 = vsel %vm2462, %v2425, 0
      %vm2526 = vcmask 1043456
      %v2528 = vsel %vm2526, %v2457, 0
      %2530 = vmatprep.subr.bf16.mxu0 0
      %2531 = vmatpush1.bf16.msra.mxu0 %v2453
      %2532 = vmatprep.subr.bf16.mxu0 0
      %2533 = vmatpush1.bf16.msra.mxu0 %v2454
      %2534 = vmatprep.subr.bf16.mxu0 0
      %2535 = vmatpush1.bf16.msra.mxu0 %v2455
      %2536 = vmatprep.subr.bf16.mxu0 0
      %2537 = vmatpush1.bf16.msra.mxu0 %v2456
      %2538 = vmatprep.subr.bf16.mxu0 0
      %2539 = vmatpush1.bf16.msra.mxu0 %v2528
      %2540 = vmatprep.subr.bf16.mxu0 0
      %2541 = vmatpush1.bf16.msra.mxu0 0
      %2542 = vmatprep.subr.bf16.mxu0 0
      %2543 = vmatpush1.bf16.msra.mxu0 0
      %2544 = vmatprep.subr.bf16.mxu0 0
      %2545 = vmatpush1.bf16.msra.mxu0 0
      %2546 = vmatprep.subr.bf16.mxu0 0
      %2547 = vmatpush1.bf16.msra.mxu0 0
      %2548 = vmatprep.subr.bf16.mxu0 0
      %2549 = vmatpush1.bf16.msra.mxu0 0
      %2550 = vmatprep.subr.bf16.mxu0 0
      %2551 = vmatpush1.bf16.msra.mxu0 0
      %2552 = vmatprep.subr.bf16.mxu0 0
      %2553 = vmatpush1.bf16.msra.mxu0 0
      %2554 = vmatprep.subr.bf16.mxu0 0
      %2555 = vmatpush1.bf16.msra.mxu0 0
      %2556 = vmatprep.subr.bf16.mxu0 0
      %2557 = vmatpush1.bf16.msra.mxu0 0
      %2558 = vmatprep.subr.bf16.mxu0 0
      %2559 = vmatpush1.bf16.msra.mxu0 0
      %2560 = vmatprep.subr.bf16.mxu0 0
      %2561 = vmatpush1.bf16.msra.mxu0 0
      %2562 = vmatprep.mubr.bf16.mxu0 0
      %2563 = vmatmul.mubr.bf16.gmra.mrb[0].mxu0 %v2464
      %v2564 = vpop.f32.mrb[0].mxu0
      %v2565 = vpop.f32.mrb[0].mxu0
      %v2566 = vpop.f32.mrb[0].mxu0
      %v2567 = vpop.f32.mrb[0].mxu0
      %2568 = vmatprep.mubr.bf16.mxu0 0
      %2569 = vmatmul.mubr.bf16.gmra.mrb[0].mxu0 %v2467
      %v2570 = vpop.f32.mrb[0].mxu0
      %v2571 = vadd.f32 0.0, %v2570
      %v2572 = vpop.f32.mrb[0].mxu0
      %v2573 = vpop.f32.mrb[0].mxu0
      %v2574 = vadd.f32 0.0, %v2573
      %v2575 = vpop.f32.mrb[0].mxu0
      %2576 = vmatprep.mubr.bf16.mxu0 0
      %2577 = vmatmul.mubr.bf16.gmra.mrb[0].mxu0 %v2470
      %v2578 = vpop.f32.mrb[0].mxu0
      %v2579 = vadd.f32 0.0, %v2578
      %v2580 = vpop.f32.mrb[0].mxu0
      %v2581 = vpop.f32.mrb[0].mxu0
      %v2582 = vadd.f32 0.0, %v2581
      %v2583 = vpop.f32.mrb[0].mxu0
      %2584 = vmatprep.mubr.bf16.mxu0 0
      %2585 = vmatmul.mubr.bf16.gmra.mrb[0].mxu0 %v2473
      %v2586 = vpop.f32.mrb[0].mxu0
      %v2587 = vadd.f32 0.0, %v2586
      %v2588 = vpop.f32.mrb[0].mxu0
      %v2589 = vpop.f32.mrb[0].mxu0
      %v2590 = vadd.f32 0.0, %v2589
      %v2591 = vpop.f32.mrb[0].mxu0
      %2592 = vmatprep.mubr.bf16.mxu0 0
      %2593 = vmatmul.mubr.bf16.gmra.mrb[0].mxu0 %v2476
      %v2594 = vpop.f32.mrb[0].mxu0
      %v2595 = vadd.f32 0.0, %v2594
      %v2596 = vpop.f32.mrb[0].mxu0
      %v2597 = vpop.f32.mrb[0].mxu0
      %v2598 = vadd.f32 0.0, %v2597
      %v2599 = vpop.f32.mrb[0].mxu0
      %2600 = vmatprep.mubr.bf16.mxu0 0
      %2601 = vmatmul.mubr.bf16.gmra.mrb[0].mxu0 %v2479
      %v2602 = vpop.f32.mrb[0].mxu0
      %v2603 = vadd.f32 0.0, %v2602
      %v2604 = vpop.f32.mrb[0].mxu0
      %v2605 = vpop.f32.mrb[0].mxu0
      %v2606 = vadd.f32 0.0, %v2605
      %v2607 = vpop.f32.mrb[0].mxu0
      %2608 = vmatprep.mubr.bf16.mxu0 0
      %2609 = vmatmul.mubr.bf16.gmra.mrb[0].mxu0 %v2482
      %v2610 = vpop.f32.mrb[0].mxu0
      %v2611 = vadd.f32 0.0, %v2610
      %v2612 = vpop.f32.mrb[0].mxu0
      %v2613 = vpop.f32.mrb[0].mxu0
      %v2614 = vadd.f32 0.0, %v2613
      %v2615 = vpop.f32.mrb[0].mxu0
      %2616 = vmatprep.mubr.bf16.mxu0 0
      %2617 = vmatmul.mubr.bf16.gmra.mrb[0].mxu0 %v2485
      %v2618 = vpop.f32.mrb[0].mxu0
      %v2619 = vadd.f32 0.0, %v2618
      %v2620 = vpop.f32.mrb[0].mxu0
      %v2621 = vpop.f32.mrb[0].mxu0
      %v2622 = vadd.f32 0.0, %v2621
      %v2623 = vpop.f32.mrb[0].mxu0
      %2624 = vmatprep.mubr.bf16.mxu0 0
      %2625 = vmatmul.mubr.bf16.gmra.mrb[0].mxu0 %v2488
      %v2626 = vpop.f32.mrb[0].mxu0
      %v2627 = vadd.f32 0.0, %v2626
      %v2628 = vpop.f32.mrb[0].mxu0
      %v2629 = vpop.f32.mrb[0].mxu0
      %v2630 = vadd.f32 0.0, %v2629
      %v2631 = vpop.f32.mrb[0].mxu0
      %2632 = vmatprep.mubr.bf16.mxu0 0
      %2633 = vmatmul.mubr.bf16.gmra.mrb[0].mxu0 %v2491
      %v2634 = vpop.f32.mrb[0].mxu0
      %v2635 = vadd.f32 0.0, %v2634
      %v2636 = vpop.f32.mrb[0].mxu0
      %v2637 = vpop.f32.mrb[0].mxu0
      %v2638 = vadd.f32 0.0, %v2637
      %v2639 = vpop.f32.mrb[0].mxu0
      %2640 = vmatprep.mubr.bf16.mxu0 0
      %2641 = vmatmul.mubr.bf16.gmra.mrb[0].mxu0 %v2494
      %v2642 = vpop.f32.mrb[0].mxu0
      %v2643 = vadd.f32 0.0, %v2642
      %v2644 = vpop.f32.mrb[0].mxu0
      %v2645 = vpop.f32.mrb[0].mxu0
      %v2646 = vadd.f32 0.0, %v2645
      %v2647 = vpop.f32.mrb[0].mxu0
      %2648 = vmatprep.mubr.bf16.mxu0 0
      %2649 = vmatmul.mubr.bf16.gmra.mrb[0].mxu0 %v2497
      %v2650 = vpop.f32.mrb[0].mxu0
      %v2651 = vadd.f32 0.0, %v2650
      %v2652 = vpop.f32.mrb[0].mxu0
      %v2653 = vpop.f32.mrb[0].mxu0
      %v2654 = vadd.f32 0.0, %v2653
      %v2655 = vpop.f32.mrb[0].mxu0
      %2656 = vmatprep.mubr.bf16.mxu0 0
      %2657 = vmatmul.mubr.bf16.gmra.mrb[0].mxu0 %v2500
      %v2658 = vpop.f32.mrb[0].mxu0
      %v2659 = vadd.f32 0.0, %v2658
      %v2660 = vpop.f32.mrb[0].mxu0
      %v2661 = vpop.f32.mrb[0].mxu0
      %v2662 = vadd.f32 0.0, %v2661
      %v2663 = vpop.f32.mrb[0].mxu0
      %2664 = vmatprep.mubr.bf16.mxu0 0
      %2665 = vmatmul.mubr.bf16.gmra.mrb[0].mxu0 %v2503
      %v2666 = vpop.f32.mrb[0].mxu0
      %v2667 = vadd.f32 0.0, %v2666
      %v2668 = vpop.f32.mrb[0].mxu0
      %v2669 = vpop.f32.mrb[0].mxu0
      %v2670 = vadd.f32 0.0, %v2669
      %v2671 = vpop.f32.mrb[0].mxu0
      %2672 = vmatprep.mubr.bf16.mxu0 0
      %2673 = vmatmul.mubr.bf16.gmra.mrb[0].mxu0 %v2506
      %v2674 = vpop.f32.mrb[0].mxu0
      %v2675 = vadd.f32 0.0, %v2674
      %v2676 = vpop.f32.mrb[0].mxu0
      %v2677 = vpop.f32.mrb[0].mxu0
      %v2678 = vadd.f32 0.0, %v2677
      %v2679 = vpop.f32.mrb[0].mxu0
      %2680 = vmatprep.mubr.bf16.mxu0 0
      %2681 = vmatmul.mubr.bf16.gmra.mrb[0].mxu0 %v2509
      %v2682 = vpop.f32.mrb[0].mxu0
      %v2683 = vadd.f32 0.0, %v2682
      %v2684 = vpop.f32.mrb[0].mxu0
      %v2685 = vpop.f32.mrb[0].mxu0
      %v2686 = vadd.f32 0.0, %v2685
      %v2687 = vpop.f32.mrb[0].mxu0
      %2688 = vmatprep.mubr.bf16.mxu0 0
      %2689 = vmatmul.mubr.bf16.gmra.mrb[0].mxu0 %v2512
      %v2690 = vpop.f32.mrb[0].mxu0
      %v2691 = vadd.f32 0.0, %v2690
      %v2692 = vpop.f32.mrb[0].mxu0
      %v2693 = vpop.f32.mrb[0].mxu0
      %v2694 = vadd.f32 0.0, %v2693
      %v2695 = vpop.f32.mrb[0].mxu0
      %2696 = vmatprep.mubr.bf16.mxu0 0
      %2697 = vmatmul.mubr.bf16.gmra.mrb[0].mxu0 %v2515
      %v2698 = vpop.f32.mrb[0].mxu0
      %v2699 = vadd.f32 0.0, %v2698
      %v2700 = vpop.f32.mrb[0].mxu0
      %v2701 = vpop.f32.mrb[0].mxu0
      %v2702 = vadd.f32 0.0, %v2701
      %v2703 = vpop.f32.mrb[0].mxu0
      %2704 = vmatprep.mubr.bf16.mxu0 0
      %2705 = vmatmul.mubr.bf16.gmra.mrb[0].mxu0 %v2518
      %v2706 = vpop.f32.mrb[0].mxu0
      %v2707 = vadd.f32 0.0, %v2706
      %v2708 = vpop.f32.mrb[0].mxu0
      %v2709 = vpop.f32.mrb[0].mxu0
      %v2710 = vadd.f32 0.0, %v2709
      %v2711 = vpop.f32.mrb[0].mxu0
      %2712 = vmatprep.mubr.bf16.mxu0 0
      %2713 = vmatmul.mubr.bf16.gmra.mrb[0].mxu0 %v2521
      %v2714 = vpop.f32.mrb[0].mxu0
      %v2715 = vadd.f32 0.0, %v2714
      %v2716 = vpop.f32.mrb[0].mxu0
      %v2717 = vpop.f32.mrb[0].mxu0
      %v2718 = vpop.f32.mrb[0].mxu0
      %2719 = vmatprep.mubr.bf16.mxu0 0
      %2720 = vmatmul.mubr.bf16.gmra.mrb[0].mxu0 %v2524
      %v2721 = vpop.f32.mrb[0].mxu0
      %v2722 = vpop.f32.mrb[0].mxu0
      %v2723 = vpop.f32.mrb[0].mxu0
      %v2724 = vpop.f32.mrb[0].mxu0
      %2725 = vdwg.mxu0
      %vm2729 = vcmask 1044480
      %v2730 = vrot.slane %v2571, 3
      %v2731 = vrot.slane %v2574, 3
      %v2732 = vsel %vm2729, %v2730, %v2731
      %v2733 = vrot.slane %v2579, 3
      %v2734 = vsel %vm2729, %v2731, %v2733
      %vm2739 = vcmask 1042432
      %v2740 = vrot.slane %v2579, 5
      %v2741 = vrot.slane %v2582, 5
      %v2742 = vsel %vm2739, %v2740, %v2741
      %v2743 = vrot.slane %v2587, 5
      %v2744 = vsel %vm2739, %v2741, %v2743
      %vm2749 = vcmask 1040384
      %v2750 = vrot.slane %v2587, 7
      %v2751 = vrot.slane %v2590, 7
      %v2752 = vsel %vm2749, %v2750, %v2751
      %v2753 = vrot.slane %v2595, 7
      %v2754 = vsel %vm2749, %v2751, %v2753
      %vm2760 = vcmask 1046528
      %v2761 = vrot.slane %v2598, 1
      %v2762 = vrot.slane %v2603, 1
      %v2763 = vsel %vm2760, %v2761, %v2762
      %v2764 = vrot.slane %v2606, 1
      %v2765 = vsel %vm2760, %v2762, %v2764
      %v2770 = vrot.slane %v2606, 3
      %v2771 = vrot.slane %v2611, 3
      %v2772 = vsel %vm2729, %v2770, %v2771
      %v2773 = vrot.slane %v2614, 3
      %v2774 = vsel %vm2729, %v2771, %v2773
      %v2779 = vrot.slane %v2614, 5
      %v2780 = vrot.slane %v2619, 5
      %v2781 = vsel %vm2739, %v2779, %v2780
      %v2782 = vrot.slane %v2622, 5
      %v2783 = vsel %vm2739, %v2780, %v2782
      %v2788 = vrot.slane %v2622, 7
      %v2789 = vrot.slane %v2627, 7
      %v2790 = vsel %vm2749, %v2788, %v2789
      %v2791 = vrot.slane %v2630, 7
      %v2792 = vsel %vm2749, %v2789, %v2791
      %v2798 = vrot.slane %v2635, 1
      %v2799 = vrot.slane %v2638, 1
      %v2800 = vsel %vm2760, %v2798, %v2799
      %v2801 = vrot.slane %v2643, 1
      %v2802 = vsel %vm2760, %v2799, %v2801
      %v2807 = vrot.slane %v2643, 3
      %v2808 = vrot.slane %v2646, 3
      %v2809 = vsel %vm2729, %v2807, %v2808
      %v2810 = vrot.slane %v2651, 3
      %v2811 = vsel %vm2729, %v2808, %v2810
      %v2816 = vrot.slane %v2651, 5
      %v2817 = vrot.slane %v2654, 5
      %v2818 = vsel %vm2739, %v2816, %v2817
      %v2819 = vrot.slane %v2659, 5
      %v2820 = vsel %vm2739, %v2817, %v2819
      %v2825 = vrot.slane %v2659, 7
      %v2826 = vrot.slane %v2662, 7
      %v2827 = vsel %vm2749, %v2825, %v2826
      %v2828 = vrot.slane %v2667, 7
      %v2829 = vsel %vm2749, %v2826, %v2828
      %v2835 = vrot.slane %v2670, 1
      %v2836 = vrot.slane %v2675, 1
      %v2837 = vsel %vm2760, %v2835, %v2836
      %v2838 = vrot.slane %v2678, 1
      %v2839 = vsel %vm2760, %v2836, %v2838
      %v2844 = vrot.slane %v2678, 3
      %v2845 = vrot.slane %v2683, 3
      %v2846 = vsel %vm2729, %v2844, %v2845
      %v2847 = vrot.slane %v2686, 3
      %v2848 = vsel %vm2729, %v2845, %v2847
      %v2853 = vrot.slane %v2686, 5
      %v2854 = vrot.slane %v2691, 5
      %v2855 = vsel %vm2739, %v2853, %v2854
      %v2856 = vrot.slane %v2694, 5
      %v2857 = vsel %vm2739, %v2854, %v2856
      %v2862 = vrot.slane %v2694, 7
      %v2863 = vrot.slane %v2699, 7
      %v2864 = vsel %vm2749, %v2862, %v2863
      %v2865 = vrot.slane %v2702, 7
      %v2866 = vsel %vm2749, %v2863, %v2865
      %v2872 = vrot.slane %v2707, 1
      %v2873 = vrot.slane %v2710, 1
      %v2874 = vsel %vm2760, %v2872, %v2873
      %v2875 = vrot.slane %v2715, 1
      %v2876 = vsel %vm2760, %v2873, %v2875
      %v2879 = vsel %vm2069, %v2732, 0.0
      %v2880 = vsel %vm2069, %v2734, 0.0
      %v2881 = vadd.f32 %v2879, %v2880
      %v2882 = vsel %vm2069, %v2742, 0.0
      %v2883 = vadd.f32 %v2881, %v2882
      %v2884 = vsel %vm2069, %v2744, 0.0
      %v2885 = vadd.f32 %v2883, %v2884
      %v2886 = vsel %vm2069, %v2752, 0.0
      %v2887 = vadd.f32 %v2885, %v2886
      %v2888 = vsel %vm2069, %v2754, 0.0
      %v2889 = vadd.f32 %v2887, %v2888
      %v2890 = vsel %vm2069, %v2763, 0.0
      %v2891 = vadd.f32 %v2889, %v2890
      %v2892 = vsel %vm2069, %v2765, 0.0
      %v2893 = vadd.f32 %v2891, %v2892
      %v2894 = vsel %vm2069, %v2772, 0.0
      %v2895 = vadd.f32 %v2893, %v2894
      %v2896 = vsel %vm2069, %v2774, 0.0
      %v2897 = vadd.f32 %v2895, %v2896
      %v2898 = vsel %vm2069, %v2781, 0.0
      %v2899 = vadd.f32 %v2897, %v2898
      %v2900 = vsel %vm2069, %v2783, 0.0
      %v2901 = vadd.f32 %v2899, %v2900
      %v2902 = vsel %vm2069, %v2790, 0.0
      %v2903 = vadd.f32 %v2901, %v2902
      %v2904 = vsel %vm2069, %v2792, 0.0
      %v2905 = vadd.f32 %v2903, %v2904
      %v2906 = vsel %vm2069, %v2800, 0.0
      %v2907 = vadd.f32 %v2905, %v2906
      %v2908 = vsel %vm2069, %v2802, 0.0
      %v2909 = vadd.f32 %v2907, %v2908
      %v2910 = vsel %vm2069, %v2809, 0.0
      %v2911 = vadd.f32 %v2909, %v2910
      %v2912 = vsel %vm2069, %v2811, 0.0
      %v2913 = vadd.f32 %v2911, %v2912
      %v2914 = vsel %vm2069, %v2818, 0.0
      %v2915 = vadd.f32 %v2913, %v2914
      %v2916 = vsel %vm2069, %v2820, 0.0
      %v2917 = vadd.f32 %v2915, %v2916
      %v2918 = vsel %vm2069, %v2827, 0.0
      %v2919 = vadd.f32 %v2917, %v2918
      %v2920 = vsel %vm2069, %v2829, 0.0
      %v2921 = vadd.f32 %v2919, %v2920
      %v2922 = vsel %vm2069, %v2837, 0.0
      %v2923 = vadd.f32 %v2921, %v2922
      %v2924 = vsel %vm2069, %v2839, 0.0
      %v2925 = vadd.f32 %v2923, %v2924
      %v2926 = vsel %vm2069, %v2846, 0.0
      %v2927 = vadd.f32 %v2925, %v2926
      %v2928 = vsel %vm2069, %v2848, 0.0
      %v2929 = vadd.f32 %v2927, %v2928
      %v2930 = vsel %vm2069, %v2855, 0.0
      %v2931 = vadd.f32 %v2929, %v2930
      %v2932 = vsel %vm2069, %v2857, 0.0
      %v2933 = vadd.f32 %v2931, %v2932
      %v2934 = vsel %vm2069, %v2864, 0.0
      %v2935 = vadd.f32 %v2933, %v2934
      %v2936 = vsel %vm2069, %v2866, 0.0
      %v2937 = vadd.f32 %v2935, %v2936
      %v2938 = vsel %vm2069, %v2874, 0.0
      %v2939 = vadd.f32 %v2937, %v2938
      %v2940 = vsel %vm2069, %v2876, 0.0
      %v2941 = vadd.f32 %v2939, %v2940
      %v2942 = vrot.slane %v2941, 4
      %v2943 = vadd.f32 %v2941, %v2942
      %v2944 = vrot.slane %v2943, 2
      %v2945 = vadd.f32 %v2943, %v2944
      %v2946 = vrot.slane %v2945, 1
      %v2947 = vadd.f32 %v2945, %v2946
      %v2948 = vmul.f32 %v2732, %v2732
      %v2949 = vmul.f32 %v2734, %v2734
      %v2950 = vmul.f32 %v2742, %v2742
      %v2951 = vmul.f32 %v2744, %v2744
      %v2952 = vmul.f32 %v2752, %v2752
      %v2953 = vmul.f32 %v2754, %v2754
      %v2954 = vmul.f32 %v2763, %v2763
      %v2955 = vmul.f32 %v2765, %v2765
      %v2956 = vmul.f32 %v2772, %v2772
      %v2957 = vmul.f32 %v2774, %v2774
      %v2958 = vmul.f32 %v2781, %v2781
      %v2959 = vmul.f32 %v2783, %v2783
      %v2960 = vmul.f32 %v2790, %v2790
      %v2961 = vmul.f32 %v2792, %v2792
      %v2962 = vmul.f32 %v2800, %v2800
      %v2963 = vmul.f32 %v2802, %v2802
      %v2964 = vmul.f32 %v2809, %v2809
      %v2965 = vmul.f32 %v2811, %v2811
      %v2966 = vmul.f32 %v2818, %v2818
      %v2967 = vmul.f32 %v2820, %v2820
      %v2968 = vmul.f32 %v2827, %v2827
      %v2969 = vmul.f32 %v2829, %v2829
      %v2970 = vmul.f32 %v2837, %v2837
      %v2971 = vmul.f32 %v2839, %v2839
      %v2972 = vmul.f32 %v2846, %v2846
      %v2973 = vmul.f32 %v2848, %v2848
      %v2974 = vmul.f32 %v2855, %v2855
      %v2975 = vmul.f32 %v2857, %v2857
      %v2976 = vmul.f32 %v2864, %v2864
      %v2977 = vmul.f32 %v2866, %v2866
      %v2978 = vmul.f32 %v2874, %v2874
      %v2979 = vmul.f32 %v2876, %v2876
      %v2980 = vsel %vm2069, %v2948, 0.0
      %v2981 = vsel %vm2069, %v2949, 0.0
      %v2982 = vadd.f32 %v2980, %v2981
      %v2983 = vsel %vm2069, %v2950, 0.0
      %v2984 = vadd.f32 %v2982, %v2983
      %v2985 = vsel %vm2069, %v2951, 0.0
      %v2986 = vadd.f32 %v2984, %v2985
      %v2987 = vsel %vm2069, %v2952, 0.0
      %v2988 = vadd.f32 %v2986, %v2987
      %v2989 = vsel %vm2069, %v2953, 0.0
      %v2990 = vadd.f32 %v2988, %v2989
      %v2991 = vsel %vm2069, %v2954, 0.0
      %v2992 = vadd.f32 %v2990, %v2991
      %v2993 = vsel %vm2069, %v2955, 0.0
      %v2994 = vadd.f32 %v2992, %v2993
      %v2995 = vsel %vm2069, %v2956, 0.0
      %v2996 = vadd.f32 %v2994, %v2995
      %v2997 = vsel %vm2069, %v2957, 0.0
      %v2998 = vadd.f32 %v2996, %v2997
      %v2999 = vsel %vm2069, %v2958, 0.0
      %v3000 = vadd.f32 %v2998, %v2999
      %v3001 = vsel %vm2069, %v2959, 0.0
      %v3002 = vadd.f32 %v3000, %v3001
      %v3003 = vsel %vm2069, %v2960, 0.0
      %v3004 = vadd.f32 %v3002, %v3003
      %v3005 = vsel %vm2069, %v2961, 0.0
      %v3006 = vadd.f32 %v3004, %v3005
      %v3007 = vsel %vm2069, %v2962, 0.0
      %v3008 = vadd.f32 %v3006, %v3007
      %v3009 = vsel %vm2069, %v2963, 0.0
      %v3010 = vadd.f32 %v3008, %v3009
      %v3011 = vsel %vm2069, %v2964, 0.0
      %v3012 = vadd.f32 %v3010, %v3011
      %v3013 = vsel %vm2069, %v2965, 0.0
      %v3014 = vadd.f32 %v3012, %v3013
      %v3015 = vsel %vm2069, %v2966, 0.0
      %v3016 = vadd.f32 %v3014, %v3015
      %v3017 = vsel %vm2069, %v2967, 0.0
      %v3018 = vadd.f32 %v3016, %v3017
      %v3019 = vsel %vm2069, %v2968, 0.0
      %v3020 = vadd.f32 %v3018, %v3019
      %v3021 = vsel %vm2069, %v2969, 0.0
      %v3022 = vadd.f32 %v3020, %v3021
      %v3023 = vsel %vm2069, %v2970, 0.0
      %v3024 = vadd.f32 %v3022, %v3023
      %v3025 = vsel %vm2069, %v2971, 0.0
      %v3026 = vadd.f32 %v3024, %v3025
      %v3027 = vsel %vm2069, %v2972, 0.0
      %v3028 = vadd.f32 %v3026, %v3027
      %v3029 = vsel %vm2069, %v2973, 0.0
      %v3030 = vadd.f32 %v3028, %v3029
      %v3031 = vsel %vm2069, %v2974, 0.0
      %v3032 = vadd.f32 %v3030, %v3031
      %v3033 = vsel %vm2069, %v2975, 0.0
      %v3034 = vadd.f32 %v3032, %v3033
      %v3035 = vsel %vm2069, %v2976, 0.0
      %v3036 = vadd.f32 %v3034, %v3035
      %v3037 = vsel %vm2069, %v2977, 0.0
      %v3038 = vadd.f32 %v3036, %v3037
      %v3039 = vsel %vm2069, %v2978, 0.0
      %v3040 = vadd.f32 %v3038, %v3039
      %v3041 = vsel %vm2069, %v2979, 0.0
      %v3042 = vadd.f32 %v3040, %v3041
      %v3043 = vrot.slane %v3042, 4
      %v3044 = vadd.f32 %v3042, %v3043
      %v3045 = vrot.slane %v3044, 2
      %v3046 = vadd.f32 %v3044, %v3045
      %v3047 = vrot.slane %v3046, 1
      %v3048 = vadd.f32 %v3046, %v3047
      %v3049 = vsel %vm2749, %v2947, %v3048
      %vm3050 = vcmask 58368
      %3051 = vst.msk [vmem:[%s280] sm:$0x3] %vm3050, %v3049
      %v3052 = vpack.c.bf16 %v2734, %v2732
      %v3053 = vpack.c.bf16 %v2744, %v2742
      %v3054 = vpack.c.bf16 %v2754, %v2752
      %v3055 = vpack.c.bf16 %v2765, %v2763
      %v3056 = vpack.c.bf16 %v2774, %v2772
      %v3057 = vpack.c.bf16 %v2783, %v2781
      %v3058 = vpack.c.bf16 %v2792, %v2790
      %v3059 = vpack.c.bf16 %v2802, %v2800
      %v3060 = vpack.c.bf16 %v2811, %v2809
      %v3061 = vpack.c.bf16 %v2820, %v2818
      %v3062 = vpack.c.bf16 %v2829, %v2827
      %v3063 = vpack.c.bf16 %v2839, %v2837
      %v3064 = vpack.c.bf16 %v2848, %v2846
      %v3065 = vpack.c.bf16 %v2857, %v2855
      %v3066 = vpack.c.bf16 %v2866, %v2864
      %v3067 = vpack.c.bf16 %v2876, %v2874
      %v3084 = vunpack.c.l.b16 %v3052
      %v3085 = vunpack.c.h.b16 %v3052
      %v3086 = vunpack.c.l.b16 %v3053
      %v3087 = vunpack.c.h.b16 %v3053
      %v3088 = vunpack.c.l.b16 %v3054
      %v3089 = vunpack.c.h.b16 %v3054
      %v3090 = vunpack.c.l.b16 %v3055
      %v3091 = vunpack.c.h.b16 %v3055
      %v3092 = vunpack.c.l.b16 %v3056
      %v3093 = vunpack.c.h.b16 %v3056
      %v3094 = vunpack.c.l.b16 %v3057
      %v3095 = vunpack.c.h.b16 %v3057
      %v3096 = vunpack.c.l.b16 %v3058
      %v3097 = vunpack.c.h.b16 %v3058
      %v3098 = vunpack.c.l.b16 %v3059
      %v3099 = vunpack.c.h.b16 %v3059
      %v3100 = vunpack.c.l.b16 %v3060
      %v3101 = vunpack.c.h.b16 %v3060
      %v3102 = vunpack.c.l.b16 %v3061
      %v3103 = vunpack.c.h.b16 %v3061
      %v3104 = vunpack.c.l.b16 %v3062
      %v3105 = vunpack.c.h.b16 %v3062
      %v3106 = vunpack.c.l.b16 %v3063
      %v3107 = vunpack.c.h.b16 %v3063
      %v3108 = vunpack.c.l.b16 %v3064
      %v3109 = vunpack.c.h.b16 %v3064
      %v3110 = vunpack.c.l.b16 %v3065
      %v3111 = vunpack.c.h.b16 %v3065
      %v3112 = vunpack.c.l.b16 %v3066
      %v3113 = vunpack.c.h.b16 %v3066
      %v3114 = vunpack.c.l.b16 %v3067
      %v3115 = vunpack.c.h.b16 %v3067
      %v3116 = vpack.c.b16 %v3084, %v3084
      %v3117 = vpack.c.b16 %v3085, %v3085
      %v3118 = vpack.c.b16 %v3086, %v3086
      %v3119 = vpack.c.b16 %v3087, %v3087
      %v3120 = vpack.c.b16 %v3088, %v3088
      %v3121 = vpack.c.b16 %v3089, %v3089
      %v3122 = vpack.c.b16 %v3090, %v3090
      %v3123 = vpack.c.b16 %v3091, %v3091
      %v3124 = vpack.c.b16 %v3092, %v3092
      %v3125 = vpack.c.b16 %v3093, %v3093
      %v3126 = vpack.c.b16 %v3094, %v3094
      %v3127 = vpack.c.b16 %v3095, %v3095
      %v3128 = vpack.c.b16 %v3096, %v3096
      %v3129 = vpack.c.b16 %v3097, %v3097
      %v3130 = vpack.c.b16 %v3098, %v3098
      %v3131 = vpack.c.b16 %v3099, %v3099
      %v3132 = vpack.c.b16 %v3100, %v3100
      %v3133 = vpack.c.b16 %v3101, %v3101
      %v3134 = vpack.c.b16 %v3102, %v3102
      %v3135 = vpack.c.b16 %v3103, %v3103
      %v3136 = vpack.c.b16 %v3104, %v3104
      %v3137 = vpack.c.b16 %v3105, %v3105
      %v3138 = vpack.c.b16 %v3106, %v3106
      %v3139 = vpack.c.b16 %v3107, %v3107
      %v3140 = vpack.c.b16 %v3108, %v3108
      %v3141 = vpack.c.b16 %v3109, %v3109
      %v3142 = vpack.c.b16 %v3110, %v3110
      %v3143 = vpack.c.b16 %v3111, %v3111
      %v3144 = vpack.c.b16 %v3112, %v3112
      %v3145 = vpack.c.b16 %v3113, %v3113
      %v3146 = vpack.c.b16 %v3114, %v3114
      %v3147 = vpack.c.b16 %v3115, %v3115
      %vm3180 = vcmask 60416
      %3181 = vst.msk [vmem:[%s273] sm:$0xf] %vm3180, %v3116
      %3182 = vst.msk [vmem:[%s273 + $0x4] sm:$0xf] %vm3180, %v3117
      %3183 = vst.msk [vmem:[%s273 + $0x8] sm:$0xf] %vm3180, %v3118
      %3184 = vst.msk [vmem:[%s273 + $0xc] sm:$0xf] %vm3180, %v3119
      %3185 = vst.msk [vmem:[%s273 + $0x10] sm:$0xf] %vm3180, %v3120
      %3186 = vst.msk [vmem:[%s273 + $0x14] sm:$0xf] %vm3180, %v3121
      %3187 = vst.msk [vmem:[%s273 + $0x18] sm:$0xf] %vm3180, %v3122
      %3188 = vst.msk [vmem:[%s273 + $0x1c] sm:$0xf] %vm3180, %v3123
      %3189 = vst.msk [vmem:[%s273 + $0x20] sm:$0xf] %vm3180, %v3124
      %3190 = vst.msk [vmem:[%s273 + $0x24] sm:$0xf] %vm3180, %v3125
      %3191 = vst.msk [vmem:[%s273 + $0x28] sm:$0xf] %vm3180, %v3126
      %3192 = vst.msk [vmem:[%s273 + $0x2c] sm:$0xf] %vm3180, %v3127
      %3193 = vst.msk [vmem:[%s273 + $0x30] sm:$0xf] %vm3180, %v3128
      %3194 = vst.msk [vmem:[%s273 + $0x34] sm:$0xf] %vm3180, %v3129
      %3195 = vst.msk [vmem:[%s273 + $0x38] sm:$0xf] %vm3180, %v3130
      %3196 = vst.msk [vmem:[%s273 + $0x3c] sm:$0xf] %vm3180, %v3131
      %3197 = vst.msk [vmem:[%s273 + $0x40] sm:$0xf] %vm3180, %v3132
      %3198 = vst.msk [vmem:[%s273 + $0x44] sm:$0xf] %vm3180, %v3133
      %3199 = vst.msk [vmem:[%s273 + $0x48] sm:$0xf] %vm3180, %v3134
      %3200 = vst.msk [vmem:[%s273 + $0x4c] sm:$0xf] %vm3180, %v3135
      %3201 = vst.msk [vmem:[%s273 + $0x50] sm:$0xf] %vm3180, %v3136
      %3202 = vst.msk [vmem:[%s273 + $0x54] sm:$0xf] %vm3180, %v3137
      %3203 = vst.msk [vmem:[%s273 + $0x58] sm:$0xf] %vm3180, %v3138
      %3204 = vst.msk [vmem:[%s273 + $0x5c] sm:$0xf] %vm3180, %v3139
      %3205 = vst.msk [vmem:[%s273 + $0x60] sm:$0xf] %vm3180, %v3140
      %3206 = vst.msk [vmem:[%s273 + $0x64] sm:$0xf] %vm3180, %v3141
      %3207 = vst.msk [vmem:[%s273 + $0x68] sm:$0xf] %vm3180, %v3142
      %3208 = vst.msk [vmem:[%s273 + $0x6c] sm:$0xf] %vm3180, %v3143
      %3209 = vst.msk [vmem:[%s273 + $0x70] sm:$0xf] %vm3180, %v3144
      %3210 = vst.msk [vmem:[%s273 + $0x74] sm:$0xf] %vm3180, %v3145
      %3211 = vst.msk [vmem:[%s273 + $0x78] sm:$0xf] %vm3180, %v3146
      %3212 = vst.msk [vmem:[%s273 + $0x7c] sm:$0xf] %vm3180, %v3147
      %p3213 = scmp.lt.s32.totalorder %s21, 1
      %s3214 = scalar_select %p3213, %s21, 1
      %p3215 = scmp.lt.s32.totalorder %s22, 0
      %s3216 = scalar_select %p3215, %s22, 0
      %s3217 = smul.addr %s3214, 32
      %s3218 = sadd.s32 %s3216, %s3217
      %s3219 = smul.addr %s3218, 4
      %s3220 = scalar_lea.vmem %s4, %s3219
      %p3221 = scmp.lt.s32.totalorder %s21, 1
      %s3222 = scalar_select %p3221, %s21, 1
      %p3223 = scmp.lt.s32.totalorder %s22, 0
      %s3224 = scalar_select %p3223, %s22, 0
      %s3225 = sadd.s32 %s3224, %s3222
      %s3226 = smul.addr %s3225, 2
      %s3227 = scalar_lea.vmem %s5, %s3226
      // Predicated region
      $region41: #{vgg_block_forward.4} parent=35 // pred_check
        %p3228 = pneg %p143
      $region42: #{vgg_block_forward.4} parent=35 // pred_check_branch
        %3230 = sbr.rel (%p3228) target = $region44
      $region43: #{vgg_block_forward.4} parent=35 // pred_region
        _
      $region44: #{vgg_block_forward.4} parent=35 // pred_fallthru
        _
      // Predicated region
      $region45: #{vgg_block_forward.4} parent=35 // pred_check
        %p3231 = pneg %p171
      $region46: #{vgg_block_forward.4} parent=35 // pred_check_branch
        %3233 = sbr.rel (%p3231) target = $region48
      $region47: #{vgg_block_forward.4} parent=35 // pred_region
        _
      $region48: #{vgg_block_forward.4} parent=35 // pred_fallthru
        _
    $region36: #{vgg_block_forward.4} parent=5 // pred_fallthru
      _
    %p3234 = scmp.le.s32.totalorder 2, %s12
    // Predicated region
    $region49: #{vgg_block_forward.4} parent=5 // pred_check
      %p3235 = pneg %p3234
    $region50: #{vgg_block_forward.4} parent=5 // pred_check_branch
      %3237 = sbr.rel (%p3235) target = $region52
    $region51: #{vgg_block_forward.4} parent=5 // pred_region
      %s3238 = ssub.s32 %s12, 2
      // Predicated region
      $region53: #{vgg_block_forward.4} parent=51 // pred_check
        %p3239 = pneg %p149
      $region54: #{vgg_block_forward.4} parent=51 // pred_check_branch
        %3241 = sbr.rel (%p3239) target = $region56
      $region55: #{vgg_block_forward.4} parent=51 // pred_region
        %p3242 = scmp.lt.s32.totalorder %s23, 1
        %s3243 = scalar_select %p3242, %s23, 1
        %p3244 = scmp.lt.s32.totalorder %s24, 0
        %s3245 = scalar_select %p3244, %s24, 0
        %s3246 = smul.addr %s3243, 32
        %s3247 = sadd.s32 %s3245, %s3246
        %s3248 = smul.addr %s3247, 4
        %s3249 = scalar_lea.vmem %s4, %s3248
      $region56: #{vgg_block_forward.4} parent=51 // pred_fallthru
        _
      // Predicated region
      $region57: #{vgg_block_forward.4} parent=51 // pred_check
        %p3250 = pneg %p177
      $region58: #{vgg_block_forward.4} parent=51 // pred_check_branch
        %3252 = sbr.rel (%p3250) target = $region60
      $region59: #{vgg_block_forward.4} parent=51 // pred_region
        %p3253 = scmp.lt.s32.totalorder %s23, 1
        %s3254 = scalar_select %p3253, %s23, 1
        %p3255 = scmp.lt.s32.totalorder %s24, 0
        %s3256 = scalar_select %p3255, %s24, 0
        %s3257 = sadd.s32 %s3256, %s3254
        %s3258 = smul.addr %s3257, 2
        %s3259 = scalar_lea.vmem %s5, %s3258
      $region60: #{vgg_block_forward.4} parent=51 // pred_fallthru
        _
    $region52: #{vgg_block_forward.4} parent=5 // pred_fallthru
      _
  $region6: #{vgg_block_forward.4} parent=0 // loop_footer
    %s16 = sadd.s32 1, %s12
  $region7: #{vgg_block_forward.4} parent=0 // loop_footer_branch
    %11 = sbr.rel target = $region3
  $region8: #{vgg_block_forward.4} parent=0 // loop_exit
    _

</llo_original>
